<compile_context>
chip_gen: v7x
topology: tpu7x:2x2x1
jax: 0.10.0
libtpu: 0.0.40
codegen_flags: <defaults>
</compile_context>

<pallas_src>
import functools

import jax
import jax.numpy as jnp
from jax.experimental import pallas as pl
from jax.experimental.pallas import tpu as pltpu


def _nerf_kernel(
    pos_ref, vd_ref,
    wp, b1, ws, bs, w9s, w9f, b9f, w10f, w10v, b10, w11t, bhead,
    out_ref,
):
    f32 = jnp.float32
    cdt = pos_ref.dtype                     # compute dtype (bf16)
    dot = functools.partial(jnp.dot, preferred_element_type=f32)
    relu = lambda v: jnp.maximum(v, 0.0)

    pos = pos_ref[...]                       # (tile_n, pos_dim)  bf16
    vd = vd_ref[...]                         # (tile_n, vd_dim)   bf16
    tile_n = pos.shape[0]

    # linear1
    x = relu(dot(pos, wp[0]) + b1[...]).astype(cdt)
    # linear2 .. linear5 (stacked weights ws[0..3], biases bs[0..3])
    for i in range(4):
        x = relu(dot(x, ws[i]) + bs[i]).astype(cdt)
    # linear6 on concat([x, pos]):  x @ W6_x + pos @ W6_pos
    x = relu(dot(x, ws[4]) + dot(pos, wp[1]) + bs[4]).astype(cdt)
    # linear7
    x = relu(dot(x, ws[5]) + bs[5]).astype(cdt)
    # linear8 -- keep the f32 activation around for the sigma head.
    x8f = relu(dot(x, ws[6]) + bs[6])
    x8 = x8f.astype(cdt)

    bh = bhead[...]                          # (1, 4) f32: [b9_sigma, b11_rgb]

    # linear9 sigma head (output width 1): VPU multiply + XLU lane-reduce
    # instead of a 1/256-lane-utilized MXU pass.  w9s is the (1, 256) row vector.
    sigma = relu(jnp.sum(x8f * w9s[...], axis=-1, keepdims=True) + bh[:, 0:1])

    # linear9 feature head (MXU, no activation in the torch module).
    feat = (dot(x8, w9f[...]) + b9f[...]).astype(cdt)
    # linear10 on concat([feat, view_dir]):  feat @ W10_f + vd @ W10_v
    h = relu(dot(feat, w10f[...]) + dot(vd, w10v[...]) + b10[...])   # (tile_n, 128) f32

    # linear11 (128 -> 3): VPU multiply + XLU lane-reduce per output channel,
    # replacing the previously zero-padded 4-lane MXU pass.
    w11 = w11t[...]                          # (3, 128) f32
    c0 = jnp.sum(h * w11[0:1, :], axis=-1, keepdims=True) + bh[:, 1:2]
    c1 = jnp.sum(h * w11[1:2, :], axis=-1, keepdims=True) + bh[:, 2:3]
    c2 = jnp.sum(h * w11[2:3, :], axis=-1, keepdims=True) + bh[:, 3:4]

    # Merge sigma (lane 0) and radiance (lanes 1..3) into one lane-packed
    # output block -> a single writeback DMA per grid step.
    lane = jax.lax.broadcasted_iota(jnp.int32, (tile_n, 4), 1)
    rad_pre = jnp.where(lane == 1, c0, jnp.where(lane == 2, c1, c2))
    rad = jax.nn.sigmoid(rad_pre)
    out = jnp.where(lane == 0, sigma, rad)
    out_ref[...] = out.astype(out_ref.dtype)


def _select_tile(n, tile_n):
    """Clamp tile to a multiple of 128 and prefer an even number of grid steps
    (balanced megacore sharding on v7x)."""
    max_tile = pl.cdiv(n, 128) * 128
    tile_n = int(max(128, min(int(tile_n), max_tile)))
    steps = pl.cdiv(n, tile_n)
    if steps > 1 and steps % 2 == 1:
        tile_n = int(max(128, pl.cdiv(pl.cdiv(n, steps + 1), 128) * 128))
    return tile_n


def pack_nerf_params(params, compute_dtype=jnp.bfloat16):
    """One-time packing of parameters for the kernel (hoisted out of forward)."""
    cdt = compute_dtype
    f32 = jnp.float32
    wp = jnp.stack([params["w1"], params["w6p"]]).astype(cdt)       # (2, pos_dim, 256)
    ws = jnp.stack([params[k] for k in
                    ("w2", "w3", "w4", "w5", "w6x", "w7", "w8")]).astype(cdt)
    bs = jnp.stack([params[k] for k in
                    ("b2", "b3", "b4", "b5", "b6", "b7", "b8")]).astype(f32)
    bhead = jnp.concatenate([params["b9s"], params["b11"]], axis=1).astype(f32)  # (1, 4)
    return {
        "wp": wp,
        "b1": params["b1"].astype(f32),
        "ws": ws,
        "bs": bs,
        "w9s": params["w9s"].T.astype(f32),          # (1, 256) VPU sigma head
        "w9f": params["w9f"].astype(cdt),
        "b9f": params["b9f"].astype(f32),
        "w10f": params["w10f"].astype(cdt),
        "w10v": params["w10v"].astype(cdt),
        "b10": params["b10"].astype(f32),
        "w11t": params["w11"].T.astype(f32),          # (3, 128) VPU rgb head
        "bhead": bhead,
    }


_PARAM_ORDER = ("wp", "b1", "ws", "bs", "w9s", "w9f", "b9f",
                "w10f", "w10v", "b10", "w11t", "bhead")


@functools.partial(jax.jit, static_argnames=("tile_n",))
def nerf_forward(pos, view_dir, packed, *, tile_n=2048):
    """pos: [N, pos_dim], view_dir: [N, vd_dim] -> (sigma [N,1], radiance [N,3]).

    `packed` is the output of pack_nerf_params().  Keep tile_n <= 4096 on v7x
    (64 MiB VMEM); v5e/v6e (128 MiB) can push higher if per-step overhead shows.
    """
    n, pos_dim = pos.shape
    vd_dim = view_dir.shape[1]
    cdt = packed["ws"].dtype

    tile_n = _select_tile(n, tile_n)
    n_pad = pl.cdiv(n, tile_n) * tile_n

    pos_c = pos.astype(cdt)
    vd_c = view_dir.astype(cdt)
    if n_pad != n:
        pos_c = jnp.pad(pos_c, ((0, n_pad - n), (0, 0)))
        vd_c = jnp.pad(vd_c, ((0, n_pad - n), (0, 0)))

    param_list = [packed[k] for k in _PARAM_ORDER]
    grid = (n_pad // tile_n,)

    def row_spec(d):
        return pl.BlockSpec((tile_n, d), lambda i: (i, 0))

    def full_spec(arr):
        nd = arr.ndim
        return pl.BlockSpec(arr.shape, lambda i: (0,) * nd)

    in_specs = [row_spec(pos_dim), row_spec(vd_dim)]
    in_specs += [full_spec(p) for p in param_list]
    out_specs = pl.BlockSpec((tile_n, 4), lambda i: (i, 0))

    feat_dim = packed["w10f"].shape[0]
    macs = (pos_dim * 256 + 4 * 256 * 256 + (256 + pos_dim) * 256
            + 2 * 256 * 256 + 256 * (feat_dim + 1)
            + (feat_dim + vd_dim) * 128 + 128 * 3)
    param_bytes = sum(int(p.size) * p.dtype.itemsize for p in param_list)
    io_bytes = (int(pos_c.size) * pos_c.dtype.itemsize
                + int(vd_c.size) * vd_c.dtype.itemsize
                + n_pad * 4 * 4)
    cost = pl.CostEstimate(
        flops=int(2 * macs * n_pad),
        transcendentals=int(3 * n_pad),
        bytes_accessed=int(param_bytes + io_bytes),
    )

    out = pl.pallas_call(
        _nerf_kernel,
        out_shape=jax.ShapeDtypeStruct((n_pad, 4), jnp.float32),
        grid_spec=pltpu.PrefetchScalarGridSpec(
            num_scalar_prefetch=0,
            grid=grid,
            in_specs=in_specs,
            out_specs=out_specs,
        ),
        compiler_params=pltpu.CompilerParams(
            dimension_semantics=("parallel",),
            vmem_limit_bytes=48 * 1024 * 1024,
        ),
        cost_estimate=cost,
    )(pos_c, vd_c, *param_list)

    sigma = out[:n, 0:1]
    radiance = out[:n, 1:4]
    return sigma, radiance


def init_nerf_params(key, pos_dim, view_dir_dim, feat_dim=256):
    """Deterministic synthetic init. Weights stored as [in, out] (PyTorch W^T)."""
    def linear(key, fan_in, fan_out):
        kw, kb = jax.random.split(key)
        bound = 1.0 / jnp.sqrt(fan_in)
        w = jax.random.uniform(kw, (fan_in, fan_out), jnp.float32, -bound, bound)
        b = jax.random.uniform(kb, (1, fan_out), jnp.float32, -bound, bound)
        return w, b

    keys = jax.random.split(key, 11)
    w1, b1 = linear(keys[0], pos_dim, 256)
    w2, b2 = linear(keys[1], 256, 256)
    w3, b3 = linear(keys[2], 256, 256)
    w4, b4 = linear(keys[3], 256, 256)
    w5, b5 = linear(keys[4], 256, 256)
    w6, b6 = linear(keys[5], 256 + pos_dim, 256)
    w7, b7 = linear(keys[6], 256, 256)
    w8, b8 = linear(keys[7], 256, 256)
    w9, b9 = linear(keys[8], 256, feat_dim + 1)
    w10, b10 = linear(keys[9], feat_dim + view_dir_dim, 128)
    w11, b11 = linear(keys[10], 128, 3)

    return {
        "w1": w1, "b1": b1, "w2": w2, "b2": b2, "w3": w3, "b3": b3,
        "w4": w4, "b4": b4, "w5": w5, "b5": b5,
        # linear6: input is concat([x(256), pos(pos_dim)])
        "w6x": w6[:256, :], "w6p": w6[256:, :], "b6": b6,
        "w7": w7, "b7": b7, "w8": w8, "b8": b8,
        # linear9: column 0 -> sigma, columns 1: -> feature vector
        "w9s": w9[:, :1], "b9s": b9[:, :1],
        "w9f": w9[:, 1:], "b9f": b9[:, 1:],
        # linear10: input is concat([feat(feat_dim), view_dir(view_dir_dim)])
        "w10f": w10[:feat_dim, :], "w10v": w10[feat_dim:, :], "b10": b10,
        "w11": w11, "b11": b11,
    }


def nerf_forward_ref(pos, view_dir, params, compute_dtype=jnp.bfloat16):
    """Pure-JAX reference mirroring the kernel's mixed precision (bf16 operands,
    f32 accumulation, f32 sigma/rgb heads), for verification."""
    f32 = jnp.float32
    cdt = compute_dtype
    relu = lambda v: jnp.maximum(v, 0.0)

    def dot(a, b):
        return jnp.dot(a, b.astype(cdt), preferred_element_type=f32)

    p = pos.astype(cdt)
    v = view_dir.astype(cdt)

    x = relu(dot(p, params["w1"]) + params["b1"]).astype(cdt)
    x = relu(dot(x, params["w2"]) + params["b2"]).astype(cdt)
    x = relu(dot(x, params["w3"]) + params["b3"]).astype(cdt)
    x = relu(dot(x, params["w4"]) + params["b4"]).astype(cdt)
    x = relu(dot(x, params["w5"]) + params["b5"]).astype(cdt)
    x = relu(dot(x, params["w6x"]) + dot(p, params["w6p"]) + params["b6"]).astype(cdt)
    x = relu(dot(x, params["w7"]) + params["b7"]).astype(cdt)
    x8f = relu(dot(x, params["w8"]) + params["b8"])            # f32
    x8 = x8f.astype(cdt)
    sigma = relu(jnp.sum(x8f * params["w9s"].T.astype(f32), axis=-1, keepdims=True)
                 + params["b9s"])
    feat = (dot(x8, params["w9f"]) + params["b9f"]).astype(cdt)
    h = relu(dot(feat, params["w10f"]) + dot(v, params["w10v"]) + params["b10"])  # f32
    rad = jax.nn.sigmoid(jnp.dot(h, params["w11"].astype(f32)) + params["b11"])
    return sigma, rad


if __name__ == "__main__":
    pos_dim = 24
    view_dir_dim = 12
    feat_dim = 256

    key = jax.random.PRNGKey(0)
    k_pos, k_vd, k_params = jax.random.split(key, 3)
    params = init_nerf_params(k_params, pos_dim, view_dir_dim, feat_dim)
    packed = pack_nerf_params(params)          # one-time packing (review item 11)

    # Small case (200 is intentionally not a multiple of the tile -> padding).
    num_sample = 200
    pos = jax.random.normal(k_pos, (num_sample, pos_dim), jnp.float32)
    view_dir = jax.random.normal(k_vd, (num_sample, view_dir_dim), jnp.float32)

    sigma, radiance = nerf_forward(pos, view_dir, packed)
    jax.block_until_ready((sigma, radiance))

    sigma_ref, rad_ref = nerf_forward_ref(pos, view_dir, params)
    assert sigma.shape == (num_sample, 1) and radiance.shape == (num_sample, 3)
    assert jnp.allclose(sigma, sigma_ref, atol=3e-2, rtol=3e-2)
    assert jnp.allclose(radiance, rad_ref, atol=3e-2, rtol=3e-2)

    # Larger case exercising a multi-step grid: 1500 rows with tile_n=512 would
    # give 3 steps; the even-grid adjustment shrinks the tile to 384 -> 4 steps.
    num_sample2 = 1500
    k2a, k2b = jax.random.split(jax.random.PRNGKey(1))
    pos2 = jax.random.normal(k2a, (num_sample2, pos_dim), jnp.float32)
    vd2 = jax.random.normal(k2b, (num_sample2, view_dir_dim), jnp.float32)
    sigma2, rad2 = nerf_forward(pos2, vd2, packed, tile_n=512)
    jax.block_until_ready((sigma2, rad2))
    s2_ref, r2_ref = nerf_forward_ref(pos2, vd2, params)
    assert jnp.allclose(sigma2, s2_ref, atol=3e-2, rtol=3e-2)
    assert jnp.allclose(rad2, r2_ref, atol=3e-2, rtol=3e-2)

    print("KERNEL_OK")
</pallas_src>

<mosaic_0001>
module attributes {stable_mosaic.version = 11 : i64} {
  func.func @_nerf_kernel(%arg0: i32, %arg1: memref<256x24xbf16, #tpu.memory_space<vmem>>, %arg2: memref<256x12xbf16, #tpu.memory_space<vmem>>, %arg3: memref<2x24x256xbf16, #tpu.memory_space<vmem>>, %arg4: memref<1x256xf32, #tpu.memory_space<vmem>>, %arg5: memref<7x256x256xbf16, #tpu.memory_space<vmem>>, %arg6: memref<7x1x256xf32, #tpu.memory_space<vmem>>, %arg7: memref<1x256xf32, #tpu.memory_space<vmem>>, %arg8: memref<256x256xbf16, #tpu.memory_space<vmem>>, %arg9: memref<1x256xf32, #tpu.memory_space<vmem>>, %arg10: memref<256x128xbf16, #tpu.memory_space<vmem>>, %arg11: memref<12x128xbf16, #tpu.memory_space<vmem>>, %arg12: memref<1x128xf32, #tpu.memory_space<vmem>>, %arg13: memref<3x128xf32, #tpu.memory_space<vmem>>, %arg14: memref<1x4xf32, #tpu.memory_space<vmem>>, %arg15: memref<256x4xf32, #tpu.memory_space<vmem>>) attributes {dimension_semantics = [#tpu.dimension_semantics<parallel>], iteration_bounds = array<i64: 1>, scalar_prefetch = 0 : i64, scratch_operands = 0 : i64, tpu.core_type = #tpu.core_type<tc>, window_params = [{transform_indices = @transform_0, window_bounds = array<i64: 256, 24>}, {transform_indices = @transform_1, window_bounds = array<i64: 256, 12>}, {pipeline_mode = #tpu.pipeline_mode<synchronous>, transform_indices = @transform_2, window_bounds = array<i64: 2, 24, 256>}, {pipeline_mode = #tpu.pipeline_mode<synchronous>, transform_indices = @transform_3, window_bounds = array<i64: 1, 256>}, {pipeline_mode = #tpu.pipeline_mode<synchronous>, transform_indices = @transform_4, window_bounds = array<i64: 7, 256, 256>}, {pipeline_mode = #tpu.pipeline_mode<synchronous>, transform_indices = @transform_5, window_bounds = array<i64: 7, 1, 256>}, {pipeline_mode = #tpu.pipeline_mode<synchronous>, transform_indices = @transform_6, window_bounds = array<i64: 1, 256>}, {pipeline_mode = #tpu.pipeline_mode<synchronous>, transform_indices = @transform_7, window_bounds = array<i64: 256, 256>}, {pipeline_mode = #tpu.pipeline_mode<synchronous>, transform_indices = @transform_8, window_bounds = array<i64: 1, 256>}, {pipeline_mode = #tpu.pipeline_mode<synchronous>, transform_indices = @transform_9, window_bounds = array<i64: 256, 128>}, {pipeline_mode = #tpu.pipeline_mode<synchronous>, transform_indices = @transform_10, window_bounds = array<i64: 12, 128>}, {pipeline_mode = #tpu.pipeline_mode<synchronous>, transform_indices = @transform_11, window_bounds = array<i64: 1, 128>}, {pipeline_mode = #tpu.pipeline_mode<synchronous>, transform_indices = @transform_12, window_bounds = array<i64: 3, 128>}, {pipeline_mode = #tpu.pipeline_mode<synchronous>, transform_indices = @transform_13, window_bounds = array<i64: 1, 4>}, {transform_indices = @transform_14, window_bounds = array<i64: 256, 4>}]} {
    %c0 = arith.constant 0 : index
    %c0_0 = arith.constant 0 : index
    %0 = vector.load %arg1[%c0, %c0_0] : memref<256x24xbf16, #tpu.memory_space<vmem>>, vector<256x24xbf16>
    %c0_1 = arith.constant 0 : index
    %c0_2 = arith.constant 0 : index
    %1 = vector.load %arg2[%c0_1, %c0_2] : memref<256x12xbf16, #tpu.memory_space<vmem>>, vector<256x12xbf16>
    %c0_3 = arith.constant 0 : index
    %c0_4 = arith.constant 0 : index
    %c0_5 = arith.constant 0 : index
    %2 = vector.load %arg3[%c0_3, %c0_4, %c0_5] : memref<2x24x256xbf16, #tpu.memory_space<vmem>>, vector<1x24x256xbf16>
    %3 = vector.shape_cast %2 : vector<1x24x256xbf16> to vector<24x256xbf16>
    %cst = arith.constant dense<0.000000e+00> : vector<256x256xf32>
    %4 = tpu.matmul %0, %3, %cst {dimension_numbers = #tpu.dot_dimension_numbers<[1], [0], [0], [1], [0, 0, 1, 1], [], []>} : vector<256x24xbf16>, vector<24x256xbf16>, vector<256x256xf32> -> vector<256x256xf32>
    %c0_6 = arith.constant 0 : index
    %c0_7 = arith.constant 0 : index
    %5 = vector.load %arg4[%c0_6, %c0_7] : memref<1x256xf32, #tpu.memory_space<vmem>>, vector<1x256xf32>
    %6 = vector.broadcast %5 : vector<1x256xf32> to vector<256x256xf32>
    %7 = arith.addf %4, %6 : vector<256x256xf32>
    %cst_8 = arith.constant 0.000000e+00 : f32
    %8 = vector.broadcast %cst_8 : f32 to vector<256x256xf32>
    %9 = arith.maximumf %7, %8 : vector<256x256xf32>
    %10 = arith.truncf %9 : vector<256x256xf32> to vector<256x256xbf16>
    %c0_9 = arith.constant 0 : index
    %c0_10 = arith.constant 0 : index
    %c0_11 = arith.constant 0 : index
    %11 = vector.load %arg5[%c0_9, %c0_10, %c0_11] : memref<7x256x256xbf16, #tpu.memory_space<vmem>>, vector<1x256x256xbf16>
    %12 = vector.shape_cast %11 : vector<1x256x256xbf16> to vector<256x256xbf16>
    %cst_12 = arith.constant dense<0.000000e+00> : vector<256x256xf32>
    %13 = tpu.matmul %10, %12, %cst_12 {dimension_numbers = #tpu.dot_dimension_numbers<[1], [0], [0], [1], [0, 0, 1, 1], [], []>} : vector<256x256xbf16>, vector<256x256xbf16>, vector<256x256xf32> -> vector<256x256xf32>
    %c0_13 = arith.constant 0 : index
    %c0_14 = arith.constant 0 : index
    %c0_15 = arith.constant 0 : index
    %14 = vector.load %arg6[%c0_13, %c0_14, %c0_15] : memref<7x1x256xf32, #tpu.memory_space<vmem>>, vector<1x1x256xf32>
    %15 = vector.shape_cast %14 : vector<1x1x256xf32> to vector<1x256xf32>
    %16 = vector.broadcast %15 : vector<1x256xf32> to vector<256x256xf32>
    %17 = arith.addf %13, %16 : vector<256x256xf32>
    %cst_16 = arith.constant 0.000000e+00 : f32
    %18 = vector.broadcast %cst_16 : f32 to vector<256x256xf32>
    %19 = arith.maximumf %17, %18 : vector<256x256xf32>
    %20 = arith.truncf %19 : vector<256x256xf32> to vector<256x256xbf16>
    %c1 = arith.constant 1 : index
    %c0_17 = arith.constant 0 : index
    %c0_18 = arith.constant 0 : index
    %21 = vector.load %arg5[%c1, %c0_17, %c0_18] : memref<7x256x256xbf16, #tpu.memory_space<vmem>>, vector<1x256x256xbf16>
    %22 = vector.shape_cast %21 : vector<1x256x256xbf16> to vector<256x256xbf16>
    %cst_19 = arith.constant dense<0.000000e+00> : vector<256x256xf32>
    %23 = tpu.matmul %20, %22, %cst_19 {dimension_numbers = #tpu.dot_dimension_numbers<[1], [0], [0], [1], [0, 0, 1, 1], [], []>} : vector<256x256xbf16>, vector<256x256xbf16>, vector<256x256xf32> -> vector<256x256xf32>
    %c1_20 = arith.constant 1 : index
    %c0_21 = arith.constant 0 : index
    %c0_22 = arith.constant 0 : index
    %24 = vector.load %arg6[%c1_20, %c0_21, %c0_22] : memref<7x1x256xf32, #tpu.memory_space<vmem>>, vector<1x1x256xf32>
    %25 = vector.shape_cast %24 : vector<1x1x256xf32> to vector<1x256xf32>
    %26 = vector.broadcast %25 : vector<1x256xf32> to vector<256x256xf32>
    %27 = arith.addf %23, %26 : vector<256x256xf32>
    %cst_23 = arith.constant 0.000000e+00 : f32
    %28 = vector.broadcast %cst_23 : f32 to vector<256x256xf32>
    %29 = arith.maximumf %27, %28 : vector<256x256xf32>
    %30 = arith.truncf %29 : vector<256x256xf32> to vector<256x256xbf16>
    %c2 = arith.constant 2 : index
    %c0_24 = arith.constant 0 : index
    %c0_25 = arith.constant 0 : index
    %31 = vector.load %arg5[%c2, %c0_24, %c0_25] : memref<7x256x256xbf16, #tpu.memory_space<vmem>>, vector<1x256x256xbf16>
    %32 = vector.shape_cast %31 : vector<1x256x256xbf16> to vector<256x256xbf16>
    %cst_26 = arith.constant dense<0.000000e+00> : vector<256x256xf32>
    %33 = tpu.matmul %30, %32, %cst_26 {dimension_numbers = #tpu.dot_dimension_numbers<[1], [0], [0], [1], [0, 0, 1, 1], [], []>} : vector<256x256xbf16>, vector<256x256xbf16>, vector<256x256xf32> -> vector<256x256xf32>
    %c2_27 = arith.constant 2 : index
    %c0_28 = arith.constant 0 : index
    %c0_29 = arith.constant 0 : index
    %34 = vector.load %arg6[%c2_27, %c0_28, %c0_29] : memref<7x1x256xf32, #tpu.memory_space<vmem>>, vector<1x1x256xf32>
    %35 = vector.shape_cast %34 : vector<1x1x256xf32> to vector<1x256xf32>
    %36 = vector.broadcast %35 : vector<1x256xf32> to vector<256x256xf32>
    %37 = arith.addf %33, %36 : vector<256x256xf32>
    %cst_30 = arith.constant 0.000000e+00 : f32
    %38 = vector.broadcast %cst_30 : f32 to vector<256x256xf32>
    %39 = arith.maximumf %37, %38 : vector<256x256xf32>
    %40 = arith.truncf %39 : vector<256x256xf32> to vector<256x256xbf16>
    %c3 = arith.constant 3 : index
    %c0_31 = arith.constant 0 : index
    %c0_32 = arith.constant 0 : index
    %41 = vector.load %arg5[%c3, %c0_31, %c0_32] : memref<7x256x256xbf16, #tpu.memory_space<vmem>>, vector<1x256x256xbf16>
    %42 = vector.shape_cast %41 : vector<1x256x256xbf16> to vector<256x256xbf16>
    %cst_33 = arith.constant dense<0.000000e+00> : vector<256x256xf32>
    %43 = tpu.matmul %40, %42, %cst_33 {dimension_numbers = #tpu.dot_dimension_numbers<[1], [0], [0], [1], [0, 0, 1, 1], [], []>} : vector<256x256xbf16>, vector<256x256xbf16>, vector<256x256xf32> -> vector<256x256xf32>
    %c3_34 = arith.constant 3 : index
    %c0_35 = arith.constant 0 : index
    %c0_36 = arith.constant 0 : index
    %44 = vector.load %arg6[%c3_34, %c0_35, %c0_36] : memref<7x1x256xf32, #tpu.memory_space<vmem>>, vector<1x1x256xf32>
    %45 = vector.shape_cast %44 : vector<1x1x256xf32> to vector<1x256xf32>
    %46 = vector.broadcast %45 : vector<1x256xf32> to vector<256x256xf32>
    %47 = arith.addf %43, %46 : vector<256x256xf32>
    %cst_37 = arith.constant 0.000000e+00 : f32
    %48 = vector.broadcast %cst_37 : f32 to vector<256x256xf32>
    %49 = arith.maximumf %47, %48 : vector<256x256xf32>
    %50 = arith.truncf %49 : vector<256x256xf32> to vector<256x256xbf16>
    %c4 = arith.constant 4 : index
    %c0_38 = arith.constant 0 : index
    %c0_39 = arith.constant 0 : index
    %51 = vector.load %arg5[%c4, %c0_38, %c0_39] : memref<7x256x256xbf16, #tpu.memory_space<vmem>>, vector<1x256x256xbf16>
    %52 = vector.shape_cast %51 : vector<1x256x256xbf16> to vector<256x256xbf16>
    %cst_40 = arith.constant dense<0.000000e+00> : vector<256x256xf32>
    %53 = tpu.matmul %50, %52, %cst_40 {dimension_numbers = #tpu.dot_dimension_numbers<[1], [0], [0], [1], [0, 0, 1, 1], [], []>} : vector<256x256xbf16>, vector<256x256xbf16>, vector<256x256xf32> -> vector<256x256xf32>
    %c1_41 = arith.constant 1 : index
    %c0_42 = arith.constant 0 : index
    %c0_43 = arith.constant 0 : index
    %54 = vector.load %arg3[%c1_41, %c0_42, %c0_43] : memref<2x24x256xbf16, #tpu.memory_space<vmem>>, vector<1x24x256xbf16>
    %55 = vector.shape_cast %54 : vector<1x24x256xbf16> to vector<24x256xbf16>
    %cst_44 = arith.constant dense<0.000000e+00> : vector<256x256xf32>
    %56 = tpu.matmul %0, %55, %cst_44 {dimension_numbers = #tpu.dot_dimension_numbers<[1], [0], [0], [1], [0, 0, 1, 1], [], []>} : vector<256x24xbf16>, vector<24x256xbf16>, vector<256x256xf32> -> vector<256x256xf32>
    %57 = arith.addf %53, %56 : vector<256x256xf32>
    %c4_45 = arith.constant 4 : index
    %c0_46 = arith.constant 0 : index
    %c0_47 = arith.constant 0 : index
    %58 = vector.load %arg6[%c4_45, %c0_46, %c0_47] : memref<7x1x256xf32, #tpu.memory_space<vmem>>, vector<1x1x256xf32>
    %59 = vector.shape_cast %58 : vector<1x1x256xf32> to vector<1x256xf32>
    %60 = vector.broadcast %59 : vector<1x256xf32> to vector<256x256xf32>
    %61 = arith.addf %57, %60 : vector<256x256xf32>
    %cst_48 = arith.constant 0.000000e+00 : f32
    %62 = vector.broadcast %cst_48 : f32 to vector<256x256xf32>
    %63 = arith.maximumf %61, %62 : vector<256x256xf32>
    %64 = arith.truncf %63 : vector<256x256xf32> to vector<256x256xbf16>
    %c5 = arith.constant 5 : index
    %c0_49 = arith.constant 0 : index
    %c0_50 = arith.constant 0 : index
    %65 = vector.load %arg5[%c5, %c0_49, %c0_50] : memref<7x256x256xbf16, #tpu.memory_space<vmem>>, vector<1x256x256xbf16>
    %66 = vector.shape_cast %65 : vector<1x256x256xbf16> to vector<256x256xbf16>
    %cst_51 = arith.constant dense<0.000000e+00> : vector<256x256xf32>
    %67 = tpu.matmul %64, %66, %cst_51 {dimension_numbers = #tpu.dot_dimension_numbers<[1], [0], [0], [1], [0, 0, 1, 1], [], []>} : vector<256x256xbf16>, vector<256x256xbf16>, vector<256x256xf32> -> vector<256x256xf32>
    %c5_52 = arith.constant 5 : index
    %c0_53 = arith.constant 0 : index
    %c0_54 = arith.constant 0 : index
    %68 = vector.load %arg6[%c5_52, %c0_53, %c0_54] : memref<7x1x256xf32, #tpu.memory_space<vmem>>, vector<1x1x256xf32>
    %69 = vector.shape_cast %68 : vector<1x1x256xf32> to vector<1x256xf32>
    %70 = vector.broadcast %69 : vector<1x256xf32> to vector<256x256xf32>
    %71 = arith.addf %67, %70 : vector<256x256xf32>
    %cst_55 = arith.constant 0.000000e+00 : f32
    %72 = vector.broadcast %cst_55 : f32 to vector<256x256xf32>
    %73 = arith.maximumf %71, %72 : vector<256x256xf32>
    %74 = arith.truncf %73 : vector<256x256xf32> to vector<256x256xbf16>
    %c6 = arith.constant 6 : index
    %c0_56 = arith.constant 0 : index
    %c0_57 = arith.constant 0 : index
    %75 = vector.load %arg5[%c6, %c0_56, %c0_57] : memref<7x256x256xbf16, #tpu.memory_space<vmem>>, vector<1x256x256xbf16>
    %76 = vector.shape_cast %75 : vector<1x256x256xbf16> to vector<256x256xbf16>
    %cst_58 = arith.constant dense<0.000000e+00> : vector<256x256xf32>
    %77 = tpu.matmul %74, %76, %cst_58 {dimension_numbers = #tpu.dot_dimension_numbers<[1], [0], [0], [1], [0, 0, 1, 1], [], []>} : vector<256x256xbf16>, vector<256x256xbf16>, vector<256x256xf32> -> vector<256x256xf32>
    %c6_59 = arith.constant 6 : index
    %c0_60 = arith.constant 0 : index
    %c0_61 = arith.constant 0 : index
    %78 = vector.load %arg6[%c6_59, %c0_60, %c0_61] : memref<7x1x256xf32, #tpu.memory_space<vmem>>, vector<1x1x256xf32>
    %79 = vector.shape_cast %78 : vector<1x1x256xf32> to vector<1x256xf32>
    %80 = vector.broadcast %79 : vector<1x256xf32> to vector<256x256xf32>
    %81 = arith.addf %77, %80 : vector<256x256xf32>
    %cst_62 = arith.constant 0.000000e+00 : f32
    %82 = vector.broadcast %cst_62 : f32 to vector<256x256xf32>
    %83 = arith.maximumf %81, %82 : vector<256x256xf32>
    %84 = arith.truncf %83 : vector<256x256xf32> to vector<256x256xbf16>
    %c0_63 = arith.constant 0 : index
    %c0_64 = arith.constant 0 : index
    %85 = vector.load %arg14[%c0_63, %c0_64] : memref<1x4xf32, #tpu.memory_space<vmem>>, vector<1x4xf32>
    %c0_65 = arith.constant 0 : index
    %c0_66 = arith.constant 0 : index
    %86 = vector.load %arg7[%c0_65, %c0_66] : memref<1x256xf32, #tpu.memory_space<vmem>>, vector<1x256xf32>
    %87 = vector.broadcast %86 : vector<1x256xf32> to vector<256x256xf32>
    %88 = arith.mulf %83, %87 : vector<256x256xf32>
    %cst_67 = arith.constant dense<0.000000e+00> : vector<256xf32>
    %89 = vector.multi_reduction <add>, %88, %cst_67 [1] : vector<256x256xf32> to vector<256xf32>
    %90 = vector.shape_cast %89 : vector<256xf32> to vector<256x1xf32>
    %91 = vector.extract_strided_slice %85 {offsets = [0, 0], sizes = [1, 1], strides = [1, 1]} : vector<1x4xf32> to vector<1x1xf32>
    %92 = vector.broadcast %91 : vector<1x1xf32> to vector<256x1xf32>
    %93 = arith.addf %90, %92 : vector<256x1xf32>
    %cst_68 = arith.constant 0.000000e+00 : f32
    %94 = vector.broadcast %cst_68 : f32 to vector<256x1xf32>
    %95 = arith.maximumf %93, %94 : vector<256x1xf32>
    %c0_69 = arith.constant 0 : index
    %c0_70 = arith.constant 0 : index
    %96 = vector.load %arg8[%c0_69, %c0_70] : memref<256x256xbf16, #tpu.memory_space<vmem>>, vector<256x256xbf16>
    %cst_71 = arith.constant dense<0.000000e+00> : vector<256x256xf32>
    %97 = tpu.matmul %84, %96, %cst_71 {dimension_numbers = #tpu.dot_dimension_numbers<[1], [0], [0], [1], [0, 0, 1, 1], [], []>} : vector<256x256xbf16>, vector<256x256xbf16>, vector<256x256xf32> -> vector<256x256xf32>
    %c0_72 = arith.constant 0 : index
    %c0_73 = arith.constant 0 : index
    %98 = vector.load %arg9[%c0_72, %c0_73] : memref<1x256xf32, #tpu.memory_space<vmem>>, vector<1x256xf32>
    %99 = vector.broadcast %98 : vector<1x256xf32> to vector<256x256xf32>
    %100 = arith.addf %97, %99 : vector<256x256xf32>
    %101 = arith.truncf %100 : vector<256x256xf32> to vector<256x256xbf16>
    %c0_74 = arith.constant 0 : index
    %c0_75 = arith.constant 0 : index
    %102 = vector.load %arg10[%c0_74, %c0_75] : memref<256x128xbf16, #tpu.memory_space<vmem>>, vector<256x128xbf16>
    %cst_76 = arith.constant dense<0.000000e+00> : vector<256x128xf32>
    %103 = tpu.matmul %101, %102, %cst_76 {dimension_numbers = #tpu.dot_dimension_numbers<[1], [0], [0], [1], [0, 0, 1, 1], [], []>} : vector<256x256xbf16>, vector<256x128xbf16>, vector<256x128xf32> -> vector<256x128xf32>
    %c0_77 = arith.constant 0 : index
    %c0_78 = arith.constant 0 : index
    %104 = vector.load %arg11[%c0_77, %c0_78] : memref<12x128xbf16, #tpu.memory_space<vmem>>, vector<12x128xbf16>
    %cst_79 = arith.constant dense<0.000000e+00> : vector<256x128xf32>
    %105 = tpu.matmul %1, %104, %cst_79 {dimension_numbers = #tpu.dot_dimension_numbers<[1], [0], [0], [1], [0, 0, 1, 1], [], []>} : vector<256x12xbf16>, vector<12x128xbf16>, vector<256x128xf32> -> vector<256x128xf32>
    %106 = arith.addf %103, %105 : vector<256x128xf32>
    %c0_80 = arith.constant 0 : index
    %c0_81 = arith.constant 0 : index
    %107 = vector.load %arg12[%c0_80, %c0_81] : memref<1x128xf32, #tpu.memory_space<vmem>>, vector<1x128xf32>
    %108 = vector.broadcast %107 : vector<1x128xf32> to vector<256x128xf32>
    %109 = arith.addf %106, %108 : vector<256x128xf32>
    %cst_82 = arith.constant 0.000000e+00 : f32
    %110 = vector.broadcast %cst_82 : f32 to vector<256x128xf32>
    %111 = arith.maximumf %109, %110 : vector<256x128xf32>
    %c0_83 = arith.constant 0 : index
    %c0_84 = arith.constant 0 : index
    %112 = vector.load %arg13[%c0_83, %c0_84] : memref<3x128xf32, #tpu.memory_space<vmem>>, vector<3x128xf32>
    %113 = vector.extract_strided_slice %112 {offsets = [0, 0], sizes = [1, 128], strides = [1, 1]} : vector<3x128xf32> to vector<1x128xf32>
    %114 = vector.broadcast %113 : vector<1x128xf32> to vector<256x128xf32>
    %115 = arith.mulf %111, %114 : vector<256x128xf32>
    %cst_85 = arith.constant dense<0.000000e+00> : vector<256xf32>
    %116 = vector.multi_reduction <add>, %115, %cst_85 [1] : vector<256x128xf32> to vector<256xf32>
    %117 = vector.shape_cast %116 : vector<256xf32> to vector<256x1xf32>
    %118 = vector.extract_strided_slice %85 {offsets = [0, 1], sizes = [1, 1], strides = [1, 1]} : vector<1x4xf32> to vector<1x1xf32>
    %119 = vector.broadcast %118 : vector<1x1xf32> to vector<256x1xf32>
    %120 = arith.addf %117, %119 : vector<256x1xf32>
    %121 = vector.extract_strided_slice %112 {offsets = [1, 0], sizes = [1, 128], strides = [1, 1]} : vector<3x128xf32> to vector<1x128xf32>
    %122 = vector.broadcast %121 : vector<1x128xf32> to vector<256x128xf32>
    %123 = arith.mulf %111, %122 : vector<256x128xf32>
    %cst_86 = arith.constant dense<0.000000e+00> : vector<256xf32>
    %124 = vector.multi_reduction <add>, %123, %cst_86 [1] : vector<256x128xf32> to vector<256xf32>
    %125 = vector.shape_cast %124 : vector<256xf32> to vector<256x1xf32>
    %126 = vector.extract_strided_slice %85 {offsets = [0, 2], sizes = [1, 1], strides = [1, 1]} : vector<1x4xf32> to vector<1x1xf32>
    %127 = vector.broadcast %126 : vector<1x1xf32> to vector<256x1xf32>
    %128 = arith.addf %125, %127 : vector<256x1xf32>
    %129 = vector.extract_strided_slice %112 {offsets = [2, 0], sizes = [1, 128], strides = [1, 1]} : vector<3x128xf32> to vector<1x128xf32>
    %130 = vector.broadcast %129 : vector<1x128xf32> to vector<256x128xf32>
    %131 = arith.mulf %111, %130 : vector<256x128xf32>
    %cst_87 = arith.constant dense<0.000000e+00> : vector<256xf32>
    %132 = vector.multi_reduction <add>, %131, %cst_87 [1] : vector<256x128xf32> to vector<256xf32>
    %133 = vector.shape_cast %132 : vector<256xf32> to vector<256x1xf32>
    %134 = vector.extract_strided_slice %85 {offsets = [0, 3], sizes = [1, 1], strides = [1, 1]} : vector<1x4xf32> to vector<1x1xf32>
    %135 = vector.broadcast %134 : vector<1x1xf32> to vector<256x1xf32>
    %136 = arith.addf %133, %135 : vector<256x1xf32>
    %137 = tpu.iota {dimensions = array<i32: 1>} : vector<256x4xi32>
    %c1_i32 = arith.constant 1 : i32
    %138 = vector.broadcast %c1_i32 : i32 to vector<256x4xi32>
    %139 = arith.cmpi eq, %137, %138 : vector<256x4xi32>
    %c2_i32 = arith.constant 2 : i32
    %140 = vector.broadcast %c2_i32 : i32 to vector<256x4xi32>
    %141 = arith.cmpi eq, %137, %140 : vector<256x4xi32>
    %142 = vector.shape_cast %128 : vector<256x1xf32> to vector<256x1xf32>
    %143 = vector.broadcast %142 : vector<256x1xf32> to vector<256x4xf32>
    %144 = vector.shape_cast %136 : vector<256x1xf32> to vector<256x1xf32>
    %145 = vector.broadcast %144 : vector<256x1xf32> to vector<256x4xf32>
    %146 = arith.select %141, %143, %145 : vector<256x4xi1>, vector<256x4xf32>
    %147 = vector.shape_cast %120 : vector<256x1xf32> to vector<256x1xf32>
    %148 = vector.broadcast %147 : vector<256x1xf32> to vector<256x4xf32>
    %149 = arith.select %139, %148, %146 : vector<256x4xi1>, vector<256x4xf32>
    %150 = arith.negf %149 : vector<256x4xf32>
    %151 = math.exp %150 : vector<256x4xf32>
    %cst_88 = arith.constant 1.000000e+00 : f32
    %152 = vector.broadcast %cst_88 : f32 to vector<256x4xf32>
    %153 = arith.addf %152, %151 : vector<256x4xf32>
    %154 = arith.divf %152, %153 : vector<256x4xf32>
    %c0_i32 = arith.constant 0 : i32
    %155 = vector.broadcast %c0_i32 : i32 to vector<256x4xi32>
    %156 = arith.cmpi eq, %137, %155 : vector<256x4xi32>
    %157 = vector.shape_cast %95 : vector<256x1xf32> to vector<256x1xf32>
    %158 = vector.broadcast %157 : vector<256x1xf32> to vector<256x4xf32>
    %159 = arith.select %156, %158, %154 : vector<256x4xi1>, vector<256x4xf32>
    %c0_89 = arith.constant 0 : index
    %c0_90 = arith.constant 0 : index
    %160 = vector.load %arg15[%c0_89, %c0_90] : memref<256x4xf32, #tpu.memory_space<vmem>>, vector<256x4xf32>
    tpu.vector_store %arg15[%c0_89, %c0_90], %159 {strides = array<i32>} : memref<256x4xf32, #tpu.memory_space<vmem>>, vector<256x4xf32>,
    return
  }
  func.func @transform_0(%arg0: i32) -> (i32, i32) {
    %c0_i32 = arith.constant 0 : i32
    %c0_i32_0 = arith.constant 0 : i32
    return %arg0, %c0_i32 : i32, i32
  }
  func.func @transform_1(%arg0: i32) -> (i32, i32) {
    %c0_i32 = arith.constant 0 : i32
    %c0_i32_0 = arith.constant 0 : i32
    return %arg0, %c0_i32 : i32, i32
  }
  func.func @transform_2(%arg0: i32) -> (i32, i32, i32) {
    %c0_i32 = arith.constant 0 : i32
    %c0_i32_0 = arith.constant 0 : i32
    %c0_i32_1 = arith.constant 0 : i32
    %c0_i32_2 = arith.constant 0 : i32
    return %c0_i32, %c0_i32_0, %c0_i32_1 : i32, i32, i32
  }
  func.func @transform_3(%arg0: i32) -> (i32, i32) {
    %c0_i32 = arith.constant 0 : i32
    %c0_i32_0 = arith.constant 0 : i32
    %c0_i32_1 = arith.constant 0 : i32
    return %c0_i32, %c0_i32_0 : i32, i32
  }
  func.func @transform_4(%arg0: i32) -> (i32, i32, i32) {
    %c0_i32 = arith.constant 0 : i32
    %c0_i32_0 = arith.constant 0 : i32
    %c0_i32_1 = arith.constant 0 : i32
    %c0_i32_2 = arith.constant 0 : i32
    return %c0_i32, %c0_i32_0, %c0_i32_1 : i32, i32, i32
  }
  func.func @transform_5(%arg0: i32) -> (i32, i32, i32) {
    %c0_i32 = arith.constant 0 : i32
    %c0_i32_0 = arith.constant 0 : i32
    %c0_i32_1 = arith.constant 0 : i32
    %c0_i32_2 = arith.constant 0 : i32
    return %c0_i32, %c0_i32_0, %c0_i32_1 : i32, i32, i32
  }
  func.func @transform_6(%arg0: i32) -> (i32, i32) {
    %c0_i32 = arith.constant 0 : i32
    %c0_i32_0 = arith.constant 0 : i32
    %c0_i32_1 = arith.constant 0 : i32
    return %c0_i32, %c0_i32_0 : i32, i32
  }
  func.func @transform_7(%arg0: i32) -> (i32, i32) {
    %c0_i32 = arith.constant 0 : i32
    %c0_i32_0 = arith.constant 0 : i32
    %c0_i32_1 = arith.constant 0 : i32
    return %c0_i32, %c0_i32_0 : i32, i32
  }
  func.func @transform_8(%arg0: i32) -> (i32, i32) {
    %c0_i32 = arith.constant 0 : i32
    %c0_i32_0 = arith.constant 0 : i32
    %c0_i32_1 = arith.constant 0 : i32
    return %c0_i32, %c0_i32_0 : i32, i32
  }
  func.func @transform_9(%arg0: i32) -> (i32, i32) {
    %c0_i32 = arith.constant 0 : i32
    %c0_i32_0 = arith.constant 0 : i32
    %c0_i32_1 = arith.constant 0 : i32
    return %c0_i32, %c0_i32_0 : i32, i32
  }
  func.func @transform_10(%arg0: i32) -> (i32, i32) {
    %c0_i32 = arith.constant 0 : i32
    %c0_i32_0 = arith.constant 0 : i32
    %c0_i32_1 = arith.constant 0 : i32
    return %c0_i32, %c0_i32_0 : i32, i32
  }
  func.func @transform_11(%arg0: i32) -> (i32, i32) {
    %c0_i32 = arith.constant 0 : i32
    %c0_i32_0 = arith.constant 0 : i32
    %c0_i32_1 = arith.constant 0 : i32
    return %c0_i32, %c0_i32_0 : i32, i32
  }
  func.func @transform_12(%arg0: i32) -> (i32, i32) {
    %c0_i32 = arith.constant 0 : i32
    %c0_i32_0 = arith.constant 0 : i32
    %c0_i32_1 = arith.constant 0 : i32
    return %c0_i32, %c0_i32_0 : i32, i32
  }
  func.func @transform_13(%arg0: i32) -> (i32, i32) {
    %c0_i32 = arith.constant 0 : i32
    %c0_i32_0 = arith.constant 0 : i32
    %c0_i32_1 = arith.constant 0 : i32
    return %c0_i32, %c0_i32_0 : i32, i32
  }
  func.func @transform_14(%arg0: i32) -> (i32, i32) {
    %c0_i32 = arith.constant 0 : i32
    %c0_i32_0 = arith.constant 0 : i32
    return %arg0, %c0_i32 : i32, i32
  }
}

</mosaic_0001>

<llo_original>
// kernel: nerf_forward.1
$region0: #{nerf_forward.1}
  #allocation0 [shape = 'u32[]', space=smem, size = 0x4, offset = 0x4, fixed_abs, tag = 'smem constant byte address 0x4 - core index']
  #allocation1 [shape = 'u32[144,128]{1,0:T(1,128)}', space=vmem, size = 0x12000, scoped, tag = 'internal scratch']
  %s0 = inlined_call_operand.vmem [shape: bf16[256,24], index: 0, kind: input, shape index: {}]
  %s1 = inlined_call_operand.vmem [shape: bf16[256,12], index: 1, kind: input, shape index: {}]
  %s2 = inlined_call_operand.vmem [shape: bf16[2,24,256], index: 2, kind: input, shape index: {}]
  %s3 = inlined_call_operand.vmem [shape: f32[1,256], index: 3, kind: input, shape index: {}]
  %s4 = inlined_call_operand.hbm [shape: bf16[7,256,256], index: 4, kind: input, shape index: {}]
  %s5 = inlined_call_operand.vmem [shape: f32[7,1,256], index: 5, kind: input, shape index: {}]
  %s6 = inlined_call_operand.vmem [shape: f32[1,256], index: 6, kind: input, shape index: {}]
  %s7 = inlined_call_operand.vmem [shape: bf16[256,256], index: 7, kind: input, shape index: {}]
  %s8 = inlined_call_operand.vmem [shape: f32[1,256], index: 8, kind: input, shape index: {}]
  %s9 = inlined_call_operand.vmem [shape: bf16[256,128], index: 9, kind: input, shape index: {}]
  %s10 = inlined_call_operand.vmem [shape: bf16[12,128], index: 10, kind: input, shape index: {}]
  %s11 = inlined_call_operand.vmem [shape: f32[1,128], index: 11, kind: input, shape index: {}]
  %s12 = inlined_call_operand.vmem [shape: f32[3,128], index: 12, kind: input, shape index: {}]
  %s13 = inlined_call_operand.vmem [shape: f32[1,4], index: 13, kind: input, shape index: {}]
  %s14 = inlined_call_operand.vmem [shape: f32[256,4], index: 14, kind: output, shape index: {}]
  %s15 = sld [smem:[#allocation0]]
  $region70: #{nerf_forward.1} parent=0
    _
  %s17 = ssub.s32 1, %s15
  %s18 = scalar_select 0, %s17, %s15
  $region1: #{nerf_forward.1} parent=0
    #allocation2 [shape = 'u8[917504]{0}', space=vmem, size = 0xe0000, scoped, tag = 'input window, operand 4, single buffered']
    #allocation3 [shape = 's32[1]{0}', space=sflag, size = 0x4, scoped, tag = 'scoped memory for nerf_forward.1']
    %19 = vsyncpa [#allocation3], 0
    // Predicated region
    $region2: #{nerf_forward.1} parent=1 // pred_check
      _
    $region3: #{nerf_forward.1} parent=1 // pred_check_branch
      %21 = sbr.rel (0) target = $region5
    $region4: #{nerf_forward.1} parent=1 // pred_region
      _
    $region5: #{nerf_forward.1} parent=1 // pred_fallthru
      _
    // Predicated region
    $region6: #{nerf_forward.1} parent=1 // pred_check
      _
    $region7: #{nerf_forward.1} parent=1 // pred_check_branch
      %23 = sbr.rel (0) target = $region9
    $region8: #{nerf_forward.1} parent=1 // pred_region
      _
    $region9: #{nerf_forward.1} parent=1 // pred_fallthru
      _
    // Predicated region
    $region10: #{nerf_forward.1} parent=1 // pred_check
      _
    $region11: #{nerf_forward.1} parent=1 // pred_check_branch
      %25 = sbr.rel (0) target = $region13
    $region12: #{nerf_forward.1} parent=1 // pred_region
      _
    $region13: #{nerf_forward.1} parent=1 // pred_fallthru
      _
    // Predicated region
    $region14: #{nerf_forward.1} parent=1 // pred_check
      _
    $region15: #{nerf_forward.1} parent=1 // pred_check_branch
      %27 = sbr.rel (0) target = $region17
    $region16: #{nerf_forward.1} parent=1 // pred_region
      _
    $region17: #{nerf_forward.1} parent=1 // pred_fallthru
      _
    // Predicated region
    $region18: #{nerf_forward.1} parent=1 // pred_check
      _
    $region19: #{nerf_forward.1} parent=1 // pred_check_branch
      %29 = sbr.rel (0) target = $region21
    $region20: #{nerf_forward.1} parent=1 // pred_region
      %s31 = ssub.s32 28672, 28672
      %32 = vsyncadd [#allocation3], %s31
      %s33 = sshll.u32 [#allocation2], 4
      %s34 = int_to_ptr.vmem [resolvable:$true] %s33
      %39 = dma.hbm_to_vmem [thread:$0]  %s4, 28672, %s34, [#allocation3], 128, 128, 8
    $region21: #{nerf_forward.1} parent=1 // pred_fallthru
      _
    // Predicated region
    $region22: #{nerf_forward.1} parent=1 // pred_check
      _
    $region23: #{nerf_forward.1} parent=1 // pred_check_branch
      %41 = sbr.rel (0) target = $region25
    $region24: #{nerf_forward.1} parent=1 // pred_region
      _
    $region25: #{nerf_forward.1} parent=1 // pred_fallthru
      _
    // Predicated region
    $region26: #{nerf_forward.1} parent=1 // pred_check
      _
    $region27: #{nerf_forward.1} parent=1 // pred_check_branch
      %43 = sbr.rel (0) target = $region29
    $region28: #{nerf_forward.1} parent=1 // pred_region
      _
    $region29: #{nerf_forward.1} parent=1 // pred_fallthru
      _
    // Predicated region
    $region30: #{nerf_forward.1} parent=1 // pred_check
      _
    $region31: #{nerf_forward.1} parent=1 // pred_check_branch
      %45 = sbr.rel (0) target = $region33
    $region32: #{nerf_forward.1} parent=1 // pred_region
      _
    $region33: #{nerf_forward.1} parent=1 // pred_fallthru
      _
    // Predicated region
    $region34: #{nerf_forward.1} parent=1 // pred_check
      _
    $region35: #{nerf_forward.1} parent=1 // pred_check_branch
      %47 = sbr.rel (0) target = $region37
    $region36: #{nerf_forward.1} parent=1 // pred_region
      _
    $region37: #{nerf_forward.1} parent=1 // pred_fallthru
      _
    // Predicated region
    $region38: #{nerf_forward.1} parent=1 // pred_check
      _
    $region39: #{nerf_forward.1} parent=1 // pred_check_branch
      %49 = sbr.rel (0) target = $region41
    $region40: #{nerf_forward.1} parent=1 // pred_region
      _
    $region41: #{nerf_forward.1} parent=1 // pred_fallthru
      _
    // Predicated region
    $region42: #{nerf_forward.1} parent=1 // pred_check
      _
    $region43: #{nerf_forward.1} parent=1 // pred_check_branch
      %51 = sbr.rel (0) target = $region45
    $region44: #{nerf_forward.1} parent=1 // pred_region
      _
    $region45: #{nerf_forward.1} parent=1 // pred_fallthru
      _
    // Predicated region
    $region46: #{nerf_forward.1} parent=1 // pred_check
      _
    $region47: #{nerf_forward.1} parent=1 // pred_check_branch
      %53 = sbr.rel (0) target = $region49
    $region48: #{nerf_forward.1} parent=1 // pred_region
      _
    $region49: #{nerf_forward.1} parent=1 // pred_fallthru
      _
    // Predicated region
    $region50: #{nerf_forward.1} parent=1 // pred_check
      _
    $region51: #{nerf_forward.1} parent=1 // pred_check_branch
      %55 = sbr.rel (0) target = $region53
    $region52: #{nerf_forward.1} parent=1 // pred_region
      _
    $region53: #{nerf_forward.1} parent=1 // pred_fallthru
      _
    // Predicated region
    $region54: #{nerf_forward.1} parent=1 // pred_check
      _
    $region55: #{nerf_forward.1} parent=1 // pred_check_branch
      %57 = sbr.rel (0) target = $region57
    $region56: #{nerf_forward.1} parent=1 // pred_region
      _
    $region57: #{nerf_forward.1} parent=1 // pred_fallthru
      _
    // Predicated region
    $region58: #{nerf_forward.1} parent=1 // pred_check
      _
    $region59: #{nerf_forward.1} parent=1 // pred_check_branch
      %59 = sbr.rel (0) target = $region61
    $region60: #{nerf_forward.1} parent=1 // pred_region
      %60 = dma.done [#allocation3], 28672
    $region61: #{nerf_forward.1} parent=1 // pred_fallthru
      _
    %v62 = vld [vmem:[%s0] sm:$0xf]
    %v63 = vld [vmem:[%s0 + $0x4] sm:$0xf]
    %v64 = vld [vmem:[%s0 + $0x8] sm:$0xf]
    %v65 = vld [vmem:[%s0 + $0xc] sm:$0xf]
    %v66 = vld [vmem:[%s0 + $0x10] sm:$0xf]
    %v67 = vld [vmem:[%s0 + $0x14] sm:$0xf]
    %v68 = vld [vmem:[%s0 + $0x18] sm:$0xf]
    %v69 = vld [vmem:[%s0 + $0x1c] sm:$0xf]
    %v70 = vld [vmem:[%s0 + $0x20] sm:$0xf]
    %v71 = vld [vmem:[%s0 + $0x24] sm:$0xf]
    %v72 = vld [vmem:[%s0 + $0x28] sm:$0xf]
    %v73 = vld [vmem:[%s0 + $0x2c] sm:$0xf]
    %v74 = vld [vmem:[%s0 + $0x30] sm:$0xf]
    %v75 = vld [vmem:[%s0 + $0x34] sm:$0xf]
    %v76 = vld [vmem:[%s0 + $0x38] sm:$0xf]
    %v77 = vld [vmem:[%s0 + $0x3c] sm:$0xf]
    %v78 = vld [vmem:[%s0 + $0x40] sm:$0xf]
    %v79 = vld [vmem:[%s0 + $0x44] sm:$0xf]
    %v80 = vld [vmem:[%s0 + $0x48] sm:$0xf]
    %v81 = vld [vmem:[%s0 + $0x4c] sm:$0xf]
    %v82 = vld [vmem:[%s0 + $0x50] sm:$0xf]
    %v83 = vld [vmem:[%s0 + $0x54] sm:$0xf]
    %v84 = vld [vmem:[%s0 + $0x58] sm:$0xf]
    %v85 = vld [vmem:[%s0 + $0x5c] sm:$0xf]
    %v86 = vld [vmem:[%s0 + $0x60] sm:$0xf]
    %v87 = vld [vmem:[%s0 + $0x64] sm:$0xf]
    %v88 = vld [vmem:[%s0 + $0x68] sm:$0xf]
    %v89 = vld [vmem:[%s0 + $0x6c] sm:$0xf]
    %v90 = vld [vmem:[%s0 + $0x70] sm:$0xf]
    %v91 = vld [vmem:[%s0 + $0x74] sm:$0xf]
    %v92 = vld [vmem:[%s0 + $0x78] sm:$0xf]
    %v93 = vld [vmem:[%s0 + $0x7c] sm:$0xf]
    %v94 = vld [vmem:[%s1] sm:$0xf]
    %v95 = vld [vmem:[%s1 + $0x4] sm:$0xf]
    %v96 = vld [vmem:[%s1 + $0x8] sm:$0xf]
    %v97 = vld [vmem:[%s1 + $0xc] sm:$0xf]
    %v98 = vld [vmem:[%s1 + $0x10] sm:$0xf]
    %v99 = vld [vmem:[%s1 + $0x14] sm:$0xf]
    %v100 = vld [vmem:[%s1 + $0x18] sm:$0xf]
    %v101 = vld [vmem:[%s1 + $0x1c] sm:$0xf]
    %v102 = vld [vmem:[%s1 + $0x20] sm:$0xf]
    %v103 = vld [vmem:[%s1 + $0x24] sm:$0xf]
    %v104 = vld [vmem:[%s1 + $0x28] sm:$0xf]
    %v105 = vld [vmem:[%s1 + $0x2c] sm:$0xf]
    %v106 = vld [vmem:[%s1 + $0x30] sm:$0xf]
    %v107 = vld [vmem:[%s1 + $0x34] sm:$0xf]
    %v108 = vld [vmem:[%s1 + $0x38] sm:$0xf]
    %v109 = vld [vmem:[%s1 + $0x3c] sm:$0xf]
    %v110 = vld [vmem:[%s1 + $0x40] sm:$0xf]
    %v111 = vld [vmem:[%s1 + $0x44] sm:$0xf]
    %v112 = vld [vmem:[%s1 + $0x48] sm:$0xf]
    %v113 = vld [vmem:[%s1 + $0x4c] sm:$0xf]
    %v114 = vld [vmem:[%s1 + $0x50] sm:$0xf]
    %v115 = vld [vmem:[%s1 + $0x54] sm:$0xf]
    %v116 = vld [vmem:[%s1 + $0x58] sm:$0xf]
    %v117 = vld [vmem:[%s1 + $0x5c] sm:$0xf]
    %v118 = vld [vmem:[%s1 + $0x60] sm:$0xf]
    %v119 = vld [vmem:[%s1 + $0x64] sm:$0xf]
    %v120 = vld [vmem:[%s1 + $0x68] sm:$0xf]
    %v121 = vld [vmem:[%s1 + $0x6c] sm:$0xf]
    %v122 = vld [vmem:[%s1 + $0x70] sm:$0xf]
    %v123 = vld [vmem:[%s1 + $0x74] sm:$0xf]
    %v124 = vld [vmem:[%s1 + $0x78] sm:$0xf]
    %v125 = vld [vmem:[%s1 + $0x7c] sm:$0xf]
    %v126 = vld [vmem:[%s2] sm:$0xff]
    %v127 = vld [vmem:[%s2 + $0x8] sm:$0xff]
    %v128 = vld [vmem:[%s2 + $0x10] sm:$0xff]
    %v129 = vld [vmem:[%s3] sm:$0x3]
    %v131 = vlaneseq
    %v132 = vshrl.u32 %v131, 7
    %v133 = vsub.s32 0, %v132
    %v134 = vrot.slane %v129, %v133
    %v135 = vlaneseq
    %v136 = vshrl.u32 %v135, 7
    %v137 = vsub.s32 1, %v136
    %v138 = vrot.slane %v129, %v137
    %v173 = vunpack.c.l.b16 %v62
    %v174 = vunpack.c.l.b16 %v63
    %v175 = vunpack.c.l.b16 %v64
    %v176 = vunpack.c.l.b16 %v65
    %v177 = vunpack.c.l.b16 %v66
    %v178 = vunpack.c.l.b16 %v67
    %v179 = vunpack.c.l.b16 %v68
    %v180 = vunpack.c.l.b16 %v69
    %v181 = vunpack.c.l.b16 %v70
    %v182 = vunpack.c.l.b16 %v71
    %v183 = vunpack.c.l.b16 %v72
    %v184 = vunpack.c.l.b16 %v73
    %v185 = vunpack.c.l.b16 %v74
    %v186 = vunpack.c.l.b16 %v75
    %v187 = vunpack.c.l.b16 %v76
    %v188 = vunpack.c.l.b16 %v77
    %v189 = vunpack.c.l.b16 %v78
    %v190 = vunpack.c.l.b16 %v79
    %v191 = vunpack.c.l.b16 %v80
    %v192 = vunpack.c.l.b16 %v81
    %v193 = vunpack.c.l.b16 %v82
    %v194 = vunpack.c.l.b16 %v83
    %v195 = vunpack.c.l.b16 %v84
    %v196 = vunpack.c.l.b16 %v85
    %v197 = vunpack.c.l.b16 %v86
    %v198 = vunpack.c.l.b16 %v87
    %v199 = vunpack.c.l.b16 %v88
    %v200 = vunpack.c.l.b16 %v89
    %v201 = vunpack.c.l.b16 %v90
    %v202 = vunpack.c.l.b16 %v91
    %v203 = vunpack.c.l.b16 %v92
    %v204 = vunpack.c.l.b16 %v93
    %v205 = vpack.c.b16 %v174, %v173
    %v206 = vpack.c.b16 %v176, %v175
    %v207 = vpack.c.b16 %v178, %v177
    %v208 = vpack.c.b16 %v180, %v179
    %v209 = vpack.c.b16 %v182, %v181
    %v210 = vpack.c.b16 %v184, %v183
    %v211 = vpack.c.b16 %v186, %v185
    %v212 = vpack.c.b16 %v188, %v187
    %v213 = vpack.c.b16 %v190, %v189
    %v214 = vpack.c.b16 %v192, %v191
    %v215 = vpack.c.b16 %v194, %v193
    %v216 = vpack.c.b16 %v196, %v195
    %v217 = vpack.c.b16 %v198, %v197
    %v218 = vpack.c.b16 %v200, %v199
    %v219 = vpack.c.b16 %v202, %v201
    %v220 = vpack.c.b16 %v204, %v203
    %v224 = vunpack.c.l.b16 %v126
    %v225 = vunpack.c.h.b16 %v126
    %v226 = vunpack.c.l.b16 %v127
    %v227 = vunpack.c.h.b16 %v127
    %v228 = vunpack.c.l.b16 %v128
    %v229 = vunpack.c.h.b16 %v128
    %v230 = vpack.c.b16 %v226, %v224
    %v231 = vpack.c.b16 %v227, %v225
    %v232 = vpack.c.b16 %v228, %v228
    %v233 = vpack.c.b16 %v229, %v229
    %vm236 = vcmask 195584
    %v238 = vsel %vm236, %v205, 0
    %v241 = vsel %vm236, %v206, 0
    %v244 = vsel %vm236, %v207, 0
    %v247 = vsel %vm236, %v208, 0
    %v250 = vsel %vm236, %v209, 0
    %v253 = vsel %vm236, %v210, 0
    %v256 = vsel %vm236, %v211, 0
    %v259 = vsel %vm236, %v212, 0
    %v262 = vsel %vm236, %v213, 0
    %v265 = vsel %vm236, %v214, 0
    %v268 = vsel %vm236, %v215, 0
    %v271 = vsel %vm236, %v216, 0
    %v274 = vsel %vm236, %v217, 0
    %v277 = vsel %vm236, %v218, 0
    %v280 = vsel %vm236, %v219, 0
    %v283 = vsel %vm236, %v220, 0
    %vm285 = vcmask 1043456
    %v287 = vsel %vm285, %v232, 0
    %v290 = vsel %vm285, %v233, 0
    %292 = vmatprep.subr.bf16.mxu0 %v231
    %293 = vmatpush1.bf16.msra.mxu0 %v230
    %294 = vmatprep.subr.bf16.mxu0 %v290
    %295 = vmatpush1.bf16.msra.mxu0 %v287
    %296 = vmatprep.subr.bf16.mxu0 0
    %297 = vmatpush1.bf16.msra.mxu0 0
    %298 = vmatprep.subr.bf16.mxu0 0
    %299 = vmatpush1.bf16.msra.mxu0 0
    %300 = vmatprep.subr.bf16.mxu0 0
    %301 = vmatpush1.bf16.msra.mxu0 0
    %302 = vmatprep.subr.bf16.mxu0 0
    %303 = vmatpush1.bf16.msra.mxu0 0
    %304 = vmatprep.subr.bf16.mxu0 0
    %305 = vmatpush1.bf16.msra.mxu0 0
    %306 = vmatprep.subr.bf16.mxu0 0
    %307 = vmatpush1.bf16.msra.mxu0 0
    %308 = vmatprep.subr.bf16.mxu0 0
    %309 = vmatpush1.bf16.msra.mxu0 0
    %310 = vmatprep.subr.bf16.mxu0 0
    %311 = vmatpush1.bf16.msra.mxu0 0
    %312 = vmatprep.subr.bf16.mxu0 0
    %313 = vmatpush1.bf16.msra.mxu0 0
    %314 = vmatprep.subr.bf16.mxu0 0
    %315 = vmatpush1.bf16.msra.mxu0 0
    %316 = vmatprep.subr.bf16.mxu0 0
    %317 = vmatpush1.bf16.msra.mxu0 0
    %318 = vmatprep.subr.bf16.mxu0 0
    %319 = vmatpush1.bf16.msra.mxu0 0
    %320 = vmatprep.subr.bf16.mxu0 0
    %321 = vmatpush1.bf16.msra.mxu0 0
    %322 = vmatprep.subr.bf16.mxu0 0
    %323 = vmatpush1.bf16.msra.mxu0 0
    %324 = vmatprep.mubr.bf16.mxu0 0
    %325 = vmatmul.mubr.bf16.gmra.mrb[0].mxu0 %v238
    %v326 = vpop.f32.mrb[0].mxu0
    %v327 = vadd.f32 %v134, %v326
    %v328 = vpop.f32.mrb[0].mxu0
    %v329 = vadd.f32 %v138, %v328
    %v330 = vpop.f32.mrb[0].mxu0
    %v331 = vadd.f32 %v134, %v330
    %v332 = vpop.f32.mrb[0].mxu0
    %v333 = vadd.f32 %v138, %v332
    %334 = vmatprep.mubr.bf16.mxu0 0
    %335 = vmatmul.mubr.bf16.gmra.mrb[0].mxu0 %v241
    %v336 = vpop.f32.mrb[0].mxu0
    %v337 = vadd.f32 %v134, %v336
    %v338 = vpop.f32.mrb[0].mxu0
    %v339 = vadd.f32 %v138, %v338
    %v340 = vpop.f32.mrb[0].mxu0
    %v341 = vadd.f32 %v134, %v340
    %v342 = vpop.f32.mrb[0].mxu0
    %v343 = vadd.f32 %v138, %v342
    %344 = vmatprep.mubr.bf16.mxu0 0
    %345 = vmatmul.mubr.bf16.gmra.mrb[0].mxu0 %v244
    %v346 = vpop.f32.mrb[0].mxu0
    %v347 = vadd.f32 %v134, %v346
    %v348 = vpop.f32.mrb[0].mxu0
    %v349 = vadd.f32 %v138, %v348
    %v350 = vpop.f32.mrb[0].mxu0
    %v351 = vadd.f32 %v134, %v350
    %v352 = vpop.f32.mrb[0].mxu0
    %v353 = vadd.f32 %v138, %v352
    %354 = vmatprep.mubr.bf16.mxu0 0
    %355 = vmatmul.mubr.bf16.gmra.mrb[0].mxu0 %v247
    %v356 = vpop.f32.mrb[0].mxu0
    %v357 = vadd.f32 %v134, %v356
    %v358 = vpop.f32.mrb[0].mxu0
    %v359 = vadd.f32 %v138, %v358
    %v360 = vpop.f32.mrb[0].mxu0
    %v361 = vadd.f32 %v134, %v360
    %v362 = vpop.f32.mrb[0].mxu0
    %v363 = vadd.f32 %v138, %v362
    %364 = vmatprep.mubr.bf16.mxu0 0
    %365 = vmatmul.mubr.bf16.gmra.mrb[0].mxu0 %v250
    %v366 = vpop.f32.mrb[0].mxu0
    %v367 = vadd.f32 %v134, %v366
    %v368 = vpop.f32.mrb[0].mxu0
    %v369 = vadd.f32 %v138, %v368
    %v370 = vpop.f32.mrb[0].mxu0
    %v371 = vadd.f32 %v134, %v370
    %v372 = vpop.f32.mrb[0].mxu0
    %v373 = vadd.f32 %v138, %v372
    %374 = vmatprep.mubr.bf16.mxu0 0
    %375 = vmatmul.mubr.bf16.gmra.mrb[0].mxu0 %v253
    %v376 = vpop.f32.mrb[0].mxu0
    %v377 = vadd.f32 %v134, %v376
    %v378 = vpop.f32.mrb[0].mxu0
    %v379 = vadd.f32 %v138, %v378
    %v380 = vpop.f32.mrb[0].mxu0
    %v381 = vadd.f32 %v134, %v380
    %v382 = vpop.f32.mrb[0].mxu0
    %v383 = vadd.f32 %v138, %v382
    %384 = vmatprep.mubr.bf16.mxu0 0
    %385 = vmatmul.mubr.bf16.gmra.mrb[0].mxu0 %v256
    %v386 = vpop.f32.mrb[0].mxu0
    %v387 = vadd.f32 %v134, %v386
    %v388 = vpop.f32.mrb[0].mxu0
    %v389 = vadd.f32 %v138, %v388
    %v390 = vpop.f32.mrb[0].mxu0
    %v391 = vadd.f32 %v134, %v390
    %v392 = vpop.f32.mrb[0].mxu0
    %v393 = vadd.f32 %v138, %v392
    %394 = vmatprep.mubr.bf16.mxu0 0
    %395 = vmatmul.mubr.bf16.gmra.mrb[0].mxu0 %v259
    %v396 = vpop.f32.mrb[0].mxu0
    %v397 = vadd.f32 %v134, %v396
    %v398 = vpop.f32.mrb[0].mxu0
    %v399 = vadd.f32 %v138, %v398
    %v400 = vpop.f32.mrb[0].mxu0
    %v401 = vadd.f32 %v134, %v400
    %v402 = vpop.f32.mrb[0].mxu0
    %v403 = vadd.f32 %v138, %v402
    %404 = vmatprep.mubr.bf16.mxu0 0
    %405 = vmatmul.mubr.bf16.gmra.mrb[0].mxu0 %v262
    %v406 = vpop.f32.mrb[0].mxu0
    %v407 = vadd.f32 %v134, %v406
    %v408 = vpop.f32.mrb[0].mxu0
    %v409 = vadd.f32 %v138, %v408
    %v410 = vpop.f32.mrb[0].mxu0
    %v411 = vadd.f32 %v134, %v410
    %v412 = vpop.f32.mrb[0].mxu0
    %v413 = vadd.f32 %v138, %v412
    %414 = vmatprep.mubr.bf16.mxu0 0
    %415 = vmatmul.mubr.bf16.gmra.mrb[0].mxu0 %v265
    %v416 = vpop.f32.mrb[0].mxu0
    %v417 = vadd.f32 %v134, %v416
    %v418 = vpop.f32.mrb[0].mxu0
    %v419 = vadd.f32 %v138, %v418
    %v420 = vpop.f32.mrb[0].mxu0
    %v421 = vadd.f32 %v134, %v420
    %v422 = vpop.f32.mrb[0].mxu0
    %v423 = vadd.f32 %v138, %v422
    %424 = vmatprep.mubr.bf16.mxu0 0
    %425 = vmatmul.mubr.bf16.gmra.mrb[0].mxu0 %v268
    %v426 = vpop.f32.mrb[0].mxu0
    %v427 = vadd.f32 %v134, %v426
    %v428 = vpop.f32.mrb[0].mxu0
    %v429 = vadd.f32 %v138, %v428
    %v430 = vpop.f32.mrb[0].mxu0
    %v431 = vadd.f32 %v134, %v430
    %v432 = vpop.f32.mrb[0].mxu0
    %v433 = vadd.f32 %v138, %v432
    %434 = vmatprep.mubr.bf16.mxu0 0
    %435 = vmatmul.mubr.bf16.gmra.mrb[0].mxu0 %v271
    %v436 = vpop.f32.mrb[0].mxu0
    %v437 = vadd.f32 %v134, %v436
    %v438 = vpop.f32.mrb[0].mxu0
    %v439 = vadd.f32 %v138, %v438
    %v440 = vpop.f32.mrb[0].mxu0
    %v441 = vadd.f32 %v134, %v440
    %v442 = vpop.f32.mrb[0].mxu0
    %v443 = vadd.f32 %v138, %v442
    %444 = vmatprep.mubr.bf16.mxu0 0
    %445 = vmatmul.mubr.bf16.gmra.mrb[0].mxu0 %v274
    %v446 = vpop.f32.mrb[0].mxu0
    %v447 = vadd.f32 %v134, %v446
    %v448 = vpop.f32.mrb[0].mxu0
    %v449 = vadd.f32 %v138, %v448
    %v450 = vpop.f32.mrb[0].mxu0
    %v451 = vadd.f32 %v134, %v450
    %v452 = vpop.f32.mrb[0].mxu0
    %v453 = vadd.f32 %v138, %v452
    %454 = vmatprep.mubr.bf16.mxu0 0
    %455 = vmatmul.mubr.bf16.gmra.mrb[0].mxu0 %v277
    %v456 = vpop.f32.mrb[0].mxu0
    %v457 = vadd.f32 %v134, %v456
    %v458 = vpop.f32.mrb[0].mxu0
    %v459 = vadd.f32 %v138, %v458
    %v460 = vpop.f32.mrb[0].mxu0
    %v461 = vadd.f32 %v134, %v460
    %v462 = vpop.f32.mrb[0].mxu0
    %v463 = vadd.f32 %v138, %v462
    %464 = vmatprep.mubr.bf16.mxu0 0
    %465 = vmatmul.mubr.bf16.gmra.mrb[0].mxu0 %v280
    %v466 = vpop.f32.mrb[0].mxu0
    %v467 = vadd.f32 %v134, %v466
    %v468 = vpop.f32.mrb[0].mxu0
    %v469 = vadd.f32 %v138, %v468
    %v470 = vpop.f32.mrb[0].mxu0
    %v471 = vadd.f32 %v134, %v470
    %v472 = vpop.f32.mrb[0].mxu0
    %v473 = vadd.f32 %v138, %v472
    %474 = vmatprep.mubr.bf16.mxu0 0
    %475 = vmatmul.mubr.bf16.gmra.mrb[0].mxu0 %v283
    %v476 = vpop.f32.mrb[0].mxu0
    %v477 = vadd.f32 %v134, %v476
    %v478 = vpop.f32.mrb[0].mxu0
    %v479 = vadd.f32 %v138, %v478
    %v480 = vpop.f32.mrb[0].mxu0
    %v481 = vadd.f32 %v134, %v480
    %v482 = vpop.f32.mrb[0].mxu0
    %v483 = vadd.f32 %v138, %v482
    %484 = vdwg.mxu0
    %v485 = vmax.f32 %v327, 0.0
    %v486 = vmax.f32 %v329, 0.0
    %v487 = vmax.f32 %v331, 0.0
    %v488 = vmax.f32 %v333, 0.0
    %v489 = vmax.f32 %v337, 0.0
    %v490 = vmax.f32 %v339, 0.0
    %v491 = vmax.f32 %v341, 0.0
    %v492 = vmax.f32 %v343, 0.0
    %v493 = vmax.f32 %v347, 0.0
    %v494 = vmax.f32 %v349, 0.0
    %v495 = vmax.f32 %v351, 0.0
    %v496 = vmax.f32 %v353, 0.0
    %v497 = vmax.f32 %v357, 0.0
    %v498 = vmax.f32 %v359, 0.0
    %v499 = vmax.f32 %v361, 0.0
    %v500 = vmax.f32 %v363, 0.0
    %v501 = vmax.f32 %v367, 0.0
    %v502 = vmax.f32 %v369, 0.0
    %v503 = vmax.f32 %v371, 0.0
    %v504 = vmax.f32 %v373, 0.0
    %v505 = vmax.f32 %v377, 0.0
    %v506 = vmax.f32 %v379, 0.0
    %v507 = vmax.f32 %v381, 0.0
    %v508 = vmax.f32 %v383, 0.0
    %v509 = vmax.f32 %v387, 0.0
    %v510 = vmax.f32 %v389, 0.0
    %v511 = vmax.f32 %v391, 0.0
    %v512 = vmax.f32 %v393, 0.0
    %v513 = vmax.f32 %v397, 0.0
    %v514 = vmax.f32 %v399, 0.0
    %v515 = vmax.f32 %v401, 0.0
    %v516 = vmax.f32 %v403, 0.0
    %v517 = vmax.f32 %v407, 0.0
    %v518 = vmax.f32 %v409, 0.0
    %v519 = vmax.f32 %v411, 0.0
    %v520 = vmax.f32 %v413, 0.0
    %v521 = vmax.f32 %v417, 0.0
    %v522 = vmax.f32 %v419, 0.0
    %v523 = vmax.f32 %v421, 0.0
    %v524 = vmax.f32 %v423, 0.0
    %v525 = vmax.f32 %v427, 0.0
    %v526 = vmax.f32 %v429, 0.0
    %v527 = vmax.f32 %v431, 0.0
    %v528 = vmax.f32 %v433, 0.0
    %v529 = vmax.f32 %v437, 0.0
    %v530 = vmax.f32 %v439, 0.0
    %v531 = vmax.f32 %v441, 0.0
    %v532 = vmax.f32 %v443, 0.0
    %v533 = vmax.f32 %v447, 0.0
    %v534 = vmax.f32 %v449, 0.0
    %v535 = vmax.f32 %v451, 0.0
    %v536 = vmax.f32 %v453, 0.0
    %v537 = vmax.f32 %v457, 0.0
    %v538 = vmax.f32 %v459, 0.0
    %v539 = vmax.f32 %v461, 0.0
    %v540 = vmax.f32 %v463, 0.0
    %v541 = vmax.f32 %v467, 0.0
    %v542 = vmax.f32 %v469, 0.0
    %v543 = vmax.f32 %v471, 0.0
    %v544 = vmax.f32 %v473, 0.0
    %v545 = vmax.f32 %v477, 0.0
    %v546 = vmax.f32 %v479, 0.0
    %v547 = vmax.f32 %v481, 0.0
    %v548 = vmax.f32 %v483, 0.0
    %v549 = vpack.c.bf16 %v487, %v485
    %v550 = vpack.c.bf16 %v488, %v486
    %v551 = vpack.c.bf16 %v491, %v489
    %v552 = vpack.c.bf16 %v492, %v490
    %v553 = vpack.c.bf16 %v495, %v493
    %v554 = vpack.c.bf16 %v496, %v494
    %v555 = vpack.c.bf16 %v499, %v497
    %v556 = vpack.c.bf16 %v500, %v498
    %v557 = vpack.c.bf16 %v503, %v501
    %v558 = vpack.c.bf16 %v504, %v502
    %v559 = vpack.c.bf16 %v507, %v505
    %v560 = vpack.c.bf16 %v508, %v506
    %v561 = vpack.c.bf16 %v511, %v509
    %v562 = vpack.c.bf16 %v512, %v510
    %v563 = vpack.c.bf16 %v515, %v513
    %v564 = vpack.c.bf16 %v516, %v514
    %v565 = vpack.c.bf16 %v519, %v517
    %v566 = vpack.c.bf16 %v520, %v518
    %v567 = vpack.c.bf16 %v523, %v521
    %v568 = vpack.c.bf16 %v524, %v522
    %v569 = vpack.c.bf16 %v527, %v525
    %v570 = vpack.c.bf16 %v528, %v526
    %v571 = vpack.c.bf16 %v531, %v529
    %v572 = vpack.c.bf16 %v532, %v530
    %v573 = vpack.c.bf16 %v535, %v533
    %v574 = vpack.c.bf16 %v536, %v534
    %v575 = vpack.c.bf16 %v539, %v537
    %v576 = vpack.c.bf16 %v540, %v538
    %v577 = vpack.c.bf16 %v543, %v541
    %v578 = vpack.c.bf16 %v544, %v542
    %v579 = vpack.c.bf16 %v547, %v545
    %v580 = vpack.c.bf16 %v548, %v546
    %v581 = vld [vmem:[#allocation2] sm:$0xff]
    %v582 = vld [vmem:[#allocation2 + $0x8] sm:$0xff]
    %v583 = vld [vmem:[#allocation2 + $0x10] sm:$0xff]
    %v584 = vld [vmem:[#allocation2 + $0x18] sm:$0xff]
    %v585 = vld [vmem:[#allocation2 + $0x20] sm:$0xff]
    %v586 = vld [vmem:[#allocation2 + $0x28] sm:$0xff]
    %v587 = vld [vmem:[#allocation2 + $0x30] sm:$0xff]
    %v588 = vld [vmem:[#allocation2 + $0x38] sm:$0xff]
    %v589 = vld [vmem:[#allocation2 + $0x40] sm:$0xff]
    %v590 = vld [vmem:[#allocation2 + $0x48] sm:$0xff]
    %v591 = vld [vmem:[#allocation2 + $0x50] sm:$0xff]
    %v592 = vld [vmem:[#allocation2 + $0x58] sm:$0xff]
    %v593 = vld [vmem:[#allocation2 + $0x60] sm:$0xff]
    %v594 = vld [vmem:[#allocation2 + $0x68] sm:$0xff]
    %v595 = vld [vmem:[#allocation2 + $0x70] sm:$0xff]
    %v596 = vld [vmem:[#allocation2 + $0x78] sm:$0xff]
    %v597 = vld [vmem:[#allocation2 + $0x80] sm:$0xff]
    %v598 = vld [vmem:[#allocation2 + $0x88] sm:$0xff]
    %v599 = vld [vmem:[#allocation2 + $0x90] sm:$0xff]
    %v600 = vld [vmem:[#allocation2 + $0x98] sm:$0xff]
    %v601 = vld [vmem:[#allocation2 + $0xa0] sm:$0xff]
    %v602 = vld [vmem:[#allocation2 + $0xa8] sm:$0xff]
    %v603 = vld [vmem:[#allocation2 + $0xb0] sm:$0xff]
    %v604 = vld [vmem:[#allocation2 + $0xb8] sm:$0xff]
    %v605 = vld [vmem:[#allocation2 + $0xc0] sm:$0xff]
    %v606 = vld [vmem:[#allocation2 + $0xc8] sm:$0xff]
    %v607 = vld [vmem:[#allocation2 + $0xd0] sm:$0xff]
    %v608 = vld [vmem:[#allocation2 + $0xd8] sm:$0xff]
    %v609 = vld [vmem:[#allocation2 + $0xe0] sm:$0xff]
    %v610 = vld [vmem:[#allocation2 + $0xe8] sm:$0xff]
    %v611 = vld [vmem:[#allocation2 + $0xf0] sm:$0xff]
    %v612 = vld [vmem:[#allocation2 + $0xf8] sm:$0xff]
    %v613 = vld [vmem:[%s5] sm:$0x3]
    %v615 = vlaneseq
    %v616 = vshrl.u32 %v615, 7
    %v617 = vsub.s32 0, %v616
    %v618 = vrot.slane %v613, %v617
    %v619 = vlaneseq
    %v620 = vshrl.u32 %v619, 7
    %v621 = vsub.s32 1, %v620
    %v622 = vrot.slane %v613, %v621
    %v657 = vunpack.c.l.b16 %v581
    %v658 = vunpack.c.h.b16 %v581
    %v659 = vunpack.c.l.b16 %v582
    %v660 = vunpack.c.h.b16 %v582
    %v661 = vunpack.c.l.b16 %v583
    %v662 = vunpack.c.h.b16 %v583
    %v663 = vunpack.c.l.b16 %v584
    %v664 = vunpack.c.h.b16 %v584
    %v665 = vunpack.c.l.b16 %v585
    %v666 = vunpack.c.h.b16 %v585
    %v667 = vunpack.c.l.b16 %v586
    %v668 = vunpack.c.h.b16 %v586
    %v669 = vunpack.c.l.b16 %v587
    %v670 = vunpack.c.h.b16 %v587
    %v671 = vunpack.c.l.b16 %v588
    %v672 = vunpack.c.h.b16 %v588
    %v673 = vunpack.c.l.b16 %v589
    %v674 = vunpack.c.h.b16 %v589
    %v675 = vunpack.c.l.b16 %v590
    %v676 = vunpack.c.h.b16 %v590
    %v677 = vunpack.c.l.b16 %v591
    %v678 = vunpack.c.h.b16 %v591
    %v679 = vunpack.c.l.b16 %v592
    %v680 = vunpack.c.h.b16 %v592
    %v681 = vunpack.c.l.b16 %v593
    %v682 = vunpack.c.h.b16 %v593
    %v683 = vunpack.c.l.b16 %v594
    %v684 = vunpack.c.h.b16 %v594
    %v685 = vunpack.c.l.b16 %v595
    %v686 = vunpack.c.h.b16 %v595
    %v687 = vunpack.c.l.b16 %v596
    %v688 = vunpack.c.h.b16 %v596
    %v689 = vunpack.c.l.b16 %v597
    %v690 = vunpack.c.h.b16 %v597
    %v691 = vunpack.c.l.b16 %v598
    %v692 = vunpack.c.h.b16 %v598
    %v693 = vunpack.c.l.b16 %v599
    %v694 = vunpack.c.h.b16 %v599
    %v695 = vunpack.c.l.b16 %v600
    %v696 = vunpack.c.h.b16 %v600
    %v697 = vunpack.c.l.b16 %v601
    %v698 = vunpack.c.h.b16 %v601
    %v699 = vunpack.c.l.b16 %v602
    %v700 = vunpack.c.h.b16 %v602
    %v701 = vunpack.c.l.b16 %v603
    %v702 = vunpack.c.h.b16 %v603
    %v703 = vunpack.c.l.b16 %v604
    %v704 = vunpack.c.h.b16 %v604
    %v705 = vunpack.c.l.b16 %v605
    %v706 = vunpack.c.h.b16 %v605
    %v707 = vunpack.c.l.b16 %v606
    %v708 = vunpack.c.h.b16 %v606
    %v709 = vunpack.c.l.b16 %v607
    %v710 = vunpack.c.h.b16 %v607
    %v711 = vunpack.c.l.b16 %v608
    %v712 = vunpack.c.h.b16 %v608
    %v713 = vunpack.c.l.b16 %v609
    %v714 = vunpack.c.h.b16 %v609
    %v715 = vunpack.c.l.b16 %v610
    %v716 = vunpack.c.h.b16 %v610
    %v717 = vunpack.c.l.b16 %v611
    %v718 = vunpack.c.h.b16 %v611
    %v719 = vunpack.c.l.b16 %v612
    %v720 = vunpack.c.h.b16 %v612
    %v721 = vpack.c.b16 %v659, %v657
    %v722 = vpack.c.b16 %v660, %v658
    %v723 = vpack.c.b16 %v663, %v661
    %v724 = vpack.c.b16 %v664, %v662
    %v725 = vpack.c.b16 %v667, %v665
    %v726 = vpack.c.b16 %v668, %v666
    %v727 = vpack.c.b16 %v671, %v669
    %v728 = vpack.c.b16 %v672, %v670
    %v729 = vpack.c.b16 %v675, %v673
    %v730 = vpack.c.b16 %v676, %v674
    %v731 = vpack.c.b16 %v679, %v677
    %v732 = vpack.c.b16 %v680, %v678
    %v733 = vpack.c.b16 %v683, %v681
    %v734 = vpack.c.b16 %v684, %v682
    %v735 = vpack.c.b16 %v687, %v685
    %v736 = vpack.c.b16 %v688, %v686
    %v737 = vpack.c.b16 %v691, %v689
    %v738 = vpack.c.b16 %v692, %v690
    %v739 = vpack.c.b16 %v695, %v693
    %v740 = vpack.c.b16 %v696, %v694
    %v741 = vpack.c.b16 %v699, %v697
    %v742 = vpack.c.b16 %v700, %v698
    %v743 = vpack.c.b16 %v703, %v701
    %v744 = vpack.c.b16 %v704, %v702
    %v745 = vpack.c.b16 %v707, %v705
    %v746 = vpack.c.b16 %v708, %v706
    %v747 = vpack.c.b16 %v711, %v709
    %v748 = vpack.c.b16 %v712, %v710
    %v749 = vpack.c.b16 %v715, %v713
    %v750 = vpack.c.b16 %v716, %v714
    %v751 = vpack.c.b16 %v719, %v717
    %v752 = vpack.c.b16 %v720, %v718
    %785 = vmatprep.subr.bf16.mxu0 %v722
    %786 = vmatpush1.bf16.msra.mxu0 %v721
    %787 = vmatprep.subr.bf16.mxu0 %v724
    %788 = vmatpush1.bf16.msra.mxu0 %v723
    %789 = vmatprep.subr.bf16.mxu0 %v726
    %790 = vmatpush1.bf16.msra.mxu0 %v725
    %791 = vmatprep.subr.bf16.mxu0 %v728
    %792 = vmatpush1.bf16.msra.mxu0 %v727
    %793 = vmatprep.subr.bf16.mxu0 %v730
    %794 = vmatpush1.bf16.msra.mxu0 %v729
    %795 = vmatprep.subr.bf16.mxu0 %v732
    %796 = vmatpush1.bf16.msra.mxu0 %v731
    %797 = vmatprep.subr.bf16.mxu0 %v734
    %798 = vmatpush1.bf16.msra.mxu0 %v733
    %799 = vmatprep.subr.bf16.mxu0 %v736
    %800 = vmatpush1.bf16.msra.mxu0 %v735
    %801 = vmatprep.subr.bf16.mxu0 %v738
    %802 = vmatpush1.bf16.msra.mxu0 %v737
    %803 = vmatprep.subr.bf16.mxu0 %v740
    %804 = vmatpush1.bf16.msra.mxu0 %v739
    %805 = vmatprep.subr.bf16.mxu0 %v742
    %806 = vmatpush1.bf16.msra.mxu0 %v741
    %807 = vmatprep.subr.bf16.mxu0 %v744
    %808 = vmatpush1.bf16.msra.mxu0 %v743
    %809 = vmatprep.subr.bf16.mxu0 %v746
    %810 = vmatpush1.bf16.msra.mxu0 %v745
    %811 = vmatprep.subr.bf16.mxu0 %v748
    %812 = vmatpush1.bf16.msra.mxu0 %v747
    %813 = vmatprep.subr.bf16.mxu0 %v750
    %814 = vmatpush1.bf16.msra.mxu0 %v749
    %815 = vmatprep.subr.bf16.mxu0 %v752
    %816 = vmatpush1.bf16.msra.mxu0 %v751
    %817 = vmatprep.mubr.bf16.mxu0 %v550
    %818 = vmatmul.mubr.bf16.gmra.mrb[0].mxu0 %v549
    %v819 = vpop.f32.mrb[0].mxu0
    %v820 = vadd.f32 %v618, %v819
    %v821 = vpop.f32.mrb[0].mxu0
    %v822 = vadd.f32 %v622, %v821
    %v823 = vpop.f32.mrb[0].mxu0
    %v824 = vadd.f32 %v618, %v823
    %v825 = vpop.f32.mrb[0].mxu0
    %v826 = vadd.f32 %v622, %v825
    %827 = vmatprep.mubr.bf16.mxu0 %v552
    %828 = vmatmul.mubr.bf16.gmra.mrb[0].mxu0 %v551
    %v829 = vpop.f32.mrb[0].mxu0
    %v830 = vadd.f32 %v618, %v829
    %v831 = vpop.f32.mrb[0].mxu0
    %v832 = vadd.f32 %v622, %v831
    %v833 = vpop.f32.mrb[0].mxu0
    %v834 = vadd.f32 %v618, %v833
    %v835 = vpop.f32.mrb[0].mxu0
    %v836 = vadd.f32 %v622, %v835
    %837 = vmatprep.mubr.bf16.mxu0 %v554
    %838 = vmatmul.mubr.bf16.gmra.mrb[0].mxu0 %v553
    %v839 = vpop.f32.mrb[0].mxu0
    %v840 = vadd.f32 %v618, %v839
    %v841 = vpop.f32.mrb[0].mxu0
    %v842 = vadd.f32 %v622, %v841
    %v843 = vpop.f32.mrb[0].mxu0
    %v844 = vadd.f32 %v618, %v843
    %v845 = vpop.f32.mrb[0].mxu0
    %v846 = vadd.f32 %v622, %v845
    %847 = vmatprep.mubr.bf16.mxu0 %v556
    %848 = vmatmul.mubr.bf16.gmra.mrb[0].mxu0 %v555
    %v849 = vpop.f32.mrb[0].mxu0
    %v850 = vadd.f32 %v618, %v849
    %v851 = vpop.f32.mrb[0].mxu0
    %v852 = vadd.f32 %v622, %v851
    %v853 = vpop.f32.mrb[0].mxu0
    %v854 = vadd.f32 %v618, %v853
    %v855 = vpop.f32.mrb[0].mxu0
    %v856 = vadd.f32 %v622, %v855
    %857 = vmatprep.mubr.bf16.mxu0 %v558
    %858 = vmatmul.mubr.bf16.gmra.mrb[0].mxu0 %v557
    %v859 = vpop.f32.mrb[0].mxu0
    %v860 = vadd.f32 %v618, %v859
    %v861 = vpop.f32.mrb[0].mxu0
    %v862 = vadd.f32 %v622, %v861
    %v863 = vpop.f32.mrb[0].mxu0
    %v864 = vadd.f32 %v618, %v863
    %v865 = vpop.f32.mrb[0].mxu0
    %v866 = vadd.f32 %v622, %v865
    %867 = vmatprep.mubr.bf16.mxu0 %v560
    %868 = vmatmul.mubr.bf16.gmra.mrb[0].mxu0 %v559
    %v869 = vpop.f32.mrb[0].mxu0
    %v870 = vadd.f32 %v618, %v869
    %v871 = vpop.f32.mrb[0].mxu0
    %v872 = vadd.f32 %v622, %v871
    %v873 = vpop.f32.mrb[0].mxu0
    %v874 = vadd.f32 %v618, %v873
    %v875 = vpop.f32.mrb[0].mxu0
    %v876 = vadd.f32 %v622, %v875
    %877 = vmatprep.mubr.bf16.mxu0 %v562
    %878 = vmatmul.mubr.bf16.gmra.mrb[0].mxu0 %v561
    %v879 = vpop.f32.mrb[0].mxu0
    %v880 = vadd.f32 %v618, %v879
    %v881 = vpop.f32.mrb[0].mxu0
    %v882 = vadd.f32 %v622, %v881
    %v883 = vpop.f32.mrb[0].mxu0
    %v884 = vadd.f32 %v618, %v883
    %v885 = vpop.f32.mrb[0].mxu0
    %v886 = vadd.f32 %v622, %v885
    %887 = vmatprep.mubr.bf16.mxu0 %v564
    %888 = vmatmul.mubr.bf16.gmra.mrb[0].mxu0 %v563
    %v889 = vpop.f32.mrb[0].mxu0
    %v890 = vadd.f32 %v618, %v889
    %v891 = vpop.f32.mrb[0].mxu0
    %v892 = vadd.f32 %v622, %v891
    %v893 = vpop.f32.mrb[0].mxu0
    %v894 = vadd.f32 %v618, %v893
    %v895 = vpop.f32.mrb[0].mxu0
    %v896 = vadd.f32 %v622, %v895
    %897 = vmatprep.mubr.bf16.mxu0 %v566
    %898 = vmatmul.mubr.bf16.gmra.mrb[0].mxu0 %v565
    %v899 = vpop.f32.mrb[0].mxu0
    %v900 = vadd.f32 %v618, %v899
    %v901 = vpop.f32.mrb[0].mxu0
    %v902 = vadd.f32 %v622, %v901
    %v903 = vpop.f32.mrb[0].mxu0
    %v904 = vadd.f32 %v618, %v903
    %v905 = vpop.f32.mrb[0].mxu0
    %v906 = vadd.f32 %v622, %v905
    %907 = vmatprep.mubr.bf16.mxu0 %v568
    %908 = vmatmul.mubr.bf16.gmra.mrb[0].mxu0 %v567
    %v909 = vpop.f32.mrb[0].mxu0
    %v910 = vadd.f32 %v618, %v909
    %v911 = vpop.f32.mrb[0].mxu0
    %v912 = vadd.f32 %v622, %v911
    %v913 = vpop.f32.mrb[0].mxu0
    %v914 = vadd.f32 %v618, %v913
    %v915 = vpop.f32.mrb[0].mxu0
    %v916 = vadd.f32 %v622, %v915
    %917 = vmatprep.mubr.bf16.mxu0 %v570
    %918 = vmatmul.mubr.bf16.gmra.mrb[0].mxu0 %v569
    %v919 = vpop.f32.mrb[0].mxu0
    %v920 = vadd.f32 %v618, %v919
    %v921 = vpop.f32.mrb[0].mxu0
    %v922 = vadd.f32 %v622, %v921
    %v923 = vpop.f32.mrb[0].mxu0
    %v924 = vadd.f32 %v618, %v923
    %v925 = vpop.f32.mrb[0].mxu0
    %v926 = vadd.f32 %v622, %v925
    %927 = vmatprep.mubr.bf16.mxu0 %v572
    %928 = vmatmul.mubr.bf16.gmra.mrb[0].mxu0 %v571
    %v929 = vpop.f32.mrb[0].mxu0
    %v930 = vadd.f32 %v618, %v929
    %v931 = vpop.f32.mrb[0].mxu0
    %v932 = vadd.f32 %v622, %v931
    %v933 = vpop.f32.mrb[0].mxu0
    %v934 = vadd.f32 %v618, %v933
    %v935 = vpop.f32.mrb[0].mxu0
    %v936 = vadd.f32 %v622, %v935
    %937 = vmatprep.mubr.bf16.mxu0 %v574
    %938 = vmatmul.mubr.bf16.gmra.mrb[0].mxu0 %v573
    %v939 = vpop.f32.mrb[0].mxu0
    %v940 = vadd.f32 %v618, %v939
    %v941 = vpop.f32.mrb[0].mxu0
    %v942 = vadd.f32 %v622, %v941
    %v943 = vpop.f32.mrb[0].mxu0
    %v944 = vadd.f32 %v618, %v943
    %v945 = vpop.f32.mrb[0].mxu0
    %v946 = vadd.f32 %v622, %v945
    %947 = vmatprep.mubr.bf16.mxu0 %v576
    %948 = vmatmul.mubr.bf16.gmra.mrb[0].mxu0 %v575
    %v949 = vpop.f32.mrb[0].mxu0
    %v950 = vadd.f32 %v618, %v949
    %v951 = vpop.f32.mrb[0].mxu0
    %v952 = vadd.f32 %v622, %v951
    %v953 = vpop.f32.mrb[0].mxu0
    %v954 = vadd.f32 %v618, %v953
    %v955 = vpop.f32.mrb[0].mxu0
    %v956 = vadd.f32 %v622, %v955
    %957 = vmatprep.mubr.bf16.mxu0 %v578
    %958 = vmatmul.mubr.bf16.gmra.mrb[0].mxu0 %v577
    %v959 = vpop.f32.mrb[0].mxu0
    %v960 = vadd.f32 %v618, %v959
    %v961 = vpop.f32.mrb[0].mxu0
    %v962 = vadd.f32 %v622, %v961
    %v963 = vpop.f32.mrb[0].mxu0
    %v964 = vadd.f32 %v618, %v963
    %v965 = vpop.f32.mrb[0].mxu0
    %v966 = vadd.f32 %v622, %v965
    %967 = vmatprep.mubr.bf16.mxu0 %v580
    %968 = vmatmul.mubr.bf16.gmra.mrb[0].mxu0 %v579
    %v969 = vpop.f32.mrb[0].mxu0
    %v970 = vadd.f32 %v618, %v969
    %v971 = vpop.f32.mrb[0].mxu0
    %v972 = vadd.f32 %v622, %v971
    %v973 = vpop.f32.mrb[0].mxu0
    %v974 = vadd.f32 %v618, %v973
    %v975 = vpop.f32.mrb[0].mxu0
    %v976 = vadd.f32 %v622, %v975
    %977 = vdwg.mxu0
    %v978 = vmax.f32 %v820, 0.0
    %v979 = vmax.f32 %v822, 0.0
    %v980 = vmax.f32 %v824, 0.0
    %v981 = vmax.f32 %v826, 0.0
    %v982 = vmax.f32 %v830, 0.0
    %v983 = vmax.f32 %v832, 0.0
    %v984 = vmax.f32 %v834, 0.0
    %v985 = vmax.f32 %v836, 0.0
    %v986 = vmax.f32 %v840, 0.0
    %v987 = vmax.f32 %v842, 0.0
    %v988 = vmax.f32 %v844, 0.0
    %v989 = vmax.f32 %v846, 0.0
    %v990 = vmax.f32 %v850, 0.0
    %v991 = vmax.f32 %v852, 0.0
    %v992 = vmax.f32 %v854, 0.0
    %v993 = vmax.f32 %v856, 0.0
    %v994 = vmax.f32 %v860, 0.0
    %v995 = vmax.f32 %v862, 0.0
    %v996 = vmax.f32 %v864, 0.0
    %v997 = vmax.f32 %v866, 0.0
    %v998 = vmax.f32 %v870, 0.0
    %v999 = vmax.f32 %v872, 0.0
    %v1000 = vmax.f32 %v874, 0.0
    %v1001 = vmax.f32 %v876, 0.0
    %v1002 = vmax.f32 %v880, 0.0
    %v1003 = vmax.f32 %v882, 0.0
    %v1004 = vmax.f32 %v884, 0.0
    %v1005 = vmax.f32 %v886, 0.0
    %v1006 = vmax.f32 %v890, 0.0
    %v1007 = vmax.f32 %v892, 0.0
    %v1008 = vmax.f32 %v894, 0.0
    %v1009 = vmax.f32 %v896, 0.0
    %v1010 = vmax.f32 %v900, 0.0
    %v1011 = vmax.f32 %v902, 0.0
    %v1012 = vmax.f32 %v904, 0.0
    %v1013 = vmax.f32 %v906, 0.0
    %v1014 = vmax.f32 %v910, 0.0
    %v1015 = vmax.f32 %v912, 0.0
    %v1016 = vmax.f32 %v914, 0.0
    %v1017 = vmax.f32 %v916, 0.0
    %v1018 = vmax.f32 %v920, 0.0
    %v1019 = vmax.f32 %v922, 0.0
    %v1020 = vmax.f32 %v924, 0.0
    %v1021 = vmax.f32 %v926, 0.0
    %v1022 = vmax.f32 %v930, 0.0
    %v1023 = vmax.f32 %v932, 0.0
    %v1024 = vmax.f32 %v934, 0.0
    %v1025 = vmax.f32 %v936, 0.0
    %v1026 = vmax.f32 %v940, 0.0
    %v1027 = vmax.f32 %v942, 0.0
    %v1028 = vmax.f32 %v944, 0.0
    %v1029 = vmax.f32 %v946, 0.0
    %v1030 = vmax.f32 %v950, 0.0
    %v1031 = vmax.f32 %v952, 0.0
    %v1032 = vmax.f32 %v954, 0.0
    %v1033 = vmax.f32 %v956, 0.0
    %v1034 = vmax.f32 %v960, 0.0
    %v1035 = vmax.f32 %v962, 0.0
    %v1036 = vmax.f32 %v964, 0.0
    %v1037 = vmax.f32 %v966, 0.0
    %v1038 = vmax.f32 %v970, 0.0
    %v1039 = vmax.f32 %v972, 0.0
    %v1040 = vmax.f32 %v974, 0.0
    %v1041 = vmax.f32 %v976, 0.0
    %v1042 = vpack.c.bf16 %v980, %v978
    %v1043 = vpack.c.bf16 %v981, %v979
    %v1044 = vpack.c.bf16 %v984, %v982
    %v1045 = vpack.c.bf16 %v985, %v983
    %v1046 = vpack.c.bf16 %v988, %v986
    %v1047 = vpack.c.bf16 %v989, %v987
    %v1048 = vpack.c.bf16 %v992, %v990
    %v1049 = vpack.c.bf16 %v993, %v991
    %v1050 = vpack.c.bf16 %v996, %v994
    %v1051 = vpack.c.bf16 %v997, %v995
    %v1052 = vpack.c.bf16 %v1000, %v998
    %v1053 = vpack.c.bf16 %v1001, %v999
    %v1054 = vpack.c.bf16 %v1004, %v1002
    %v1055 = vpack.c.bf16 %v1005, %v1003
    %v1056 = vpack.c.bf16 %v1008, %v1006
    %v1057 = vpack.c.bf16 %v1009, %v1007
    %v1058 = vpack.c.bf16 %v1012, %v1010
    %v1059 = vpack.c.bf16 %v1013, %v1011
    %v1060 = vpack.c.bf16 %v1016, %v1014
    %v1061 = vpack.c.bf16 %v1017, %v1015
    %v1062 = vpack.c.bf16 %v1020, %v1018
    %v1063 = vpack.c.bf16 %v1021, %v1019
    %v1064 = vpack.c.bf16 %v1024, %v1022
    %v1065 = vpack.c.bf16 %v1025, %v1023
    %v1066 = vpack.c.bf16 %v1028, %v1026
    %v1067 = vpack.c.bf16 %v1029, %v1027
    %v1068 = vpack.c.bf16 %v1032, %v1030
    %v1069 = vpack.c.bf16 %v1033, %v1031
    %v1070 = vpack.c.bf16 %v1036, %v1034
    %v1071 = vpack.c.bf16 %v1037, %v1035
    %v1072 = vpack.c.bf16 %v1040, %v1038
    %v1073 = vpack.c.bf16 %v1041, %v1039
    %s1074 = scalar_lea.vmem [#allocation2], 256
    %v1075 = vld [vmem:[%s1074] sm:$0xff]
    %v1076 = vld [vmem:[%s1074 + $0x8] sm:$0xff]
    %v1077 = vld [vmem:[%s1074 + $0x10] sm:$0xff]
    %v1078 = vld [vmem:[%s1074 + $0x18] sm:$0xff]
    %v1079 = vld [vmem:[%s1074 + $0x20] sm:$0xff]
    %v1080 = vld [vmem:[%s1074 + $0x28] sm:$0xff]
    %v1081 = vld [vmem:[%s1074 + $0x30] sm:$0xff]
    %v1082 = vld [vmem:[%s1074 + $0x38] sm:$0xff]
    %v1083 = vld [vmem:[%s1074 + $0x40] sm:$0xff]
    %v1084 = vld [vmem:[%s1074 + $0x48] sm:$0xff]
    %v1085 = vld [vmem:[%s1074 + $0x50] sm:$0xff]
    %v1086 = vld [vmem:[%s1074 + $0x58] sm:$0xff]
    %v1087 = vld [vmem:[%s1074 + $0x60] sm:$0xff]
    %v1088 = vld [vmem:[%s1074 + $0x68] sm:$0xff]
    %v1089 = vld [vmem:[%s1074 + $0x70] sm:$0xff]
    %v1090 = vld [vmem:[%s1074 + $0x78] sm:$0xff]
    %v1091 = vld [vmem:[%s1074 + $0x80] sm:$0xff]
    %v1092 = vld [vmem:[%s1074 + $0x88] sm:$0xff]
    %v1093 = vld [vmem:[%s1074 + $0x90] sm:$0xff]
    %v1094 = vld [vmem:[%s1074 + $0x98] sm:$0xff]
    %v1095 = vld [vmem:[%s1074 + $0xa0] sm:$0xff]
    %v1096 = vld [vmem:[%s1074 + $0xa8] sm:$0xff]
    %v1097 = vld [vmem:[%s1074 + $0xb0] sm:$0xff]
    %v1098 = vld [vmem:[%s1074 + $0xb8] sm:$0xff]
    %v1099 = vld [vmem:[%s1074 + $0xc0] sm:$0xff]
    %v1100 = vld [vmem:[%s1074 + $0xc8] sm:$0xff]
    %v1101 = vld [vmem:[%s1074 + $0xd0] sm:$0xff]
    %v1102 = vld [vmem:[%s1074 + $0xd8] sm:$0xff]
    %v1103 = vld [vmem:[%s1074 + $0xe0] sm:$0xff]
    %v1104 = vld [vmem:[%s1074 + $0xe8] sm:$0xff]
    %v1105 = vld [vmem:[%s1074 + $0xf0] sm:$0xff]
    %v1106 = vld [vmem:[%s1074 + $0xf8] sm:$0xff]
    %s1107 = scalar_lea.vmem %s5, 2
    %v1108 = vld [vmem:[%s1107] sm:$0x3]
    %v1110 = vlaneseq
    %v1111 = vshrl.u32 %v1110, 7
    %v1112 = vsub.s32 0, %v1111
    %v1113 = vrot.slane %v1108, %v1112
    %v1114 = vlaneseq
    %v1115 = vshrl.u32 %v1114, 7
    %v1116 = vsub.s32 1, %v1115
    %v1117 = vrot.slane %v1108, %v1116
    %v1152 = vunpack.c.l.b16 %v1075
    %v1153 = vunpack.c.h.b16 %v1075
    %v1154 = vunpack.c.l.b16 %v1076
    %v1155 = vunpack.c.h.b16 %v1076
    %v1156 = vunpack.c.l.b16 %v1077
    %v1157 = vunpack.c.h.b16 %v1077
    %v1158 = vunpack.c.l.b16 %v1078
    %v1159 = vunpack.c.h.b16 %v1078
    %v1160 = vunpack.c.l.b16 %v1079
    %v1161 = vunpack.c.h.b16 %v1079
    %v1162 = vunpack.c.l.b16 %v1080
    %v1163 = vunpack.c.h.b16 %v1080
    %v1164 = vunpack.c.l.b16 %v1081
    %v1165 = vunpack.c.h.b16 %v1081
    %v1166 = vunpack.c.l.b16 %v1082
    %v1167 = vunpack.c.h.b16 %v1082
    %v1168 = vunpack.c.l.b16 %v1083
    %v1169 = vunpack.c.h.b16 %v1083
    %v1170 = vunpack.c.l.b16 %v1084
    %v1171 = vunpack.c.h.b16 %v1084
    %v1172 = vunpack.c.l.b16 %v1085
    %v1173 = vunpack.c.h.b16 %v1085
    %v1174 = vunpack.c.l.b16 %v1086
    %v1175 = vunpack.c.h.b16 %v1086
    %v1176 = vunpack.c.l.b16 %v1087
    %v1177 = vunpack.c.h.b16 %v1087
    %v1178 = vunpack.c.l.b16 %v1088
    %v1179 = vunpack.c.h.b16 %v1088
    %v1180 = vunpack.c.l.b16 %v1089
    %v1181 = vunpack.c.h.b16 %v1089
    %v1182 = vunpack.c.l.b16 %v1090
    %v1183 = vunpack.c.h.b16 %v1090
    %v1184 = vunpack.c.l.b16 %v1091
    %v1185 = vunpack.c.h.b16 %v1091
    %v1186 = vunpack.c.l.b16 %v1092
    %v1187 = vunpack.c.h.b16 %v1092
    %v1188 = vunpack.c.l.b16 %v1093
    %v1189 = vunpack.c.h.b16 %v1093
    %v1190 = vunpack.c.l.b16 %v1094
    %v1191 = vunpack.c.h.b16 %v1094
    %v1192 = vunpack.c.l.b16 %v1095
    %v1193 = vunpack.c.h.b16 %v1095
    %v1194 = vunpack.c.l.b16 %v1096
    %v1195 = vunpack.c.h.b16 %v1096
    %v1196 = vunpack.c.l.b16 %v1097
    %v1197 = vunpack.c.h.b16 %v1097
    %v1198 = vunpack.c.l.b16 %v1098
    %v1199 = vunpack.c.h.b16 %v1098
    %v1200 = vunpack.c.l.b16 %v1099
    %v1201 = vunpack.c.h.b16 %v1099
    %v1202 = vunpack.c.l.b16 %v1100
    %v1203 = vunpack.c.h.b16 %v1100
    %v1204 = vunpack.c.l.b16 %v1101
    %v1205 = vunpack.c.h.b16 %v1101
    %v1206 = vunpack.c.l.b16 %v1102
    %v1207 = vunpack.c.h.b16 %v1102
    %v1208 = vunpack.c.l.b16 %v1103
    %v1209 = vunpack.c.h.b16 %v1103
    %v1210 = vunpack.c.l.b16 %v1104
    %v1211 = vunpack.c.h.b16 %v1104
    %v1212 = vunpack.c.l.b16 %v1105
    %v1213 = vunpack.c.h.b16 %v1105
    %v1214 = vunpack.c.l.b16 %v1106
    %v1215 = vunpack.c.h.b16 %v1106
    %v1216 = vpack.c.b16 %v1154, %v1152
    %v1217 = vpack.c.b16 %v1155, %v1153
    %v1218 = vpack.c.b16 %v1158, %v1156
    %v1219 = vpack.c.b16 %v1159, %v1157
    %v1220 = vpack.c.b16 %v1162, %v1160
    %v1221 = vpack.c.b16 %v1163, %v1161
    %v1222 = vpack.c.b16 %v1166, %v1164
    %v1223 = vpack.c.b16 %v1167, %v1165
    %v1224 = vpack.c.b16 %v1170, %v1168
    %v1225 = vpack.c.b16 %v1171, %v1169
    %v1226 = vpack.c.b16 %v1174, %v1172
    %v1227 = vpack.c.b16 %v1175, %v1173
    %v1228 = vpack.c.b16 %v1178, %v1176
    %v1229 = vpack.c.b16 %v1179, %v1177
    %v1230 = vpack.c.b16 %v1182, %v1180
    %v1231 = vpack.c.b16 %v1183, %v1181
    %v1232 = vpack.c.b16 %v1186, %v1184
    %v1233 = vpack.c.b16 %v1187, %v1185
    %v1234 = vpack.c.b16 %v1190, %v1188
    %v1235 = vpack.c.b16 %v1191, %v1189
    %v1236 = vpack.c.b16 %v1194, %v1192
    %v1237 = vpack.c.b16 %v1195, %v1193
    %v1238 = vpack.c.b16 %v1198, %v1196
    %v1239 = vpack.c.b16 %v1199, %v1197
    %v1240 = vpack.c.b16 %v1202, %v1200
    %v1241 = vpack.c.b16 %v1203, %v1201
    %v1242 = vpack.c.b16 %v1206, %v1204
    %v1243 = vpack.c.b16 %v1207, %v1205
    %v1244 = vpack.c.b16 %v1210, %v1208
    %v1245 = vpack.c.b16 %v1211, %v1209
    %v1246 = vpack.c.b16 %v1214, %v1212
    %v1247 = vpack.c.b16 %v1215, %v1213
    %1280 = vmatprep.subr.bf16.mxu0 %v1217
    %1281 = vmatpush1.bf16.msra.mxu0 %v1216
    %1282 = vmatprep.subr.bf16.mxu0 %v1219
    %1283 = vmatpush1.bf16.msra.mxu0 %v1218
    %1284 = vmatprep.subr.bf16.mxu0 %v1221
    %1285 = vmatpush1.bf16.msra.mxu0 %v1220
    %1286 = vmatprep.subr.bf16.mxu0 %v1223
    %1287 = vmatpush1.bf16.msra.mxu0 %v1222
    %1288 = vmatprep.subr.bf16.mxu0 %v1225
    %1289 = vmatpush1.bf16.msra.mxu0 %v1224
    %1290 = vmatprep.subr.bf16.mxu0 %v1227
    %1291 = vmatpush1.bf16.msra.mxu0 %v1226
    %1292 = vmatprep.subr.bf16.mxu0 %v1229
    %1293 = vmatpush1.bf16.msra.mxu0 %v1228
    %1294 = vmatprep.subr.bf16.mxu0 %v1231
    %1295 = vmatpush1.bf16.msra.mxu0 %v1230
    %1296 = vmatprep.subr.bf16.mxu0 %v1233
    %1297 = vmatpush1.bf16.msra.mxu0 %v1232
    %1298 = vmatprep.subr.bf16.mxu0 %v1235
    %1299 = vmatpush1.bf16.msra.mxu0 %v1234
    %1300 = vmatprep.subr.bf16.mxu0 %v1237
    %1301 = vmatpush1.bf16.msra.mxu0 %v1236
    %1302 = vmatprep.subr.bf16.mxu0 %v1239
    %1303 = vmatpush1.bf16.msra.mxu0 %v1238
    %1304 = vmatprep.subr.bf16.mxu0 %v1241
    %1305 = vmatpush1.bf16.msra.mxu0 %v1240
    %1306 = vmatprep.subr.bf16.mxu0 %v1243
    %1307 = vmatpush1.bf16.msra.mxu0 %v1242
    %1308 = vmatprep.subr.bf16.mxu0 %v1245
    %1309 = vmatpush1.bf16.msra.mxu0 %v1244
    %1310 = vmatprep.subr.bf16.mxu0 %v1247
    %1311 = vmatpush1.bf16.msra.mxu0 %v1246
    %1312 = vmatprep.mubr.bf16.mxu0 %v1043
    %1313 = vmatmul.mubr.bf16.gmra.mrb[0].mxu0 %v1042
    %v1314 = vpop.f32.mrb[0].mxu0
    %v1315 = vadd.f32 %v1113, %v1314
    %v1316 = vpop.f32.mrb[0].mxu0
    %v1317 = vadd.f32 %v1117, %v1316
    %v1318 = vpop.f32.mrb[0].mxu0
    %v1319 = vadd.f32 %v1113, %v1318
    %v1320 = vpop.f32.mrb[0].mxu0
    %v1321 = vadd.f32 %v1117, %v1320
    %1322 = vmatprep.mubr.bf16.mxu0 %v1045
    %1323 = vmatmul.mubr.bf16.gmra.mrb[0].mxu0 %v1044
    %v1324 = vpop.f32.mrb[0].mxu0
    %v1325 = vadd.f32 %v1113, %v1324
    %v1326 = vpop.f32.mrb[0].mxu0
    %v1327 = vadd.f32 %v1117, %v1326
    %v1328 = vpop.f32.mrb[0].mxu0
    %v1329 = vadd.f32 %v1113, %v1328
    %v1330 = vpop.f32.mrb[0].mxu0
    %v1331 = vadd.f32 %v1117, %v1330
    %1332 = vmatprep.mubr.bf16.mxu0 %v1047
    %1333 = vmatmul.mubr.bf16.gmra.mrb[0].mxu0 %v1046
    %v1334 = vpop.f32.mrb[0].mxu0
    %v1335 = vadd.f32 %v1113, %v1334
    %v1336 = vpop.f32.mrb[0].mxu0
    %v1337 = vadd.f32 %v1117, %v1336
    %v1338 = vpop.f32.mrb[0].mxu0
    %v1339 = vadd.f32 %v1113, %v1338
    %v1340 = vpop.f32.mrb[0].mxu0
    %v1341 = vadd.f32 %v1117, %v1340
    %1342 = vmatprep.mubr.bf16.mxu0 %v1049
    %1343 = vmatmul.mubr.bf16.gmra.mrb[0].mxu0 %v1048
    %v1344 = vpop.f32.mrb[0].mxu0
    %v1345 = vadd.f32 %v1113, %v1344
    %v1346 = vpop.f32.mrb[0].mxu0
    %v1347 = vadd.f32 %v1117, %v1346
    %v1348 = vpop.f32.mrb[0].mxu0
    %v1349 = vadd.f32 %v1113, %v1348
    %v1350 = vpop.f32.mrb[0].mxu0
    %v1351 = vadd.f32 %v1117, %v1350
    %1352 = vmatprep.mubr.bf16.mxu0 %v1051
    %1353 = vmatmul.mubr.bf16.gmra.mrb[0].mxu0 %v1050
    %v1354 = vpop.f32.mrb[0].mxu0
    %v1355 = vadd.f32 %v1113, %v1354
    %v1356 = vpop.f32.mrb[0].mxu0
    %v1357 = vadd.f32 %v1117, %v1356
    %v1358 = vpop.f32.mrb[0].mxu0
    %v1359 = vadd.f32 %v1113, %v1358
    %v1360 = vpop.f32.mrb[0].mxu0
    %v1361 = vadd.f32 %v1117, %v1360
    %1362 = vmatprep.mubr.bf16.mxu0 %v1053
    %1363 = vmatmul.mubr.bf16.gmra.mrb[0].mxu0 %v1052
    %v1364 = vpop.f32.mrb[0].mxu0
    %v1365 = vadd.f32 %v1113, %v1364
    %v1366 = vpop.f32.mrb[0].mxu0
    %v1367 = vadd.f32 %v1117, %v1366
    %v1368 = vpop.f32.mrb[0].mxu0
    %v1369 = vadd.f32 %v1113, %v1368
    %v1370 = vpop.f32.mrb[0].mxu0
    %v1371 = vadd.f32 %v1117, %v1370
    %1372 = vmatprep.mubr.bf16.mxu0 %v1055
    %1373 = vmatmul.mubr.bf16.gmra.mrb[0].mxu0 %v1054
    %v1374 = vpop.f32.mrb[0].mxu0
    %v1375 = vadd.f32 %v1113, %v1374
    %v1376 = vpop.f32.mrb[0].mxu0
    %v1377 = vadd.f32 %v1117, %v1376
    %v1378 = vpop.f32.mrb[0].mxu0
    %v1379 = vadd.f32 %v1113, %v1378
    %v1380 = vpop.f32.mrb[0].mxu0
    %v1381 = vadd.f32 %v1117, %v1380
    %1382 = vmatprep.mubr.bf16.mxu0 %v1057
    %1383 = vmatmul.mubr.bf16.gmra.mrb[0].mxu0 %v1056
    %v1384 = vpop.f32.mrb[0].mxu0
    %v1385 = vadd.f32 %v1113, %v1384
    %v1386 = vpop.f32.mrb[0].mxu0
    %v1387 = vadd.f32 %v1117, %v1386
    %v1388 = vpop.f32.mrb[0].mxu0
    %v1389 = vadd.f32 %v1113, %v1388
    %v1390 = vpop.f32.mrb[0].mxu0
    %v1391 = vadd.f32 %v1117, %v1390
    %1392 = vmatprep.mubr.bf16.mxu0 %v1059
    %1393 = vmatmul.mubr.bf16.gmra.mrb[0].mxu0 %v1058
    %v1394 = vpop.f32.mrb[0].mxu0
    %v1395 = vadd.f32 %v1113, %v1394
    %v1396 = vpop.f32.mrb[0].mxu0
    %v1397 = vadd.f32 %v1117, %v1396
    %v1398 = vpop.f32.mrb[0].mxu0
    %v1399 = vadd.f32 %v1113, %v1398
    %v1400 = vpop.f32.mrb[0].mxu0
    %v1401 = vadd.f32 %v1117, %v1400
    %1402 = vmatprep.mubr.bf16.mxu0 %v1061
    %1403 = vmatmul.mubr.bf16.gmra.mrb[0].mxu0 %v1060
    %v1404 = vpop.f32.mrb[0].mxu0
    %v1405 = vadd.f32 %v1113, %v1404
    %v1406 = vpop.f32.mrb[0].mxu0
    %v1407 = vadd.f32 %v1117, %v1406
    %v1408 = vpop.f32.mrb[0].mxu0
    %v1409 = vadd.f32 %v1113, %v1408
    %v1410 = vpop.f32.mrb[0].mxu0
    %v1411 = vadd.f32 %v1117, %v1410
    %1412 = vmatprep.mubr.bf16.mxu0 %v1063
    %1413 = vmatmul.mubr.bf16.gmra.mrb[0].mxu0 %v1062
    %v1414 = vpop.f32.mrb[0].mxu0
    %v1415 = vadd.f32 %v1113, %v1414
    %v1416 = vpop.f32.mrb[0].mxu0
    %v1417 = vadd.f32 %v1117, %v1416
    %v1418 = vpop.f32.mrb[0].mxu0
    %v1419 = vadd.f32 %v1113, %v1418
    %v1420 = vpop.f32.mrb[0].mxu0
    %v1421 = vadd.f32 %v1117, %v1420
    %1422 = vmatprep.mubr.bf16.mxu0 %v1065
    %1423 = vmatmul.mubr.bf16.gmra.mrb[0].mxu0 %v1064
    %v1424 = vpop.f32.mrb[0].mxu0
    %v1425 = vadd.f32 %v1113, %v1424
    %v1426 = vpop.f32.mrb[0].mxu0
    %v1427 = vadd.f32 %v1117, %v1426
    %v1428 = vpop.f32.mrb[0].mxu0
    %v1429 = vadd.f32 %v1113, %v1428
    %v1430 = vpop.f32.mrb[0].mxu0
    %v1431 = vadd.f32 %v1117, %v1430
    %1432 = vmatprep.mubr.bf16.mxu0 %v1067
    %1433 = vmatmul.mubr.bf16.gmra.mrb[0].mxu0 %v1066
    %v1434 = vpop.f32.mrb[0].mxu0
    %v1435 = vadd.f32 %v1113, %v1434
    %v1436 = vpop.f32.mrb[0].mxu0
    %v1437 = vadd.f32 %v1117, %v1436
    %v1438 = vpop.f32.mrb[0].mxu0
    %v1439 = vadd.f32 %v1113, %v1438
    %v1440 = vpop.f32.mrb[0].mxu0
    %v1441 = vadd.f32 %v1117, %v1440
    %1442 = vmatprep.mubr.bf16.mxu0 %v1069
    %1443 = vmatmul.mubr.bf16.gmra.mrb[0].mxu0 %v1068
    %v1444 = vpop.f32.mrb[0].mxu0
    %v1445 = vadd.f32 %v1113, %v1444
    %v1446 = vpop.f32.mrb[0].mxu0
    %v1447 = vadd.f32 %v1117, %v1446
    %v1448 = vpop.f32.mrb[0].mxu0
    %v1449 = vadd.f32 %v1113, %v1448
    %v1450 = vpop.f32.mrb[0].mxu0
    %v1451 = vadd.f32 %v1117, %v1450
    %1452 = vmatprep.mubr.bf16.mxu0 %v1071
    %1453 = vmatmul.mubr.bf16.gmra.mrb[0].mxu0 %v1070
    %v1454 = vpop.f32.mrb[0].mxu0
    %v1455 = vadd.f32 %v1113, %v1454
    %v1456 = vpop.f32.mrb[0].mxu0
    %v1457 = vadd.f32 %v1117, %v1456
    %v1458 = vpop.f32.mrb[0].mxu0
    %v1459 = vadd.f32 %v1113, %v1458
    %v1460 = vpop.f32.mrb[0].mxu0
    %v1461 = vadd.f32 %v1117, %v1460
    %1462 = vmatprep.mubr.bf16.mxu0 %v1073
    %1463 = vmatmul.mubr.bf16.gmra.mrb[0].mxu0 %v1072
    %v1464 = vpop.f32.mrb[0].mxu0
    %v1465 = vadd.f32 %v1113, %v1464
    %v1466 = vpop.f32.mrb[0].mxu0
    %v1467 = vadd.f32 %v1117, %v1466
    %v1468 = vpop.f32.mrb[0].mxu0
    %v1469 = vadd.f32 %v1113, %v1468
    %v1470 = vpop.f32.mrb[0].mxu0
    %v1471 = vadd.f32 %v1117, %v1470
    %1472 = vdwg.mxu0
    %v1473 = vmax.f32 %v1315, 0.0
    %v1474 = vmax.f32 %v1317, 0.0
    %v1475 = vmax.f32 %v1319, 0.0
    %v1476 = vmax.f32 %v1321, 0.0
    %v1477 = vmax.f32 %v1325, 0.0
    %v1478 = vmax.f32 %v1327, 0.0
    %v1479 = vmax.f32 %v1329, 0.0
    %v1480 = vmax.f32 %v1331, 0.0
    %v1481 = vmax.f32 %v1335, 0.0
    %v1482 = vmax.f32 %v1337, 0.0
    %v1483 = vmax.f32 %v1339, 0.0
    %v1484 = vmax.f32 %v1341, 0.0
    %v1485 = vmax.f32 %v1345, 0.0
    %v1486 = vmax.f32 %v1347, 0.0
    %v1487 = vmax.f32 %v1349, 0.0
    %v1488 = vmax.f32 %v1351, 0.0
    %v1489 = vmax.f32 %v1355, 0.0
    %v1490 = vmax.f32 %v1357, 0.0
    %v1491 = vmax.f32 %v1359, 0.0
    %v1492 = vmax.f32 %v1361, 0.0
    %v1493 = vmax.f32 %v1365, 0.0
    %v1494 = vmax.f32 %v1367, 0.0
    %v1495 = vmax.f32 %v1369, 0.0
    %v1496 = vmax.f32 %v1371, 0.0
    %v1497 = vmax.f32 %v1375, 0.0
    %v1498 = vmax.f32 %v1377, 0.0
    %v1499 = vmax.f32 %v1379, 0.0
    %v1500 = vmax.f32 %v1381, 0.0
    %v1501 = vmax.f32 %v1385, 0.0
    %v1502 = vmax.f32 %v1387, 0.0
    %v1503 = vmax.f32 %v1389, 0.0
    %v1504 = vmax.f32 %v1391, 0.0
    %v1505 = vmax.f32 %v1395, 0.0
    %v1506 = vmax.f32 %v1397, 0.0
    %v1507 = vmax.f32 %v1399, 0.0
    %v1508 = vmax.f32 %v1401, 0.0
    %v1509 = vmax.f32 %v1405, 0.0
    %v1510 = vmax.f32 %v1407, 0.0
    %v1511 = vmax.f32 %v1409, 0.0
    %v1512 = vmax.f32 %v1411, 0.0
    %v1513 = vmax.f32 %v1415, 0.0
    %v1514 = vmax.f32 %v1417, 0.0
    %v1515 = vmax.f32 %v1419, 0.0
    %v1516 = vmax.f32 %v1421, 0.0
    %v1517 = vmax.f32 %v1425, 0.0
    %v1518 = vmax.f32 %v1427, 0.0
    %v1519 = vmax.f32 %v1429, 0.0
    %v1520 = vmax.f32 %v1431, 0.0
    %v1521 = vmax.f32 %v1435, 0.0
    %v1522 = vmax.f32 %v1437, 0.0
    %v1523 = vmax.f32 %v1439, 0.0
    %v1524 = vmax.f32 %v1441, 0.0
    %v1525 = vmax.f32 %v1445, 0.0
    %v1526 = vmax.f32 %v1447, 0.0
    %v1527 = vmax.f32 %v1449, 0.0
    %v1528 = vmax.f32 %v1451, 0.0
    %v1529 = vmax.f32 %v1455, 0.0
    %v1530 = vmax.f32 %v1457, 0.0
    %v1531 = vmax.f32 %v1459, 0.0
    %v1532 = vmax.f32 %v1461, 0.0
    %v1533 = vmax.f32 %v1465, 0.0
    %v1534 = vmax.f32 %v1467, 0.0
    %v1535 = vmax.f32 %v1469, 0.0
    %v1536 = vmax.f32 %v1471, 0.0
    %v1537 = vpack.c.bf16 %v1475, %v1473
    %v1538 = vpack.c.bf16 %v1476, %v1474
    %v1539 = vpack.c.bf16 %v1479, %v1477
    %v1540 = vpack.c.bf16 %v1480, %v1478
    %v1541 = vpack.c.bf16 %v1483, %v1481
    %v1542 = vpack.c.bf16 %v1484, %v1482
    %v1543 = vpack.c.bf16 %v1487, %v1485
    %v1544 = vpack.c.bf16 %v1488, %v1486
    %v1545 = vpack.c.bf16 %v1491, %v1489
    %v1546 = vpack.c.bf16 %v1492, %v1490
    %v1547 = vpack.c.bf16 %v1495, %v1493
    %v1548 = vpack.c.bf16 %v1496, %v1494
    %v1549 = vpack.c.bf16 %v1499, %v1497
    %v1550 = vpack.c.bf16 %v1500, %v1498
    %v1551 = vpack.c.bf16 %v1503, %v1501
    %v1552 = vpack.c.bf16 %v1504, %v1502
    %v1553 = vpack.c.bf16 %v1507, %v1505
    %v1554 = vpack.c.bf16 %v1508, %v1506
    %v1555 = vpack.c.bf16 %v1511, %v1509
    %v1556 = vpack.c.bf16 %v1512, %v1510
    %v1557 = vpack.c.bf16 %v1515, %v1513
    %v1558 = vpack.c.bf16 %v1516, %v1514
    %v1559 = vpack.c.bf16 %v1519, %v1517
    %v1560 = vpack.c.bf16 %v1520, %v1518
    %v1561 = vpack.c.bf16 %v1523, %v1521
    %v1562 = vpack.c.bf16 %v1524, %v1522
    %v1563 = vpack.c.bf16 %v1527, %v1525
    %v1564 = vpack.c.bf16 %v1528, %v1526
    %v1565 = vpack.c.bf16 %v1531, %v1529
    %v1566 = vpack.c.bf16 %v1532, %v1530
    %v1567 = vpack.c.bf16 %v1535, %v1533
    %v1568 = vpack.c.bf16 %v1536, %v1534
    %s1569 = scalar_lea.vmem [#allocation2], 512
    %v1570 = vld [vmem:[%s1569] sm:$0xff]
    %v1571 = vld [vmem:[%s1569 + $0x8] sm:$0xff]
    %v1572 = vld [vmem:[%s1569 + $0x10] sm:$0xff]
    %v1573 = vld [vmem:[%s1569 + $0x18] sm:$0xff]
    %v1574 = vld [vmem:[%s1569 + $0x20] sm:$0xff]
    %v1575 = vld [vmem:[%s1569 + $0x28] sm:$0xff]
    %v1576 = vld [vmem:[%s1569 + $0x30] sm:$0xff]
    %v1577 = vld [vmem:[%s1569 + $0x38] sm:$0xff]
    %v1578 = vld [vmem:[%s1569 + $0x40] sm:$0xff]
    %v1579 = vld [vmem:[%s1569 + $0x48] sm:$0xff]
    %v1580 = vld [vmem:[%s1569 + $0x50] sm:$0xff]
    %v1581 = vld [vmem:[%s1569 + $0x58] sm:$0xff]
    %v1582 = vld [vmem:[%s1569 + $0x60] sm:$0xff]
    %v1583 = vld [vmem:[%s1569 + $0x68] sm:$0xff]
    %v1584 = vld [vmem:[%s1569 + $0x70] sm:$0xff]
    %v1585 = vld [vmem:[%s1569 + $0x78] sm:$0xff]
    %v1586 = vld [vmem:[%s1569 + $0x80] sm:$0xff]
    %v1587 = vld [vmem:[%s1569 + $0x88] sm:$0xff]
    %v1588 = vld [vmem:[%s1569 + $0x90] sm:$0xff]
    %v1589 = vld [vmem:[%s1569 + $0x98] sm:$0xff]
    %v1590 = vld [vmem:[%s1569 + $0xa0] sm:$0xff]
    %v1591 = vld [vmem:[%s1569 + $0xa8] sm:$0xff]
    %v1592 = vld [vmem:[%s1569 + $0xb0] sm:$0xff]
    %v1593 = vld [vmem:[%s1569 + $0xb8] sm:$0xff]
    %v1594 = vld [vmem:[%s1569 + $0xc0] sm:$0xff]
    %v1595 = vld [vmem:[%s1569 + $0xc8] sm:$0xff]
    %v1596 = vld [vmem:[%s1569 + $0xd0] sm:$0xff]
    %v1597 = vld [vmem:[%s1569 + $0xd8] sm:$0xff]
    %v1598 = vld [vmem:[%s1569 + $0xe0] sm:$0xff]
    %v1599 = vld [vmem:[%s1569 + $0xe8] sm:$0xff]
    %v1600 = vld [vmem:[%s1569 + $0xf0] sm:$0xff]
    %v1601 = vld [vmem:[%s1569 + $0xf8] sm:$0xff]
    %s1602 = scalar_lea.vmem %s5, 4
    %v1603 = vld [vmem:[%s1602] sm:$0x3]
    %v1605 = vlaneseq
    %v1606 = vshrl.u32 %v1605, 7
    %v1607 = vsub.s32 0, %v1606
    %v1608 = vrot.slane %v1603, %v1607
    %v1609 = vlaneseq
    %v1610 = vshrl.u32 %v1609, 7
    %v1611 = vsub.s32 1, %v1610
    %v1612 = vrot.slane %v1603, %v1611
    %v1647 = vunpack.c.l.b16 %v1570
    %v1648 = vunpack.c.h.b16 %v1570
    %v1649 = vunpack.c.l.b16 %v1571
    %v1650 = vunpack.c.h.b16 %v1571
    %v1651 = vunpack.c.l.b16 %v1572
    %v1652 = vunpack.c.h.b16 %v1572
    %v1653 = vunpack.c.l.b16 %v1573
    %v1654 = vunpack.c.h.b16 %v1573
    %v1655 = vunpack.c.l.b16 %v1574
    %v1656 = vunpack.c.h.b16 %v1574
    %v1657 = vunpack.c.l.b16 %v1575
    %v1658 = vunpack.c.h.b16 %v1575
    %v1659 = vunpack.c.l.b16 %v1576
    %v1660 = vunpack.c.h.b16 %v1576
    %v1661 = vunpack.c.l.b16 %v1577
    %v1662 = vunpack.c.h.b16 %v1577
    %v1663 = vunpack.c.l.b16 %v1578
    %v1664 = vunpack.c.h.b16 %v1578
    %v1665 = vunpack.c.l.b16 %v1579
    %v1666 = vunpack.c.h.b16 %v1579
    %v1667 = vunpack.c.l.b16 %v1580
    %v1668 = vunpack.c.h.b16 %v1580
    %v1669 = vunpack.c.l.b16 %v1581
    %v1670 = vunpack.c.h.b16 %v1581
    %v1671 = vunpack.c.l.b16 %v1582
    %v1672 = vunpack.c.h.b16 %v1582
    %v1673 = vunpack.c.l.b16 %v1583
    %v1674 = vunpack.c.h.b16 %v1583
    %v1675 = vunpack.c.l.b16 %v1584
    %v1676 = vunpack.c.h.b16 %v1584
    %v1677 = vunpack.c.l.b16 %v1585
    %v1678 = vunpack.c.h.b16 %v1585
    %v1679 = vunpack.c.l.b16 %v1586
    %v1680 = vunpack.c.h.b16 %v1586
    %v1681 = vunpack.c.l.b16 %v1587
    %v1682 = vunpack.c.h.b16 %v1587
    %v1683 = vunpack.c.l.b16 %v1588
    %v1684 = vunpack.c.h.b16 %v1588
    %v1685 = vunpack.c.l.b16 %v1589
    %v1686 = vunpack.c.h.b16 %v1589
    %v1687 = vunpack.c.l.b16 %v1590
    %v1688 = vunpack.c.h.b16 %v1590
    %v1689 = vunpack.c.l.b16 %v1591
    %v1690 = vunpack.c.h.b16 %v1591
    %v1691 = vunpack.c.l.b16 %v1592
    %v1692 = vunpack.c.h.b16 %v1592
    %v1693 = vunpack.c.l.b16 %v1593
    %v1694 = vunpack.c.h.b16 %v1593
    %v1695 = vunpack.c.l.b16 %v1594
    %v1696 = vunpack.c.h.b16 %v1594
    %v1697 = vunpack.c.l.b16 %v1595
    %v1698 = vunpack.c.h.b16 %v1595
    %v1699 = vunpack.c.l.b16 %v1596
    %v1700 = vunpack.c.h.b16 %v1596
    %v1701 = vunpack.c.l.b16 %v1597
    %v1702 = vunpack.c.h.b16 %v1597
    %v1703 = vunpack.c.l.b16 %v1598
    %v1704 = vunpack.c.h.b16 %v1598
    %v1705 = vunpack.c.l.b16 %v1599
    %v1706 = vunpack.c.h.b16 %v1599
    %v1707 = vunpack.c.l.b16 %v1600
    %v1708 = vunpack.c.h.b16 %v1600
    %v1709 = vunpack.c.l.b16 %v1601
    %v1710 = vunpack.c.h.b16 %v1601
    %v1711 = vpack.c.b16 %v1649, %v1647
    %v1712 = vpack.c.b16 %v1650, %v1648
    %v1713 = vpack.c.b16 %v1653, %v1651
    %v1714 = vpack.c.b16 %v1654, %v1652
    %v1715 = vpack.c.b16 %v1657, %v1655
    %v1716 = vpack.c.b16 %v1658, %v1656
    %v1717 = vpack.c.b16 %v1661, %v1659
    %v1718 = vpack.c.b16 %v1662, %v1660
    %v1719 = vpack.c.b16 %v1665, %v1663
    %v1720 = vpack.c.b16 %v1666, %v1664
    %v1721 = vpack.c.b16 %v1669, %v1667
    %v1722 = vpack.c.b16 %v1670, %v1668
    %v1723 = vpack.c.b16 %v1673, %v1671
    %v1724 = vpack.c.b16 %v1674, %v1672
    %v1725 = vpack.c.b16 %v1677, %v1675
    %v1726 = vpack.c.b16 %v1678, %v1676
    %v1727 = vpack.c.b16 %v1681, %v1679
    %v1728 = vpack.c.b16 %v1682, %v1680
    %v1729 = vpack.c.b16 %v1685, %v1683
    %v1730 = vpack.c.b16 %v1686, %v1684
    %v1731 = vpack.c.b16 %v1689, %v1687
    %v1732 = vpack.c.b16 %v1690, %v1688
    %v1733 = vpack.c.b16 %v1693, %v1691
    %v1734 = vpack.c.b16 %v1694, %v1692
    %v1735 = vpack.c.b16 %v1697, %v1695
    %v1736 = vpack.c.b16 %v1698, %v1696
    %v1737 = vpack.c.b16 %v1701, %v1699
    %v1738 = vpack.c.b16 %v1702, %v1700
    %v1739 = vpack.c.b16 %v1705, %v1703
    %v1740 = vpack.c.b16 %v1706, %v1704
    %v1741 = vpack.c.b16 %v1709, %v1707
    %v1742 = vpack.c.b16 %v1710, %v1708
    %1775 = vmatprep.subr.bf16.mxu0 %v1712
    %1776 = vmatpush1.bf16.msra.mxu0 %v1711
    %1777 = vmatprep.subr.bf16.mxu0 %v1714
    %1778 = vmatpush1.bf16.msra.mxu0 %v1713
    %1779 = vmatprep.subr.bf16.mxu0 %v1716
    %1780 = vmatpush1.bf16.msra.mxu0 %v1715
    %1781 = vmatprep.subr.bf16.mxu0 %v1718
    %1782 = vmatpush1.bf16.msra.mxu0 %v1717
    %1783 = vmatprep.subr.bf16.mxu0 %v1720
    %1784 = vmatpush1.bf16.msra.mxu0 %v1719
    %1785 = vmatprep.subr.bf16.mxu0 %v1722
    %1786 = vmatpush1.bf16.msra.mxu0 %v1721
    %1787 = vmatprep.subr.bf16.mxu0 %v1724
    %1788 = vmatpush1.bf16.msra.mxu0 %v1723
    %1789 = vmatprep.subr.bf16.mxu0 %v1726
    %1790 = vmatpush1.bf16.msra.mxu0 %v1725
    %1791 = vmatprep.subr.bf16.mxu0 %v1728
    %1792 = vmatpush1.bf16.msra.mxu0 %v1727
    %1793 = vmatprep.subr.bf16.mxu0 %v1730
    %1794 = vmatpush1.bf16.msra.mxu0 %v1729
    %1795 = vmatprep.subr.bf16.mxu0 %v1732
    %1796 = vmatpush1.bf16.msra.mxu0 %v1731
    %1797 = vmatprep.subr.bf16.mxu0 %v1734
    %1798 = vmatpush1.bf16.msra.mxu0 %v1733
    %1799 = vmatprep.subr.bf16.mxu0 %v1736
    %1800 = vmatpush1.bf16.msra.mxu0 %v1735
    %1801 = vmatprep.subr.bf16.mxu0 %v1738
    %1802 = vmatpush1.bf16.msra.mxu0 %v1737
    %1803 = vmatprep.subr.bf16.mxu0 %v1740
    %1804 = vmatpush1.bf16.msra.mxu0 %v1739
    %1805 = vmatprep.subr.bf16.mxu0 %v1742
    %1806 = vmatpush1.bf16.msra.mxu0 %v1741
    %1807 = vmatprep.mubr.bf16.mxu0 %v1538
    %1808 = vmatmul.mubr.bf16.gmra.mrb[0].mxu0 %v1537
    %v1809 = vpop.f32.mrb[0].mxu0
    %v1810 = vadd.f32 %v1608, %v1809
    %v1811 = vpop.f32.mrb[0].mxu0
    %v1812 = vadd.f32 %v1612, %v1811
    %v1813 = vpop.f32.mrb[0].mxu0
    %v1814 = vadd.f32 %v1608, %v1813
    %v1815 = vpop.f32.mrb[0].mxu0
    %v1816 = vadd.f32 %v1612, %v1815
    %1817 = vmatprep.mubr.bf16.mxu0 %v1540
    %1818 = vmatmul.mubr.bf16.gmra.mrb[0].mxu0 %v1539
    %v1819 = vpop.f32.mrb[0].mxu0
    %v1820 = vadd.f32 %v1608, %v1819
    %v1821 = vpop.f32.mrb[0].mxu0
    %v1822 = vadd.f32 %v1612, %v1821
    %v1823 = vpop.f32.mrb[0].mxu0
    %v1824 = vadd.f32 %v1608, %v1823
    %v1825 = vpop.f32.mrb[0].mxu0
    %v1826 = vadd.f32 %v1612, %v1825
    %1827 = vmatprep.mubr.bf16.mxu0 %v1542
    %1828 = vmatmul.mubr.bf16.gmra.mrb[0].mxu0 %v1541
    %v1829 = vpop.f32.mrb[0].mxu0
    %v1830 = vadd.f32 %v1608, %v1829
    %v1831 = vpop.f32.mrb[0].mxu0
    %v1832 = vadd.f32 %v1612, %v1831
    %v1833 = vpop.f32.mrb[0].mxu0
    %v1834 = vadd.f32 %v1608, %v1833
    %v1835 = vpop.f32.mrb[0].mxu0
    %v1836 = vadd.f32 %v1612, %v1835
    %1837 = vmatprep.mubr.bf16.mxu0 %v1544
    %1838 = vmatmul.mubr.bf16.gmra.mrb[0].mxu0 %v1543
    %v1839 = vpop.f32.mrb[0].mxu0
    %v1840 = vadd.f32 %v1608, %v1839
    %v1841 = vpop.f32.mrb[0].mxu0
    %v1842 = vadd.f32 %v1612, %v1841
    %v1843 = vpop.f32.mrb[0].mxu0
    %v1844 = vadd.f32 %v1608, %v1843
    %v1845 = vpop.f32.mrb[0].mxu0
    %v1846 = vadd.f32 %v1612, %v1845
    %1847 = vmatprep.mubr.bf16.mxu0 %v1546
    %1848 = vmatmul.mubr.bf16.gmra.mrb[0].mxu0 %v1545
    %v1849 = vpop.f32.mrb[0].mxu0
    %v1850 = vadd.f32 %v1608, %v1849
    %v1851 = vpop.f32.mrb[0].mxu0
    %v1852 = vadd.f32 %v1612, %v1851
    %v1853 = vpop.f32.mrb[0].mxu0
    %v1854 = vadd.f32 %v1608, %v1853
    %v1855 = vpop.f32.mrb[0].mxu0
    %v1856 = vadd.f32 %v1612, %v1855
    %1857 = vmatprep.mubr.bf16.mxu0 %v1548
    %1858 = vmatmul.mubr.bf16.gmra.mrb[0].mxu0 %v1547
    %v1859 = vpop.f32.mrb[0].mxu0
    %v1860 = vadd.f32 %v1608, %v1859
    %v1861 = vpop.f32.mrb[0].mxu0
    %v1862 = vadd.f32 %v1612, %v1861
    %v1863 = vpop.f32.mrb[0].mxu0
    %v1864 = vadd.f32 %v1608, %v1863
    %v1865 = vpop.f32.mrb[0].mxu0
    %v1866 = vadd.f32 %v1612, %v1865
    %1867 = vmatprep.mubr.bf16.mxu0 %v1550
    %1868 = vmatmul.mubr.bf16.gmra.mrb[0].mxu0 %v1549
    %v1869 = vpop.f32.mrb[0].mxu0
    %v1870 = vadd.f32 %v1608, %v1869
    %v1871 = vpop.f32.mrb[0].mxu0
    %v1872 = vadd.f32 %v1612, %v1871
    %v1873 = vpop.f32.mrb[0].mxu0
    %v1874 = vadd.f32 %v1608, %v1873
    %v1875 = vpop.f32.mrb[0].mxu0
    %v1876 = vadd.f32 %v1612, %v1875
    %1877 = vmatprep.mubr.bf16.mxu0 %v1552
    %1878 = vmatmul.mubr.bf16.gmra.mrb[0].mxu0 %v1551
    %v1879 = vpop.f32.mrb[0].mxu0
    %v1880 = vadd.f32 %v1608, %v1879
    %v1881 = vpop.f32.mrb[0].mxu0
    %v1882 = vadd.f32 %v1612, %v1881
    %v1883 = vpop.f32.mrb[0].mxu0
    %v1884 = vadd.f32 %v1608, %v1883
    %v1885 = vpop.f32.mrb[0].mxu0
    %v1886 = vadd.f32 %v1612, %v1885
    %1887 = vmatprep.mubr.bf16.mxu0 %v1554
    %1888 = vmatmul.mubr.bf16.gmra.mrb[0].mxu0 %v1553
    %v1889 = vpop.f32.mrb[0].mxu0
    %v1890 = vadd.f32 %v1608, %v1889
    %v1891 = vpop.f32.mrb[0].mxu0
    %v1892 = vadd.f32 %v1612, %v1891
    %v1893 = vpop.f32.mrb[0].mxu0
    %v1894 = vadd.f32 %v1608, %v1893
    %v1895 = vpop.f32.mrb[0].mxu0
    %v1896 = vadd.f32 %v1612, %v1895
    %1897 = vmatprep.mubr.bf16.mxu0 %v1556
    %1898 = vmatmul.mubr.bf16.gmra.mrb[0].mxu0 %v1555
    %v1899 = vpop.f32.mrb[0].mxu0
    %v1900 = vadd.f32 %v1608, %v1899
    %v1901 = vpop.f32.mrb[0].mxu0
    %v1902 = vadd.f32 %v1612, %v1901
    %v1903 = vpop.f32.mrb[0].mxu0
    %v1904 = vadd.f32 %v1608, %v1903
    %v1905 = vpop.f32.mrb[0].mxu0
    %v1906 = vadd.f32 %v1612, %v1905
    %1907 = vmatprep.mubr.bf16.mxu0 %v1558
    %1908 = vmatmul.mubr.bf16.gmra.mrb[0].mxu0 %v1557
    %v1909 = vpop.f32.mrb[0].mxu0
    %v1910 = vadd.f32 %v1608, %v1909
    %v1911 = vpop.f32.mrb[0].mxu0
    %v1912 = vadd.f32 %v1612, %v1911
    %v1913 = vpop.f32.mrb[0].mxu0
    %v1914 = vadd.f32 %v1608, %v1913
    %v1915 = vpop.f32.mrb[0].mxu0
    %v1916 = vadd.f32 %v1612, %v1915
    %1917 = vmatprep.mubr.bf16.mxu0 %v1560
    %1918 = vmatmul.mubr.bf16.gmra.mrb[0].mxu0 %v1559
    %v1919 = vpop.f32.mrb[0].mxu0
    %v1920 = vadd.f32 %v1608, %v1919
    %v1921 = vpop.f32.mrb[0].mxu0
    %v1922 = vadd.f32 %v1612, %v1921
    %v1923 = vpop.f32.mrb[0].mxu0
    %v1924 = vadd.f32 %v1608, %v1923
    %v1925 = vpop.f32.mrb[0].mxu0
    %v1926 = vadd.f32 %v1612, %v1925
    %1927 = vmatprep.mubr.bf16.mxu0 %v1562
    %1928 = vmatmul.mubr.bf16.gmra.mrb[0].mxu0 %v1561
    %v1929 = vpop.f32.mrb[0].mxu0
    %v1930 = vadd.f32 %v1608, %v1929
    %v1931 = vpop.f32.mrb[0].mxu0
    %v1932 = vadd.f32 %v1612, %v1931
    %v1933 = vpop.f32.mrb[0].mxu0
    %v1934 = vadd.f32 %v1608, %v1933
    %v1935 = vpop.f32.mrb[0].mxu0
    %v1936 = vadd.f32 %v1612, %v1935
    %1937 = vmatprep.mubr.bf16.mxu0 %v1564
    %1938 = vmatmul.mubr.bf16.gmra.mrb[0].mxu0 %v1563
    %v1939 = vpop.f32.mrb[0].mxu0
    %v1940 = vadd.f32 %v1608, %v1939
    %v1941 = vpop.f32.mrb[0].mxu0
    %v1942 = vadd.f32 %v1612, %v1941
    %v1943 = vpop.f32.mrb[0].mxu0
    %v1944 = vadd.f32 %v1608, %v1943
    %v1945 = vpop.f32.mrb[0].mxu0
    %v1946 = vadd.f32 %v1612, %v1945
    %1947 = vmatprep.mubr.bf16.mxu0 %v1566
    %1948 = vmatmul.mubr.bf16.gmra.mrb[0].mxu0 %v1565
    %v1949 = vpop.f32.mrb[0].mxu0
    %v1950 = vadd.f32 %v1608, %v1949
    %v1951 = vpop.f32.mrb[0].mxu0
    %v1952 = vadd.f32 %v1612, %v1951
    %v1953 = vpop.f32.mrb[0].mxu0
    %v1954 = vadd.f32 %v1608, %v1953
    %v1955 = vpop.f32.mrb[0].mxu0
    %v1956 = vadd.f32 %v1612, %v1955
    %1957 = vmatprep.mubr.bf16.mxu0 %v1568
    %1958 = vmatmul.mubr.bf16.gmra.mrb[0].mxu0 %v1567
    %v1959 = vpop.f32.mrb[0].mxu0
    %v1960 = vadd.f32 %v1608, %v1959
    %v1961 = vpop.f32.mrb[0].mxu0
    %v1962 = vadd.f32 %v1612, %v1961
    %v1963 = vpop.f32.mrb[0].mxu0
    %v1964 = vadd.f32 %v1608, %v1963
    %v1965 = vpop.f32.mrb[0].mxu0
    %v1966 = vadd.f32 %v1612, %v1965
    %1967 = vdwg.mxu0
    %v1968 = vmax.f32 %v1810, 0.0
    %v1969 = vmax.f32 %v1812, 0.0
    %v1970 = vmax.f32 %v1814, 0.0
    %v1971 = vmax.f32 %v1816, 0.0
    %v1972 = vmax.f32 %v1820, 0.0
    %v1973 = vmax.f32 %v1822, 0.0
    %v1974 = vmax.f32 %v1824, 0.0
    %v1975 = vmax.f32 %v1826, 0.0
    %v1976 = vmax.f32 %v1830, 0.0
    %v1977 = vmax.f32 %v1832, 0.0
    %v1978 = vmax.f32 %v1834, 0.0
    %v1979 = vmax.f32 %v1836, 0.0
    %v1980 = vmax.f32 %v1840, 0.0
    %v1981 = vmax.f32 %v1842, 0.0
    %v1982 = vmax.f32 %v1844, 0.0
    %v1983 = vmax.f32 %v1846, 0.0
    %v1984 = vmax.f32 %v1850, 0.0
    %v1985 = vmax.f32 %v1852, 0.0
    %v1986 = vmax.f32 %v1854, 0.0
    %v1987 = vmax.f32 %v1856, 0.0
    %v1988 = vmax.f32 %v1860, 0.0
    %v1989 = vmax.f32 %v1862, 0.0
    %v1990 = vmax.f32 %v1864, 0.0
    %v1991 = vmax.f32 %v1866, 0.0
    %v1992 = vmax.f32 %v1870, 0.0
    %v1993 = vmax.f32 %v1872, 0.0
    %v1994 = vmax.f32 %v1874, 0.0
    %v1995 = vmax.f32 %v1876, 0.0
    %v1996 = vmax.f32 %v1880, 0.0
    %v1997 = vmax.f32 %v1882, 0.0
    %v1998 = vmax.f32 %v1884, 0.0
    %v1999 = vmax.f32 %v1886, 0.0
    %v2000 = vmax.f32 %v1890, 0.0
    %v2001 = vmax.f32 %v1892, 0.0
    %v2002 = vmax.f32 %v1894, 0.0
    %v2003 = vmax.f32 %v1896, 0.0
    %v2004 = vmax.f32 %v1900, 0.0
    %v2005 = vmax.f32 %v1902, 0.0
    %v2006 = vmax.f32 %v1904, 0.0
    %v2007 = vmax.f32 %v1906, 0.0
    %v2008 = vmax.f32 %v1910, 0.0
    %v2009 = vmax.f32 %v1912, 0.0
    %v2010 = vmax.f32 %v1914, 0.0
    %v2011 = vmax.f32 %v1916, 0.0
    %v2012 = vmax.f32 %v1920, 0.0
    %v2013 = vmax.f32 %v1922, 0.0
    %v2014 = vmax.f32 %v1924, 0.0
    %v2015 = vmax.f32 %v1926, 0.0
    %v2016 = vmax.f32 %v1930, 0.0
    %v2017 = vmax.f32 %v1932, 0.0
    %v2018 = vmax.f32 %v1934, 0.0
    %v2019 = vmax.f32 %v1936, 0.0
    %v2020 = vmax.f32 %v1940, 0.0
    %v2021 = vmax.f32 %v1942, 0.0
    %v2022 = vmax.f32 %v1944, 0.0
    %v2023 = vmax.f32 %v1946, 0.0
    %v2024 = vmax.f32 %v1950, 0.0
    %v2025 = vmax.f32 %v1952, 0.0
    %v2026 = vmax.f32 %v1954, 0.0
    %v2027 = vmax.f32 %v1956, 0.0
    %v2028 = vmax.f32 %v1960, 0.0
    %v2029 = vmax.f32 %v1962, 0.0
    %v2030 = vmax.f32 %v1964, 0.0
    %v2031 = vmax.f32 %v1966, 0.0
    %v2032 = vpack.c.bf16 %v1970, %v1968
    %v2033 = vpack.c.bf16 %v1971, %v1969
    %v2034 = vpack.c.bf16 %v1974, %v1972
    %v2035 = vpack.c.bf16 %v1975, %v1973
    %v2036 = vpack.c.bf16 %v1978, %v1976
    %v2037 = vpack.c.bf16 %v1979, %v1977
    %v2038 = vpack.c.bf16 %v1982, %v1980
    %v2039 = vpack.c.bf16 %v1983, %v1981
    %v2040 = vpack.c.bf16 %v1986, %v1984
    %v2041 = vpack.c.bf16 %v1987, %v1985
    %v2042 = vpack.c.bf16 %v1990, %v1988
    %v2043 = vpack.c.bf16 %v1991, %v1989
    %v2044 = vpack.c.bf16 %v1994, %v1992
    %v2045 = vpack.c.bf16 %v1995, %v1993
    %v2046 = vpack.c.bf16 %v1998, %v1996
    %v2047 = vpack.c.bf16 %v1999, %v1997
    %v2048 = vpack.c.bf16 %v2002, %v2000
    %v2049 = vpack.c.bf16 %v2003, %v2001
    %v2050 = vpack.c.bf16 %v2006, %v2004
    %v2051 = vpack.c.bf16 %v2007, %v2005
    %v2052 = vpack.c.bf16 %v2010, %v2008
    %v2053 = vpack.c.bf16 %v2011, %v2009
    %v2054 = vpack.c.bf16 %v2014, %v2012
    %v2055 = vpack.c.bf16 %v2015, %v2013
    %v2056 = vpack.c.bf16 %v2018, %v2016
    %v2057 = vpack.c.bf16 %v2019, %v2017
    %v2058 = vpack.c.bf16 %v2022, %v2020
    %v2059 = vpack.c.bf16 %v2023, %v2021
    %v2060 = vpack.c.bf16 %v2026, %v2024
    %v2061 = vpack.c.bf16 %v2027, %v2025
    %v2062 = vpack.c.bf16 %v2030, %v2028
    %v2063 = vpack.c.bf16 %v2031, %v2029
    %s2064 = scalar_lea.vmem [#allocation2], 768
    %v2065 = vld [vmem:[%s2064] sm:$0xff]
    %v2066 = vld [vmem:[%s2064 + $0x8] sm:$0xff]
    %v2067 = vld [vmem:[%s2064 + $0x10] sm:$0xff]
    %v2068 = vld [vmem:[%s2064 + $0x18] sm:$0xff]
    %v2069 = vld [vmem:[%s2064 + $0x20] sm:$0xff]
    %v2070 = vld [vmem:[%s2064 + $0x28] sm:$0xff]
    %v2071 = vld [vmem:[%s2064 + $0x30] sm:$0xff]
    %v2072 = vld [vmem:[%s2064 + $0x38] sm:$0xff]
    %v2073 = vld [vmem:[%s2064 + $0x40] sm:$0xff]
    %v2074 = vld [vmem:[%s2064 + $0x48] sm:$0xff]
    %v2075 = vld [vmem:[%s2064 + $0x50] sm:$0xff]
    %v2076 = vld [vmem:[%s2064 + $0x58] sm:$0xff]
    %v2077 = vld [vmem:[%s2064 + $0x60] sm:$0xff]
    %v2078 = vld [vmem:[%s2064 + $0x68] sm:$0xff]
    %v2079 = vld [vmem:[%s2064 + $0x70] sm:$0xff]
    %v2080 = vld [vmem:[%s2064 + $0x78] sm:$0xff]
    %v2081 = vld [vmem:[%s2064 + $0x80] sm:$0xff]
    %v2082 = vld [vmem:[%s2064 + $0x88] sm:$0xff]
    %v2083 = vld [vmem:[%s2064 + $0x90] sm:$0xff]
    %v2084 = vld [vmem:[%s2064 + $0x98] sm:$0xff]
    %v2085 = vld [vmem:[%s2064 + $0xa0] sm:$0xff]
    %v2086 = vld [vmem:[%s2064 + $0xa8] sm:$0xff]
    %v2087 = vld [vmem:[%s2064 + $0xb0] sm:$0xff]
    %v2088 = vld [vmem:[%s2064 + $0xb8] sm:$0xff]
    %v2089 = vld [vmem:[%s2064 + $0xc0] sm:$0xff]
    %v2090 = vld [vmem:[%s2064 + $0xc8] sm:$0xff]
    %v2091 = vld [vmem:[%s2064 + $0xd0] sm:$0xff]
    %v2092 = vld [vmem:[%s2064 + $0xd8] sm:$0xff]
    %v2093 = vld [vmem:[%s2064 + $0xe0] sm:$0xff]
    %v2094 = vld [vmem:[%s2064 + $0xe8] sm:$0xff]
    %v2095 = vld [vmem:[%s2064 + $0xf0] sm:$0xff]
    %v2096 = vld [vmem:[%s2064 + $0xf8] sm:$0xff]
    %s2097 = scalar_lea.vmem %s5, 6
    %v2098 = vld [vmem:[%s2097] sm:$0x3]
    %v2100 = vlaneseq
    %v2101 = vshrl.u32 %v2100, 7
    %v2102 = vsub.s32 0, %v2101
    %v2103 = vrot.slane %v2098, %v2102
    %v2104 = vlaneseq
    %v2105 = vshrl.u32 %v2104, 7
    %v2106 = vsub.s32 1, %v2105
    %v2107 = vrot.slane %v2098, %v2106
    %v2142 = vunpack.c.l.b16 %v2065
    %v2143 = vunpack.c.h.b16 %v2065
    %v2144 = vunpack.c.l.b16 %v2066
    %v2145 = vunpack.c.h.b16 %v2066
    %v2146 = vunpack.c.l.b16 %v2067
    %v2147 = vunpack.c.h.b16 %v2067
    %v2148 = vunpack.c.l.b16 %v2068
    %v2149 = vunpack.c.h.b16 %v2068
    %v2150 = vunpack.c.l.b16 %v2069
    %v2151 = vunpack.c.h.b16 %v2069
    %v2152 = vunpack.c.l.b16 %v2070
    %v2153 = vunpack.c.h.b16 %v2070
    %v2154 = vunpack.c.l.b16 %v2071
    %v2155 = vunpack.c.h.b16 %v2071
    %v2156 = vunpack.c.l.b16 %v2072
    %v2157 = vunpack.c.h.b16 %v2072
    %v2158 = vunpack.c.l.b16 %v2073
    %v2159 = vunpack.c.h.b16 %v2073
    %v2160 = vunpack.c.l.b16 %v2074
    %v2161 = vunpack.c.h.b16 %v2074
    %v2162 = vunpack.c.l.b16 %v2075
    %v2163 = vunpack.c.h.b16 %v2075
    %v2164 = vunpack.c.l.b16 %v2076
    %v2165 = vunpack.c.h.b16 %v2076
    %v2166 = vunpack.c.l.b16 %v2077
    %v2167 = vunpack.c.h.b16 %v2077
    %v2168 = vunpack.c.l.b16 %v2078
    %v2169 = vunpack.c.h.b16 %v2078
    %v2170 = vunpack.c.l.b16 %v2079
    %v2171 = vunpack.c.h.b16 %v2079
    %v2172 = vunpack.c.l.b16 %v2080
    %v2173 = vunpack.c.h.b16 %v2080
    %v2174 = vunpack.c.l.b16 %v2081
    %v2175 = vunpack.c.h.b16 %v2081
    %v2176 = vunpack.c.l.b16 %v2082
    %v2177 = vunpack.c.h.b16 %v2082
    %v2178 = vunpack.c.l.b16 %v2083
    %v2179 = vunpack.c.h.b16 %v2083
    %v2180 = vunpack.c.l.b16 %v2084
    %v2181 = vunpack.c.h.b16 %v2084
    %v2182 = vunpack.c.l.b16 %v2085
    %v2183 = vunpack.c.h.b16 %v2085
    %v2184 = vunpack.c.l.b16 %v2086
    %v2185 = vunpack.c.h.b16 %v2086
    %v2186 = vunpack.c.l.b16 %v2087
    %v2187 = vunpack.c.h.b16 %v2087
    %v2188 = vunpack.c.l.b16 %v2088
    %v2189 = vunpack.c.h.b16 %v2088
    %v2190 = vunpack.c.l.b16 %v2089
    %v2191 = vunpack.c.h.b16 %v2089
    %v2192 = vunpack.c.l.b16 %v2090
    %v2193 = vunpack.c.h.b16 %v2090
    %v2194 = vunpack.c.l.b16 %v2091
    %v2195 = vunpack.c.h.b16 %v2091
    %v2196 = vunpack.c.l.b16 %v2092
    %v2197 = vunpack.c.h.b16 %v2092
    %v2198 = vunpack.c.l.b16 %v2093
    %v2199 = vunpack.c.h.b16 %v2093
    %v2200 = vunpack.c.l.b16 %v2094
    %v2201 = vunpack.c.h.b16 %v2094
    %v2202 = vunpack.c.l.b16 %v2095
    %v2203 = vunpack.c.h.b16 %v2095
    %v2204 = vunpack.c.l.b16 %v2096
    %v2205 = vunpack.c.h.b16 %v2096
    %v2206 = vpack.c.b16 %v2144, %v2142
    %v2207 = vpack.c.b16 %v2145, %v2143
    %v2208 = vpack.c.b16 %v2148, %v2146
    %v2209 = vpack.c.b16 %v2149, %v2147
    %v2210 = vpack.c.b16 %v2152, %v2150
    %v2211 = vpack.c.b16 %v2153, %v2151
    %v2212 = vpack.c.b16 %v2156, %v2154
    %v2213 = vpack.c.b16 %v2157, %v2155
    %v2214 = vpack.c.b16 %v2160, %v2158
    %v2215 = vpack.c.b16 %v2161, %v2159
    %v2216 = vpack.c.b16 %v2164, %v2162
    %v2217 = vpack.c.b16 %v2165, %v2163
    %v2218 = vpack.c.b16 %v2168, %v2166
    %v2219 = vpack.c.b16 %v2169, %v2167
    %v2220 = vpack.c.b16 %v2172, %v2170
    %v2221 = vpack.c.b16 %v2173, %v2171
    %v2222 = vpack.c.b16 %v2176, %v2174
    %v2223 = vpack.c.b16 %v2177, %v2175
    %v2224 = vpack.c.b16 %v2180, %v2178
    %v2225 = vpack.c.b16 %v2181, %v2179
    %v2226 = vpack.c.b16 %v2184, %v2182
    %v2227 = vpack.c.b16 %v2185, %v2183
    %v2228 = vpack.c.b16 %v2188, %v2186
    %v2229 = vpack.c.b16 %v2189, %v2187
    %v2230 = vpack.c.b16 %v2192, %v2190
    %v2231 = vpack.c.b16 %v2193, %v2191
    %v2232 = vpack.c.b16 %v2196, %v2194
    %v2233 = vpack.c.b16 %v2197, %v2195
    %v2234 = vpack.c.b16 %v2200, %v2198
    %v2235 = vpack.c.b16 %v2201, %v2199
    %v2236 = vpack.c.b16 %v2204, %v2202
    %v2237 = vpack.c.b16 %v2205, %v2203
    %2270 = vmatprep.subr.bf16.mxu0 %v2207
    %2271 = vmatpush1.bf16.msra.mxu0 %v2206
    %2272 = vmatprep.subr.bf16.mxu0 %v2209
    %2273 = vmatpush1.bf16.msra.mxu0 %v2208
    %2274 = vmatprep.subr.bf16.mxu0 %v2211
    %2275 = vmatpush1.bf16.msra.mxu0 %v2210
    %2276 = vmatprep.subr.bf16.mxu0 %v2213
    %2277 = vmatpush1.bf16.msra.mxu0 %v2212
    %2278 = vmatprep.subr.bf16.mxu0 %v2215
    %2279 = vmatpush1.bf16.msra.mxu0 %v2214
    %2280 = vmatprep.subr.bf16.mxu0 %v2217
    %2281 = vmatpush1.bf16.msra.mxu0 %v2216
    %2282 = vmatprep.subr.bf16.mxu0 %v2219
    %2283 = vmatpush1.bf16.msra.mxu0 %v2218
    %2284 = vmatprep.subr.bf16.mxu0 %v2221
    %2285 = vmatpush1.bf16.msra.mxu0 %v2220
    %2286 = vmatprep.subr.bf16.mxu0 %v2223
    %2287 = vmatpush1.bf16.msra.mxu0 %v2222
    %2288 = vmatprep.subr.bf16.mxu0 %v2225
    %2289 = vmatpush1.bf16.msra.mxu0 %v2224
    %2290 = vmatprep.subr.bf16.mxu0 %v2227
    %2291 = vmatpush1.bf16.msra.mxu0 %v2226
    %2292 = vmatprep.subr.bf16.mxu0 %v2229
    %2293 = vmatpush1.bf16.msra.mxu0 %v2228
    %2294 = vmatprep.subr.bf16.mxu0 %v2231
    %2295 = vmatpush1.bf16.msra.mxu0 %v2230
    %2296 = vmatprep.subr.bf16.mxu0 %v2233
    %2297 = vmatpush1.bf16.msra.mxu0 %v2232
    %2298 = vmatprep.subr.bf16.mxu0 %v2235
    %2299 = vmatpush1.bf16.msra.mxu0 %v2234
    %2300 = vmatprep.subr.bf16.mxu0 %v2237
    %2301 = vmatpush1.bf16.msra.mxu0 %v2236
    %2302 = vmatprep.mubr.bf16.mxu0 %v2033
    %2303 = vmatmul.mubr.bf16.gmra.mrb[0].mxu0 %v2032
    %v2304 = vpop.f32.mrb[0].mxu0
    %v2305 = vadd.f32 %v2103, %v2304
    %v2306 = vpop.f32.mrb[0].mxu0
    %v2307 = vadd.f32 %v2107, %v2306
    %v2308 = vpop.f32.mrb[0].mxu0
    %v2309 = vadd.f32 %v2103, %v2308
    %v2310 = vpop.f32.mrb[0].mxu0
    %v2311 = vadd.f32 %v2107, %v2310
    %2312 = vmatprep.mubr.bf16.mxu0 %v2035
    %2313 = vmatmul.mubr.bf16.gmra.mrb[0].mxu0 %v2034
    %v2314 = vpop.f32.mrb[0].mxu0
    %v2315 = vadd.f32 %v2103, %v2314
    %v2316 = vpop.f32.mrb[0].mxu0
    %v2317 = vadd.f32 %v2107, %v2316
    %v2318 = vpop.f32.mrb[0].mxu0
    %v2319 = vadd.f32 %v2103, %v2318
    %v2320 = vpop.f32.mrb[0].mxu0
    %v2321 = vadd.f32 %v2107, %v2320
    %2322 = vmatprep.mubr.bf16.mxu0 %v2037
    %2323 = vmatmul.mubr.bf16.gmra.mrb[0].mxu0 %v2036
    %v2324 = vpop.f32.mrb[0].mxu0
    %v2325 = vadd.f32 %v2103, %v2324
    %v2326 = vpop.f32.mrb[0].mxu0
    %v2327 = vadd.f32 %v2107, %v2326
    %v2328 = vpop.f32.mrb[0].mxu0
    %v2329 = vadd.f32 %v2103, %v2328
    %v2330 = vpop.f32.mrb[0].mxu0
    %v2331 = vadd.f32 %v2107, %v2330
    %2332 = vmatprep.mubr.bf16.mxu0 %v2039
    %2333 = vmatmul.mubr.bf16.gmra.mrb[0].mxu0 %v2038
    %v2334 = vpop.f32.mrb[0].mxu0
    %v2335 = vadd.f32 %v2103, %v2334
    %v2336 = vpop.f32.mrb[0].mxu0
    %v2337 = vadd.f32 %v2107, %v2336
    %v2338 = vpop.f32.mrb[0].mxu0
    %v2339 = vadd.f32 %v2103, %v2338
    %v2340 = vpop.f32.mrb[0].mxu0
    %v2341 = vadd.f32 %v2107, %v2340
    %2342 = vmatprep.mubr.bf16.mxu0 %v2041
    %2343 = vmatmul.mubr.bf16.gmra.mrb[0].mxu0 %v2040
    %v2344 = vpop.f32.mrb[0].mxu0
    %v2345 = vadd.f32 %v2103, %v2344
    %v2346 = vpop.f32.mrb[0].mxu0
    %v2347 = vadd.f32 %v2107, %v2346
    %v2348 = vpop.f32.mrb[0].mxu0
    %v2349 = vadd.f32 %v2103, %v2348
    %v2350 = vpop.f32.mrb[0].mxu0
    %v2351 = vadd.f32 %v2107, %v2350
    %2352 = vmatprep.mubr.bf16.mxu0 %v2043
    %2353 = vmatmul.mubr.bf16.gmra.mrb[0].mxu0 %v2042
    %v2354 = vpop.f32.mrb[0].mxu0
    %v2355 = vadd.f32 %v2103, %v2354
    %v2356 = vpop.f32.mrb[0].mxu0
    %v2357 = vadd.f32 %v2107, %v2356
    %v2358 = vpop.f32.mrb[0].mxu0
    %v2359 = vadd.f32 %v2103, %v2358
    %v2360 = vpop.f32.mrb[0].mxu0
    %v2361 = vadd.f32 %v2107, %v2360
    %2362 = vmatprep.mubr.bf16.mxu0 %v2045
    %2363 = vmatmul.mubr.bf16.gmra.mrb[0].mxu0 %v2044
    %v2364 = vpop.f32.mrb[0].mxu0
    %v2365 = vadd.f32 %v2103, %v2364
    %v2366 = vpop.f32.mrb[0].mxu0
    %v2367 = vadd.f32 %v2107, %v2366
    %v2368 = vpop.f32.mrb[0].mxu0
    %v2369 = vadd.f32 %v2103, %v2368
    %v2370 = vpop.f32.mrb[0].mxu0
    %v2371 = vadd.f32 %v2107, %v2370
    %2372 = vmatprep.mubr.bf16.mxu0 %v2047
    %2373 = vmatmul.mubr.bf16.gmra.mrb[0].mxu0 %v2046
    %v2374 = vpop.f32.mrb[0].mxu0
    %v2375 = vadd.f32 %v2103, %v2374
    %v2376 = vpop.f32.mrb[0].mxu0
    %v2377 = vadd.f32 %v2107, %v2376
    %v2378 = vpop.f32.mrb[0].mxu0
    %v2379 = vadd.f32 %v2103, %v2378
    %v2380 = vpop.f32.mrb[0].mxu0
    %v2381 = vadd.f32 %v2107, %v2380
    %2382 = vmatprep.mubr.bf16.mxu0 %v2049
    %2383 = vmatmul.mubr.bf16.gmra.mrb[0].mxu0 %v2048
    %v2384 = vpop.f32.mrb[0].mxu0
    %v2385 = vadd.f32 %v2103, %v2384
    %v2386 = vpop.f32.mrb[0].mxu0
    %v2387 = vadd.f32 %v2107, %v2386
    %v2388 = vpop.f32.mrb[0].mxu0
    %v2389 = vadd.f32 %v2103, %v2388
    %v2390 = vpop.f32.mrb[0].mxu0
    %v2391 = vadd.f32 %v2107, %v2390
    %2392 = vmatprep.mubr.bf16.mxu0 %v2051
    %2393 = vmatmul.mubr.bf16.gmra.mrb[0].mxu0 %v2050
    %v2394 = vpop.f32.mrb[0].mxu0
    %v2395 = vadd.f32 %v2103, %v2394
    %v2396 = vpop.f32.mrb[0].mxu0
    %v2397 = vadd.f32 %v2107, %v2396
    %v2398 = vpop.f32.mrb[0].mxu0
    %v2399 = vadd.f32 %v2103, %v2398
    %v2400 = vpop.f32.mrb[0].mxu0
    %v2401 = vadd.f32 %v2107, %v2400
    %2402 = vmatprep.mubr.bf16.mxu0 %v2053
    %2403 = vmatmul.mubr.bf16.gmra.mrb[0].mxu0 %v2052
    %v2404 = vpop.f32.mrb[0].mxu0
    %v2405 = vadd.f32 %v2103, %v2404
    %v2406 = vpop.f32.mrb[0].mxu0
    %v2407 = vadd.f32 %v2107, %v2406
    %v2408 = vpop.f32.mrb[0].mxu0
    %v2409 = vadd.f32 %v2103, %v2408
    %v2410 = vpop.f32.mrb[0].mxu0
    %v2411 = vadd.f32 %v2107, %v2410
    %2412 = vmatprep.mubr.bf16.mxu0 %v2055
    %2413 = vmatmul.mubr.bf16.gmra.mrb[0].mxu0 %v2054
    %v2414 = vpop.f32.mrb[0].mxu0
    %v2415 = vadd.f32 %v2103, %v2414
    %v2416 = vpop.f32.mrb[0].mxu0
    %v2417 = vadd.f32 %v2107, %v2416
    %v2418 = vpop.f32.mrb[0].mxu0
    %v2419 = vadd.f32 %v2103, %v2418
    %v2420 = vpop.f32.mrb[0].mxu0
    %v2421 = vadd.f32 %v2107, %v2420
    %2422 = vmatprep.mubr.bf16.mxu0 %v2057
    %2423 = vmatmul.mubr.bf16.gmra.mrb[0].mxu0 %v2056
    %v2424 = vpop.f32.mrb[0].mxu0
    %v2425 = vadd.f32 %v2103, %v2424
    %v2426 = vpop.f32.mrb[0].mxu0
    %v2427 = vadd.f32 %v2107, %v2426
    %v2428 = vpop.f32.mrb[0].mxu0
    %v2429 = vadd.f32 %v2103, %v2428
    %v2430 = vpop.f32.mrb[0].mxu0
    %v2431 = vadd.f32 %v2107, %v2430
    %2432 = vmatprep.mubr.bf16.mxu0 %v2059
    %2433 = vmatmul.mubr.bf16.gmra.mrb[0].mxu0 %v2058
    %v2434 = vpop.f32.mrb[0].mxu0
    %v2435 = vadd.f32 %v2103, %v2434
    %v2436 = vpop.f32.mrb[0].mxu0
    %v2437 = vadd.f32 %v2107, %v2436
    %v2438 = vpop.f32.mrb[0].mxu0
    %v2439 = vadd.f32 %v2103, %v2438
    %v2440 = vpop.f32.mrb[0].mxu0
    %v2441 = vadd.f32 %v2107, %v2440
    %2442 = vmatprep.mubr.bf16.mxu0 %v2061
    %2443 = vmatmul.mubr.bf16.gmra.mrb[0].mxu0 %v2060
    %v2444 = vpop.f32.mrb[0].mxu0
    %v2445 = vadd.f32 %v2103, %v2444
    %v2446 = vpop.f32.mrb[0].mxu0
    %v2447 = vadd.f32 %v2107, %v2446
    %v2448 = vpop.f32.mrb[0].mxu0
    %v2449 = vadd.f32 %v2103, %v2448
    %v2450 = vpop.f32.mrb[0].mxu0
    %v2451 = vadd.f32 %v2107, %v2450
    %2452 = vmatprep.mubr.bf16.mxu0 %v2063
    %2453 = vmatmul.mubr.bf16.gmra.mrb[0].mxu0 %v2062
    %v2454 = vpop.f32.mrb[0].mxu0
    %v2455 = vadd.f32 %v2103, %v2454
    %v2456 = vpop.f32.mrb[0].mxu0
    %v2457 = vadd.f32 %v2107, %v2456
    %v2458 = vpop.f32.mrb[0].mxu0
    %v2459 = vadd.f32 %v2103, %v2458
    %v2460 = vpop.f32.mrb[0].mxu0
    %v2461 = vadd.f32 %v2107, %v2460
    %2462 = vdwg.mxu0
    %v2463 = vmax.f32 %v2305, 0.0
    %v2464 = vmax.f32 %v2307, 0.0
    %v2465 = vmax.f32 %v2309, 0.0
    %v2466 = vmax.f32 %v2311, 0.0
    %v2467 = vmax.f32 %v2315, 0.0
    %v2468 = vmax.f32 %v2317, 0.0
    %v2469 = vmax.f32 %v2319, 0.0
    %v2470 = vmax.f32 %v2321, 0.0
    %v2471 = vmax.f32 %v2325, 0.0
    %v2472 = vmax.f32 %v2327, 0.0
    %v2473 = vmax.f32 %v2329, 0.0
    %v2474 = vmax.f32 %v2331, 0.0
    %v2475 = vmax.f32 %v2335, 0.0
    %v2476 = vmax.f32 %v2337, 0.0
    %v2477 = vmax.f32 %v2339, 0.0
    %v2478 = vmax.f32 %v2341, 0.0
    %v2479 = vmax.f32 %v2345, 0.0
    %v2480 = vmax.f32 %v2347, 0.0
    %v2481 = vmax.f32 %v2349, 0.0
    %v2482 = vmax.f32 %v2351, 0.0
    %v2483 = vmax.f32 %v2355, 0.0
    %v2484 = vmax.f32 %v2357, 0.0
    %v2485 = vmax.f32 %v2359, 0.0
    %v2486 = vmax.f32 %v2361, 0.0
    %v2487 = vmax.f32 %v2365, 0.0
    %v2488 = vmax.f32 %v2367, 0.0
    %v2489 = vmax.f32 %v2369, 0.0
    %v2490 = vmax.f32 %v2371, 0.0
    %v2491 = vmax.f32 %v2375, 0.0
    %v2492 = vmax.f32 %v2377, 0.0
    %v2493 = vmax.f32 %v2379, 0.0
    %v2494 = vmax.f32 %v2381, 0.0
    %v2495 = vmax.f32 %v2385, 0.0
    %v2496 = vmax.f32 %v2387, 0.0
    %v2497 = vmax.f32 %v2389, 0.0
    %v2498 = vmax.f32 %v2391, 0.0
    %v2499 = vmax.f32 %v2395, 0.0
    %v2500 = vmax.f32 %v2397, 0.0
    %v2501 = vmax.f32 %v2399, 0.0
    %v2502 = vmax.f32 %v2401, 0.0
    %v2503 = vmax.f32 %v2405, 0.0
    %v2504 = vmax.f32 %v2407, 0.0
    %v2505 = vmax.f32 %v2409, 0.0
    %v2506 = vmax.f32 %v2411, 0.0
    %v2507 = vmax.f32 %v2415, 0.0
    %v2508 = vmax.f32 %v2417, 0.0
    %v2509 = vmax.f32 %v2419, 0.0
    %v2510 = vmax.f32 %v2421, 0.0
    %v2511 = vmax.f32 %v2425, 0.0
    %v2512 = vmax.f32 %v2427, 0.0
    %v2513 = vmax.f32 %v2429, 0.0
    %v2514 = vmax.f32 %v2431, 0.0
    %v2515 = vmax.f32 %v2435, 0.0
    %v2516 = vmax.f32 %v2437, 0.0
    %v2517 = vmax.f32 %v2439, 0.0
    %v2518 = vmax.f32 %v2441, 0.0
    %v2519 = vmax.f32 %v2445, 0.0
    %v2520 = vmax.f32 %v2447, 0.0
    %v2521 = vmax.f32 %v2449, 0.0
    %v2522 = vmax.f32 %v2451, 0.0
    %v2523 = vmax.f32 %v2455, 0.0
    %v2524 = vmax.f32 %v2457, 0.0
    %v2525 = vmax.f32 %v2459, 0.0
    %v2526 = vmax.f32 %v2461, 0.0
    %v2527 = vpack.c.bf16 %v2465, %v2463
    %v2528 = vpack.c.bf16 %v2466, %v2464
    %v2529 = vpack.c.bf16 %v2469, %v2467
    %v2530 = vpack.c.bf16 %v2470, %v2468
    %v2531 = vpack.c.bf16 %v2473, %v2471
    %v2532 = vpack.c.bf16 %v2474, %v2472
    %v2533 = vpack.c.bf16 %v2477, %v2475
    %v2534 = vpack.c.bf16 %v2478, %v2476
    %v2535 = vpack.c.bf16 %v2481, %v2479
    %v2536 = vpack.c.bf16 %v2482, %v2480
    %v2537 = vpack.c.bf16 %v2485, %v2483
    %v2538 = vpack.c.bf16 %v2486, %v2484
    %v2539 = vpack.c.bf16 %v2489, %v2487
    %v2540 = vpack.c.bf16 %v2490, %v2488
    %v2541 = vpack.c.bf16 %v2493, %v2491
    %v2542 = vpack.c.bf16 %v2494, %v2492
    %v2543 = vpack.c.bf16 %v2497, %v2495
    %v2544 = vpack.c.bf16 %v2498, %v2496
    %v2545 = vpack.c.bf16 %v2501, %v2499
    %v2546 = vpack.c.bf16 %v2502, %v2500
    %v2547 = vpack.c.bf16 %v2505, %v2503
    %v2548 = vpack.c.bf16 %v2506, %v2504
    %v2549 = vpack.c.bf16 %v2509, %v2507
    %v2550 = vpack.c.bf16 %v2510, %v2508
    %v2551 = vpack.c.bf16 %v2513, %v2511
    %v2552 = vpack.c.bf16 %v2514, %v2512
    %v2553 = vpack.c.bf16 %v2517, %v2515
    %v2554 = vpack.c.bf16 %v2518, %v2516
    %v2555 = vpack.c.bf16 %v2521, %v2519
    %v2556 = vpack.c.bf16 %v2522, %v2520
    %v2557 = vpack.c.bf16 %v2525, %v2523
    %v2558 = vpack.c.bf16 %v2526, %v2524
    %s2559 = scalar_lea.vmem [#allocation2], 1024
    %v2560 = vld [vmem:[%s2559] sm:$0xff]
    %v2561 = vld [vmem:[%s2559 + $0x8] sm:$0xff]
    %v2562 = vld [vmem:[%s2559 + $0x10] sm:$0xff]
    %v2563 = vld [vmem:[%s2559 + $0x18] sm:$0xff]
    %v2564 = vld [vmem:[%s2559 + $0x20] sm:$0xff]
    %v2565 = vld [vmem:[%s2559 + $0x28] sm:$0xff]
    %v2566 = vld [vmem:[%s2559 + $0x30] sm:$0xff]
    %v2567 = vld [vmem:[%s2559 + $0x38] sm:$0xff]
    %v2568 = vld [vmem:[%s2559 + $0x40] sm:$0xff]
    %v2569 = vld [vmem:[%s2559 + $0x48] sm:$0xff]
    %v2570 = vld [vmem:[%s2559 + $0x50] sm:$0xff]
    %v2571 = vld [vmem:[%s2559 + $0x58] sm:$0xff]
    %v2572 = vld [vmem:[%s2559 + $0x60] sm:$0xff]
    %v2573 = vld [vmem:[%s2559 + $0x68] sm:$0xff]
    %v2574 = vld [vmem:[%s2559 + $0x70] sm:$0xff]
    %v2575 = vld [vmem:[%s2559 + $0x78] sm:$0xff]
    %v2576 = vld [vmem:[%s2559 + $0x80] sm:$0xff]
    %v2577 = vld [vmem:[%s2559 + $0x88] sm:$0xff]
    %v2578 = vld [vmem:[%s2559 + $0x90] sm:$0xff]
    %v2579 = vld [vmem:[%s2559 + $0x98] sm:$0xff]
    %v2580 = vld [vmem:[%s2559 + $0xa0] sm:$0xff]
    %v2581 = vld [vmem:[%s2559 + $0xa8] sm:$0xff]
    %v2582 = vld [vmem:[%s2559 + $0xb0] sm:$0xff]
    %v2583 = vld [vmem:[%s2559 + $0xb8] sm:$0xff]
    %v2584 = vld [vmem:[%s2559 + $0xc0] sm:$0xff]
    %v2585 = vld [vmem:[%s2559 + $0xc8] sm:$0xff]
    %v2586 = vld [vmem:[%s2559 + $0xd0] sm:$0xff]
    %v2587 = vld [vmem:[%s2559 + $0xd8] sm:$0xff]
    %v2588 = vld [vmem:[%s2559 + $0xe0] sm:$0xff]
    %v2589 = vld [vmem:[%s2559 + $0xe8] sm:$0xff]
    %v2590 = vld [vmem:[%s2559 + $0xf0] sm:$0xff]
    %v2591 = vld [vmem:[%s2559 + $0xf8] sm:$0xff]
    %s2592 = scalar_lea.vmem %s2, 24
    %v2593 = vld [vmem:[%s2592] sm:$0xff]
    %v2594 = vld [vmem:[%s2592 + $0x8] sm:$0xff]
    %v2595 = vld [vmem:[%s2592 + $0x10] sm:$0xff]
    %v2599 = vunpack.c.l.b16 %v2593
    %v2600 = vunpack.c.h.b16 %v2593
    %v2601 = vunpack.c.l.b16 %v2594
    %v2602 = vunpack.c.h.b16 %v2594
    %v2603 = vunpack.c.l.b16 %v2595
    %v2604 = vunpack.c.h.b16 %v2595
    %v2605 = vpack.c.b16 %v2601, %v2599
    %v2606 = vpack.c.b16 %v2602, %v2600
    %v2607 = vpack.c.b16 %v2603, %v2603
    %v2608 = vpack.c.b16 %v2604, %v2604
    %v2612 = vsel %vm285, %v2607, 0
    %v2615 = vsel %vm285, %v2608, 0
    %2617 = vmatprep.subr.bf16.mxu0 %v2606
    %2618 = vmatpush1.bf16.msra.mxu0 %v2605
    %2619 = vmatprep.subr.bf16.mxu0 %v2615
    %2620 = vmatpush1.bf16.msra.mxu0 %v2612
    %2621 = vmatprep.subr.bf16.mxu0 0
    %2622 = vmatpush1.bf16.msra.mxu0 0
    %2623 = vmatprep.subr.bf16.mxu0 0
    %2624 = vmatpush1.bf16.msra.mxu0 0
    %2625 = vmatprep.subr.bf16.mxu0 0
    %2626 = vmatpush1.bf16.msra.mxu0 0
    %2627 = vmatprep.subr.bf16.mxu0 0
    %2628 = vmatpush1.bf16.msra.mxu0 0
    %2629 = vmatprep.subr.bf16.mxu0 0
    %2630 = vmatpush1.bf16.msra.mxu0 0
    %2631 = vmatprep.subr.bf16.mxu0 0
    %2632 = vmatpush1.bf16.msra.mxu0 0
    %2633 = vmatprep.subr.bf16.mxu0 0
    %2634 = vmatpush1.bf16.msra.mxu0 0
    %2635 = vmatprep.subr.bf16.mxu0 0
    %2636 = vmatpush1.bf16.msra.mxu0 0
    %2637 = vmatprep.subr.bf16.mxu0 0
    %2638 = vmatpush1.bf16.msra.mxu0 0
    %2639 = vmatprep.subr.bf16.mxu0 0
    %2640 = vmatpush1.bf16.msra.mxu0 0
    %2641 = vmatprep.subr.bf16.mxu0 0
    %2642 = vmatpush1.bf16.msra.mxu0 0
    %2643 = vmatprep.subr.bf16.mxu0 0
    %2644 = vmatpush1.bf16.msra.mxu0 0
    %2645 = vmatprep.subr.bf16.mxu0 0
    %2646 = vmatpush1.bf16.msra.mxu0 0
    %2647 = vmatprep.subr.bf16.mxu0 0
    %2648 = vmatpush1.bf16.msra.mxu0 0
    %2649 = vmatprep.mubr.bf16.mxu0 0
    %2650 = vmatmul.mubr.bf16.gmra.mrb[0].mxu0 %v238
    %v2651 = vpop.f32.mrb[0].mxu0
    %v2652 = vadd.f32 0.0, %v2651
    %v2653 = vpop.f32.mrb[0].mxu0
    %v2654 = vadd.f32 0.0, %v2653
    %v2655 = vpop.f32.mrb[0].mxu0
    %v2656 = vadd.f32 0.0, %v2655
    %v2657 = vpop.f32.mrb[0].mxu0
    %v2658 = vadd.f32 0.0, %v2657
    %2659 = vmatprep.mubr.bf16.mxu0 0
    %2660 = vmatmul.mubr.bf16.gmra.mrb[0].mxu0 %v241
    %v2661 = vpop.f32.mrb[0].mxu0
    %v2662 = vadd.f32 0.0, %v2661
    %v2663 = vpop.f32.mrb[0].mxu0
    %v2664 = vadd.f32 0.0, %v2663
    %v2665 = vpop.f32.mrb[0].mxu0
    %v2666 = vadd.f32 0.0, %v2665
    %v2667 = vpop.f32.mrb[0].mxu0
    %v2668 = vadd.f32 0.0, %v2667
    %2669 = vmatprep.mubr.bf16.mxu0 0
    %2670 = vmatmul.mubr.bf16.gmra.mrb[0].mxu0 %v244
    %v2671 = vpop.f32.mrb[0].mxu0
    %v2672 = vadd.f32 0.0, %v2671
    %v2673 = vpop.f32.mrb[0].mxu0
    %v2674 = vadd.f32 0.0, %v2673
    %v2675 = vpop.f32.mrb[0].mxu0
    %v2676 = vadd.f32 0.0, %v2675
    %v2677 = vpop.f32.mrb[0].mxu0
    %v2678 = vadd.f32 0.0, %v2677
    %2679 = vmatprep.mubr.bf16.mxu0 0
    %2680 = vmatmul.mubr.bf16.gmra.mrb[0].mxu0 %v247
    %v2681 = vpop.f32.mrb[0].mxu0
    %v2682 = vadd.f32 0.0, %v2681
    %v2683 = vpop.f32.mrb[0].mxu0
    %v2684 = vadd.f32 0.0, %v2683
    %v2685 = vpop.f32.mrb[0].mxu0
    %v2686 = vadd.f32 0.0, %v2685
    %v2687 = vpop.f32.mrb[0].mxu0
    %v2688 = vadd.f32 0.0, %v2687
    %2689 = vmatprep.mubr.bf16.mxu0 0
    %2690 = vmatmul.mubr.bf16.gmra.mrb[0].mxu0 %v250
    %v2691 = vpop.f32.mrb[0].mxu0
    %v2692 = vadd.f32 0.0, %v2691
    %v2693 = vpop.f32.mrb[0].mxu0
    %v2694 = vadd.f32 0.0, %v2693
    %v2695 = vpop.f32.mrb[0].mxu0
    %v2696 = vadd.f32 0.0, %v2695
    %v2697 = vpop.f32.mrb[0].mxu0
    %v2698 = vadd.f32 0.0, %v2697
    %2699 = vmatprep.mubr.bf16.mxu0 0
    %2700 = vmatmul.mubr.bf16.gmra.mrb[0].mxu0 %v253
    %v2701 = vpop.f32.mrb[0].mxu0
    %v2702 = vadd.f32 0.0, %v2701
    %v2703 = vpop.f32.mrb[0].mxu0
    %v2704 = vadd.f32 0.0, %v2703
    %v2705 = vpop.f32.mrb[0].mxu0
    %v2706 = vadd.f32 0.0, %v2705
    %v2707 = vpop.f32.mrb[0].mxu0
    %v2708 = vadd.f32 0.0, %v2707
    %2709 = vmatprep.mubr.bf16.mxu0 0
    %2710 = vmatmul.mubr.bf16.gmra.mrb[0].mxu0 %v256
    %v2711 = vpop.f32.mrb[0].mxu0
    %v2712 = vadd.f32 0.0, %v2711
    %v2713 = vpop.f32.mrb[0].mxu0
    %v2714 = vadd.f32 0.0, %v2713
    %v2715 = vpop.f32.mrb[0].mxu0
    %v2716 = vadd.f32 0.0, %v2715
    %v2717 = vpop.f32.mrb[0].mxu0
    %v2718 = vadd.f32 0.0, %v2717
    %2719 = vmatprep.mubr.bf16.mxu0 0
    %2720 = vmatmul.mubr.bf16.gmra.mrb[0].mxu0 %v259
    %v2721 = vpop.f32.mrb[0].mxu0
    %v2722 = vadd.f32 0.0, %v2721
    %v2723 = vpop.f32.mrb[0].mxu0
    %v2724 = vadd.f32 0.0, %v2723
    %v2725 = vpop.f32.mrb[0].mxu0
    %v2726 = vadd.f32 0.0, %v2725
    %v2727 = vpop.f32.mrb[0].mxu0
    %v2728 = vadd.f32 0.0, %v2727
    %2729 = vmatprep.mubr.bf16.mxu0 0
    %2730 = vmatmul.mubr.bf16.gmra.mrb[0].mxu0 %v262
    %v2731 = vpop.f32.mrb[0].mxu0
    %v2732 = vadd.f32 0.0, %v2731
    %v2733 = vpop.f32.mrb[0].mxu0
    %v2734 = vadd.f32 0.0, %v2733
    %v2735 = vpop.f32.mrb[0].mxu0
    %v2736 = vadd.f32 0.0, %v2735
    %v2737 = vpop.f32.mrb[0].mxu0
    %v2738 = vadd.f32 0.0, %v2737
    %2739 = vmatprep.mubr.bf16.mxu0 0
    %2740 = vmatmul.mubr.bf16.gmra.mrb[0].mxu0 %v265
    %v2741 = vpop.f32.mrb[0].mxu0
    %v2742 = vadd.f32 0.0, %v2741
    %v2743 = vpop.f32.mrb[0].mxu0
    %v2744 = vadd.f32 0.0, %v2743
    %v2745 = vpop.f32.mrb[0].mxu0
    %v2746 = vadd.f32 0.0, %v2745
    %v2747 = vpop.f32.mrb[0].mxu0
    %v2748 = vadd.f32 0.0, %v2747
    %2749 = vmatprep.mubr.bf16.mxu0 0
    %2750 = vmatmul.mubr.bf16.gmra.mrb[0].mxu0 %v268
    %v2751 = vpop.f32.mrb[0].mxu0
    %v2752 = vadd.f32 0.0, %v2751
    %v2753 = vpop.f32.mrb[0].mxu0
    %v2754 = vadd.f32 0.0, %v2753
    %v2755 = vpop.f32.mrb[0].mxu0
    %v2756 = vadd.f32 0.0, %v2755
    %v2757 = vpop.f32.mrb[0].mxu0
    %v2758 = vadd.f32 0.0, %v2757
    %2759 = vmatprep.mubr.bf16.mxu0 0
    %2760 = vmatmul.mubr.bf16.gmra.mrb[0].mxu0 %v271
    %v2761 = vpop.f32.mrb[0].mxu0
    %v2762 = vadd.f32 0.0, %v2761
    %v2763 = vpop.f32.mrb[0].mxu0
    %v2764 = vadd.f32 0.0, %v2763
    %v2765 = vpop.f32.mrb[0].mxu0
    %v2766 = vadd.f32 0.0, %v2765
    %v2767 = vpop.f32.mrb[0].mxu0
    %v2768 = vadd.f32 0.0, %v2767
    %2769 = vmatprep.mubr.bf16.mxu0 0
    %2770 = vmatmul.mubr.bf16.gmra.mrb[0].mxu0 %v274
    %v2771 = vpop.f32.mrb[0].mxu0
    %v2772 = vadd.f32 0.0, %v2771
    %v2773 = vpop.f32.mrb[0].mxu0
    %v2774 = vadd.f32 0.0, %v2773
    %v2775 = vpop.f32.mrb[0].mxu0
    %v2776 = vadd.f32 0.0, %v2775
    %v2777 = vpop.f32.mrb[0].mxu0
    %v2778 = vadd.f32 0.0, %v2777
    %2779 = vmatprep.mubr.bf16.mxu0 0
    %2780 = vmatmul.mubr.bf16.gmra.mrb[0].mxu0 %v277
    %v2781 = vpop.f32.mrb[0].mxu0
    %v2782 = vadd.f32 0.0, %v2781
    %v2783 = vpop.f32.mrb[0].mxu0
    %v2784 = vadd.f32 0.0, %v2783
    %v2785 = vpop.f32.mrb[0].mxu0
    %v2786 = vadd.f32 0.0, %v2785
    %v2787 = vpop.f32.mrb[0].mxu0
    %v2788 = vadd.f32 0.0, %v2787
    %2789 = vmatprep.mubr.bf16.mxu0 0
    %2790 = vmatmul.mubr.bf16.gmra.mrb[0].mxu0 %v280
    %v2791 = vpop.f32.mrb[0].mxu0
    %v2792 = vadd.f32 0.0, %v2791
    %v2793 = vpop.f32.mrb[0].mxu0
    %v2794 = vadd.f32 0.0, %v2793
    %v2795 = vpop.f32.mrb[0].mxu0
    %v2796 = vadd.f32 0.0, %v2795
    %v2797 = vpop.f32.mrb[0].mxu0
    %v2798 = vadd.f32 0.0, %v2797
    %2799 = vmatprep.mubr.bf16.mxu0 0
    %2800 = vmatmul.mubr.bf16.gmra.mrb[0].mxu0 %v283
    %v2801 = vpop.f32.mrb[0].mxu0
    %v2802 = vadd.f32 0.0, %v2801
    %v2803 = vpop.f32.mrb[0].mxu0
    %v2804 = vadd.f32 0.0, %v2803
    %v2805 = vpop.f32.mrb[0].mxu0
    %v2806 = vadd.f32 0.0, %v2805
    %v2807 = vpop.f32.mrb[0].mxu0
    %v2808 = vadd.f32 0.0, %v2807
    %2809 = vdwg.mxu0
    %v2842 = vunpack.c.l.b16 %v2560
    %v2843 = vunpack.c.h.b16 %v2560
    %v2844 = vunpack.c.l.b16 %v2561
    %v2845 = vunpack.c.h.b16 %v2561
    %v2846 = vunpack.c.l.b16 %v2562
    %v2847 = vunpack.c.h.b16 %v2562
    %v2848 = vunpack.c.l.b16 %v2563
    %v2849 = vunpack.c.h.b16 %v2563
    %v2850 = vunpack.c.l.b16 %v2564
    %v2851 = vunpack.c.h.b16 %v2564
    %v2852 = vunpack.c.l.b16 %v2565
    %v2853 = vunpack.c.h.b16 %v2565
    %v2854 = vunpack.c.l.b16 %v2566
    %v2855 = vunpack.c.h.b16 %v2566
    %v2856 = vunpack.c.l.b16 %v2567
    %v2857 = vunpack.c.h.b16 %v2567
    %v2858 = vunpack.c.l.b16 %v2568
    %v2859 = vunpack.c.h.b16 %v2568
    %v2860 = vunpack.c.l.b16 %v2569
    %v2861 = vunpack.c.h.b16 %v2569
    %v2862 = vunpack.c.l.b16 %v2570
    %v2863 = vunpack.c.h.b16 %v2570
    %v2864 = vunpack.c.l.b16 %v2571
    %v2865 = vunpack.c.h.b16 %v2571
    %v2866 = vunpack.c.l.b16 %v2572
    %v2867 = vunpack.c.h.b16 %v2572
    %v2868 = vunpack.c.l.b16 %v2573
    %v2869 = vunpack.c.h.b16 %v2573
    %v2870 = vunpack.c.l.b16 %v2574
    %v2871 = vunpack.c.h.b16 %v2574
    %v2872 = vunpack.c.l.b16 %v2575
    %v2873 = vunpack.c.h.b16 %v2575
    %v2874 = vunpack.c.l.b16 %v2576
    %v2875 = vunpack.c.h.b16 %v2576
    %v2876 = vunpack.c.l.b16 %v2577
    %v2877 = vunpack.c.h.b16 %v2577
    %v2878 = vunpack.c.l.b16 %v2578
    %v2879 = vunpack.c.h.b16 %v2578
    %v2880 = vunpack.c.l.b16 %v2579
    %v2881 = vunpack.c.h.b16 %v2579
    %v2882 = vunpack.c.l.b16 %v2580
    %v2883 = vunpack.c.h.b16 %v2580
    %v2884 = vunpack.c.l.b16 %v2581
    %v2885 = vunpack.c.h.b16 %v2581
    %v2886 = vunpack.c.l.b16 %v2582
    %v2887 = vunpack.c.h.b16 %v2582
    %v2888 = vunpack.c.l.b16 %v2583
    %v2889 = vunpack.c.h.b16 %v2583
    %v2890 = vunpack.c.l.b16 %v2584
    %v2891 = vunpack.c.h.b16 %v2584
    %v2892 = vunpack.c.l.b16 %v2585
    %v2893 = vunpack.c.h.b16 %v2585
    %v2894 = vunpack.c.l.b16 %v2586
    %v2895 = vunpack.c.h.b16 %v2586
    %v2896 = vunpack.c.l.b16 %v2587
    %v2897 = vunpack.c.h.b16 %v2587
    %v2898 = vunpack.c.l.b16 %v2588
    %v2899 = vunpack.c.h.b16 %v2588
    %v2900 = vunpack.c.l.b16 %v2589
    %v2901 = vunpack.c.h.b16 %v2589
    %v2902 = vunpack.c.l.b16 %v2590
    %v2903 = vunpack.c.h.b16 %v2590
    %v2904 = vunpack.c.l.b16 %v2591
    %v2905 = vunpack.c.h.b16 %v2591
    %v2906 = vpack.c.b16 %v2844, %v2842
    %v2907 = vpack.c.b16 %v2845, %v2843
    %v2908 = vpack.c.b16 %v2848, %v2846
    %v2909 = vpack.c.b16 %v2849, %v2847
    %v2910 = vpack.c.b16 %v2852, %v2850
    %v2911 = vpack.c.b16 %v2853, %v2851
    %v2912 = vpack.c.b16 %v2856, %v2854
    %v2913 = vpack.c.b16 %v2857, %v2855
    %v2914 = vpack.c.b16 %v2860, %v2858
    %v2915 = vpack.c.b16 %v2861, %v2859
    %v2916 = vpack.c.b16 %v2864, %v2862
    %v2917 = vpack.c.b16 %v2865, %v2863
    %v2918 = vpack.c.b16 %v2868, %v2866
    %v2919 = vpack.c.b16 %v2869, %v2867
    %v2920 = vpack.c.b16 %v2872, %v2870
    %v2921 = vpack.c.b16 %v2873, %v2871
    %v2922 = vpack.c.b16 %v2876, %v2874
    %v2923 = vpack.c.b16 %v2877, %v2875
    %v2924 = vpack.c.b16 %v2880, %v2878
    %v2925 = vpack.c.b16 %v2881, %v2879
    %v2926 = vpack.c.b16 %v2884, %v2882
    %v2927 = vpack.c.b16 %v2885, %v2883
    %v2928 = vpack.c.b16 %v2888, %v2886
    %v2929 = vpack.c.b16 %v2889, %v2887
    %v2930 = vpack.c.b16 %v2892, %v2890
    %v2931 = vpack.c.b16 %v2893, %v2891
    %v2932 = vpack.c.b16 %v2896, %v2894
    %v2933 = vpack.c.b16 %v2897, %v2895
    %v2934 = vpack.c.b16 %v2900, %v2898
    %v2935 = vpack.c.b16 %v2901, %v2899
    %v2936 = vpack.c.b16 %v2904, %v2902
    %v2937 = vpack.c.b16 %v2905, %v2903
    %2970 = vmatprep.subr.bf16.mxu0 %v2907
    %2971 = vmatpush1.bf16.msra.mxu0 %v2906
    %2972 = vmatprep.subr.bf16.mxu0 %v2909
    %2973 = vmatpush1.bf16.msra.mxu0 %v2908
    %2974 = vmatprep.subr.bf16.mxu0 %v2911
    %2975 = vmatpush1.bf16.msra.mxu0 %v2910
    %2976 = vmatprep.subr.bf16.mxu0 %v2913
    %2977 = vmatpush1.bf16.msra.mxu0 %v2912
    %2978 = vmatprep.subr.bf16.mxu0 %v2915
    %2979 = vmatpush1.bf16.msra.mxu0 %v2914
    %2980 = vmatprep.subr.bf16.mxu0 %v2917
    %2981 = vmatpush1.bf16.msra.mxu0 %v2916
    %2982 = vmatprep.subr.bf16.mxu0 %v2919
    %2983 = vmatpush1.bf16.msra.mxu0 %v2918
    %2984 = vmatprep.subr.bf16.mxu0 %v2921
    %2985 = vmatpush1.bf16.msra.mxu0 %v2920
    %2986 = vmatprep.subr.bf16.mxu0 %v2923
    %2987 = vmatpush1.bf16.msra.mxu0 %v2922
    %2988 = vmatprep.subr.bf16.mxu0 %v2925
    %2989 = vmatpush1.bf16.msra.mxu0 %v2924
    %2990 = vmatprep.subr.bf16.mxu0 %v2927
    %2991 = vmatpush1.bf16.msra.mxu0 %v2926
    %2992 = vmatprep.subr.bf16.mxu0 %v2929
    %2993 = vmatpush1.bf16.msra.mxu0 %v2928
    %2994 = vmatprep.subr.bf16.mxu0 %v2931
    %2995 = vmatpush1.bf16.msra.mxu0 %v2930
    %2996 = vmatprep.subr.bf16.mxu0 %v2933
    %2997 = vmatpush1.bf16.msra.mxu0 %v2932
    %2998 = vmatprep.subr.bf16.mxu0 %v2935
    %2999 = vmatpush1.bf16.msra.mxu0 %v2934
    %3000 = vmatprep.subr.bf16.mxu0 %v2937
    %3001 = vmatpush1.bf16.msra.mxu0 %v2936
    %3002 = vmatprep.mubr.bf16.mxu0 %v2528
    %3003 = vmatmul.mubr.bf16.gmra.mrb[0].mxu0 %v2527
    %v3004 = vpop.f32.mrb[0].mxu0
    %v3005 = vadd.f32 %v2652, %v3004
    %v3006 = vpop.f32.mrb[0].mxu0
    %v3007 = vadd.f32 %v2654, %v3006
    %v3008 = vpop.f32.mrb[0].mxu0
    %v3009 = vadd.f32 %v2656, %v3008
    %v3010 = vpop.f32.mrb[0].mxu0
    %v3011 = vadd.f32 %v2658, %v3010
    %3012 = vmatprep.mubr.bf16.mxu0 %v2530
    %3013 = vmatmul.mubr.bf16.gmra.mrb[0].mxu0 %v2529
    %v3014 = vpop.f32.mrb[0].mxu0
    %v3015 = vadd.f32 %v2662, %v3014
    %v3016 = vpop.f32.mrb[0].mxu0
    %v3017 = vadd.f32 %v2664, %v3016
    %v3018 = vpop.f32.mrb[0].mxu0
    %v3019 = vadd.f32 %v2666, %v3018
    %v3020 = vpop.f32.mrb[0].mxu0
    %v3021 = vadd.f32 %v2668, %v3020
    %3022 = vmatprep.mubr.bf16.mxu0 %v2532
    %3023 = vmatmul.mubr.bf16.gmra.mrb[0].mxu0 %v2531
    %v3024 = vpop.f32.mrb[0].mxu0
    %v3025 = vadd.f32 %v2672, %v3024
    %v3026 = vpop.f32.mrb[0].mxu0
    %v3027 = vadd.f32 %v2674, %v3026
    %v3028 = vpop.f32.mrb[0].mxu0
    %v3029 = vadd.f32 %v2676, %v3028
    %v3030 = vpop.f32.mrb[0].mxu0
    %v3031 = vadd.f32 %v2678, %v3030
    %3032 = vmatprep.mubr.bf16.mxu0 %v2534
    %3033 = vmatmul.mubr.bf16.gmra.mrb[0].mxu0 %v2533
    %v3034 = vpop.f32.mrb[0].mxu0
    %v3035 = vadd.f32 %v2682, %v3034
    %v3036 = vpop.f32.mrb[0].mxu0
    %v3037 = vadd.f32 %v2684, %v3036
    %v3038 = vpop.f32.mrb[0].mxu0
    %v3039 = vadd.f32 %v2686, %v3038
    %v3040 = vpop.f32.mrb[0].mxu0
    %v3041 = vadd.f32 %v2688, %v3040
    %3042 = vmatprep.mubr.bf16.mxu0 %v2536
    %3043 = vmatmul.mubr.bf16.gmra.mrb[0].mxu0 %v2535
    %v3044 = vpop.f32.mrb[0].mxu0
    %v3045 = vadd.f32 %v2692, %v3044
    %v3046 = vpop.f32.mrb[0].mxu0
    %v3047 = vadd.f32 %v2694, %v3046
    %v3048 = vpop.f32.mrb[0].mxu0
    %v3049 = vadd.f32 %v2696, %v3048
    %v3050 = vpop.f32.mrb[0].mxu0
    %v3051 = vadd.f32 %v2698, %v3050
    %3052 = vmatprep.mubr.bf16.mxu0 %v2538
    %3053 = vmatmul.mubr.bf16.gmra.mrb[0].mxu0 %v2537
    %v3054 = vpop.f32.mrb[0].mxu0
    %v3055 = vadd.f32 %v2702, %v3054
    %v3056 = vpop.f32.mrb[0].mxu0
    %v3057 = vadd.f32 %v2704, %v3056
    %v3058 = vpop.f32.mrb[0].mxu0
    %v3059 = vadd.f32 %v2706, %v3058
    %v3060 = vpop.f32.mrb[0].mxu0
    %v3061 = vadd.f32 %v2708, %v3060
    %3062 = vmatprep.mubr.bf16.mxu0 %v2540
    %3063 = vmatmul.mubr.bf16.gmra.mrb[0].mxu0 %v2539
    %v3064 = vpop.f32.mrb[0].mxu0
    %v3065 = vadd.f32 %v2712, %v3064
    %v3066 = vpop.f32.mrb[0].mxu0
    %v3067 = vadd.f32 %v2714, %v3066
    %v3068 = vpop.f32.mrb[0].mxu0
    %v3069 = vadd.f32 %v2716, %v3068
    %v3070 = vpop.f32.mrb[0].mxu0
    %v3071 = vadd.f32 %v2718, %v3070
    %3072 = vmatprep.mubr.bf16.mxu0 %v2542
    %3073 = vmatmul.mubr.bf16.gmra.mrb[0].mxu0 %v2541
    %v3074 = vpop.f32.mrb[0].mxu0
    %v3075 = vadd.f32 %v2722, %v3074
    %v3076 = vpop.f32.mrb[0].mxu0
    %v3077 = vadd.f32 %v2724, %v3076
    %v3078 = vpop.f32.mrb[0].mxu0
    %v3079 = vadd.f32 %v2726, %v3078
    %v3080 = vpop.f32.mrb[0].mxu0
    %v3081 = vadd.f32 %v2728, %v3080
    %3082 = vmatprep.mubr.bf16.mxu0 %v2544
    %3083 = vmatmul.mubr.bf16.gmra.mrb[0].mxu0 %v2543
    %v3084 = vpop.f32.mrb[0].mxu0
    %v3085 = vadd.f32 %v2732, %v3084
    %v3086 = vpop.f32.mrb[0].mxu0
    %v3087 = vadd.f32 %v2734, %v3086
    %v3088 = vpop.f32.mrb[0].mxu0
    %v3089 = vadd.f32 %v2736, %v3088
    %v3090 = vpop.f32.mrb[0].mxu0
    %v3091 = vadd.f32 %v2738, %v3090
    %3092 = vmatprep.mubr.bf16.mxu0 %v2546
    %3093 = vmatmul.mubr.bf16.gmra.mrb[0].mxu0 %v2545
    %v3094 = vpop.f32.mrb[0].mxu0
    %v3095 = vadd.f32 %v2742, %v3094
    %v3096 = vpop.f32.mrb[0].mxu0
    %v3097 = vadd.f32 %v2744, %v3096
    %v3098 = vpop.f32.mrb[0].mxu0
    %v3099 = vadd.f32 %v2746, %v3098
    %v3100 = vpop.f32.mrb[0].mxu0
    %v3101 = vadd.f32 %v2748, %v3100
    %3102 = vmatprep.mubr.bf16.mxu0 %v2548
    %3103 = vmatmul.mubr.bf16.gmra.mrb[0].mxu0 %v2547
    %v3104 = vpop.f32.mrb[0].mxu0
    %v3105 = vadd.f32 %v2752, %v3104
    %v3106 = vpop.f32.mrb[0].mxu0
    %v3107 = vadd.f32 %v2754, %v3106
    %v3108 = vpop.f32.mrb[0].mxu0
    %v3109 = vadd.f32 %v2756, %v3108
    %v3110 = vpop.f32.mrb[0].mxu0
    %v3111 = vadd.f32 %v2758, %v3110
    %3112 = vmatprep.mubr.bf16.mxu0 %v2550
    %3113 = vmatmul.mubr.bf16.gmra.mrb[0].mxu0 %v2549
    %v3114 = vpop.f32.mrb[0].mxu0
    %v3115 = vadd.f32 %v2762, %v3114
    %v3116 = vpop.f32.mrb[0].mxu0
    %v3117 = vadd.f32 %v2764, %v3116
    %v3118 = vpop.f32.mrb[0].mxu0
    %v3119 = vadd.f32 %v2766, %v3118
    %v3120 = vpop.f32.mrb[0].mxu0
    %v3121 = vadd.f32 %v2768, %v3120
    %3122 = vmatprep.mubr.bf16.mxu0 %v2552
    %3123 = vmatmul.mubr.bf16.gmra.mrb[0].mxu0 %v2551
    %v3124 = vpop.f32.mrb[0].mxu0
    %v3125 = vadd.f32 %v2772, %v3124
    %v3126 = vpop.f32.mrb[0].mxu0
    %v3127 = vadd.f32 %v2774, %v3126
    %v3128 = vpop.f32.mrb[0].mxu0
    %v3129 = vadd.f32 %v2776, %v3128
    %v3130 = vpop.f32.mrb[0].mxu0
    %v3131 = vadd.f32 %v2778, %v3130
    %3132 = vmatprep.mubr.bf16.mxu0 %v2554
    %3133 = vmatmul.mubr.bf16.gmra.mrb[0].mxu0 %v2553
    %v3134 = vpop.f32.mrb[0].mxu0
    %v3135 = vadd.f32 %v2782, %v3134
    %v3136 = vpop.f32.mrb[0].mxu0
    %v3137 = vadd.f32 %v2784, %v3136
    %v3138 = vpop.f32.mrb[0].mxu0
    %v3139 = vadd.f32 %v2786, %v3138
    %v3140 = vpop.f32.mrb[0].mxu0
    %v3141 = vadd.f32 %v2788, %v3140
    %3142 = vmatprep.mubr.bf16.mxu0 %v2556
    %3143 = vmatmul.mubr.bf16.gmra.mrb[0].mxu0 %v2555
    %v3144 = vpop.f32.mrb[0].mxu0
    %v3145 = vadd.f32 %v2792, %v3144
    %v3146 = vpop.f32.mrb[0].mxu0
    %v3147 = vadd.f32 %v2794, %v3146
    %v3148 = vpop.f32.mrb[0].mxu0
    %v3149 = vadd.f32 %v2796, %v3148
    %v3150 = vpop.f32.mrb[0].mxu0
    %v3151 = vadd.f32 %v2798, %v3150
    %3152 = vmatprep.mubr.bf16.mxu0 %v2558
    %3153 = vmatmul.mubr.bf16.gmra.mrb[0].mxu0 %v2557
    %v3154 = vpop.f32.mrb[0].mxu0
    %v3155 = vadd.f32 %v2802, %v3154
    %v3156 = vpop.f32.mrb[0].mxu0
    %v3157 = vadd.f32 %v2804, %v3156
    %v3158 = vpop.f32.mrb[0].mxu0
    %v3159 = vadd.f32 %v2806, %v3158
    %v3160 = vpop.f32.mrb[0].mxu0
    %v3161 = vadd.f32 %v2808, %v3160
    %3162 = vdwg.mxu0
    %s3163 = scalar_lea.vmem %s5, 8
    %v3164 = vld [vmem:[%s3163] sm:$0x3]
    %v3166 = vlaneseq
    %v3167 = vshrl.u32 %v3166, 7
    %v3168 = vsub.s32 0, %v3167
    %v3169 = vrot.slane %v3164, %v3168
    %v3170 = vlaneseq
    %v3171 = vshrl.u32 %v3170, 7
    %v3172 = vsub.s32 1, %v3171
    %v3173 = vrot.slane %v3164, %v3172
    %v3176 = vadd.f32 %v3005, %v3169
    %v3177 = vadd.f32 %v3007, %v3173
    %v3178 = vadd.f32 %v3009, %v3169
    %v3179 = vadd.f32 %v3011, %v3173
    %v3180 = vadd.f32 %v3015, %v3169
    %v3181 = vadd.f32 %v3017, %v3173
    %v3182 = vadd.f32 %v3019, %v3169
    %v3183 = vadd.f32 %v3021, %v3173
    %v3184 = vadd.f32 %v3025, %v3169
    %v3185 = vadd.f32 %v3027, %v3173
    %v3186 = vadd.f32 %v3029, %v3169
    %v3187 = vadd.f32 %v3031, %v3173
    %v3188 = vadd.f32 %v3035, %v3169
    %v3189 = vadd.f32 %v3037, %v3173
    %v3190 = vadd.f32 %v3039, %v3169
    %v3191 = vadd.f32 %v3041, %v3173
    %v3192 = vadd.f32 %v3045, %v3169
    %v3193 = vadd.f32 %v3047, %v3173
    %v3194 = vadd.f32 %v3049, %v3169
    %v3195 = vadd.f32 %v3051, %v3173
    %v3196 = vadd.f32 %v3055, %v3169
    %v3197 = vadd.f32 %v3057, %v3173
    %v3198 = vadd.f32 %v3059, %v3169
    %v3199 = vadd.f32 %v3061, %v3173
    %v3200 = vadd.f32 %v3065, %v3169
    %v3201 = vadd.f32 %v3067, %v3173
    %v3202 = vadd.f32 %v3069, %v3169
    %v3203 = vadd.f32 %v3071, %v3173
    %v3204 = vadd.f32 %v3075, %v3169
    %v3205 = vadd.f32 %v3077, %v3173
    %v3206 = vadd.f32 %v3079, %v3169
    %v3207 = vadd.f32 %v3081, %v3173
    %v3208 = vadd.f32 %v3085, %v3169
    %v3209 = vadd.f32 %v3087, %v3173
    %v3210 = vadd.f32 %v3089, %v3169
    %v3211 = vadd.f32 %v3091, %v3173
    %v3212 = vadd.f32 %v3095, %v3169
    %v3213 = vadd.f32 %v3097, %v3173
    %v3214 = vadd.f32 %v3099, %v3169
    %v3215 = vadd.f32 %v3101, %v3173
    %v3216 = vadd.f32 %v3105, %v3169
    %v3217 = vadd.f32 %v3107, %v3173
    %v3218 = vadd.f32 %v3109, %v3169
    %v3219 = vadd.f32 %v3111, %v3173
    %v3220 = vadd.f32 %v3115, %v3169
    %v3221 = vadd.f32 %v3117, %v3173
    %v3222 = vadd.f32 %v3119, %v3169
    %v3223 = vadd.f32 %v3121, %v3173
    %v3224 = vadd.f32 %v3125, %v3169
    %v3225 = vadd.f32 %v3127, %v3173
    %v3226 = vadd.f32 %v3129, %v3169
    %v3227 = vadd.f32 %v3131, %v3173
    %v3228 = vadd.f32 %v3135, %v3169
    %v3229 = vadd.f32 %v3137, %v3173
    %v3230 = vadd.f32 %v3139, %v3169
    %v3231 = vadd.f32 %v3141, %v3173
    %v3232 = vadd.f32 %v3145, %v3169
    %v3233 = vadd.f32 %v3147, %v3173
    %v3234 = vadd.f32 %v3149, %v3169
    %v3235 = vadd.f32 %v3151, %v3173
    %v3236 = vadd.f32 %v3155, %v3169
    %v3237 = vadd.f32 %v3157, %v3173
    %v3238 = vadd.f32 %v3159, %v3169
    %v3239 = vadd.f32 %v3161, %v3173
    %v3240 = vmax.f32 %v3176, 0.0
    %v3241 = vmax.f32 %v3177, 0.0
    %v3242 = vmax.f32 %v3178, 0.0
    %v3243 = vmax.f32 %v3179, 0.0
    %v3244 = vmax.f32 %v3180, 0.0
    %v3245 = vmax.f32 %v3181, 0.0
    %v3246 = vmax.f32 %v3182, 0.0
    %v3247 = vmax.f32 %v3183, 0.0
    %v3248 = vmax.f32 %v3184, 0.0
    %v3249 = vmax.f32 %v3185, 0.0
    %v3250 = vmax.f32 %v3186, 0.0
    %v3251 = vmax.f32 %v3187, 0.0
    %v3252 = vmax.f32 %v3188, 0.0
    %v3253 = vmax.f32 %v3189, 0.0
    %v3254 = vmax.f32 %v3190, 0.0
    %v3255 = vmax.f32 %v3191, 0.0
    %v3256 = vmax.f32 %v3192, 0.0
    %v3257 = vmax.f32 %v3193, 0.0
    %v3258 = vmax.f32 %v3194, 0.0
    %v3259 = vmax.f32 %v3195, 0.0
    %v3260 = vmax.f32 %v3196, 0.0
    %v3261 = vmax.f32 %v3197, 0.0
    %v3262 = vmax.f32 %v3198, 0.0
    %v3263 = vmax.f32 %v3199, 0.0
    %v3264 = vmax.f32 %v3200, 0.0
    %v3265 = vmax.f32 %v3201, 0.0
    %v3266 = vmax.f32 %v3202, 0.0
    %v3267 = vmax.f32 %v3203, 0.0
    %v3268 = vmax.f32 %v3204, 0.0
    %v3269 = vmax.f32 %v3205, 0.0
    %v3270 = vmax.f32 %v3206, 0.0
    %v3271 = vmax.f32 %v3207, 0.0
    %v3272 = vmax.f32 %v3208, 0.0
    %v3273 = vmax.f32 %v3209, 0.0
    %v3274 = vmax.f32 %v3210, 0.0
    %v3275 = vmax.f32 %v3211, 0.0
    %v3276 = vmax.f32 %v3212, 0.0
    %v3277 = vmax.f32 %v3213, 0.0
    %v3278 = vmax.f32 %v3214, 0.0
    %v3279 = vmax.f32 %v3215, 0.0
    %v3280 = vmax.f32 %v3216, 0.0
    %v3281 = vmax.f32 %v3217, 0.0
    %v3282 = vmax.f32 %v3218, 0.0
    %v3283 = vmax.f32 %v3219, 0.0
    %v3284 = vmax.f32 %v3220, 0.0
    %v3285 = vmax.f32 %v3221, 0.0
    %v3286 = vmax.f32 %v3222, 0.0
    %v3287 = vmax.f32 %v3223, 0.0
    %v3288 = vmax.f32 %v3224, 0.0
    %v3289 = vmax.f32 %v3225, 0.0
    %v3290 = vmax.f32 %v3226, 0.0
    %v3291 = vmax.f32 %v3227, 0.0
    %v3292 = vmax.f32 %v3228, 0.0
    %v3293 = vmax.f32 %v3229, 0.0
    %v3294 = vmax.f32 %v3230, 0.0
    %v3295 = vmax.f32 %v3231, 0.0
    %v3296 = vmax.f32 %v3232, 0.0
    %v3297 = vmax.f32 %v3233, 0.0
    %v3298 = vmax.f32 %v3234, 0.0
    %v3299 = vmax.f32 %v3235, 0.0
    %v3300 = vmax.f32 %v3236, 0.0
    %v3301 = vmax.f32 %v3237, 0.0
    %v3302 = vmax.f32 %v3238, 0.0
    %v3303 = vmax.f32 %v3239, 0.0
    %v3304 = vpack.c.bf16 %v3242, %v3240
    %v3305 = vpack.c.bf16 %v3243, %v3241
    %v3306 = vpack.c.bf16 %v3246, %v3244
    %v3307 = vpack.c.bf16 %v3247, %v3245
    %v3308 = vpack.c.bf16 %v3250, %v3248
    %v3309 = vpack.c.bf16 %v3251, %v3249
    %v3310 = vpack.c.bf16 %v3254, %v3252
    %v3311 = vpack.c.bf16 %v3255, %v3253
    %v3312 = vpack.c.bf16 %v3258, %v3256
    %v3313 = vpack.c.bf16 %v3259, %v3257
    %v3314 = vpack.c.bf16 %v3262, %v3260
    %v3315 = vpack.c.bf16 %v3263, %v3261
    %v3316 = vpack.c.bf16 %v3266, %v3264
    %v3317 = vpack.c.bf16 %v3267, %v3265
    %v3318 = vpack.c.bf16 %v3270, %v3268
    %v3319 = vpack.c.bf16 %v3271, %v3269
    %v3320 = vpack.c.bf16 %v3274, %v3272
    %v3321 = vpack.c.bf16 %v3275, %v3273
    %v3322 = vpack.c.bf16 %v3278, %v3276
    %v3323 = vpack.c.bf16 %v3279, %v3277
    %v3324 = vpack.c.bf16 %v3282, %v3280
    %v3325 = vpack.c.bf16 %v3283, %v3281
    %v3326 = vpack.c.bf16 %v3286, %v3284
    %v3327 = vpack.c.bf16 %v3287, %v3285
    %v3328 = vpack.c.bf16 %v3290, %v3288
    %v3329 = vpack.c.bf16 %v3291, %v3289
    %v3330 = vpack.c.bf16 %v3294, %v3292
    %v3331 = vpack.c.bf16 %v3295, %v3293
    %v3332 = vpack.c.bf16 %v3298, %v3296
    %v3333 = vpack.c.bf16 %v3299, %v3297
    %v3334 = vpack.c.bf16 %v3302, %v3300
    %v3335 = vpack.c.bf16 %v3303, %v3301
    %s3336 = scalar_lea.vmem [#allocation2], 1280
    %v3337 = vld [vmem:[%s3336] sm:$0xff]
    %v3338 = vld [vmem:[%s3336 + $0x8] sm:$0xff]
    %v3339 = vld [vmem:[%s3336 + $0x10] sm:$0xff]
    %v3340 = vld [vmem:[%s3336 + $0x18] sm:$0xff]
    %v3341 = vld [vmem:[%s3336 + $0x20] sm:$0xff]
    %v3342 = vld [vmem:[%s3336 + $0x28] sm:$0xff]
    %v3343 = vld [vmem:[%s3336 + $0x30] sm:$0xff]
    %v3344 = vld [vmem:[%s3336 + $0x38] sm:$0xff]
    %v3345 = vld [vmem:[%s3336 + $0x40] sm:$0xff]
    %v3346 = vld [vmem:[%s3336 + $0x48] sm:$0xff]
    %v3347 = vld [vmem:[%s3336 + $0x50] sm:$0xff]
    %v3348 = vld [vmem:[%s3336 + $0x58] sm:$0xff]
    %v3349 = vld [vmem:[%s3336 + $0x60] sm:$0xff]
    %v3350 = vld [vmem:[%s3336 + $0x68] sm:$0xff]
    %v3351 = vld [vmem:[%s3336 + $0x70] sm:$0xff]
    %v3352 = vld [vmem:[%s3336 + $0x78] sm:$0xff]
    %v3353 = vld [vmem:[%s3336 + $0x80] sm:$0xff]
    %v3354 = vld [vmem:[%s3336 + $0x88] sm:$0xff]
    %v3355 = vld [vmem:[%s3336 + $0x90] sm:$0xff]
    %v3356 = vld [vmem:[%s3336 + $0x98] sm:$0xff]
    %v3357 = vld [vmem:[%s3336 + $0xa0] sm:$0xff]
    %v3358 = vld [vmem:[%s3336 + $0xa8] sm:$0xff]
    %v3359 = vld [vmem:[%s3336 + $0xb0] sm:$0xff]
    %v3360 = vld [vmem:[%s3336 + $0xb8] sm:$0xff]
    %v3361 = vld [vmem:[%s3336 + $0xc0] sm:$0xff]
    %v3362 = vld [vmem:[%s3336 + $0xc8] sm:$0xff]
    %v3363 = vld [vmem:[%s3336 + $0xd0] sm:$0xff]
    %v3364 = vld [vmem:[%s3336 + $0xd8] sm:$0xff]
    %v3365 = vld [vmem:[%s3336 + $0xe0] sm:$0xff]
    %v3366 = vld [vmem:[%s3336 + $0xe8] sm:$0xff]
    %v3367 = vld [vmem:[%s3336 + $0xf0] sm:$0xff]
    %v3368 = vld [vmem:[%s3336 + $0xf8] sm:$0xff]
    %s3369 = scalar_lea.vmem %s5, 10
    %v3370 = vld [vmem:[%s3369] sm:$0x3]
    %v3372 = vlaneseq
    %v3373 = vshrl.u32 %v3372, 7
    %v3374 = vsub.s32 0, %v3373
    %v3375 = vrot.slane %v3370, %v3374
    %v3376 = vlaneseq
    %v3377 = vshrl.u32 %v3376, 7
    %v3378 = vsub.s32 1, %v3377
    %v3379 = vrot.slane %v3370, %v3378
    %v3414 = vunpack.c.l.b16 %v3337
    %v3415 = vunpack.c.h.b16 %v3337
    %v3416 = vunpack.c.l.b16 %v3338
    %v3417 = vunpack.c.h.b16 %v3338
    %v3418 = vunpack.c.l.b16 %v3339
    %v3419 = vunpack.c.h.b16 %v3339
    %v3420 = vunpack.c.l.b16 %v3340
    %v3421 = vunpack.c.h.b16 %v3340
    %v3422 = vunpack.c.l.b16 %v3341
    %v3423 = vunpack.c.h.b16 %v3341
    %v3424 = vunpack.c.l.b16 %v3342
    %v3425 = vunpack.c.h.b16 %v3342
    %v3426 = vunpack.c.l.b16 %v3343
    %v3427 = vunpack.c.h.b16 %v3343
    %v3428 = vunpack.c.l.b16 %v3344
    %v3429 = vunpack.c.h.b16 %v3344
    %v3430 = vunpack.c.l.b16 %v3345
    %v3431 = vunpack.c.h.b16 %v3345
    %v3432 = vunpack.c.l.b16 %v3346
    %v3433 = vunpack.c.h.b16 %v3346
    %v3434 = vunpack.c.l.b16 %v3347
    %v3435 = vunpack.c.h.b16 %v3347
    %v3436 = vunpack.c.l.b16 %v3348
    %v3437 = vunpack.c.h.b16 %v3348
    %v3438 = vunpack.c.l.b16 %v3349
    %v3439 = vunpack.c.h.b16 %v3349
    %v3440 = vunpack.c.l.b16 %v3350
    %v3441 = vunpack.c.h.b16 %v3350
    %v3442 = vunpack.c.l.b16 %v3351
    %v3443 = vunpack.c.h.b16 %v3351
    %v3444 = vunpack.c.l.b16 %v3352
    %v3445 = vunpack.c.h.b16 %v3352
    %v3446 = vunpack.c.l.b16 %v3353
    %v3447 = vunpack.c.h.b16 %v3353
    %v3448 = vunpack.c.l.b16 %v3354
    %v3449 = vunpack.c.h.b16 %v3354
    %v3450 = vunpack.c.l.b16 %v3355
    %v3451 = vunpack.c.h.b16 %v3355
    %v3452 = vunpack.c.l.b16 %v3356
    %v3453 = vunpack.c.h.b16 %v3356
    %v3454 = vunpack.c.l.b16 %v3357
    %v3455 = vunpack.c.h.b16 %v3357
    %v3456 = vunpack.c.l.b16 %v3358
    %v3457 = vunpack.c.h.b16 %v3358
    %v3458 = vunpack.c.l.b16 %v3359
    %v3459 = vunpack.c.h.b16 %v3359
    %v3460 = vunpack.c.l.b16 %v3360
    %v3461 = vunpack.c.h.b16 %v3360
    %v3462 = vunpack.c.l.b16 %v3361
    %v3463 = vunpack.c.h.b16 %v3361
    %v3464 = vunpack.c.l.b16 %v3362
    %v3465 = vunpack.c.h.b16 %v3362
    %v3466 = vunpack.c.l.b16 %v3363
    %v3467 = vunpack.c.h.b16 %v3363
    %v3468 = vunpack.c.l.b16 %v3364
    %v3469 = vunpack.c.h.b16 %v3364
    %v3470 = vunpack.c.l.b16 %v3365
    %v3471 = vunpack.c.h.b16 %v3365
    %v3472 = vunpack.c.l.b16 %v3366
    %v3473 = vunpack.c.h.b16 %v3366
    %v3474 = vunpack.c.l.b16 %v3367
    %v3475 = vunpack.c.h.b16 %v3367
    %v3476 = vunpack.c.l.b16 %v3368
    %v3477 = vunpack.c.h.b16 %v3368
    %v3478 = vpack.c.b16 %v3416, %v3414
    %v3479 = vpack.c.b16 %v3417, %v3415
    %v3480 = vpack.c.b16 %v3420, %v3418
    %v3481 = vpack.c.b16 %v3421, %v3419
    %v3482 = vpack.c.b16 %v3424, %v3422
    %v3483 = vpack.c.b16 %v3425, %v3423
    %v3484 = vpack.c.b16 %v3428, %v3426
    %v3485 = vpack.c.b16 %v3429, %v3427
    %v3486 = vpack.c.b16 %v3432, %v3430
    %v3487 = vpack.c.b16 %v3433, %v3431
    %v3488 = vpack.c.b16 %v3436, %v3434
    %v3489 = vpack.c.b16 %v3437, %v3435
    %v3490 = vpack.c.b16 %v3440, %v3438
    %v3491 = vpack.c.b16 %v3441, %v3439
    %v3492 = vpack.c.b16 %v3444, %v3442
    %v3493 = vpack.c.b16 %v3445, %v3443
    %v3494 = vpack.c.b16 %v3448, %v3446
    %v3495 = vpack.c.b16 %v3449, %v3447
    %v3496 = vpack.c.b16 %v3452, %v3450
    %v3497 = vpack.c.b16 %v3453, %v3451
    %v3498 = vpack.c.b16 %v3456, %v3454
    %v3499 = vpack.c.b16 %v3457, %v3455
    %v3500 = vpack.c.b16 %v3460, %v3458
    %v3501 = vpack.c.b16 %v3461, %v3459
    %v3502 = vpack.c.b16 %v3464, %v3462
    %v3503 = vpack.c.b16 %v3465, %v3463
    %v3504 = vpack.c.b16 %v3468, %v3466
    %v3505 = vpack.c.b16 %v3469, %v3467
    %v3506 = vpack.c.b16 %v3472, %v3470
    %v3507 = vpack.c.b16 %v3473, %v3471
    %v3508 = vpack.c.b16 %v3476, %v3474
    %v3509 = vpack.c.b16 %v3477, %v3475
    %3542 = vmatprep.subr.bf16.mxu0 %v3479
    %3543 = vmatpush1.bf16.msra.mxu0 %v3478
    %3544 = vmatprep.subr.bf16.mxu0 %v3481
    %3545 = vmatpush1.bf16.msra.mxu0 %v3480
    %3546 = vmatprep.subr.bf16.mxu0 %v3483
    %3547 = vmatpush1.bf16.msra.mxu0 %v3482
    %3548 = vmatprep.subr.bf16.mxu0 %v3485
    %3549 = vmatpush1.bf16.msra.mxu0 %v3484
    %3550 = vmatprep.subr.bf16.mxu0 %v3487
    %3551 = vmatpush1.bf16.msra.mxu0 %v3486
    %3552 = vmatprep.subr.bf16.mxu0 %v3489
    %3553 = vmatpush1.bf16.msra.mxu0 %v3488
    %3554 = vmatprep.subr.bf16.mxu0 %v3491
    %3555 = vmatpush1.bf16.msra.mxu0 %v3490
    %3556 = vmatprep.subr.bf16.mxu0 %v3493
    %3557 = vmatpush1.bf16.msra.mxu0 %v3492
    %3558 = vmatprep.subr.bf16.mxu0 %v3495
    %3559 = vmatpush1.bf16.msra.mxu0 %v3494
    %3560 = vmatprep.subr.bf16.mxu0 %v3497
    %3561 = vmatpush1.bf16.msra.mxu0 %v3496
    %3562 = vmatprep.subr.bf16.mxu0 %v3499
    %3563 = vmatpush1.bf16.msra.mxu0 %v3498
    %3564 = vmatprep.subr.bf16.mxu0 %v3501
    %3565 = vmatpush1.bf16.msra.mxu0 %v3500
    %3566 = vmatprep.subr.bf16.mxu0 %v3503
    %3567 = vmatpush1.bf16.msra.mxu0 %v3502
    %3568 = vmatprep.subr.bf16.mxu0 %v3505
    %3569 = vmatpush1.bf16.msra.mxu0 %v3504
    %3570 = vmatprep.subr.bf16.mxu0 %v3507
    %3571 = vmatpush1.bf16.msra.mxu0 %v3506
    %3572 = vmatprep.subr.bf16.mxu0 %v3509
    %3573 = vmatpush1.bf16.msra.mxu0 %v3508
    %3574 = vmatprep.mubr.bf16.mxu0 %v3305
    %3575 = vmatmul.mubr.bf16.gmra.mrb[0].mxu0 %v3304
    %v3576 = vpop.f32.mrb[0].mxu0
    %v3577 = vadd.f32 %v3375, %v3576
    %v3578 = vpop.f32.mrb[0].mxu0
    %v3579 = vadd.f32 %v3379, %v3578
    %v3580 = vpop.f32.mrb[0].mxu0
    %v3581 = vadd.f32 %v3375, %v3580
    %v3582 = vpop.f32.mrb[0].mxu0
    %v3583 = vadd.f32 %v3379, %v3582
    %3584 = vmatprep.mubr.bf16.mxu0 %v3307
    %3585 = vmatmul.mubr.bf16.gmra.mrb[0].mxu0 %v3306
    %v3586 = vpop.f32.mrb[0].mxu0
    %v3587 = vadd.f32 %v3375, %v3586
    %v3588 = vpop.f32.mrb[0].mxu0
    %v3589 = vadd.f32 %v3379, %v3588
    %v3590 = vpop.f32.mrb[0].mxu0
    %v3591 = vadd.f32 %v3375, %v3590
    %v3592 = vpop.f32.mrb[0].mxu0
    %v3593 = vadd.f32 %v3379, %v3592
    %3594 = vmatprep.mubr.bf16.mxu0 %v3309
    %3595 = vmatmul.mubr.bf16.gmra.mrb[0].mxu0 %v3308
    %v3596 = vpop.f32.mrb[0].mxu0
    %v3597 = vadd.f32 %v3375, %v3596
    %v3598 = vpop.f32.mrb[0].mxu0
    %v3599 = vadd.f32 %v3379, %v3598
    %v3600 = vpop.f32.mrb[0].mxu0
    %v3601 = vadd.f32 %v3375, %v3600
    %v3602 = vpop.f32.mrb[0].mxu0
    %v3603 = vadd.f32 %v3379, %v3602
    %3604 = vmatprep.mubr.bf16.mxu0 %v3311
    %3605 = vmatmul.mubr.bf16.gmra.mrb[0].mxu0 %v3310
    %v3606 = vpop.f32.mrb[0].mxu0
    %v3607 = vadd.f32 %v3375, %v3606
    %v3608 = vpop.f32.mrb[0].mxu0
    %v3609 = vadd.f32 %v3379, %v3608
    %v3610 = vpop.f32.mrb[0].mxu0
    %v3611 = vadd.f32 %v3375, %v3610
    %v3612 = vpop.f32.mrb[0].mxu0
    %v3613 = vadd.f32 %v3379, %v3612
    %3614 = vmatprep.mubr.bf16.mxu0 %v3313
    %3615 = vmatmul.mubr.bf16.gmra.mrb[0].mxu0 %v3312
    %v3616 = vpop.f32.mrb[0].mxu0
    %v3617 = vadd.f32 %v3375, %v3616
    %v3618 = vpop.f32.mrb[0].mxu0
    %v3619 = vadd.f32 %v3379, %v3618
    %v3620 = vpop.f32.mrb[0].mxu0
    %v3621 = vadd.f32 %v3375, %v3620
    %v3622 = vpop.f32.mrb[0].mxu0
    %v3623 = vadd.f32 %v3379, %v3622
    %3624 = vmatprep.mubr.bf16.mxu0 %v3315
    %3625 = vmatmul.mubr.bf16.gmra.mrb[0].mxu0 %v3314
    %v3626 = vpop.f32.mrb[0].mxu0
    %v3627 = vadd.f32 %v3375, %v3626
    %v3628 = vpop.f32.mrb[0].mxu0
    %v3629 = vadd.f32 %v3379, %v3628
    %v3630 = vpop.f32.mrb[0].mxu0
    %v3631 = vadd.f32 %v3375, %v3630
    %v3632 = vpop.f32.mrb[0].mxu0
    %v3633 = vadd.f32 %v3379, %v3632
    %3634 = vmatprep.mubr.bf16.mxu0 %v3317
    %3635 = vmatmul.mubr.bf16.gmra.mrb[0].mxu0 %v3316
    %v3636 = vpop.f32.mrb[0].mxu0
    %v3637 = vadd.f32 %v3375, %v3636
    %v3638 = vpop.f32.mrb[0].mxu0
    %v3639 = vadd.f32 %v3379, %v3638
    %v3640 = vpop.f32.mrb[0].mxu0
    %v3641 = vadd.f32 %v3375, %v3640
    %v3642 = vpop.f32.mrb[0].mxu0
    %v3643 = vadd.f32 %v3379, %v3642
    %3644 = vmatprep.mubr.bf16.mxu0 %v3319
    %3645 = vmatmul.mubr.bf16.gmra.mrb[0].mxu0 %v3318
    %v3646 = vpop.f32.mrb[0].mxu0
    %v3647 = vadd.f32 %v3375, %v3646
    %v3648 = vpop.f32.mrb[0].mxu0
    %v3649 = vadd.f32 %v3379, %v3648
    %v3650 = vpop.f32.mrb[0].mxu0
    %v3651 = vadd.f32 %v3375, %v3650
    %v3652 = vpop.f32.mrb[0].mxu0
    %v3653 = vadd.f32 %v3379, %v3652
    %3654 = vmatprep.mubr.bf16.mxu0 %v3321
    %3655 = vmatmul.mubr.bf16.gmra.mrb[0].mxu0 %v3320
    %v3656 = vpop.f32.mrb[0].mxu0
    %v3657 = vadd.f32 %v3375, %v3656
    %v3658 = vpop.f32.mrb[0].mxu0
    %v3659 = vadd.f32 %v3379, %v3658
    %v3660 = vpop.f32.mrb[0].mxu0
    %v3661 = vadd.f32 %v3375, %v3660
    %v3662 = vpop.f32.mrb[0].mxu0
    %v3663 = vadd.f32 %v3379, %v3662
    %3664 = vmatprep.mubr.bf16.mxu0 %v3323
    %3665 = vmatmul.mubr.bf16.gmra.mrb[0].mxu0 %v3322
    %v3666 = vpop.f32.mrb[0].mxu0
    %v3667 = vadd.f32 %v3375, %v3666
    %v3668 = vpop.f32.mrb[0].mxu0
    %v3669 = vadd.f32 %v3379, %v3668
    %v3670 = vpop.f32.mrb[0].mxu0
    %v3671 = vadd.f32 %v3375, %v3670
    %v3672 = vpop.f32.mrb[0].mxu0
    %v3673 = vadd.f32 %v3379, %v3672
    %3674 = vmatprep.mubr.bf16.mxu0 %v3325
    %3675 = vmatmul.mubr.bf16.gmra.mrb[0].mxu0 %v3324
    %v3676 = vpop.f32.mrb[0].mxu0
    %v3677 = vadd.f32 %v3375, %v3676
    %v3678 = vpop.f32.mrb[0].mxu0
    %v3679 = vadd.f32 %v3379, %v3678
    %v3680 = vpop.f32.mrb[0].mxu0
    %v3681 = vadd.f32 %v3375, %v3680
    %v3682 = vpop.f32.mrb[0].mxu0
    %v3683 = vadd.f32 %v3379, %v3682
    %3684 = vmatprep.mubr.bf16.mxu0 %v3327
    %3685 = vmatmul.mubr.bf16.gmra.mrb[0].mxu0 %v3326
    %v3686 = vpop.f32.mrb[0].mxu0
    %v3687 = vadd.f32 %v3375, %v3686
    %v3688 = vpop.f32.mrb[0].mxu0
    %v3689 = vadd.f32 %v3379, %v3688
    %v3690 = vpop.f32.mrb[0].mxu0
    %v3691 = vadd.f32 %v3375, %v3690
    %v3692 = vpop.f32.mrb[0].mxu0
    %v3693 = vadd.f32 %v3379, %v3692
    %3694 = vmatprep.mubr.bf16.mxu0 %v3329
    %3695 = vmatmul.mubr.bf16.gmra.mrb[0].mxu0 %v3328
    %v3696 = vpop.f32.mrb[0].mxu0
    %v3697 = vadd.f32 %v3375, %v3696
    %v3698 = vpop.f32.mrb[0].mxu0
    %v3699 = vadd.f32 %v3379, %v3698
    %v3700 = vpop.f32.mrb[0].mxu0
    %v3701 = vadd.f32 %v3375, %v3700
    %v3702 = vpop.f32.mrb[0].mxu0
    %v3703 = vadd.f32 %v3379, %v3702
    %3704 = vmatprep.mubr.bf16.mxu0 %v3331
    %3705 = vmatmul.mubr.bf16.gmra.mrb[0].mxu0 %v3330
    %v3706 = vpop.f32.mrb[0].mxu0
    %v3707 = vadd.f32 %v3375, %v3706
    %v3708 = vpop.f32.mrb[0].mxu0
    %v3709 = vadd.f32 %v3379, %v3708
    %v3710 = vpop.f32.mrb[0].mxu0
    %v3711 = vadd.f32 %v3375, %v3710
    %v3712 = vpop.f32.mrb[0].mxu0
    %v3713 = vadd.f32 %v3379, %v3712
    %3714 = vmatprep.mubr.bf16.mxu0 %v3333
    %3715 = vmatmul.mubr.bf16.gmra.mrb[0].mxu0 %v3332
    %v3716 = vpop.f32.mrb[0].mxu0
    %v3717 = vadd.f32 %v3375, %v3716
    %v3718 = vpop.f32.mrb[0].mxu0
    %v3719 = vadd.f32 %v3379, %v3718
    %v3720 = vpop.f32.mrb[0].mxu0
    %v3721 = vadd.f32 %v3375, %v3720
    %v3722 = vpop.f32.mrb[0].mxu0
    %v3723 = vadd.f32 %v3379, %v3722
    %3724 = vmatprep.mubr.bf16.mxu0 %v3335
    %3725 = vmatmul.mubr.bf16.gmra.mrb[0].mxu0 %v3334
    %v3726 = vpop.f32.mrb[0].mxu0
    %v3727 = vadd.f32 %v3375, %v3726
    %v3728 = vpop.f32.mrb[0].mxu0
    %v3729 = vadd.f32 %v3379, %v3728
    %v3730 = vpop.f32.mrb[0].mxu0
    %v3731 = vadd.f32 %v3375, %v3730
    %v3732 = vpop.f32.mrb[0].mxu0
    %v3733 = vadd.f32 %v3379, %v3732
    %3734 = vdwg.mxu0
    %v3735 = vmax.f32 %v3577, 0.0
    %v3736 = vmax.f32 %v3579, 0.0
    %v3737 = vmax.f32 %v3581, 0.0
    %v3738 = vmax.f32 %v3583, 0.0
    %v3739 = vmax.f32 %v3587, 0.0
    %v3740 = vmax.f32 %v3589, 0.0
    %v3741 = vmax.f32 %v3591, 0.0
    %v3742 = vmax.f32 %v3593, 0.0
    %v3743 = vmax.f32 %v3597, 0.0
    %v3744 = vmax.f32 %v3599, 0.0
    %v3745 = vmax.f32 %v3601, 0.0
    %v3746 = vmax.f32 %v3603, 0.0
    %v3747 = vmax.f32 %v3607, 0.0
    %v3748 = vmax.f32 %v3609, 0.0
    %v3749 = vmax.f32 %v3611, 0.0
    %v3750 = vmax.f32 %v3613, 0.0
    %v3751 = vmax.f32 %v3617, 0.0
    %v3752 = vmax.f32 %v3619, 0.0
    %v3753 = vmax.f32 %v3621, 0.0
    %v3754 = vmax.f32 %v3623, 0.0
    %v3755 = vmax.f32 %v3627, 0.0
    %v3756 = vmax.f32 %v3629, 0.0
    %v3757 = vmax.f32 %v3631, 0.0
    %v3758 = vmax.f32 %v3633, 0.0
    %v3759 = vmax.f32 %v3637, 0.0
    %v3760 = vmax.f32 %v3639, 0.0
    %v3761 = vmax.f32 %v3641, 0.0
    %v3762 = vmax.f32 %v3643, 0.0
    %v3763 = vmax.f32 %v3647, 0.0
    %v3764 = vmax.f32 %v3649, 0.0
    %v3765 = vmax.f32 %v3651, 0.0
    %v3766 = vmax.f32 %v3653, 0.0
    %v3767 = vmax.f32 %v3657, 0.0
    %v3768 = vmax.f32 %v3659, 0.0
    %v3769 = vmax.f32 %v3661, 0.0
    %v3770 = vmax.f32 %v3663, 0.0
    %v3771 = vmax.f32 %v3667, 0.0
    %v3772 = vmax.f32 %v3669, 0.0
    %v3773 = vmax.f32 %v3671, 0.0
    %v3774 = vmax.f32 %v3673, 0.0
    %v3775 = vmax.f32 %v3677, 0.0
    %v3776 = vmax.f32 %v3679, 0.0
    %v3777 = vmax.f32 %v3681, 0.0
    %v3778 = vmax.f32 %v3683, 0.0
    %v3779 = vmax.f32 %v3687, 0.0
    %v3780 = vmax.f32 %v3689, 0.0
    %v3781 = vmax.f32 %v3691, 0.0
    %v3782 = vmax.f32 %v3693, 0.0
    %v3783 = vmax.f32 %v3697, 0.0
    %v3784 = vmax.f32 %v3699, 0.0
    %v3785 = vmax.f32 %v3701, 0.0
    %v3786 = vmax.f32 %v3703, 0.0
    %v3787 = vmax.f32 %v3707, 0.0
    %v3788 = vmax.f32 %v3709, 0.0
    %v3789 = vmax.f32 %v3711, 0.0
    %v3790 = vmax.f32 %v3713, 0.0
    %v3791 = vmax.f32 %v3717, 0.0
    %v3792 = vmax.f32 %v3719, 0.0
    %v3793 = vmax.f32 %v3721, 0.0
    %v3794 = vmax.f32 %v3723, 0.0
    %v3795 = vmax.f32 %v3727, 0.0
    %v3796 = vmax.f32 %v3729, 0.0
    %v3797 = vmax.f32 %v3731, 0.0
    %v3798 = vmax.f32 %v3733, 0.0
    %v3799 = vpack.c.bf16 %v3737, %v3735
    %v3800 = vpack.c.bf16 %v3738, %v3736
    %v3801 = vpack.c.bf16 %v3741, %v3739
    %v3802 = vpack.c.bf16 %v3742, %v3740
    %v3803 = vpack.c.bf16 %v3745, %v3743
    %v3804 = vpack.c.bf16 %v3746, %v3744
    %v3805 = vpack.c.bf16 %v3749, %v3747
    %v3806 = vpack.c.bf16 %v3750, %v3748
    %v3807 = vpack.c.bf16 %v3753, %v3751
    %v3808 = vpack.c.bf16 %v3754, %v3752
    %v3809 = vpack.c.bf16 %v3757, %v3755
    %v3810 = vpack.c.bf16 %v3758, %v3756
    %v3811 = vpack.c.bf16 %v3761, %v3759
    %v3812 = vpack.c.bf16 %v3762, %v3760
    %v3813 = vpack.c.bf16 %v3765, %v3763
    %v3814 = vpack.c.bf16 %v3766, %v3764
    %v3815 = vpack.c.bf16 %v3769, %v3767
    %v3816 = vpack.c.bf16 %v3770, %v3768
    %v3817 = vpack.c.bf16 %v3773, %v3771
    %v3818 = vpack.c.bf16 %v3774, %v3772
    %v3819 = vpack.c.bf16 %v3777, %v3775
    %v3820 = vpack.c.bf16 %v3778, %v3776
    %v3821 = vpack.c.bf16 %v3781, %v3779
    %v3822 = vpack.c.bf16 %v3782, %v3780
    %v3823 = vpack.c.bf16 %v3785, %v3783
    %v3824 = vpack.c.bf16 %v3786, %v3784
    %v3825 = vpack.c.bf16 %v3789, %v3787
    %v3826 = vpack.c.bf16 %v3790, %v3788
    %v3827 = vpack.c.bf16 %v3793, %v3791
    %v3828 = vpack.c.bf16 %v3794, %v3792
    %v3829 = vpack.c.bf16 %v3797, %v3795
    %v3830 = vpack.c.bf16 %v3798, %v3796
    %s3831 = scalar_lea.vmem [#allocation2], 1536
    %v3832 = vld [vmem:[%s3831] sm:$0xff]
    %v3833 = vld [vmem:[%s3831 + $0x8] sm:$0xff]
    %v3834 = vld [vmem:[%s3831 + $0x10] sm:$0xff]
    %v3835 = vld [vmem:[%s3831 + $0x18] sm:$0xff]
    %v3836 = vld [vmem:[%s3831 + $0x20] sm:$0xff]
    %v3837 = vld [vmem:[%s3831 + $0x28] sm:$0xff]
    %v3838 = vld [vmem:[%s3831 + $0x30] sm:$0xff]
    %v3839 = vld [vmem:[%s3831 + $0x38] sm:$0xff]
    %v3840 = vld [vmem:[%s3831 + $0x40] sm:$0xff]
    %v3841 = vld [vmem:[%s3831 + $0x48] sm:$0xff]
    %v3842 = vld [vmem:[%s3831 + $0x50] sm:$0xff]
    %v3843 = vld [vmem:[%s3831 + $0x58] sm:$0xff]
    %v3844 = vld [vmem:[%s3831 + $0x60] sm:$0xff]
    %v3845 = vld [vmem:[%s3831 + $0x68] sm:$0xff]
    %v3846 = vld [vmem:[%s3831 + $0x70] sm:$0xff]
    %v3847 = vld [vmem:[%s3831 + $0x78] sm:$0xff]
    %v3848 = vld [vmem:[%s3831 + $0x80] sm:$0xff]
    %v3849 = vld [vmem:[%s3831 + $0x88] sm:$0xff]
    %v3850 = vld [vmem:[%s3831 + $0x90] sm:$0xff]
    %v3851 = vld [vmem:[%s3831 + $0x98] sm:$0xff]
    %v3852 = vld [vmem:[%s3831 + $0xa0] sm:$0xff]
    %v3853 = vld [vmem:[%s3831 + $0xa8] sm:$0xff]
    %v3854 = vld [vmem:[%s3831 + $0xb0] sm:$0xff]
    %v3855 = vld [vmem:[%s3831 + $0xb8] sm:$0xff]
    %v3856 = vld [vmem:[%s3831 + $0xc0] sm:$0xff]
    %v3857 = vld [vmem:[%s3831 + $0xc8] sm:$0xff]
    %v3858 = vld [vmem:[%s3831 + $0xd0] sm:$0xff]
    %v3859 = vld [vmem:[%s3831 + $0xd8] sm:$0xff]
    %v3860 = vld [vmem:[%s3831 + $0xe0] sm:$0xff]
    %v3861 = vld [vmem:[%s3831 + $0xe8] sm:$0xff]
    %v3862 = vld [vmem:[%s3831 + $0xf0] sm:$0xff]
    %v3863 = vld [vmem:[%s3831 + $0xf8] sm:$0xff]
    %s3864 = scalar_lea.vmem %s5, 12
    %v3865 = vld [vmem:[%s3864] sm:$0x3]
    %v3867 = vlaneseq
    %v3868 = vshrl.u32 %v3867, 7
    %v3869 = vsub.s32 0, %v3868
    %v3870 = vrot.slane %v3865, %v3869
    %v3871 = vlaneseq
    %v3872 = vshrl.u32 %v3871, 7
    %v3873 = vsub.s32 1, %v3872
    %v3874 = vrot.slane %v3865, %v3873
    %v3909 = vunpack.c.l.b16 %v3832
    %v3910 = vunpack.c.h.b16 %v3832
    %v3911 = vunpack.c.l.b16 %v3833
    %v3912 = vunpack.c.h.b16 %v3833
    %v3913 = vunpack.c.l.b16 %v3834
    %v3914 = vunpack.c.h.b16 %v3834
    %v3915 = vunpack.c.l.b16 %v3835
    %v3916 = vunpack.c.h.b16 %v3835
    %v3917 = vunpack.c.l.b16 %v3836
    %v3918 = vunpack.c.h.b16 %v3836
    %v3919 = vunpack.c.l.b16 %v3837
    %v3920 = vunpack.c.h.b16 %v3837
    %v3921 = vunpack.c.l.b16 %v3838
    %v3922 = vunpack.c.h.b16 %v3838
    %v3923 = vunpack.c.l.b16 %v3839
    %v3924 = vunpack.c.h.b16 %v3839
    %v3925 = vunpack.c.l.b16 %v3840
    %v3926 = vunpack.c.h.b16 %v3840
    %v3927 = vunpack.c.l.b16 %v3841
    %v3928 = vunpack.c.h.b16 %v3841
    %v3929 = vunpack.c.l.b16 %v3842
    %v3930 = vunpack.c.h.b16 %v3842
    %v3931 = vunpack.c.l.b16 %v3843
    %v3932 = vunpack.c.h.b16 %v3843
    %v3933 = vunpack.c.l.b16 %v3844
    %v3934 = vunpack.c.h.b16 %v3844
    %v3935 = vunpack.c.l.b16 %v3845
    %v3936 = vunpack.c.h.b16 %v3845
    %v3937 = vunpack.c.l.b16 %v3846
    %v3938 = vunpack.c.h.b16 %v3846
    %v3939 = vunpack.c.l.b16 %v3847
    %v3940 = vunpack.c.h.b16 %v3847
    %v3941 = vunpack.c.l.b16 %v3848
    %v3942 = vunpack.c.h.b16 %v3848
    %v3943 = vunpack.c.l.b16 %v3849
    %v3944 = vunpack.c.h.b16 %v3849
    %v3945 = vunpack.c.l.b16 %v3850
    %v3946 = vunpack.c.h.b16 %v3850
    %v3947 = vunpack.c.l.b16 %v3851
    %v3948 = vunpack.c.h.b16 %v3851
    %v3949 = vunpack.c.l.b16 %v3852
    %v3950 = vunpack.c.h.b16 %v3852
    %v3951 = vunpack.c.l.b16 %v3853
    %v3952 = vunpack.c.h.b16 %v3853
    %v3953 = vunpack.c.l.b16 %v3854
    %v3954 = vunpack.c.h.b16 %v3854
    %v3955 = vunpack.c.l.b16 %v3855
    %v3956 = vunpack.c.h.b16 %v3855
    %v3957 = vunpack.c.l.b16 %v3856
    %v3958 = vunpack.c.h.b16 %v3856
    %v3959 = vunpack.c.l.b16 %v3857
    %v3960 = vunpack.c.h.b16 %v3857
    %v3961 = vunpack.c.l.b16 %v3858
    %v3962 = vunpack.c.h.b16 %v3858
    %v3963 = vunpack.c.l.b16 %v3859
    %v3964 = vunpack.c.h.b16 %v3859
    %v3965 = vunpack.c.l.b16 %v3860
    %v3966 = vunpack.c.h.b16 %v3860
    %v3967 = vunpack.c.l.b16 %v3861
    %v3968 = vunpack.c.h.b16 %v3861
    %v3969 = vunpack.c.l.b16 %v3862
    %v3970 = vunpack.c.h.b16 %v3862
    %v3971 = vunpack.c.l.b16 %v3863
    %v3972 = vunpack.c.h.b16 %v3863
    %v3973 = vpack.c.b16 %v3911, %v3909
    %v3974 = vpack.c.b16 %v3912, %v3910
    %v3975 = vpack.c.b16 %v3915, %v3913
    %v3976 = vpack.c.b16 %v3916, %v3914
    %v3977 = vpack.c.b16 %v3919, %v3917
    %v3978 = vpack.c.b16 %v3920, %v3918
    %v3979 = vpack.c.b16 %v3923, %v3921
    %v3980 = vpack.c.b16 %v3924, %v3922
    %v3981 = vpack.c.b16 %v3927, %v3925
    %v3982 = vpack.c.b16 %v3928, %v3926
    %v3983 = vpack.c.b16 %v3931, %v3929
    %v3984 = vpack.c.b16 %v3932, %v3930
    %v3985 = vpack.c.b16 %v3935, %v3933
    %v3986 = vpack.c.b16 %v3936, %v3934
    %v3987 = vpack.c.b16 %v3939, %v3937
    %v3988 = vpack.c.b16 %v3940, %v3938
    %v3989 = vpack.c.b16 %v3943, %v3941
    %v3990 = vpack.c.b16 %v3944, %v3942
    %v3991 = vpack.c.b16 %v3947, %v3945
    %v3992 = vpack.c.b16 %v3948, %v3946
    %v3993 = vpack.c.b16 %v3951, %v3949
    %v3994 = vpack.c.b16 %v3952, %v3950
    %v3995 = vpack.c.b16 %v3955, %v3953
    %v3996 = vpack.c.b16 %v3956, %v3954
    %v3997 = vpack.c.b16 %v3959, %v3957
    %v3998 = vpack.c.b16 %v3960, %v3958
    %v3999 = vpack.c.b16 %v3963, %v3961
    %v4000 = vpack.c.b16 %v3964, %v3962
    %v4001 = vpack.c.b16 %v3967, %v3965
    %v4002 = vpack.c.b16 %v3968, %v3966
    %v4003 = vpack.c.b16 %v3971, %v3969
    %v4004 = vpack.c.b16 %v3972, %v3970
    %4037 = vmatprep.subr.bf16.mxu0 %v3974
    %4038 = vmatpush1.bf16.msra.mxu0 %v3973
    %4039 = vmatprep.subr.bf16.mxu0 %v3976
    %4040 = vmatpush1.bf16.msra.mxu0 %v3975
    %4041 = vmatprep.subr.bf16.mxu0 %v3978
    %4042 = vmatpush1.bf16.msra.mxu0 %v3977
    %4043 = vmatprep.subr.bf16.mxu0 %v3980
    %4044 = vmatpush1.bf16.msra.mxu0 %v3979
    %4045 = vmatprep.subr.bf16.mxu0 %v3982
    %4046 = vmatpush1.bf16.msra.mxu0 %v3981
    %4047 = vmatprep.subr.bf16.mxu0 %v3984
    %4048 = vmatpush1.bf16.msra.mxu0 %v3983
    %4049 = vmatprep.subr.bf16.mxu0 %v3986
    %4050 = vmatpush1.bf16.msra.mxu0 %v3985
    %4051 = vmatprep.subr.bf16.mxu0 %v3988
    %4052 = vmatpush1.bf16.msra.mxu0 %v3987
    %4053 = vmatprep.subr.bf16.mxu0 %v3990
    %4054 = vmatpush1.bf16.msra.mxu0 %v3989
    %4055 = vmatprep.subr.bf16.mxu0 %v3992
    %4056 = vmatpush1.bf16.msra.mxu0 %v3991
    %4057 = vmatprep.subr.bf16.mxu0 %v3994
    %4058 = vmatpush1.bf16.msra.mxu0 %v3993
    %4059 = vmatprep.subr.bf16.mxu0 %v3996
    %4060 = vmatpush1.bf16.msra.mxu0 %v3995
    %4061 = vmatprep.subr.bf16.mxu0 %v3998
    %4062 = vmatpush1.bf16.msra.mxu0 %v3997
    %4063 = vmatprep.subr.bf16.mxu0 %v4000
    %4064 = vmatpush1.bf16.msra.mxu0 %v3999
    %4065 = vmatprep.subr.bf16.mxu0 %v4002
    %4066 = vmatpush1.bf16.msra.mxu0 %v4001
    %4067 = vmatprep.subr.bf16.mxu0 %v4004
    %4068 = vmatpush1.bf16.msra.mxu0 %v4003
    %4069 = vmatprep.mubr.bf16.mxu0 %v3800
    %4070 = vmatmul.mubr.bf16.gmra.mrb[0].mxu0 %v3799
    %v4071 = vpop.f32.mrb[0].mxu0
    %v4072 = vadd.f32 %v3870, %v4071
    %v4073 = vpop.f32.mrb[0].mxu0
    %v4074 = vadd.f32 %v3874, %v4073
    %v4075 = vpop.f32.mrb[0].mxu0
    %v4076 = vadd.f32 %v3870, %v4075
    %v4077 = vpop.f32.mrb[0].mxu0
    %v4078 = vadd.f32 %v3874, %v4077
    %4079 = vmatprep.mubr.bf16.mxu0 %v3802
    %4080 = vmatmul.mubr.bf16.gmra.mrb[0].mxu0 %v3801
    %v4081 = vpop.f32.mrb[0].mxu0
    %v4082 = vadd.f32 %v3870, %v4081
    %v4083 = vpop.f32.mrb[0].mxu0
    %v4084 = vadd.f32 %v3874, %v4083
    %v4085 = vpop.f32.mrb[0].mxu0
    %v4086 = vadd.f32 %v3870, %v4085
    %v4087 = vpop.f32.mrb[0].mxu0
    %v4088 = vadd.f32 %v3874, %v4087
    %4089 = vmatprep.mubr.bf16.mxu0 %v3804
    %4090 = vmatmul.mubr.bf16.gmra.mrb[0].mxu0 %v3803
    %v4091 = vpop.f32.mrb[0].mxu0
    %v4092 = vadd.f32 %v3870, %v4091
    %v4093 = vpop.f32.mrb[0].mxu0
    %v4094 = vadd.f32 %v3874, %v4093
    %v4095 = vpop.f32.mrb[0].mxu0
    %v4096 = vadd.f32 %v3870, %v4095
    %v4097 = vpop.f32.mrb[0].mxu0
    %v4098 = vadd.f32 %v3874, %v4097
    %4099 = vmatprep.mubr.bf16.mxu0 %v3806
    %4100 = vmatmul.mubr.bf16.gmra.mrb[0].mxu0 %v3805
    %v4101 = vpop.f32.mrb[0].mxu0
    %v4102 = vadd.f32 %v3870, %v4101
    %v4103 = vpop.f32.mrb[0].mxu0
    %v4104 = vadd.f32 %v3874, %v4103
    %v4105 = vpop.f32.mrb[0].mxu0
    %v4106 = vadd.f32 %v3870, %v4105
    %v4107 = vpop.f32.mrb[0].mxu0
    %v4108 = vadd.f32 %v3874, %v4107
    %4109 = vmatprep.mubr.bf16.mxu0 %v3808
    %4110 = vmatmul.mubr.bf16.gmra.mrb[0].mxu0 %v3807
    %v4111 = vpop.f32.mrb[0].mxu0
    %v4112 = vadd.f32 %v3870, %v4111
    %v4113 = vpop.f32.mrb[0].mxu0
    %v4114 = vadd.f32 %v3874, %v4113
    %v4115 = vpop.f32.mrb[0].mxu0
    %v4116 = vadd.f32 %v3870, %v4115
    %v4117 = vpop.f32.mrb[0].mxu0
    %v4118 = vadd.f32 %v3874, %v4117
    %4119 = vmatprep.mubr.bf16.mxu0 %v3810
    %4120 = vmatmul.mubr.bf16.gmra.mrb[0].mxu0 %v3809
    %v4121 = vpop.f32.mrb[0].mxu0
    %v4122 = vadd.f32 %v3870, %v4121
    %v4123 = vpop.f32.mrb[0].mxu0
    %v4124 = vadd.f32 %v3874, %v4123
    %v4125 = vpop.f32.mrb[0].mxu0
    %v4126 = vadd.f32 %v3870, %v4125
    %v4127 = vpop.f32.mrb[0].mxu0
    %v4128 = vadd.f32 %v3874, %v4127
    %4129 = vmatprep.mubr.bf16.mxu0 %v3812
    %4130 = vmatmul.mubr.bf16.gmra.mrb[0].mxu0 %v3811
    %v4131 = vpop.f32.mrb[0].mxu0
    %v4132 = vadd.f32 %v3870, %v4131
    %v4133 = vpop.f32.mrb[0].mxu0
    %v4134 = vadd.f32 %v3874, %v4133
    %v4135 = vpop.f32.mrb[0].mxu0
    %v4136 = vadd.f32 %v3870, %v4135
    %v4137 = vpop.f32.mrb[0].mxu0
    %v4138 = vadd.f32 %v3874, %v4137
    %4139 = vmatprep.mubr.bf16.mxu0 %v3814
    %4140 = vmatmul.mubr.bf16.gmra.mrb[0].mxu0 %v3813
    %v4141 = vpop.f32.mrb[0].mxu0
    %v4142 = vadd.f32 %v3870, %v4141
    %v4143 = vpop.f32.mrb[0].mxu0
    %v4144 = vadd.f32 %v3874, %v4143
    %v4145 = vpop.f32.mrb[0].mxu0
    %v4146 = vadd.f32 %v3870, %v4145
    %v4147 = vpop.f32.mrb[0].mxu0
    %v4148 = vadd.f32 %v3874, %v4147
    %4149 = vmatprep.mubr.bf16.mxu0 %v3816
    %4150 = vmatmul.mubr.bf16.gmra.mrb[0].mxu0 %v3815
    %v4151 = vpop.f32.mrb[0].mxu0
    %v4152 = vadd.f32 %v3870, %v4151
    %v4153 = vpop.f32.mrb[0].mxu0
    %v4154 = vadd.f32 %v3874, %v4153
    %v4155 = vpop.f32.mrb[0].mxu0
    %v4156 = vadd.f32 %v3870, %v4155
    %v4157 = vpop.f32.mrb[0].mxu0
    %v4158 = vadd.f32 %v3874, %v4157
    %4159 = vmatprep.mubr.bf16.mxu0 %v3818
    %4160 = vmatmul.mubr.bf16.gmra.mrb[0].mxu0 %v3817
    %v4161 = vpop.f32.mrb[0].mxu0
    %v4162 = vadd.f32 %v3870, %v4161
    %v4163 = vpop.f32.mrb[0].mxu0
    %v4164 = vadd.f32 %v3874, %v4163
    %v4165 = vpop.f32.mrb[0].mxu0
    %v4166 = vadd.f32 %v3870, %v4165
    %v4167 = vpop.f32.mrb[0].mxu0
    %v4168 = vadd.f32 %v3874, %v4167
    %4169 = vmatprep.mubr.bf16.mxu0 %v3820
    %4170 = vmatmul.mubr.bf16.gmra.mrb[0].mxu0 %v3819
    %v4171 = vpop.f32.mrb[0].mxu0
    %v4172 = vadd.f32 %v3870, %v4171
    %v4173 = vpop.f32.mrb[0].mxu0
    %v4174 = vadd.f32 %v3874, %v4173
    %v4175 = vpop.f32.mrb[0].mxu0
    %v4176 = vadd.f32 %v3870, %v4175
    %v4177 = vpop.f32.mrb[0].mxu0
    %v4178 = vadd.f32 %v3874, %v4177
    %4179 = vmatprep.mubr.bf16.mxu0 %v3822
    %4180 = vmatmul.mubr.bf16.gmra.mrb[0].mxu0 %v3821
    %v4181 = vpop.f32.mrb[0].mxu0
    %v4182 = vadd.f32 %v3870, %v4181
    %v4183 = vpop.f32.mrb[0].mxu0
    %v4184 = vadd.f32 %v3874, %v4183
    %v4185 = vpop.f32.mrb[0].mxu0
    %v4186 = vadd.f32 %v3870, %v4185
    %v4187 = vpop.f32.mrb[0].mxu0
    %v4188 = vadd.f32 %v3874, %v4187
    %4189 = vmatprep.mubr.bf16.mxu0 %v3824
    %4190 = vmatmul.mubr.bf16.gmra.mrb[0].mxu0 %v3823
    %v4191 = vpop.f32.mrb[0].mxu0
    %v4192 = vadd.f32 %v3870, %v4191
    %v4193 = vpop.f32.mrb[0].mxu0
    %v4194 = vadd.f32 %v3874, %v4193
    %v4195 = vpop.f32.mrb[0].mxu0
    %v4196 = vadd.f32 %v3870, %v4195
    %v4197 = vpop.f32.mrb[0].mxu0
    %v4198 = vadd.f32 %v3874, %v4197
    %4199 = vmatprep.mubr.bf16.mxu0 %v3826
    %4200 = vmatmul.mubr.bf16.gmra.mrb[0].mxu0 %v3825
    %v4201 = vpop.f32.mrb[0].mxu0
    %v4202 = vadd.f32 %v3870, %v4201
    %v4203 = vpop.f32.mrb[0].mxu0
    %v4204 = vadd.f32 %v3874, %v4203
    %v4205 = vpop.f32.mrb[0].mxu0
    %v4206 = vadd.f32 %v3870, %v4205
    %v4207 = vpop.f32.mrb[0].mxu0
    %v4208 = vadd.f32 %v3874, %v4207
    %4209 = vmatprep.mubr.bf16.mxu0 %v3828
    %4210 = vmatmul.mubr.bf16.gmra.mrb[0].mxu0 %v3827
    %v4211 = vpop.f32.mrb[0].mxu0
    %v4212 = vadd.f32 %v3870, %v4211
    %v4213 = vpop.f32.mrb[0].mxu0
    %v4214 = vadd.f32 %v3874, %v4213
    %v4215 = vpop.f32.mrb[0].mxu0
    %v4216 = vadd.f32 %v3870, %v4215
    %v4217 = vpop.f32.mrb[0].mxu0
    %v4218 = vadd.f32 %v3874, %v4217
    %4219 = vmatprep.mubr.bf16.mxu0 %v3830
    %4220 = vmatmul.mubr.bf16.gmra.mrb[0].mxu0 %v3829
    %v4221 = vpop.f32.mrb[0].mxu0
    %v4222 = vadd.f32 %v3870, %v4221
    %v4223 = vpop.f32.mrb[0].mxu0
    %v4224 = vadd.f32 %v3874, %v4223
    %v4225 = vpop.f32.mrb[0].mxu0
    %v4226 = vadd.f32 %v3870, %v4225
    %v4227 = vpop.f32.mrb[0].mxu0
    %v4228 = vadd.f32 %v3874, %v4227
    %4229 = vdwg.mxu0
    %v4230 = vmax.f32 %v4072, 0.0
    %v4231 = vmax.f32 %v4074, 0.0
    %v4232 = vmax.f32 %v4076, 0.0
    %v4233 = vmax.f32 %v4078, 0.0
    %v4234 = vmax.f32 %v4082, 0.0
    %v4235 = vmax.f32 %v4084, 0.0
    %v4236 = vmax.f32 %v4086, 0.0
    %v4237 = vmax.f32 %v4088, 0.0
    %v4238 = vmax.f32 %v4092, 0.0
    %v4239 = vmax.f32 %v4094, 0.0
    %v4240 = vmax.f32 %v4096, 0.0
    %v4241 = vmax.f32 %v4098, 0.0
    %v4242 = vmax.f32 %v4102, 0.0
    %v4243 = vmax.f32 %v4104, 0.0
    %v4244 = vmax.f32 %v4106, 0.0
    %v4245 = vmax.f32 %v4108, 0.0
    %v4246 = vmax.f32 %v4112, 0.0
    %v4247 = vmax.f32 %v4114, 0.0
    %v4248 = vmax.f32 %v4116, 0.0
    %v4249 = vmax.f32 %v4118, 0.0
    %v4250 = vmax.f32 %v4122, 0.0
    %v4251 = vmax.f32 %v4124, 0.0
    %v4252 = vmax.f32 %v4126, 0.0
    %v4253 = vmax.f32 %v4128, 0.0
    %v4254 = vmax.f32 %v4132, 0.0
    %v4255 = vmax.f32 %v4134, 0.0
    %v4256 = vmax.f32 %v4136, 0.0
    %v4257 = vmax.f32 %v4138, 0.0
    %v4258 = vmax.f32 %v4142, 0.0
    %v4259 = vmax.f32 %v4144, 0.0
    %v4260 = vmax.f32 %v4146, 0.0
    %v4261 = vmax.f32 %v4148, 0.0
    %v4262 = vmax.f32 %v4152, 0.0
    %v4263 = vmax.f32 %v4154, 0.0
    %v4264 = vmax.f32 %v4156, 0.0
    %v4265 = vmax.f32 %v4158, 0.0
    %v4266 = vmax.f32 %v4162, 0.0
    %v4267 = vmax.f32 %v4164, 0.0
    %v4268 = vmax.f32 %v4166, 0.0
    %v4269 = vmax.f32 %v4168, 0.0
    %v4270 = vmax.f32 %v4172, 0.0
    %v4271 = vmax.f32 %v4174, 0.0
    %v4272 = vmax.f32 %v4176, 0.0
    %v4273 = vmax.f32 %v4178, 0.0
    %v4274 = vmax.f32 %v4182, 0.0
    %v4275 = vmax.f32 %v4184, 0.0
    %v4276 = vmax.f32 %v4186, 0.0
    %v4277 = vmax.f32 %v4188, 0.0
    %v4278 = vmax.f32 %v4192, 0.0
    %v4279 = vmax.f32 %v4194, 0.0
    %v4280 = vmax.f32 %v4196, 0.0
    %v4281 = vmax.f32 %v4198, 0.0
    %v4282 = vmax.f32 %v4202, 0.0
    %v4283 = vmax.f32 %v4204, 0.0
    %v4284 = vmax.f32 %v4206, 0.0
    %v4285 = vmax.f32 %v4208, 0.0
    %v4286 = vmax.f32 %v4212, 0.0
    %v4287 = vmax.f32 %v4214, 0.0
    %v4288 = vmax.f32 %v4216, 0.0
    %v4289 = vmax.f32 %v4218, 0.0
    %v4290 = vmax.f32 %v4222, 0.0
    %v4291 = vmax.f32 %v4224, 0.0
    %v4292 = vmax.f32 %v4226, 0.0
    %v4293 = vmax.f32 %v4228, 0.0
    %v4294 = vpack.c.bf16 %v4232, %v4230
    %v4295 = vpack.c.bf16 %v4233, %v4231
    %v4296 = vpack.c.bf16 %v4236, %v4234
    %v4297 = vpack.c.bf16 %v4237, %v4235
    %v4298 = vpack.c.bf16 %v4240, %v4238
    %v4299 = vpack.c.bf16 %v4241, %v4239
    %v4300 = vpack.c.bf16 %v4244, %v4242
    %v4301 = vpack.c.bf16 %v4245, %v4243
    %v4302 = vpack.c.bf16 %v4248, %v4246
    %v4303 = vpack.c.bf16 %v4249, %v4247
    %v4304 = vpack.c.bf16 %v4252, %v4250
    %v4305 = vpack.c.bf16 %v4253, %v4251
    %v4306 = vpack.c.bf16 %v4256, %v4254
    %v4307 = vpack.c.bf16 %v4257, %v4255
    %v4308 = vpack.c.bf16 %v4260, %v4258
    %v4309 = vpack.c.bf16 %v4261, %v4259
    %v4310 = vpack.c.bf16 %v4264, %v4262
    %v4311 = vpack.c.bf16 %v4265, %v4263
    %v4312 = vpack.c.bf16 %v4268, %v4266
    %v4313 = vpack.c.bf16 %v4269, %v4267
    %v4314 = vpack.c.bf16 %v4272, %v4270
    %v4315 = vpack.c.bf16 %v4273, %v4271
    %v4316 = vpack.c.bf16 %v4276, %v4274
    %v4317 = vpack.c.bf16 %v4277, %v4275
    %v4318 = vpack.c.bf16 %v4280, %v4278
    %v4319 = vpack.c.bf16 %v4281, %v4279
    %v4320 = vpack.c.bf16 %v4284, %v4282
    %v4321 = vpack.c.bf16 %v4285, %v4283
    %v4322 = vpack.c.bf16 %v4288, %v4286
    %v4323 = vpack.c.bf16 %v4289, %v4287
    %v4324 = vpack.c.bf16 %v4292, %v4290
    %v4325 = vpack.c.bf16 %v4293, %v4291
    %v4326 = vld [vmem:[%s13] sm:$0x1]
    %v4327 = vld [vmem:[%s6] sm:$0x3]
    %v4329 = vlaneseq
    %v4330 = vshrl.u32 %v4329, 7
    %v4331 = vsub.s32 0, %v4330
    %v4332 = vrot.slane %v4327, %v4331
    %v4333 = vlaneseq
    %v4334 = vshrl.u32 %v4333, 7
    %v4335 = vsub.s32 1, %v4334
    %v4336 = vrot.slane %v4327, %v4335
    %v4339 = vmul.f32 %v4230, %v4332
    %v4340 = vmul.f32 %v4231, %v4336
    %v4341 = vmul.f32 %v4232, %v4332
    %v4342 = vmul.f32 %v4233, %v4336
    %v4343 = vmul.f32 %v4234, %v4332
    %v4344 = vmul.f32 %v4235, %v4336
    %v4345 = vmul.f32 %v4236, %v4332
    %v4346 = vmul.f32 %v4237, %v4336
    %v4347 = vmul.f32 %v4238, %v4332
    %v4348 = vmul.f32 %v4239, %v4336
    %v4349 = vmul.f32 %v4240, %v4332
    %v4350 = vmul.f32 %v4241, %v4336
    %v4351 = vmul.f32 %v4242, %v4332
    %v4352 = vmul.f32 %v4243, %v4336
    %v4353 = vmul.f32 %v4244, %v4332
    %v4354 = vmul.f32 %v4245, %v4336
    %v4355 = vmul.f32 %v4246, %v4332
    %v4356 = vmul.f32 %v4247, %v4336
    %v4357 = vmul.f32 %v4248, %v4332
    %v4358 = vmul.f32 %v4249, %v4336
    %v4359 = vmul.f32 %v4250, %v4332
    %v4360 = vmul.f32 %v4251, %v4336
    %v4361 = vmul.f32 %v4252, %v4332
    %v4362 = vmul.f32 %v4253, %v4336
    %v4363 = vmul.f32 %v4254, %v4332
    %v4364 = vmul.f32 %v4255, %v4336
    %v4365 = vmul.f32 %v4256, %v4332
    %v4366 = vmul.f32 %v4257, %v4336
    %v4367 = vmul.f32 %v4258, %v4332
    %v4368 = vmul.f32 %v4259, %v4336
    %v4369 = vmul.f32 %v4260, %v4332
    %v4370 = vmul.f32 %v4261, %v4336
    %v4371 = vmul.f32 %v4262, %v4332
    %v4372 = vmul.f32 %v4263, %v4336
    %v4373 = vmul.f32 %v4264, %v4332
    %v4374 = vmul.f32 %v4265, %v4336
    %v4375 = vmul.f32 %v4266, %v4332
    %v4376 = vmul.f32 %v4267, %v4336
    %v4377 = vmul.f32 %v4268, %v4332
    %v4378 = vmul.f32 %v4269, %v4336
    %v4379 = vmul.f32 %v4270, %v4332
    %v4380 = vmul.f32 %v4271, %v4336
    %v4381 = vmul.f32 %v4272, %v4332
    %v4382 = vmul.f32 %v4273, %v4336
    %v4383 = vmul.f32 %v4274, %v4332
    %v4384 = vmul.f32 %v4275, %v4336
    %v4385 = vmul.f32 %v4276, %v4332
    %v4386 = vmul.f32 %v4277, %v4336
    %v4387 = vmul.f32 %v4278, %v4332
    %v4388 = vmul.f32 %v4279, %v4336
    %v4389 = vmul.f32 %v4280, %v4332
    %v4390 = vmul.f32 %v4281, %v4336
    %v4391 = vmul.f32 %v4282, %v4332
    %v4392 = vmul.f32 %v4283, %v4336
    %v4393 = vmul.f32 %v4284, %v4332
    %v4394 = vmul.f32 %v4285, %v4336
    %v4395 = vmul.f32 %v4286, %v4332
    %v4396 = vmul.f32 %v4287, %v4336
    %v4397 = vmul.f32 %v4288, %v4332
    %v4398 = vmul.f32 %v4289, %v4336
    %v4399 = vmul.f32 %v4290, %v4332
    %v4400 = vmul.f32 %v4291, %v4336
    %v4401 = vmul.f32 %v4292, %v4332
    %v4402 = vmul.f32 %v4293, %v4336
    %v4403 = vadd.f32 %v4339, %v4340
    %4404 = vadd.xlane.f32.xlu0 %v4403
    %v4405 = vpop.xlane.xlu0 %4404
    %v4406 = vadd.f32 %v4341, %v4342
    %4407 = vadd.xlane.f32.xlu0 %v4406
    %v4408 = vpop.xlane.xlu0 %4407
    %v4409 = vadd.f32 %v4343, %v4344
    %4410 = vadd.xlane.f32.xlu0 %v4409
    %v4411 = vpop.xlane.xlu0 %4410
    %v4412 = vadd.f32 %v4345, %v4346
    %4413 = vadd.xlane.f32.xlu0 %v4412
    %v4414 = vpop.xlane.xlu0 %4413
    %v4415 = vadd.f32 %v4347, %v4348
    %4416 = vadd.xlane.f32.xlu0 %v4415
    %v4417 = vpop.xlane.xlu0 %4416
    %v4418 = vadd.f32 %v4349, %v4350
    %4419 = vadd.xlane.f32.xlu0 %v4418
    %v4420 = vpop.xlane.xlu0 %4419
    %v4421 = vadd.f32 %v4351, %v4352
    %4422 = vadd.xlane.f32.xlu0 %v4421
    %v4423 = vpop.xlane.xlu0 %4422
    %v4424 = vadd.f32 %v4353, %v4354
    %4425 = vadd.xlane.f32.xlu0 %v4424
    %v4426 = vpop.xlane.xlu0 %4425
    %v4427 = vadd.f32 %v4355, %v4356
    %4428 = vadd.xlane.f32.xlu0 %v4427
    %v4429 = vpop.xlane.xlu0 %4428
    %v4430 = vadd.f32 %v4357, %v4358
    %4431 = vadd.xlane.f32.xlu0 %v4430
    %v4432 = vpop.xlane.xlu0 %4431
    %v4433 = vadd.f32 %v4359, %v4360
    %4434 = vadd.xlane.f32.xlu0 %v4433
    %v4435 = vpop.xlane.xlu0 %4434
    %v4436 = vadd.f32 %v4361, %v4362
    %4437 = vadd.xlane.f32.xlu0 %v4436
    %v4438 = vpop.xlane.xlu0 %4437
    %v4439 = vadd.f32 %v4363, %v4364
    %4440 = vadd.xlane.f32.xlu0 %v4439
    %v4441 = vpop.xlane.xlu0 %4440
    %v4442 = vadd.f32 %v4365, %v4366
    %4443 = vadd.xlane.f32.xlu0 %v4442
    %v4444 = vpop.xlane.xlu0 %4443
    %v4445 = vadd.f32 %v4367, %v4368
    %4446 = vadd.xlane.f32.xlu0 %v4445
    %v4447 = vpop.xlane.xlu0 %4446
    %v4448 = vadd.f32 %v4369, %v4370
    %4449 = vadd.xlane.f32.xlu0 %v4448
    %v4450 = vpop.xlane.xlu0 %4449
    %v4451 = vadd.f32 %v4371, %v4372
    %4452 = vadd.xlane.f32.xlu0 %v4451
    %v4453 = vpop.xlane.xlu0 %4452
    %v4454 = vadd.f32 %v4373, %v4374
    %4455 = vadd.xlane.f32.xlu0 %v4454
    %v4456 = vpop.xlane.xlu0 %4455
    %v4457 = vadd.f32 %v4375, %v4376
    %4458 = vadd.xlane.f32.xlu0 %v4457
    %v4459 = vpop.xlane.xlu0 %4458
    %v4460 = vadd.f32 %v4377, %v4378
    %4461 = vadd.xlane.f32.xlu0 %v4460
    %v4462 = vpop.xlane.xlu0 %4461
    %v4463 = vadd.f32 %v4379, %v4380
    %4464 = vadd.xlane.f32.xlu0 %v4463
    %v4465 = vpop.xlane.xlu0 %4464
    %v4466 = vadd.f32 %v4381, %v4382
    %4467 = vadd.xlane.f32.xlu0 %v4466
    %v4468 = vpop.xlane.xlu0 %4467
    %v4469 = vadd.f32 %v4383, %v4384
    %4470 = vadd.xlane.f32.xlu0 %v4469
    %v4471 = vpop.xlane.xlu0 %4470
    %v4472 = vadd.f32 %v4385, %v4386
    %4473 = vadd.xlane.f32.xlu0 %v4472
    %v4474 = vpop.xlane.xlu0 %4473
    %v4475 = vadd.f32 %v4387, %v4388
    %4476 = vadd.xlane.f32.xlu0 %v4475
    %v4477 = vpop.xlane.xlu0 %4476
    %v4478 = vadd.f32 %v4389, %v4390
    %4479 = vadd.xlane.f32.xlu0 %v4478
    %v4480 = vpop.xlane.xlu0 %4479
    %v4481 = vadd.f32 %v4391, %v4392
    %4482 = vadd.xlane.f32.xlu0 %v4481
    %v4483 = vpop.xlane.xlu0 %4482
    %v4484 = vadd.f32 %v4393, %v4394
    %4485 = vadd.xlane.f32.xlu0 %v4484
    %v4486 = vpop.xlane.xlu0 %4485
    %v4487 = vadd.f32 %v4395, %v4396
    %4488 = vadd.xlane.f32.xlu0 %v4487
    %v4489 = vpop.xlane.xlu0 %4488
    %v4490 = vadd.f32 %v4397, %v4398
    %4491 = vadd.xlane.f32.xlu0 %v4490
    %v4492 = vpop.xlane.xlu0 %4491
    %v4493 = vadd.f32 %v4399, %v4400
    %4494 = vadd.xlane.f32.xlu0 %v4493
    %v4495 = vpop.xlane.xlu0 %4494
    %v4496 = vadd.f32 %v4401, %v4402
    %4497 = vadd.xlane.f32.xlu0 %v4496
    %v4498 = vpop.xlane.xlu0 %4497
    %v4500 = vlaneseq
    %v4501 = vshrl.u32 %v4500, 7
    %v4502 = vsub.s32 0, %v4501
    %v4503 = vrot.slane %v4326, %v4502
    %v4505 = vadd.f32 %v4405, %v4503
    %v4506 = vadd.f32 %v4408, %v4503
    %v4507 = vadd.f32 %v4411, %v4503
    %v4508 = vadd.f32 %v4414, %v4503
    %v4509 = vadd.f32 %v4417, %v4503
    %v4510 = vadd.f32 %v4420, %v4503
    %v4511 = vadd.f32 %v4423, %v4503
    %v4512 = vadd.f32 %v4426, %v4503
    %v4513 = vadd.f32 %v4429, %v4503
    %v4514 = vadd.f32 %v4432, %v4503
    %v4515 = vadd.f32 %v4435, %v4503
    %v4516 = vadd.f32 %v4438, %v4503
    %v4517 = vadd.f32 %v4441, %v4503
    %v4518 = vadd.f32 %v4444, %v4503
    %v4519 = vadd.f32 %v4447, %v4503
    %v4520 = vadd.f32 %v4450, %v4503
    %v4521 = vadd.f32 %v4453, %v4503
    %v4522 = vadd.f32 %v4456, %v4503
    %v4523 = vadd.f32 %v4459, %v4503
    %v4524 = vadd.f32 %v4462, %v4503
    %v4525 = vadd.f32 %v4465, %v4503
    %v4526 = vadd.f32 %v4468, %v4503
    %v4527 = vadd.f32 %v4471, %v4503
    %v4528 = vadd.f32 %v4474, %v4503
    %v4529 = vadd.f32 %v4477, %v4503
    %v4530 = vadd.f32 %v4480, %v4503
    %v4531 = vadd.f32 %v4483, %v4503
    %v4532 = vadd.f32 %v4486, %v4503
    %v4533 = vadd.f32 %v4489, %v4503
    %v4534 = vadd.f32 %v4492, %v4503
    %v4535 = vadd.f32 %v4495, %v4503
    %v4536 = vadd.f32 %v4498, %v4503
    %v4537 = vmax.f32 %v4505, 0.0
    %v4538 = vmax.f32 %v4506, 0.0
    %v4539 = vmax.f32 %v4507, 0.0
    %v4540 = vmax.f32 %v4508, 0.0
    %v4541 = vmax.f32 %v4509, 0.0
    %v4542 = vmax.f32 %v4510, 0.0
    %v4543 = vmax.f32 %v4511, 0.0
    %v4544 = vmax.f32 %v4512, 0.0
    %v4545 = vmax.f32 %v4513, 0.0
    %v4546 = vmax.f32 %v4514, 0.0
    %v4547 = vmax.f32 %v4515, 0.0
    %v4548 = vmax.f32 %v4516, 0.0
    %v4549 = vmax.f32 %v4517, 0.0
    %v4550 = vmax.f32 %v4518, 0.0
    %v4551 = vmax.f32 %v4519, 0.0
    %v4552 = vmax.f32 %v4520, 0.0
    %v4553 = vmax.f32 %v4521, 0.0
    %v4554 = vmax.f32 %v4522, 0.0
    %v4555 = vmax.f32 %v4523, 0.0
    %v4556 = vmax.f32 %v4524, 0.0
    %v4557 = vmax.f32 %v4525, 0.0
    %v4558 = vmax.f32 %v4526, 0.0
    %v4559 = vmax.f32 %v4527, 0.0
    %v4560 = vmax.f32 %v4528, 0.0
    %v4561 = vmax.f32 %v4529, 0.0
    %v4562 = vmax.f32 %v4530, 0.0
    %v4563 = vmax.f32 %v4531, 0.0
    %v4564 = vmax.f32 %v4532, 0.0
    %v4565 = vmax.f32 %v4533, 0.0
    %v4566 = vmax.f32 %v4534, 0.0
    %v4567 = vmax.f32 %v4535, 0.0
    %v4568 = vmax.f32 %v4536, 0.0
    %v4569 = vld [vmem:[%s7] sm:$0xff]
    %v4570 = vld [vmem:[%s7 + $0x8] sm:$0xff]
    %v4571 = vld [vmem:[%s7 + $0x10] sm:$0xff]
    %v4572 = vld [vmem:[%s7 + $0x18] sm:$0xff]
    %v4573 = vld [vmem:[%s7 + $0x20] sm:$0xff]
    %v4574 = vld [vmem:[%s7 + $0x28] sm:$0xff]
    %v4575 = vld [vmem:[%s7 + $0x30] sm:$0xff]
    %v4576 = vld [vmem:[%s7 + $0x38] sm:$0xff]
    %v4577 = vld [vmem:[%s7 + $0x40] sm:$0xff]
    %v4578 = vld [vmem:[%s7 + $0x48] sm:$0xff]
    %v4579 = vld [vmem:[%s7 + $0x50] sm:$0xff]
    %v4580 = vld [vmem:[%s7 + $0x58] sm:$0xff]
    %v4581 = vld [vmem:[%s7 + $0x60] sm:$0xff]
    %v4582 = vld [vmem:[%s7 + $0x68] sm:$0xff]
    %v4583 = vld [vmem:[%s7 + $0x70] sm:$0xff]
    %v4584 = vld [vmem:[%s7 + $0x78] sm:$0xff]
    %v4585 = vld [vmem:[%s7 + $0x80] sm:$0xff]
    %v4586 = vld [vmem:[%s7 + $0x88] sm:$0xff]
    %v4587 = vld [vmem:[%s7 + $0x90] sm:$0xff]
    %v4588 = vld [vmem:[%s7 + $0x98] sm:$0xff]
    %v4589 = vld [vmem:[%s7 + $0xa0] sm:$0xff]
    %v4590 = vld [vmem:[%s7 + $0xa8] sm:$0xff]
    %v4591 = vld [vmem:[%s7 + $0xb0] sm:$0xff]
    %v4592 = vld [vmem:[%s7 + $0xb8] sm:$0xff]
    %v4593 = vld [vmem:[%s7 + $0xc0] sm:$0xff]
    %v4594 = vld [vmem:[%s7 + $0xc8] sm:$0xff]
    %v4595 = vld [vmem:[%s7 + $0xd0] sm:$0xff]
    %v4596 = vld [vmem:[%s7 + $0xd8] sm:$0xff]
    %v4597 = vld [vmem:[%s7 + $0xe0] sm:$0xff]
    %v4598 = vld [vmem:[%s7 + $0xe8] sm:$0xff]
    %v4599 = vld [vmem:[%s7 + $0xf0] sm:$0xff]
    %v4600 = vld [vmem:[%s7 + $0xf8] sm:$0xff]
    %v4601 = vld [vmem:[%s8] sm:$0x3]
    %v4603 = vlaneseq
    %v4604 = vshrl.u32 %v4603, 7
    %v4605 = vsub.s32 0, %v4604
    %v4606 = vrot.slane %v4601, %v4605
    %v4607 = vlaneseq
    %v4608 = vshrl.u32 %v4607, 7
    %v4609 = vsub.s32 1, %v4608
    %v4610 = vrot.slane %v4601, %v4609
    %v4645 = vunpack.c.l.b16 %v4569
    %v4646 = vunpack.c.h.b16 %v4569
    %v4647 = vunpack.c.l.b16 %v4570
    %v4648 = vunpack.c.h.b16 %v4570
    %v4649 = vunpack.c.l.b16 %v4571
    %v4650 = vunpack.c.h.b16 %v4571
    %v4651 = vunpack.c.l.b16 %v4572
    %v4652 = vunpack.c.h.b16 %v4572
    %v4653 = vunpack.c.l.b16 %v4573
    %v4654 = vunpack.c.h.b16 %v4573
    %v4655 = vunpack.c.l.b16 %v4574
    %v4656 = vunpack.c.h.b16 %v4574
    %v4657 = vunpack.c.l.b16 %v4575
    %v4658 = vunpack.c.h.b16 %v4575
    %v4659 = vunpack.c.l.b16 %v4576
    %v4660 = vunpack.c.h.b16 %v4576
    %v4661 = vunpack.c.l.b16 %v4577
    %v4662 = vunpack.c.h.b16 %v4577
    %v4663 = vunpack.c.l.b16 %v4578
    %v4664 = vunpack.c.h.b16 %v4578
    %v4665 = vunpack.c.l.b16 %v4579
    %v4666 = vunpack.c.h.b16 %v4579
    %v4667 = vunpack.c.l.b16 %v4580
    %v4668 = vunpack.c.h.b16 %v4580
    %v4669 = vunpack.c.l.b16 %v4581
    %v4670 = vunpack.c.h.b16 %v4581
    %v4671 = vunpack.c.l.b16 %v4582
    %v4672 = vunpack.c.h.b16 %v4582
    %v4673 = vunpack.c.l.b16 %v4583
    %v4674 = vunpack.c.h.b16 %v4583
    %v4675 = vunpack.c.l.b16 %v4584
    %v4676 = vunpack.c.h.b16 %v4584
    %v4677 = vunpack.c.l.b16 %v4585
    %v4678 = vunpack.c.h.b16 %v4585
    %v4679 = vunpack.c.l.b16 %v4586
    %v4680 = vunpack.c.h.b16 %v4586
    %v4681 = vunpack.c.l.b16 %v4587
    %v4682 = vunpack.c.h.b16 %v4587
    %v4683 = vunpack.c.l.b16 %v4588
    %v4684 = vunpack.c.h.b16 %v4588
    %v4685 = vunpack.c.l.b16 %v4589
    %v4686 = vunpack.c.h.b16 %v4589
    %v4687 = vunpack.c.l.b16 %v4590
    %v4688 = vunpack.c.h.b16 %v4590
    %v4689 = vunpack.c.l.b16 %v4591
    %v4690 = vunpack.c.h.b16 %v4591
    %v4691 = vunpack.c.l.b16 %v4592
    %v4692 = vunpack.c.h.b16 %v4592
    %v4693 = vunpack.c.l.b16 %v4593
    %v4694 = vunpack.c.h.b16 %v4593
    %v4695 = vunpack.c.l.b16 %v4594
    %v4696 = vunpack.c.h.b16 %v4594
    %v4697 = vunpack.c.l.b16 %v4595
    %v4698 = vunpack.c.h.b16 %v4595
    %v4699 = vunpack.c.l.b16 %v4596
    %v4700 = vunpack.c.h.b16 %v4596
    %v4701 = vunpack.c.l.b16 %v4597
    %v4702 = vunpack.c.h.b16 %v4597
    %v4703 = vunpack.c.l.b16 %v4598
    %v4704 = vunpack.c.h.b16 %v4598
    %v4705 = vunpack.c.l.b16 %v4599
    %v4706 = vunpack.c.h.b16 %v4599
    %v4707 = vunpack.c.l.b16 %v4600
    %v4708 = vunpack.c.h.b16 %v4600
    %v4709 = vpack.c.b16 %v4647, %v4645
    %v4710 = vpack.c.b16 %v4648, %v4646
    %v4711 = vpack.c.b16 %v4651, %v4649
    %v4712 = vpack.c.b16 %v4652, %v4650
    %v4713 = vpack.c.b16 %v4655, %v4653
    %v4714 = vpack.c.b16 %v4656, %v4654
    %v4715 = vpack.c.b16 %v4659, %v4657
    %v4716 = vpack.c.b16 %v4660, %v4658
    %v4717 = vpack.c.b16 %v4663, %v4661
    %v4718 = vpack.c.b16 %v4664, %v4662
    %v4719 = vpack.c.b16 %v4667, %v4665
    %v4720 = vpack.c.b16 %v4668, %v4666
    %v4721 = vpack.c.b16 %v4671, %v4669
    %v4722 = vpack.c.b16 %v4672, %v4670
    %v4723 = vpack.c.b16 %v4675, %v4673
    %v4724 = vpack.c.b16 %v4676, %v4674
    %v4725 = vpack.c.b16 %v4679, %v4677
    %v4726 = vpack.c.b16 %v4680, %v4678
    %v4727 = vpack.c.b16 %v4683, %v4681
    %v4728 = vpack.c.b16 %v4684, %v4682
    %v4729 = vpack.c.b16 %v4687, %v4685
    %v4730 = vpack.c.b16 %v4688, %v4686
    %v4731 = vpack.c.b16 %v4691, %v4689
    %v4732 = vpack.c.b16 %v4692, %v4690
    %v4733 = vpack.c.b16 %v4695, %v4693
    %v4734 = vpack.c.b16 %v4696, %v4694
    %v4735 = vpack.c.b16 %v4699, %v4697
    %v4736 = vpack.c.b16 %v4700, %v4698
    %v4737 = vpack.c.b16 %v4703, %v4701
    %v4738 = vpack.c.b16 %v4704, %v4702
    %v4739 = vpack.c.b16 %v4707, %v4705
    %v4740 = vpack.c.b16 %v4708, %v4706
    %4773 = vmatprep.subr.bf16.mxu0 %v4710
    %4774 = vmatpush1.bf16.msra.mxu0 %v4709
    %4775 = vmatprep.subr.bf16.mxu0 %v4712
    %4776 = vmatpush1.bf16.msra.mxu0 %v4711
    %4777 = vmatprep.subr.bf16.mxu0 %v4714
    %4778 = vmatpush1.bf16.msra.mxu0 %v4713
    %4779 = vmatprep.subr.bf16.mxu0 %v4716
    %4780 = vmatpush1.bf16.msra.mxu0 %v4715
    %4781 = vmatprep.subr.bf16.mxu0 %v4718
    %4782 = vmatpush1.bf16.msra.mxu0 %v4717
    %4783 = vmatprep.subr.bf16.mxu0 %v4720
    %4784 = vmatpush1.bf16.msra.mxu0 %v4719
    %4785 = vmatprep.subr.bf16.mxu0 %v4722
    %4786 = vmatpush1.bf16.msra.mxu0 %v4721
    %4787 = vmatprep.subr.bf16.mxu0 %v4724
    %4788 = vmatpush1.bf16.msra.mxu0 %v4723
    %4789 = vmatprep.subr.bf16.mxu0 %v4726
    %4790 = vmatpush1.bf16.msra.mxu0 %v4725
    %4791 = vmatprep.subr.bf16.mxu0 %v4728
    %4792 = vmatpush1.bf16.msra.mxu0 %v4727
    %4793 = vmatprep.subr.bf16.mxu0 %v4730
    %4794 = vmatpush1.bf16.msra.mxu0 %v4729
    %4795 = vmatprep.subr.bf16.mxu0 %v4732
    %4796 = vmatpush1.bf16.msra.mxu0 %v4731
    %4797 = vmatprep.subr.bf16.mxu0 %v4734
    %4798 = vmatpush1.bf16.msra.mxu0 %v4733
    %4799 = vmatprep.subr.bf16.mxu0 %v4736
    %4800 = vmatpush1.bf16.msra.mxu0 %v4735
    %4801 = vmatprep.subr.bf16.mxu0 %v4738
    %4802 = vmatpush1.bf16.msra.mxu0 %v4737
    %4803 = vmatprep.subr.bf16.mxu0 %v4740
    %4804 = vmatpush1.bf16.msra.mxu0 %v4739
    %4805 = vmatprep.mubr.bf16.mxu0 %v4295
    %4806 = vmatmul.mubr.bf16.gmra.mrb[0].mxu0 %v4294
    %v4807 = vpop.f32.mrb[0].mxu0
    %v4808 = vadd.f32 %v4606, %v4807
    %v4809 = vpop.f32.mrb[0].mxu0
    %v4810 = vadd.f32 %v4610, %v4809
    %v4811 = vpop.f32.mrb[0].mxu0
    %v4812 = vadd.f32 %v4606, %v4811
    %v4813 = vpop.f32.mrb[0].mxu0
    %v4814 = vadd.f32 %v4610, %v4813
    %4815 = vmatprep.mubr.bf16.mxu0 %v4297
    %4816 = vmatmul.mubr.bf16.gmra.mrb[0].mxu0 %v4296
    %v4817 = vpop.f32.mrb[0].mxu0
    %v4818 = vadd.f32 %v4606, %v4817
    %v4819 = vpop.f32.mrb[0].mxu0
    %v4820 = vadd.f32 %v4610, %v4819
    %v4821 = vpop.f32.mrb[0].mxu0
    %v4822 = vadd.f32 %v4606, %v4821
    %v4823 = vpop.f32.mrb[0].mxu0
    %v4824 = vadd.f32 %v4610, %v4823
    %4825 = vmatprep.mubr.bf16.mxu0 %v4299
    %4826 = vmatmul.mubr.bf16.gmra.mrb[0].mxu0 %v4298
    %v4827 = vpop.f32.mrb[0].mxu0
    %v4828 = vadd.f32 %v4606, %v4827
    %v4829 = vpop.f32.mrb[0].mxu0
    %v4830 = vadd.f32 %v4610, %v4829
    %v4831 = vpop.f32.mrb[0].mxu0
    %v4832 = vadd.f32 %v4606, %v4831
    %v4833 = vpop.f32.mrb[0].mxu0
    %v4834 = vadd.f32 %v4610, %v4833
    %4835 = vmatprep.mubr.bf16.mxu0 %v4301
    %4836 = vmatmul.mubr.bf16.gmra.mrb[0].mxu0 %v4300
    %v4837 = vpop.f32.mrb[0].mxu0
    %v4838 = vadd.f32 %v4606, %v4837
    %v4839 = vpop.f32.mrb[0].mxu0
    %v4840 = vadd.f32 %v4610, %v4839
    %v4841 = vpop.f32.mrb[0].mxu0
    %v4842 = vadd.f32 %v4606, %v4841
    %v4843 = vpop.f32.mrb[0].mxu0
    %v4844 = vadd.f32 %v4610, %v4843
    %4845 = vmatprep.mubr.bf16.mxu0 %v4303
    %4846 = vmatmul.mubr.bf16.gmra.mrb[0].mxu0 %v4302
    %v4847 = vpop.f32.mrb[0].mxu0
    %v4848 = vadd.f32 %v4606, %v4847
    %v4849 = vpop.f32.mrb[0].mxu0
    %v4850 = vadd.f32 %v4610, %v4849
    %v4851 = vpop.f32.mrb[0].mxu0
    %v4852 = vadd.f32 %v4606, %v4851
    %v4853 = vpop.f32.mrb[0].mxu0
    %v4854 = vadd.f32 %v4610, %v4853
    %4855 = vmatprep.mubr.bf16.mxu0 %v4305
    %4856 = vmatmul.mubr.bf16.gmra.mrb[0].mxu0 %v4304
    %v4857 = vpop.f32.mrb[0].mxu0
    %v4858 = vadd.f32 %v4606, %v4857
    %v4859 = vpop.f32.mrb[0].mxu0
    %v4860 = vadd.f32 %v4610, %v4859
    %v4861 = vpop.f32.mrb[0].mxu0
    %v4862 = vadd.f32 %v4606, %v4861
    %v4863 = vpop.f32.mrb[0].mxu0
    %v4864 = vadd.f32 %v4610, %v4863
    %4865 = vmatprep.mubr.bf16.mxu0 %v4307
    %4866 = vmatmul.mubr.bf16.gmra.mrb[0].mxu0 %v4306
    %v4867 = vpop.f32.mrb[0].mxu0
    %v4868 = vadd.f32 %v4606, %v4867
    %v4869 = vpop.f32.mrb[0].mxu0
    %v4870 = vadd.f32 %v4610, %v4869
    %v4871 = vpop.f32.mrb[0].mxu0
    %v4872 = vadd.f32 %v4606, %v4871
    %v4873 = vpop.f32.mrb[0].mxu0
    %v4874 = vadd.f32 %v4610, %v4873
    %4875 = vmatprep.mubr.bf16.mxu0 %v4309
    %4876 = vmatmul.mubr.bf16.gmra.mrb[0].mxu0 %v4308
    %v4877 = vpop.f32.mrb[0].mxu0
    %v4878 = vadd.f32 %v4606, %v4877
    %v4879 = vpop.f32.mrb[0].mxu0
    %v4880 = vadd.f32 %v4610, %v4879
    %v4881 = vpop.f32.mrb[0].mxu0
    %v4882 = vadd.f32 %v4606, %v4881
    %v4883 = vpop.f32.mrb[0].mxu0
    %v4884 = vadd.f32 %v4610, %v4883
    %4885 = vmatprep.mubr.bf16.mxu0 %v4311
    %4886 = vmatmul.mubr.bf16.gmra.mrb[0].mxu0 %v4310
    %v4887 = vpop.f32.mrb[0].mxu0
    %v4888 = vadd.f32 %v4606, %v4887
    %v4889 = vpop.f32.mrb[0].mxu0
    %v4890 = vadd.f32 %v4610, %v4889
    %v4891 = vpop.f32.mrb[0].mxu0
    %v4892 = vadd.f32 %v4606, %v4891
    %v4893 = vpop.f32.mrb[0].mxu0
    %v4894 = vadd.f32 %v4610, %v4893
    %4895 = vmatprep.mubr.bf16.mxu0 %v4313
    %4896 = vmatmul.mubr.bf16.gmra.mrb[0].mxu0 %v4312
    %v4897 = vpop.f32.mrb[0].mxu0
    %v4898 = vadd.f32 %v4606, %v4897
    %v4899 = vpop.f32.mrb[0].mxu0
    %v4900 = vadd.f32 %v4610, %v4899
    %v4901 = vpop.f32.mrb[0].mxu0
    %v4902 = vadd.f32 %v4606, %v4901
    %v4903 = vpop.f32.mrb[0].mxu0
    %v4904 = vadd.f32 %v4610, %v4903
    %4905 = vmatprep.mubr.bf16.mxu0 %v4315
    %4906 = vmatmul.mubr.bf16.gmra.mrb[0].mxu0 %v4314
    %v4907 = vpop.f32.mrb[0].mxu0
    %v4908 = vadd.f32 %v4606, %v4907
    %v4909 = vpop.f32.mrb[0].mxu0
    %v4910 = vadd.f32 %v4610, %v4909
    %v4911 = vpop.f32.mrb[0].mxu0
    %v4912 = vadd.f32 %v4606, %v4911
    %v4913 = vpop.f32.mrb[0].mxu0
    %v4914 = vadd.f32 %v4610, %v4913
    %4915 = vmatprep.mubr.bf16.mxu0 %v4317
    %4916 = vmatmul.mubr.bf16.gmra.mrb[0].mxu0 %v4316
    %v4917 = vpop.f32.mrb[0].mxu0
    %v4918 = vadd.f32 %v4606, %v4917
    %v4919 = vpop.f32.mrb[0].mxu0
    %v4920 = vadd.f32 %v4610, %v4919
    %v4921 = vpop.f32.mrb[0].mxu0
    %v4922 = vadd.f32 %v4606, %v4921
    %v4923 = vpop.f32.mrb[0].mxu0
    %v4924 = vadd.f32 %v4610, %v4923
    %4925 = vmatprep.mubr.bf16.mxu0 %v4319
    %4926 = vmatmul.mubr.bf16.gmra.mrb[0].mxu0 %v4318
    %v4927 = vpop.f32.mrb[0].mxu0
    %v4928 = vadd.f32 %v4606, %v4927
    %v4929 = vpop.f32.mrb[0].mxu0
    %v4930 = vadd.f32 %v4610, %v4929
    %v4931 = vpop.f32.mrb[0].mxu0
    %v4932 = vadd.f32 %v4606, %v4931
    %v4933 = vpop.f32.mrb[0].mxu0
    %v4934 = vadd.f32 %v4610, %v4933
    %4935 = vmatprep.mubr.bf16.mxu0 %v4321
    %4936 = vmatmul.mubr.bf16.gmra.mrb[0].mxu0 %v4320
    %v4937 = vpop.f32.mrb[0].mxu0
    %v4938 = vadd.f32 %v4606, %v4937
    %v4939 = vpop.f32.mrb[0].mxu0
    %v4940 = vadd.f32 %v4610, %v4939
    %v4941 = vpop.f32.mrb[0].mxu0
    %v4942 = vadd.f32 %v4606, %v4941
    %v4943 = vpop.f32.mrb[0].mxu0
    %v4944 = vadd.f32 %v4610, %v4943
    %4945 = vmatprep.mubr.bf16.mxu0 %v4323
    %4946 = vmatmul.mubr.bf16.gmra.mrb[0].mxu0 %v4322
    %v4947 = vpop.f32.mrb[0].mxu0
    %v4948 = vadd.f32 %v4606, %v4947
    %v4949 = vpop.f32.mrb[0].mxu0
    %v4950 = vadd.f32 %v4610, %v4949
    %v4951 = vpop.f32.mrb[0].mxu0
    %v4952 = vadd.f32 %v4606, %v4951
    %v4953 = vpop.f32.mrb[0].mxu0
    %v4954 = vadd.f32 %v4610, %v4953
    %4955 = vmatprep.mubr.bf16.mxu0 %v4325
    %4956 = vmatmul.mubr.bf16.gmra.mrb[0].mxu0 %v4324
    %v4957 = vpop.f32.mrb[0].mxu0
    %v4958 = vadd.f32 %v4606, %v4957
    %v4959 = vpop.f32.mrb[0].mxu0
    %v4960 = vadd.f32 %v4610, %v4959
    %v4961 = vpop.f32.mrb[0].mxu0
    %v4962 = vadd.f32 %v4606, %v4961
    %v4963 = vpop.f32.mrb[0].mxu0
    %v4964 = vadd.f32 %v4610, %v4963
    %4965 = vdwg.mxu0
    %v4966 = vpack.c.bf16 %v4812, %v4808
    %v4967 = vpack.c.bf16 %v4814, %v4810
    %v4968 = vpack.c.bf16 %v4822, %v4818
    %v4969 = vpack.c.bf16 %v4824, %v4820
    %v4970 = vpack.c.bf16 %v4832, %v4828
    %v4971 = vpack.c.bf16 %v4834, %v4830
    %v4972 = vpack.c.bf16 %v4842, %v4838
    %v4973 = vpack.c.bf16 %v4844, %v4840
    %v4974 = vpack.c.bf16 %v4852, %v4848
    %v4975 = vpack.c.bf16 %v4854, %v4850
    %v4976 = vpack.c.bf16 %v4862, %v4858
    %v4977 = vpack.c.bf16 %v4864, %v4860
    %v4978 = vpack.c.bf16 %v4872, %v4868
    %v4979 = vpack.c.bf16 %v4874, %v4870
    %v4980 = vpack.c.bf16 %v4882, %v4878
    %v4981 = vpack.c.bf16 %v4884, %v4880
    %v4982 = vpack.c.bf16 %v4892, %v4888
    %v4983 = vpack.c.bf16 %v4894, %v4890
    %v4984 = vpack.c.bf16 %v4902, %v4898
    %v4985 = vpack.c.bf16 %v4904, %v4900
    %v4986 = vpack.c.bf16 %v4912, %v4908
    %v4987 = vpack.c.bf16 %v4914, %v4910
    %v4988 = vpack.c.bf16 %v4922, %v4918
    %v4989 = vpack.c.bf16 %v4924, %v4920
    %v4990 = vpack.c.bf16 %v4932, %v4928
    %v4991 = vpack.c.bf16 %v4934, %v4930
    %v4992 = vpack.c.bf16 %v4942, %v4938
    %v4993 = vpack.c.bf16 %v4944, %v4940
    %v4994 = vpack.c.bf16 %v4952, %v4948
    %v4995 = vpack.c.bf16 %v4954, %v4950
    %v4996 = vpack.c.bf16 %v4962, %v4958
    %v4997 = vpack.c.bf16 %v4964, %v4960
    %v4998 = vld [vmem:[%s9] sm:$0xf]
    %v4999 = vld [vmem:[%s9 + $0x4] sm:$0xf]
    %v5000 = vld [vmem:[%s9 + $0x8] sm:$0xf]
    %v5001 = vld [vmem:[%s9 + $0xc] sm:$0xf]
    %v5002 = vld [vmem:[%s9 + $0x10] sm:$0xf]
    %v5003 = vld [vmem:[%s9 + $0x14] sm:$0xf]
    %v5004 = vld [vmem:[%s9 + $0x18] sm:$0xf]
    %v5005 = vld [vmem:[%s9 + $0x1c] sm:$0xf]
    %v5006 = vld [vmem:[%s9 + $0x20] sm:$0xf]
    %v5007 = vld [vmem:[%s9 + $0x24] sm:$0xf]
    %v5008 = vld [vmem:[%s9 + $0x28] sm:$0xf]
    %v5009 = vld [vmem:[%s9 + $0x2c] sm:$0xf]
    %v5010 = vld [vmem:[%s9 + $0x30] sm:$0xf]
    %v5011 = vld [vmem:[%s9 + $0x34] sm:$0xf]
    %v5012 = vld [vmem:[%s9 + $0x38] sm:$0xf]
    %v5013 = vld [vmem:[%s9 + $0x3c] sm:$0xf]
    %v5014 = vld [vmem:[%s9 + $0x40] sm:$0xf]
    %v5015 = vld [vmem:[%s9 + $0x44] sm:$0xf]
    %v5016 = vld [vmem:[%s9 + $0x48] sm:$0xf]
    %v5017 = vld [vmem:[%s9 + $0x4c] sm:$0xf]
    %v5018 = vld [vmem:[%s9 + $0x50] sm:$0xf]
    %v5019 = vld [vmem:[%s9 + $0x54] sm:$0xf]
    %v5020 = vld [vmem:[%s9 + $0x58] sm:$0xf]
    %v5021 = vld [vmem:[%s9 + $0x5c] sm:$0xf]
    %v5022 = vld [vmem:[%s9 + $0x60] sm:$0xf]
    %v5023 = vld [vmem:[%s9 + $0x64] sm:$0xf]
    %v5024 = vld [vmem:[%s9 + $0x68] sm:$0xf]
    %v5025 = vld [vmem:[%s9 + $0x6c] sm:$0xf]
    %v5026 = vld [vmem:[%s9 + $0x70] sm:$0xf]
    %v5027 = vld [vmem:[%s9 + $0x74] sm:$0xf]
    %v5028 = vld [vmem:[%s9 + $0x78] sm:$0xf]
    %v5029 = vld [vmem:[%s9 + $0x7c] sm:$0xf]
    %v5030 = vld [vmem:[%s10] sm:$0xf]
    %v5031 = vld [vmem:[%s10 + $0x4] sm:$0x3]
    %v5064 = vunpack.c.l.b16 %v94
    %v5065 = vunpack.c.l.b16 %v95
    %v5066 = vunpack.c.l.b16 %v96
    %v5067 = vunpack.c.l.b16 %v97
    %v5068 = vunpack.c.l.b16 %v98
    %v5069 = vunpack.c.l.b16 %v99
    %v5070 = vunpack.c.l.b16 %v100
    %v5071 = vunpack.c.l.b16 %v101
    %v5072 = vunpack.c.l.b16 %v102
    %v5073 = vunpack.c.l.b16 %v103
    %v5074 = vunpack.c.l.b16 %v104
    %v5075 = vunpack.c.l.b16 %v105
    %v5076 = vunpack.c.l.b16 %v106
    %v5077 = vunpack.c.l.b16 %v107
    %v5078 = vunpack.c.l.b16 %v108
    %v5079 = vunpack.c.l.b16 %v109
    %v5080 = vunpack.c.l.b16 %v110
    %v5081 = vunpack.c.l.b16 %v111
    %v5082 = vunpack.c.l.b16 %v112
    %v5083 = vunpack.c.l.b16 %v113
    %v5084 = vunpack.c.l.b16 %v114
    %v5085 = vunpack.c.l.b16 %v115
    %v5086 = vunpack.c.l.b16 %v116
    %v5087 = vunpack.c.l.b16 %v117
    %v5088 = vunpack.c.l.b16 %v118
    %v5089 = vunpack.c.l.b16 %v119
    %v5090 = vunpack.c.l.b16 %v120
    %v5091 = vunpack.c.l.b16 %v121
    %v5092 = vunpack.c.l.b16 %v122
    %v5093 = vunpack.c.l.b16 %v123
    %v5094 = vunpack.c.l.b16 %v124
    %v5095 = vunpack.c.l.b16 %v125
    %v5096 = vpack.c.b16 %v5065, %v5064
    %v5097 = vpack.c.b16 %v5067, %v5066
    %v5098 = vpack.c.b16 %v5069, %v5068
    %v5099 = vpack.c.b16 %v5071, %v5070
    %v5100 = vpack.c.b16 %v5073, %v5072
    %v5101 = vpack.c.b16 %v5075, %v5074
    %v5102 = vpack.c.b16 %v5077, %v5076
    %v5103 = vpack.c.b16 %v5079, %v5078
    %v5104 = vpack.c.b16 %v5081, %v5080
    %v5105 = vpack.c.b16 %v5083, %v5082
    %v5106 = vpack.c.b16 %v5085, %v5084
    %v5107 = vpack.c.b16 %v5087, %v5086
    %v5108 = vpack.c.b16 %v5089, %v5088
    %v5109 = vpack.c.b16 %v5091, %v5090
    %v5110 = vpack.c.b16 %v5093, %v5092
    %v5111 = vpack.c.b16 %v5095, %v5094
    %v5114 = vunpack.c.l.b16 %v5030
    %v5115 = vunpack.c.l.b16 %v5031
    %v5116 = vpack.c.b16 %v5115, %v5114
    %vm5117 = vcmask 97280
    %v5119 = vsel %vm5117, %v5096, 0
    %v5122 = vsel %vm5117, %v5097, 0
    %v5125 = vsel %vm5117, %v5098, 0
    %v5128 = vsel %vm5117, %v5099, 0
    %v5131 = vsel %vm5117, %v5100, 0
    %v5134 = vsel %vm5117, %v5101, 0
    %v5137 = vsel %vm5117, %v5102, 0
    %v5140 = vsel %vm5117, %v5103, 0
    %v5143 = vsel %vm5117, %v5104, 0
    %v5146 = vsel %vm5117, %v5105, 0
    %v5149 = vsel %vm5117, %v5106, 0
    %v5152 = vsel %vm5117, %v5107, 0
    %v5155 = vsel %vm5117, %v5108, 0
    %v5158 = vsel %vm5117, %v5109, 0
    %v5161 = vsel %vm5117, %v5110, 0
    %v5164 = vsel %vm5117, %v5111, 0
    %vm5166 = vcmask 1045504
    %v5168 = vsel %vm5166, %v5116, 0
    %5170 = vmatprep.subr.bf16.mxu0 0
    %5171 = vmatpush1.bf16.msra.mxu0 %v5168
    %5172 = vmatprep.subr.bf16.mxu0 0
    %5173 = vmatpush1.bf16.msra.mxu0 0
    %5174 = vmatprep.subr.bf16.mxu0 0
    %5175 = vmatpush1.bf16.msra.mxu0 0
    %5176 = vmatprep.subr.bf16.mxu0 0
    %5177 = vmatpush1.bf16.msra.mxu0 0
    %5178 = vmatprep.subr.bf16.mxu0 0
    %5179 = vmatpush1.bf16.msra.mxu0 0
    %5180 = vmatprep.subr.bf16.mxu0 0
    %5181 = vmatpush1.bf16.msra.mxu0 0
    %5182 = vmatprep.subr.bf16.mxu0 0
    %5183 = vmatpush1.bf16.msra.mxu0 0
    %5184 = vmatprep.subr.bf16.mxu0 0
    %5185 = vmatpush1.bf16.msra.mxu0 0
    %5186 = vmatprep.subr.bf16.mxu0 0
    %5187 = vmatpush1.bf16.msra.mxu0 0
    %5188 = vmatprep.subr.bf16.mxu0 0
    %5189 = vmatpush1.bf16.msra.mxu0 0
    %5190 = vmatprep.subr.bf16.mxu0 0
    %5191 = vmatpush1.bf16.msra.mxu0 0
    %5192 = vmatprep.subr.bf16.mxu0 0
    %5193 = vmatpush1.bf16.msra.mxu0 0
    %5194 = vmatprep.subr.bf16.mxu0 0
    %5195 = vmatpush1.bf16.msra.mxu0 0
    %5196 = vmatprep.subr.bf16.mxu0 0
    %5197 = vmatpush1.bf16.msra.mxu0 0
    %5198 = vmatprep.subr.bf16.mxu0 0
    %5199 = vmatpush1.bf16.msra.mxu0 0
    %5200 = vmatprep.subr.bf16.mxu0 0
    %5201 = vmatpush1.bf16.msra.mxu0 0
    %5202 = vmatprep.mubr.bf16.mxu0 0
    %5203 = vmatmul.mubr.bf16.gmra.mrb[0].mxu0 %v5119
    %v5204 = vpop.f32.mrb[0].mxu0
    %v5205 = vadd.f32 0.0, %v5204
    %v5206 = vpop.f32.mrb[0].mxu0
    %v5207 = vpop.f32.mrb[0].mxu0
    %v5208 = vadd.f32 0.0, %v5207
    %v5209 = vpop.f32.mrb[0].mxu0
    %5210 = vmatprep.mubr.bf16.mxu0 0
    %5211 = vmatmul.mubr.bf16.gmra.mrb[0].mxu0 %v5122
    %v5212 = vpop.f32.mrb[0].mxu0
    %v5213 = vadd.f32 0.0, %v5212
    %v5214 = vpop.f32.mrb[0].mxu0
    %v5215 = vpop.f32.mrb[0].mxu0
    %v5216 = vadd.f32 0.0, %v5215
    %v5217 = vpop.f32.mrb[0].mxu0
    %5218 = vmatprep.mubr.bf16.mxu0 0
    %5219 = vmatmul.mubr.bf16.gmra.mrb[0].mxu0 %v5125
    %v5220 = vpop.f32.mrb[0].mxu0
    %v5221 = vadd.f32 0.0, %v5220
    %v5222 = vpop.f32.mrb[0].mxu0
    %v5223 = vpop.f32.mrb[0].mxu0
    %v5224 = vadd.f32 0.0, %v5223
    %v5225 = vpop.f32.mrb[0].mxu0
    %5226 = vmatprep.mubr.bf16.mxu0 0
    %5227 = vmatmul.mubr.bf16.gmra.mrb[0].mxu0 %v5128
    %v5228 = vpop.f32.mrb[0].mxu0
    %v5229 = vadd.f32 0.0, %v5228
    %v5230 = vpop.f32.mrb[0].mxu0
    %v5231 = vpop.f32.mrb[0].mxu0
    %v5232 = vadd.f32 0.0, %v5231
    %v5233 = vpop.f32.mrb[0].mxu0
    %5234 = vmatprep.mubr.bf16.mxu0 0
    %5235 = vmatmul.mubr.bf16.gmra.mrb[0].mxu0 %v5131
    %v5236 = vpop.f32.mrb[0].mxu0
    %v5237 = vadd.f32 0.0, %v5236
    %v5238 = vpop.f32.mrb[0].mxu0
    %v5239 = vpop.f32.mrb[0].mxu0
    %v5240 = vadd.f32 0.0, %v5239
    %v5241 = vpop.f32.mrb[0].mxu0
    %5242 = vmatprep.mubr.bf16.mxu0 0
    %5243 = vmatmul.mubr.bf16.gmra.mrb[0].mxu0 %v5134
    %v5244 = vpop.f32.mrb[0].mxu0
    %v5245 = vadd.f32 0.0, %v5244
    %v5246 = vpop.f32.mrb[0].mxu0
    %v5247 = vpop.f32.mrb[0].mxu0
    %v5248 = vadd.f32 0.0, %v5247
    %v5249 = vpop.f32.mrb[0].mxu0
    %5250 = vmatprep.mubr.bf16.mxu0 0
    %5251 = vmatmul.mubr.bf16.gmra.mrb[0].mxu0 %v5137
    %v5252 = vpop.f32.mrb[0].mxu0
    %v5253 = vadd.f32 0.0, %v5252
    %v5254 = vpop.f32.mrb[0].mxu0
    %v5255 = vpop.f32.mrb[0].mxu0
    %v5256 = vadd.f32 0.0, %v5255
    %v5257 = vpop.f32.mrb[0].mxu0
    %5258 = vmatprep.mubr.bf16.mxu0 0
    %5259 = vmatmul.mubr.bf16.gmra.mrb[0].mxu0 %v5140
    %v5260 = vpop.f32.mrb[0].mxu0
    %v5261 = vadd.f32 0.0, %v5260
    %v5262 = vpop.f32.mrb[0].mxu0
    %v5263 = vpop.f32.mrb[0].mxu0
    %v5264 = vadd.f32 0.0, %v5263
    %v5265 = vpop.f32.mrb[0].mxu0
    %5266 = vmatprep.mubr.bf16.mxu0 0
    %5267 = vmatmul.mubr.bf16.gmra.mrb[0].mxu0 %v5143
    %v5268 = vpop.f32.mrb[0].mxu0
    %v5269 = vadd.f32 0.0, %v5268
    %v5270 = vpop.f32.mrb[0].mxu0
    %v5271 = vpop.f32.mrb[0].mxu0
    %v5272 = vadd.f32 0.0, %v5271
    %v5273 = vpop.f32.mrb[0].mxu0
    %5274 = vmatprep.mubr.bf16.mxu0 0
    %5275 = vmatmul.mubr.bf16.gmra.mrb[0].mxu0 %v5146
    %v5276 = vpop.f32.mrb[0].mxu0
    %v5277 = vadd.f32 0.0, %v5276
    %v5278 = vpop.f32.mrb[0].mxu0
    %v5279 = vpop.f32.mrb[0].mxu0
    %v5280 = vadd.f32 0.0, %v5279
    %v5281 = vpop.f32.mrb[0].mxu0
    %5282 = vmatprep.mubr.bf16.mxu0 0
    %5283 = vmatmul.mubr.bf16.gmra.mrb[0].mxu0 %v5149
    %v5284 = vpop.f32.mrb[0].mxu0
    %v5285 = vadd.f32 0.0, %v5284
    %v5286 = vpop.f32.mrb[0].mxu0
    %v5287 = vpop.f32.mrb[0].mxu0
    %v5288 = vadd.f32 0.0, %v5287
    %v5289 = vpop.f32.mrb[0].mxu0
    %5290 = vmatprep.mubr.bf16.mxu0 0
    %5291 = vmatmul.mubr.bf16.gmra.mrb[0].mxu0 %v5152
    %v5292 = vpop.f32.mrb[0].mxu0
    %v5293 = vadd.f32 0.0, %v5292
    %v5294 = vpop.f32.mrb[0].mxu0
    %v5295 = vpop.f32.mrb[0].mxu0
    %v5296 = vadd.f32 0.0, %v5295
    %v5297 = vpop.f32.mrb[0].mxu0
    %5298 = vmatprep.mubr.bf16.mxu0 0
    %5299 = vmatmul.mubr.bf16.gmra.mrb[0].mxu0 %v5155
    %v5300 = vpop.f32.mrb[0].mxu0
    %v5301 = vadd.f32 0.0, %v5300
    %v5302 = vpop.f32.mrb[0].mxu0
    %v5303 = vpop.f32.mrb[0].mxu0
    %v5304 = vadd.f32 0.0, %v5303
    %v5305 = vpop.f32.mrb[0].mxu0
    %5306 = vmatprep.mubr.bf16.mxu0 0
    %5307 = vmatmul.mubr.bf16.gmra.mrb[0].mxu0 %v5158
    %v5308 = vpop.f32.mrb[0].mxu0
    %v5309 = vadd.f32 0.0, %v5308
    %v5310 = vpop.f32.mrb[0].mxu0
    %v5311 = vpop.f32.mrb[0].mxu0
    %v5312 = vadd.f32 0.0, %v5311
    %v5313 = vpop.f32.mrb[0].mxu0
    %5314 = vmatprep.mubr.bf16.mxu0 0
    %5315 = vmatmul.mubr.bf16.gmra.mrb[0].mxu0 %v5161
    %v5316 = vpop.f32.mrb[0].mxu0
    %v5317 = vadd.f32 0.0, %v5316
    %v5318 = vpop.f32.mrb[0].mxu0
    %v5319 = vpop.f32.mrb[0].mxu0
    %v5320 = vadd.f32 0.0, %v5319
    %v5321 = vpop.f32.mrb[0].mxu0
    %5322 = vmatprep.mubr.bf16.mxu0 0
    %5323 = vmatmul.mubr.bf16.gmra.mrb[0].mxu0 %v5164
    %v5324 = vpop.f32.mrb[0].mxu0
    %v5325 = vadd.f32 0.0, %v5324
    %v5326 = vpop.f32.mrb[0].mxu0
    %v5327 = vpop.f32.mrb[0].mxu0
    %v5328 = vadd.f32 0.0, %v5327
    %v5329 = vpop.f32.mrb[0].mxu0
    %5330 = vdwg.mxu0
    %v5363 = vunpack.c.l.b16 %v4998
    %v5364 = vunpack.c.l.b16 %v4999
    %v5365 = vunpack.c.l.b16 %v5000
    %v5366 = vunpack.c.l.b16 %v5001
    %v5367 = vunpack.c.l.b16 %v5002
    %v5368 = vunpack.c.l.b16 %v5003
    %v5369 = vunpack.c.l.b16 %v5004
    %v5370 = vunpack.c.l.b16 %v5005
    %v5371 = vunpack.c.l.b16 %v5006
    %v5372 = vunpack.c.l.b16 %v5007
    %v5373 = vunpack.c.l.b16 %v5008
    %v5374 = vunpack.c.l.b16 %v5009
    %v5375 = vunpack.c.l.b16 %v5010
    %v5376 = vunpack.c.l.b16 %v5011
    %v5377 = vunpack.c.l.b16 %v5012
    %v5378 = vunpack.c.l.b16 %v5013
    %v5379 = vunpack.c.l.b16 %v5014
    %v5380 = vunpack.c.l.b16 %v5015
    %v5381 = vunpack.c.l.b16 %v5016
    %v5382 = vunpack.c.l.b16 %v5017
    %v5383 = vunpack.c.l.b16 %v5018
    %v5384 = vunpack.c.l.b16 %v5019
    %v5385 = vunpack.c.l.b16 %v5020
    %v5386 = vunpack.c.l.b16 %v5021
    %v5387 = vunpack.c.l.b16 %v5022
    %v5388 = vunpack.c.l.b16 %v5023
    %v5389 = vunpack.c.l.b16 %v5024
    %v5390 = vunpack.c.l.b16 %v5025
    %v5391 = vunpack.c.l.b16 %v5026
    %v5392 = vunpack.c.l.b16 %v5027
    %v5393 = vunpack.c.l.b16 %v5028
    %v5394 = vunpack.c.l.b16 %v5029
    %v5395 = vpack.c.b16 %v5364, %v5363
    %v5396 = vpack.c.b16 %v5366, %v5365
    %v5397 = vpack.c.b16 %v5368, %v5367
    %v5398 = vpack.c.b16 %v5370, %v5369
    %v5399 = vpack.c.b16 %v5372, %v5371
    %v5400 = vpack.c.b16 %v5374, %v5373
    %v5401 = vpack.c.b16 %v5376, %v5375
    %v5402 = vpack.c.b16 %v5378, %v5377
    %v5403 = vpack.c.b16 %v5380, %v5379
    %v5404 = vpack.c.b16 %v5382, %v5381
    %v5405 = vpack.c.b16 %v5384, %v5383
    %v5406 = vpack.c.b16 %v5386, %v5385
    %v5407 = vpack.c.b16 %v5388, %v5387
    %v5408 = vpack.c.b16 %v5390, %v5389
    %v5409 = vpack.c.b16 %v5392, %v5391
    %v5410 = vpack.c.b16 %v5394, %v5393
    %5427 = vmatprep.subr.bf16.mxu0 0
    %5428 = vmatpush1.bf16.msra.mxu0 %v5395
    %5429 = vmatprep.subr.bf16.mxu0 0
    %5430 = vmatpush1.bf16.msra.mxu0 %v5396
    %5431 = vmatprep.subr.bf16.mxu0 0
    %5432 = vmatpush1.bf16.msra.mxu0 %v5397
    %5433 = vmatprep.subr.bf16.mxu0 0
    %5434 = vmatpush1.bf16.msra.mxu0 %v5398
    %5435 = vmatprep.subr.bf16.mxu0 0
    %5436 = vmatpush1.bf16.msra.mxu0 %v5399
    %5437 = vmatprep.subr.bf16.mxu0 0
    %5438 = vmatpush1.bf16.msra.mxu0 %v5400
    %5439 = vmatprep.subr.bf16.mxu0 0
    %5440 = vmatpush1.bf16.msra.mxu0 %v5401
    %5441 = vmatprep.subr.bf16.mxu0 0
    %5442 = vmatpush1.bf16.msra.mxu0 %v5402
    %5443 = vmatprep.subr.bf16.mxu0 0
    %5444 = vmatpush1.bf16.msra.mxu0 %v5403
    %5445 = vmatprep.subr.bf16.mxu0 0
    %5446 = vmatpush1.bf16.msra.mxu0 %v5404
    %5447 = vmatprep.subr.bf16.mxu0 0
    %5448 = vmatpush1.bf16.msra.mxu0 %v5405
    %5449 = vmatprep.subr.bf16.mxu0 0
    %5450 = vmatpush1.bf16.msra.mxu0 %v5406
    %5451 = vmatprep.subr.bf16.mxu0 0
    %5452 = vmatpush1.bf16.msra.mxu0 %v5407
    %5453 = vmatprep.subr.bf16.mxu0 0
    %5454 = vmatpush1.bf16.msra.mxu0 %v5408
    %5455 = vmatprep.subr.bf16.mxu0 0
    %5456 = vmatpush1.bf16.msra.mxu0 %v5409
    %5457 = vmatprep.subr.bf16.mxu0 0
    %5458 = vmatpush1.bf16.msra.mxu0 %v5410
    %5459 = vmatprep.mubr.bf16.mxu0 %v4967
    %5460 = vmatmul.mubr.bf16.gmra.mrb[0].mxu0 %v4966
    %v5461 = vpop.f32.mrb[0].mxu0
    %v5462 = vadd.f32 %v5205, %v5461
    %v5463 = vpop.f32.mrb[0].mxu0
    %v5464 = vpop.f32.mrb[0].mxu0
    %v5465 = vadd.f32 %v5208, %v5464
    %v5466 = vpop.f32.mrb[0].mxu0
    %5467 = vmatprep.mubr.bf16.mxu0 %v4969
    %5468 = vmatmul.mubr.bf16.gmra.mrb[0].mxu0 %v4968
    %v5469 = vpop.f32.mrb[0].mxu0
    %v5470 = vadd.f32 %v5213, %v5469
    %v5471 = vpop.f32.mrb[0].mxu0
    %v5472 = vpop.f32.mrb[0].mxu0
    %v5473 = vadd.f32 %v5216, %v5472
    %v5474 = vpop.f32.mrb[0].mxu0
    %5475 = vmatprep.mubr.bf16.mxu0 %v4971
    %5476 = vmatmul.mubr.bf16.gmra.mrb[0].mxu0 %v4970
    %v5477 = vpop.f32.mrb[0].mxu0
    %v5478 = vadd.f32 %v5221, %v5477
    %v5479 = vpop.f32.mrb[0].mxu0
    %v5480 = vpop.f32.mrb[0].mxu0
    %v5481 = vadd.f32 %v5224, %v5480
    %v5482 = vpop.f32.mrb[0].mxu0
    %5483 = vmatprep.mubr.bf16.mxu0 %v4973
    %5484 = vmatmul.mubr.bf16.gmra.mrb[0].mxu0 %v4972
    %v5485 = vpop.f32.mrb[0].mxu0
    %v5486 = vadd.f32 %v5229, %v5485
    %v5487 = vpop.f32.mrb[0].mxu0
    %v5488 = vpop.f32.mrb[0].mxu0
    %v5489 = vadd.f32 %v5232, %v5488
    %v5490 = vpop.f32.mrb[0].mxu0
    %5491 = vmatprep.mubr.bf16.mxu0 %v4975
    %5492 = vmatmul.mubr.bf16.gmra.mrb[0].mxu0 %v4974
    %v5493 = vpop.f32.mrb[0].mxu0
    %v5494 = vadd.f32 %v5237, %v5493
    %v5495 = vpop.f32.mrb[0].mxu0
    %v5496 = vpop.f32.mrb[0].mxu0
    %v5497 = vadd.f32 %v5240, %v5496
    %v5498 = vpop.f32.mrb[0].mxu0
    %5499 = vmatprep.mubr.bf16.mxu0 %v4977
    %5500 = vmatmul.mubr.bf16.gmra.mrb[0].mxu0 %v4976
    %v5501 = vpop.f32.mrb[0].mxu0
    %v5502 = vadd.f32 %v5245, %v5501
    %v5503 = vpop.f32.mrb[0].mxu0
    %v5504 = vpop.f32.mrb[0].mxu0
    %v5505 = vadd.f32 %v5248, %v5504
    %v5506 = vpop.f32.mrb[0].mxu0
    %5507 = vmatprep.mubr.bf16.mxu0 %v4979
    %5508 = vmatmul.mubr.bf16.gmra.mrb[0].mxu0 %v4978
    %v5509 = vpop.f32.mrb[0].mxu0
    %v5510 = vadd.f32 %v5253, %v5509
    %v5511 = vpop.f32.mrb[0].mxu0
    %v5512 = vpop.f32.mrb[0].mxu0
    %v5513 = vadd.f32 %v5256, %v5512
    %v5514 = vpop.f32.mrb[0].mxu0
    %5515 = vmatprep.mubr.bf16.mxu0 %v4981
    %5516 = vmatmul.mubr.bf16.gmra.mrb[0].mxu0 %v4980
    %v5517 = vpop.f32.mrb[0].mxu0
    %v5518 = vadd.f32 %v5261, %v5517
    %v5519 = vpop.f32.mrb[0].mxu0
    %v5520 = vpop.f32.mrb[0].mxu0
    %v5521 = vadd.f32 %v5264, %v5520
    %v5522 = vpop.f32.mrb[0].mxu0
    %5523 = vmatprep.mubr.bf16.mxu0 %v4983
    %5524 = vmatmul.mubr.bf16.gmra.mrb[0].mxu0 %v4982
    %v5525 = vpop.f32.mrb[0].mxu0
    %v5526 = vadd.f32 %v5269, %v5525
    %v5527 = vpop.f32.mrb[0].mxu0
    %v5528 = vpop.f32.mrb[0].mxu0
    %v5529 = vadd.f32 %v5272, %v5528
    %v5530 = vpop.f32.mrb[0].mxu0
    %5531 = vmatprep.mubr.bf16.mxu0 %v4985
    %5532 = vmatmul.mubr.bf16.gmra.mrb[0].mxu0 %v4984
    %v5533 = vpop.f32.mrb[0].mxu0
    %v5534 = vadd.f32 %v5277, %v5533
    %v5535 = vpop.f32.mrb[0].mxu0
    %v5536 = vpop.f32.mrb[0].mxu0
    %v5537 = vadd.f32 %v5280, %v5536
    %v5538 = vpop.f32.mrb[0].mxu0
    %5539 = vmatprep.mubr.bf16.mxu0 %v4987
    %5540 = vmatmul.mubr.bf16.gmra.mrb[0].mxu0 %v4986
    %v5541 = vpop.f32.mrb[0].mxu0
    %v5542 = vadd.f32 %v5285, %v5541
    %v5543 = vpop.f32.mrb[0].mxu0
    %v5544 = vpop.f32.mrb[0].mxu0
    %v5545 = vadd.f32 %v5288, %v5544
    %v5546 = vpop.f32.mrb[0].mxu0
    %5547 = vmatprep.mubr.bf16.mxu0 %v4989
    %5548 = vmatmul.mubr.bf16.gmra.mrb[0].mxu0 %v4988
    %v5549 = vpop.f32.mrb[0].mxu0
    %v5550 = vadd.f32 %v5293, %v5549
    %v5551 = vpop.f32.mrb[0].mxu0
    %v5552 = vpop.f32.mrb[0].mxu0
    %v5553 = vadd.f32 %v5296, %v5552
    %v5554 = vpop.f32.mrb[0].mxu0
    %5555 = vmatprep.mubr.bf16.mxu0 %v4991
    %5556 = vmatmul.mubr.bf16.gmra.mrb[0].mxu0 %v4990
    %v5557 = vpop.f32.mrb[0].mxu0
    %v5558 = vadd.f32 %v5301, %v5557
    %v5559 = vpop.f32.mrb[0].mxu0
    %v5560 = vpop.f32.mrb[0].mxu0
    %v5561 = vadd.f32 %v5304, %v5560
    %v5562 = vpop.f32.mrb[0].mxu0
    %5563 = vmatprep.mubr.bf16.mxu0 %v4993
    %5564 = vmatmul.mubr.bf16.gmra.mrb[0].mxu0 %v4992
    %v5565 = vpop.f32.mrb[0].mxu0
    %v5566 = vadd.f32 %v5309, %v5565
    %v5567 = vpop.f32.mrb[0].mxu0
    %v5568 = vpop.f32.mrb[0].mxu0
    %v5569 = vadd.f32 %v5312, %v5568
    %v5570 = vpop.f32.mrb[0].mxu0
    %5571 = vmatprep.mubr.bf16.mxu0 %v4995
    %5572 = vmatmul.mubr.bf16.gmra.mrb[0].mxu0 %v4994
    %v5573 = vpop.f32.mrb[0].mxu0
    %v5574 = vadd.f32 %v5317, %v5573
    %v5575 = vpop.f32.mrb[0].mxu0
    %v5576 = vpop.f32.mrb[0].mxu0
    %v5577 = vadd.f32 %v5320, %v5576
    %v5578 = vpop.f32.mrb[0].mxu0
    %5579 = vmatprep.mubr.bf16.mxu0 %v4997
    %5580 = vmatmul.mubr.bf16.gmra.mrb[0].mxu0 %v4996
    %v5581 = vpop.f32.mrb[0].mxu0
    %v5582 = vadd.f32 %v5325, %v5581
    %v5583 = vpop.f32.mrb[0].mxu0
    %v5584 = vpop.f32.mrb[0].mxu0
    %v5585 = vadd.f32 %v5328, %v5584
    %v5586 = vpop.f32.mrb[0].mxu0
    %5587 = vdwg.mxu0
    %v5588 = vld [vmem:[%s11] sm:$0x1]
    %v5590 = vlaneseq
    %v5591 = vshrl.u32 %v5590, 7
    %v5592 = vsub.s32 0, %v5591
    %v5593 = vrot.slane %v5588, %v5592
    %v5595 = vadd.f32 %v5462, %v5593
    %v5596 = vadd.f32 %v5465, %v5593
    %v5597 = vadd.f32 %v5470, %v5593
    %v5598 = vadd.f32 %v5473, %v5593
    %v5599 = vadd.f32 %v5478, %v5593
    %v5600 = vadd.f32 %v5481, %v5593
    %v5601 = vadd.f32 %v5486, %v5593
    %v5602 = vadd.f32 %v5489, %v5593
    %v5603 = vadd.f32 %v5494, %v5593
    %v5604 = vadd.f32 %v5497, %v5593
    %v5605 = vadd.f32 %v5502, %v5593
    %v5606 = vadd.f32 %v5505, %v5593
    %v5607 = vadd.f32 %v5510, %v5593
    %v5608 = vadd.f32 %v5513, %v5593
    %v5609 = vadd.f32 %v5518, %v5593
    %v5610 = vadd.f32 %v5521, %v5593
    %v5611 = vadd.f32 %v5526, %v5593
    %v5612 = vadd.f32 %v5529, %v5593
    %v5613 = vadd.f32 %v5534, %v5593
    %v5614 = vadd.f32 %v5537, %v5593
    %v5615 = vadd.f32 %v5542, %v5593
    %v5616 = vadd.f32 %v5545, %v5593
    %v5617 = vadd.f32 %v5550, %v5593
    %v5618 = vadd.f32 %v5553, %v5593
    %v5619 = vadd.f32 %v5558, %v5593
    %v5620 = vadd.f32 %v5561, %v5593
    %v5621 = vadd.f32 %v5566, %v5593
    %v5622 = vadd.f32 %v5569, %v5593
    %v5623 = vadd.f32 %v5574, %v5593
    %v5624 = vadd.f32 %v5577, %v5593
    %v5625 = vadd.f32 %v5582, %v5593
    %v5626 = vadd.f32 %v5585, %v5593
    %v5627 = vmax.f32 %v5595, 0.0
    %v5628 = vmax.f32 %v5596, 0.0
    %v5629 = vmax.f32 %v5597, 0.0
    %v5630 = vmax.f32 %v5598, 0.0
    %v5631 = vmax.f32 %v5599, 0.0
    %v5632 = vmax.f32 %v5600, 0.0
    %v5633 = vmax.f32 %v5601, 0.0
    %v5634 = vmax.f32 %v5602, 0.0
    %v5635 = vmax.f32 %v5603, 0.0
    %v5636 = vmax.f32 %v5604, 0.0
    %v5637 = vmax.f32 %v5605, 0.0
    %v5638 = vmax.f32 %v5606, 0.0
    %v5639 = vmax.f32 %v5607, 0.0
    %v5640 = vmax.f32 %v5608, 0.0
    %v5641 = vmax.f32 %v5609, 0.0
    %v5642 = vmax.f32 %v5610, 0.0
    %v5643 = vmax.f32 %v5611, 0.0
    %v5644 = vmax.f32 %v5612, 0.0
    %v5645 = vmax.f32 %v5613, 0.0
    %v5646 = vmax.f32 %v5614, 0.0
    %v5647 = vmax.f32 %v5615, 0.0
    %v5648 = vmax.f32 %v5616, 0.0
    %v5649 = vmax.f32 %v5617, 0.0
    %v5650 = vmax.f32 %v5618, 0.0
    %v5651 = vmax.f32 %v5619, 0.0
    %v5652 = vmax.f32 %v5620, 0.0
    %v5653 = vmax.f32 %v5621, 0.0
    %v5654 = vmax.f32 %v5622, 0.0
    %v5655 = vmax.f32 %v5623, 0.0
    %v5656 = vmax.f32 %v5624, 0.0
    %v5657 = vmax.f32 %v5625, 0.0
    %v5658 = vmax.f32 %v5626, 0.0
    %v5659 = vld [vmem:[%s12] sm:$0x7]
    %v5660 = vlaneseq
    %v5661 = vshrl.u32 %v5660, 7
    %v5662 = vsub.s32 0, %v5661
    %v5663 = vrot.slane %v5659, %v5662
    %v5664 = vmul.f32 %v5627, %v5663
    %v5665 = vmul.f32 %v5628, %v5663
    %v5666 = vmul.f32 %v5629, %v5663
    %v5667 = vmul.f32 %v5630, %v5663
    %v5668 = vmul.f32 %v5631, %v5663
    %v5669 = vmul.f32 %v5632, %v5663
    %v5670 = vmul.f32 %v5633, %v5663
    %v5671 = vmul.f32 %v5634, %v5663
    %v5672 = vmul.f32 %v5635, %v5663
    %v5673 = vmul.f32 %v5636, %v5663
    %v5674 = vmul.f32 %v5637, %v5663
    %v5675 = vmul.f32 %v5638, %v5663
    %v5676 = vmul.f32 %v5639, %v5663
    %v5677 = vmul.f32 %v5640, %v5663
    %v5678 = vmul.f32 %v5641, %v5663
    %v5679 = vmul.f32 %v5642, %v5663
    %v5680 = vmul.f32 %v5643, %v5663
    %v5681 = vmul.f32 %v5644, %v5663
    %v5682 = vmul.f32 %v5645, %v5663
    %v5683 = vmul.f32 %v5646, %v5663
    %v5684 = vmul.f32 %v5647, %v5663
    %v5685 = vmul.f32 %v5648, %v5663
    %v5686 = vmul.f32 %v5649, %v5663
    %v5687 = vmul.f32 %v5650, %v5663
    %v5688 = vmul.f32 %v5651, %v5663
    %v5689 = vmul.f32 %v5652, %v5663
    %v5690 = vmul.f32 %v5653, %v5663
    %v5691 = vmul.f32 %v5654, %v5663
    %v5692 = vmul.f32 %v5655, %v5663
    %v5693 = vmul.f32 %v5656, %v5663
    %v5694 = vmul.f32 %v5657, %v5663
    %v5695 = vmul.f32 %v5658, %v5663
    %5696 = vadd.xlane.f32.xlu0 %v5664
    %v5697 = vpop.xlane.xlu0 %5696
    %5698 = vadd.xlane.f32.xlu0 %v5665
    %v5699 = vpop.xlane.xlu0 %5698
    %5700 = vadd.xlane.f32.xlu0 %v5666
    %v5701 = vpop.xlane.xlu0 %5700
    %5702 = vadd.xlane.f32.xlu0 %v5667
    %v5703 = vpop.xlane.xlu0 %5702
    %5704 = vadd.xlane.f32.xlu0 %v5668
    %v5705 = vpop.xlane.xlu0 %5704
    %5706 = vadd.xlane.f32.xlu0 %v5669
    %v5707 = vpop.xlane.xlu0 %5706
    %5708 = vadd.xlane.f32.xlu0 %v5670
    %v5709 = vpop.xlane.xlu0 %5708
    %5710 = vadd.xlane.f32.xlu0 %v5671
    %v5711 = vpop.xlane.xlu0 %5710
    %5712 = vadd.xlane.f32.xlu0 %v5672
    %v5713 = vpop.xlane.xlu0 %5712
    %5714 = vadd.xlane.f32.xlu0 %v5673
    %v5715 = vpop.xlane.xlu0 %5714
    %5716 = vadd.xlane.f32.xlu0 %v5674
    %v5717 = vpop.xlane.xlu0 %5716
    %5718 = vadd.xlane.f32.xlu0 %v5675
    %v5719 = vpop.xlane.xlu0 %5718
    %5720 = vadd.xlane.f32.xlu0 %v5676
    %v5721 = vpop.xlane.xlu0 %5720
    %5722 = vadd.xlane.f32.xlu0 %v5677
    %v5723 = vpop.xlane.xlu0 %5722
    %5724 = vadd.xlane.f32.xlu0 %v5678
    %v5725 = vpop.xlane.xlu0 %5724
    %5726 = vadd.xlane.f32.xlu0 %v5679
    %v5727 = vpop.xlane.xlu0 %5726
    %5728 = vadd.xlane.f32.xlu0 %v5680
    %v5729 = vpop.xlane.xlu0 %5728
    %5730 = vadd.xlane.f32.xlu0 %v5681
    %v5731 = vpop.xlane.xlu0 %5730
    %5732 = vadd.xlane.f32.xlu0 %v5682
    %v5733 = vpop.xlane.xlu0 %5732
    %5734 = vadd.xlane.f32.xlu0 %v5683
    %v5735 = vpop.xlane.xlu0 %5734
    %5736 = vadd.xlane.f32.xlu0 %v5684
    %v5737 = vpop.xlane.xlu0 %5736
    %5738 = vadd.xlane.f32.xlu0 %v5685
    %v5739 = vpop.xlane.xlu0 %5738
    %5740 = vadd.xlane.f32.xlu0 %v5686
    %v5741 = vpop.xlane.xlu0 %5740
    %5742 = vadd.xlane.f32.xlu0 %v5687
    %v5743 = vpop.xlane.xlu0 %5742
    %5744 = vadd.xlane.f32.xlu0 %v5688
    %v5745 = vpop.xlane.xlu0 %5744
    %5746 = vadd.xlane.f32.xlu0 %v5689
    %v5747 = vpop.xlane.xlu0 %5746
    %5748 = vadd.xlane.f32.xlu0 %v5690
    %v5749 = vpop.xlane.xlu0 %5748
    %5750 = vadd.xlane.f32.xlu0 %v5691
    %v5751 = vpop.xlane.xlu0 %5750
    %5752 = vadd.xlane.f32.xlu0 %v5692
    %v5753 = vpop.xlane.xlu0 %5752
    %5754 = vadd.xlane.f32.xlu0 %v5693
    %v5755 = vpop.xlane.xlu0 %5754
    %5756 = vadd.xlane.f32.xlu0 %v5694
    %v5757 = vpop.xlane.xlu0 %5756
    %5758 = vadd.xlane.f32.xlu0 %v5695
    %v5759 = vpop.xlane.xlu0 %5758
    %v5760 = vadd.f32 %v5697, %v4503
    %v5761 = vadd.f32 %v5699, %v4503
    %v5762 = vadd.f32 %v5701, %v4503
    %v5763 = vadd.f32 %v5703, %v4503
    %v5764 = vadd.f32 %v5705, %v4503
    %v5765 = vadd.f32 %v5707, %v4503
    %v5766 = vadd.f32 %v5709, %v4503
    %v5767 = vadd.f32 %v5711, %v4503
    %v5768 = vadd.f32 %v5713, %v4503
    %v5769 = vadd.f32 %v5715, %v4503
    %v5770 = vadd.f32 %v5717, %v4503
    %v5771 = vadd.f32 %v5719, %v4503
    %v5772 = vadd.f32 %v5721, %v4503
    %v5773 = vadd.f32 %v5723, %v4503
    %v5774 = vadd.f32 %v5725, %v4503
    %v5775 = vadd.f32 %v5727, %v4503
    %v5776 = vadd.f32 %v5729, %v4503
    %v5777 = vadd.f32 %v5731, %v4503
    %v5778 = vadd.f32 %v5733, %v4503
    %v5779 = vadd.f32 %v5735, %v4503
    %v5780 = vadd.f32 %v5737, %v4503
    %v5781 = vadd.f32 %v5739, %v4503
    %v5782 = vadd.f32 %v5741, %v4503
    %v5783 = vadd.f32 %v5743, %v4503
    %v5784 = vadd.f32 %v5745, %v4503
    %v5785 = vadd.f32 %v5747, %v4503
    %v5786 = vadd.f32 %v5749, %v4503
    %v5787 = vadd.f32 %v5751, %v4503
    %v5788 = vadd.f32 %v5753, %v4503
    %v5789 = vadd.f32 %v5755, %v4503
    %v5790 = vadd.f32 %v5757, %v4503
    %v5791 = vadd.f32 %v5759, %v4503
    %v5792 = vlaneseq
    %v5793 = vshrl.u32 %v5792, 7
    %v5794 = vsub.s32 1, %v5793
    %v5795 = vrot.slane %v5659, %v5794
    %v5796 = vmul.f32 %v5627, %v5795
    %v5797 = vmul.f32 %v5628, %v5795
    %v5798 = vmul.f32 %v5629, %v5795
    %v5799 = vmul.f32 %v5630, %v5795
    %v5800 = vmul.f32 %v5631, %v5795
    %v5801 = vmul.f32 %v5632, %v5795
    %v5802 = vmul.f32 %v5633, %v5795
    %v5803 = vmul.f32 %v5634, %v5795
    %v5804 = vmul.f32 %v5635, %v5795
    %v5805 = vmul.f32 %v5636, %v5795
    %v5806 = vmul.f32 %v5637, %v5795
    %v5807 = vmul.f32 %v5638, %v5795
    %v5808 = vmul.f32 %v5639, %v5795
    %v5809 = vmul.f32 %v5640, %v5795
    %v5810 = vmul.f32 %v5641, %v5795
    %v5811 = vmul.f32 %v5642, %v5795
    %v5812 = vmul.f32 %v5643, %v5795
    %v5813 = vmul.f32 %v5644, %v5795
    %v5814 = vmul.f32 %v5645, %v5795
    %v5815 = vmul.f32 %v5646, %v5795
    %v5816 = vmul.f32 %v5647, %v5795
    %v5817 = vmul.f32 %v5648, %v5795
    %v5818 = vmul.f32 %v5649, %v5795
    %v5819 = vmul.f32 %v5650, %v5795
    %v5820 = vmul.f32 %v5651, %v5795
    %v5821 = vmul.f32 %v5652, %v5795
    %v5822 = vmul.f32 %v5653, %v5795
    %v5823 = vmul.f32 %v5654, %v5795
    %v5824 = vmul.f32 %v5655, %v5795
    %v5825 = vmul.f32 %v5656, %v5795
    %v5826 = vmul.f32 %v5657, %v5795
    %v5827 = vmul.f32 %v5658, %v5795
    %5828 = vadd.xlane.f32.xlu0 %v5796
    %v5829 = vpop.xlane.xlu0 %5828
    %5830 = vadd.xlane.f32.xlu0 %v5797
    %v5831 = vpop.xlane.xlu0 %5830
    %5832 = vadd.xlane.f32.xlu0 %v5798
    %v5833 = vpop.xlane.xlu0 %5832
    %5834 = vadd.xlane.f32.xlu0 %v5799
    %v5835 = vpop.xlane.xlu0 %5834
    %5836 = vadd.xlane.f32.xlu0 %v5800
    %v5837 = vpop.xlane.xlu0 %5836
    %5838 = vadd.xlane.f32.xlu0 %v5801
    %v5839 = vpop.xlane.xlu0 %5838
    %5840 = vadd.xlane.f32.xlu0 %v5802
    %v5841 = vpop.xlane.xlu0 %5840
    %5842 = vadd.xlane.f32.xlu0 %v5803
    %v5843 = vpop.xlane.xlu0 %5842
    %5844 = vadd.xlane.f32.xlu0 %v5804
    %v5845 = vpop.xlane.xlu0 %5844
    %5846 = vadd.xlane.f32.xlu0 %v5805
    %v5847 = vpop.xlane.xlu0 %5846
    %5848 = vadd.xlane.f32.xlu0 %v5806
    %v5849 = vpop.xlane.xlu0 %5848
    %5850 = vadd.xlane.f32.xlu0 %v5807
    %v5851 = vpop.xlane.xlu0 %5850
    %5852 = vadd.xlane.f32.xlu0 %v5808
    %v5853 = vpop.xlane.xlu0 %5852
    %5854 = vadd.xlane.f32.xlu0 %v5809
    %v5855 = vpop.xlane.xlu0 %5854
    %5856 = vadd.xlane.f32.xlu0 %v5810
    %v5857 = vpop.xlane.xlu0 %5856
    %5858 = vadd.xlane.f32.xlu0 %v5811
    %v5859 = vpop.xlane.xlu0 %5858
    %5860 = vadd.xlane.f32.xlu0 %v5812
    %v5861 = vpop.xlane.xlu0 %5860
    %5862 = vadd.xlane.f32.xlu0 %v5813
    %v5863 = vpop.xlane.xlu0 %5862
    %5864 = vadd.xlane.f32.xlu0 %v5814
    %v5865 = vpop.xlane.xlu0 %5864
    %5866 = vadd.xlane.f32.xlu0 %v5815
    %v5867 = vpop.xlane.xlu0 %5866
    %5868 = vadd.xlane.f32.xlu0 %v5816
    %v5869 = vpop.xlane.xlu0 %5868
    %5870 = vadd.xlane.f32.xlu0 %v5817
    %v5871 = vpop.xlane.xlu0 %5870
    %5872 = vadd.xlane.f32.xlu0 %v5818
    %v5873 = vpop.xlane.xlu0 %5872
    %5874 = vadd.xlane.f32.xlu0 %v5819
    %v5875 = vpop.xlane.xlu0 %5874
    %5876 = vadd.xlane.f32.xlu0 %v5820
    %v5877 = vpop.xlane.xlu0 %5876
    %5878 = vadd.xlane.f32.xlu0 %v5821
    %v5879 = vpop.xlane.xlu0 %5878
    %5880 = vadd.xlane.f32.xlu0 %v5822
    %v5881 = vpop.xlane.xlu0 %5880
    %5882 = vadd.xlane.f32.xlu0 %v5823
    %v5883 = vpop.xlane.xlu0 %5882
    %5884 = vadd.xlane.f32.xlu0 %v5824
    %v5885 = vpop.xlane.xlu0 %5884
    %5886 = vadd.xlane.f32.xlu0 %v5825
    %v5887 = vpop.xlane.xlu0 %5886
    %5888 = vadd.xlane.f32.xlu0 %v5826
    %v5889 = vpop.xlane.xlu0 %5888
    %5890 = vadd.xlane.f32.xlu0 %v5827
    %v5891 = vpop.xlane.xlu0 %5890
    %v5892 = vadd.f32 %v5829, %v4503
    %v5893 = vadd.f32 %v5831, %v4503
    %v5894 = vadd.f32 %v5833, %v4503
    %v5895 = vadd.f32 %v5835, %v4503
    %v5896 = vadd.f32 %v5837, %v4503
    %v5897 = vadd.f32 %v5839, %v4503
    %v5898 = vadd.f32 %v5841, %v4503
    %v5899 = vadd.f32 %v5843, %v4503
    %v5900 = vadd.f32 %v5845, %v4503
    %v5901 = vadd.f32 %v5847, %v4503
    %v5902 = vadd.f32 %v5849, %v4503
    %v5903 = vadd.f32 %v5851, %v4503
    %v5904 = vadd.f32 %v5853, %v4503
    %v5905 = vadd.f32 %v5855, %v4503
    %v5906 = vadd.f32 %v5857, %v4503
    %v5907 = vadd.f32 %v5859, %v4503
    %v5908 = vadd.f32 %v5861, %v4503
    %v5909 = vadd.f32 %v5863, %v4503
    %v5910 = vadd.f32 %v5865, %v4503
    %v5911 = vadd.f32 %v5867, %v4503
    %v5912 = vadd.f32 %v5869, %v4503
    %v5913 = vadd.f32 %v5871, %v4503
    %v5914 = vadd.f32 %v5873, %v4503
    %v5915 = vadd.f32 %v5875, %v4503
    %v5916 = vadd.f32 %v5877, %v4503
    %v5917 = vadd.f32 %v5879, %v4503
    %v5918 = vadd.f32 %v5881, %v4503
    %v5919 = vadd.f32 %v5883, %v4503
    %v5920 = vadd.f32 %v5885, %v4503
    %v5921 = vadd.f32 %v5887, %v4503
    %v5922 = vadd.f32 %v5889, %v4503
    %v5923 = vadd.f32 %v5891, %v4503
    %v5924 = vlaneseq
    %v5925 = vshrl.u32 %v5924, 7
    %v5926 = vsub.s32 2, %v5925
    %v5927 = vrot.slane %v5659, %v5926
    %v5928 = vmul.f32 %v5627, %v5927
    %v5929 = vmul.f32 %v5628, %v5927
    %v5930 = vmul.f32 %v5629, %v5927
    %v5931 = vmul.f32 %v5630, %v5927
    %v5932 = vmul.f32 %v5631, %v5927
    %v5933 = vmul.f32 %v5632, %v5927
    %v5934 = vmul.f32 %v5633, %v5927
    %v5935 = vmul.f32 %v5634, %v5927
    %v5936 = vmul.f32 %v5635, %v5927
    %v5937 = vmul.f32 %v5636, %v5927
    %v5938 = vmul.f32 %v5637, %v5927
    %v5939 = vmul.f32 %v5638, %v5927
    %v5940 = vmul.f32 %v5639, %v5927
    %v5941 = vmul.f32 %v5640, %v5927
    %v5942 = vmul.f32 %v5641, %v5927
    %v5943 = vmul.f32 %v5642, %v5927
    %v5944 = vmul.f32 %v5643, %v5927
    %v5945 = vmul.f32 %v5644, %v5927
    %v5946 = vmul.f32 %v5645, %v5927
    %v5947 = vmul.f32 %v5646, %v5927
    %v5948 = vmul.f32 %v5647, %v5927
    %v5949 = vmul.f32 %v5648, %v5927
    %v5950 = vmul.f32 %v5649, %v5927
    %v5951 = vmul.f32 %v5650, %v5927
    %v5952 = vmul.f32 %v5651, %v5927
    %v5953 = vmul.f32 %v5652, %v5927
    %v5954 = vmul.f32 %v5653, %v5927
    %v5955 = vmul.f32 %v5654, %v5927
    %v5956 = vmul.f32 %v5655, %v5927
    %v5957 = vmul.f32 %v5656, %v5927
    %v5958 = vmul.f32 %v5657, %v5927
    %v5959 = vmul.f32 %v5658, %v5927
    %5960 = vadd.xlane.f32.xlu0 %v5928
    %v5961 = vpop.xlane.xlu0 %5960
    %5962 = vadd.xlane.f32.xlu0 %v5929
    %v5963 = vpop.xlane.xlu0 %5962
    %5964 = vadd.xlane.f32.xlu0 %v5930
    %v5965 = vpop.xlane.xlu0 %5964
    %5966 = vadd.xlane.f32.xlu0 %v5931
    %v5967 = vpop.xlane.xlu0 %5966
    %5968 = vadd.xlane.f32.xlu0 %v5932
    %v5969 = vpop.xlane.xlu0 %5968
    %5970 = vadd.xlane.f32.xlu0 %v5933
    %v5971 = vpop.xlane.xlu0 %5970
    %5972 = vadd.xlane.f32.xlu0 %v5934
    %v5973 = vpop.xlane.xlu0 %5972
    %5974 = vadd.xlane.f32.xlu0 %v5935
    %v5975 = vpop.xlane.xlu0 %5974
    %5976 = vadd.xlane.f32.xlu0 %v5936
    %v5977 = vpop.xlane.xlu0 %5976
    %5978 = vadd.xlane.f32.xlu0 %v5937
    %v5979 = vpop.xlane.xlu0 %5978
    %5980 = vadd.xlane.f32.xlu0 %v5938
    %v5981 = vpop.xlane.xlu0 %5980
    %5982 = vadd.xlane.f32.xlu0 %v5939
    %v5983 = vpop.xlane.xlu0 %5982
    %5984 = vadd.xlane.f32.xlu0 %v5940
    %v5985 = vpop.xlane.xlu0 %5984
    %5986 = vadd.xlane.f32.xlu0 %v5941
    %v5987 = vpop.xlane.xlu0 %5986
    %5988 = vadd.xlane.f32.xlu0 %v5942
    %v5989 = vpop.xlane.xlu0 %5988
    %5990 = vadd.xlane.f32.xlu0 %v5943
    %v5991 = vpop.xlane.xlu0 %5990
    %5992 = vadd.xlane.f32.xlu0 %v5944
    %v5993 = vpop.xlane.xlu0 %5992
    %5994 = vadd.xlane.f32.xlu0 %v5945
    %v5995 = vpop.xlane.xlu0 %5994
    %5996 = vadd.xlane.f32.xlu0 %v5946
    %v5997 = vpop.xlane.xlu0 %5996
    %5998 = vadd.xlane.f32.xlu0 %v5947
    %v5999 = vpop.xlane.xlu0 %5998
    %6000 = vadd.xlane.f32.xlu0 %v5948
    %v6001 = vpop.xlane.xlu0 %6000
    %6002 = vadd.xlane.f32.xlu0 %v5949
    %v6003 = vpop.xlane.xlu0 %6002
    %6004 = vadd.xlane.f32.xlu0 %v5950
    %v6005 = vpop.xlane.xlu0 %6004
    %6006 = vadd.xlane.f32.xlu0 %v5951
    %v6007 = vpop.xlane.xlu0 %6006
    %6008 = vadd.xlane.f32.xlu0 %v5952
    %v6009 = vpop.xlane.xlu0 %6008
    %6010 = vadd.xlane.f32.xlu0 %v5953
    %v6011 = vpop.xlane.xlu0 %6010
    %6012 = vadd.xlane.f32.xlu0 %v5954
    %v6013 = vpop.xlane.xlu0 %6012
    %6014 = vadd.xlane.f32.xlu0 %v5955
    %v6015 = vpop.xlane.xlu0 %6014
    %6016 = vadd.xlane.f32.xlu0 %v5956
    %v6017 = vpop.xlane.xlu0 %6016
    %6018 = vadd.xlane.f32.xlu0 %v5957
    %v6019 = vpop.xlane.xlu0 %6018
    %6020 = vadd.xlane.f32.xlu0 %v5958
    %v6021 = vpop.xlane.xlu0 %6020
    %6022 = vadd.xlane.f32.xlu0 %v5959
    %v6023 = vpop.xlane.xlu0 %6022
    %v6024 = vadd.f32 %v5961, %v4503
    %v6025 = vadd.f32 %v5963, %v4503
    %v6026 = vadd.f32 %v5965, %v4503
    %v6027 = vadd.f32 %v5967, %v4503
    %v6028 = vadd.f32 %v5969, %v4503
    %v6029 = vadd.f32 %v5971, %v4503
    %v6030 = vadd.f32 %v5973, %v4503
    %v6031 = vadd.f32 %v5975, %v4503
    %v6032 = vadd.f32 %v5977, %v4503
    %v6033 = vadd.f32 %v5979, %v4503
    %v6034 = vadd.f32 %v5981, %v4503
    %v6035 = vadd.f32 %v5983, %v4503
    %v6036 = vadd.f32 %v5985, %v4503
    %v6037 = vadd.f32 %v5987, %v4503
    %v6038 = vadd.f32 %v5989, %v4503
    %v6039 = vadd.f32 %v5991, %v4503
    %v6040 = vadd.f32 %v5993, %v4503
    %v6041 = vadd.f32 %v5995, %v4503
    %v6042 = vadd.f32 %v5997, %v4503
    %v6043 = vadd.f32 %v5999, %v4503
    %v6044 = vadd.f32 %v6001, %v4503
    %v6045 = vadd.f32 %v6003, %v4503
    %v6046 = vadd.f32 %v6005, %v4503
    %v6047 = vadd.f32 %v6007, %v4503
    %v6048 = vadd.f32 %v6009, %v4503
    %v6049 = vadd.f32 %v6011, %v4503
    %v6050 = vadd.f32 %v6013, %v4503
    %v6051 = vadd.f32 %v6015, %v4503
    %v6052 = vadd.f32 %v6017, %v4503
    %v6053 = vadd.f32 %v6019, %v4503
    %v6054 = vadd.f32 %v6021, %v4503
    %v6055 = vadd.f32 %v6023, %v4503
    %v6056 = vlaneseq
    %v6057 = vand.u32 %v6056, 127
    %vm6058 = vcmp.eq.s32.totalorder %v6057, 1
    %vm6059 = vcmp.eq.s32.totalorder %v6057, 2
    %6061 = vset.pattern.permute.xlu0 2
    %6062 = vperm.xlu0 %6061, %v5892
    %v6063 = vpop.permute.xlu0 %6062
    %6066 = vset.pattern.permute.xlu0 2
    %6067 = vperm.xlu0 %6066, %v5893
    %v6068 = vpop.permute.xlu0 %6067
    %6071 = vset.pattern.permute.xlu0 2
    %6072 = vperm.xlu0 %6071, %v5894
    %v6073 = vpop.permute.xlu0 %6072
    %6076 = vset.pattern.permute.xlu0 2
    %6077 = vperm.xlu0 %6076, %v5895
    %v6078 = vpop.permute.xlu0 %6077
    %6081 = vset.pattern.permute.xlu0 2
    %6082 = vperm.xlu0 %6081, %v5896
    %v6083 = vpop.permute.xlu0 %6082
    %6086 = vset.pattern.permute.xlu0 2
    %6087 = vperm.xlu0 %6086, %v5897
    %v6088 = vpop.permute.xlu0 %6087
    %6091 = vset.pattern.permute.xlu0 2
    %6092 = vperm.xlu0 %6091, %v5898
    %v6093 = vpop.permute.xlu0 %6092
    %6096 = vset.pattern.permute.xlu0 2
    %6097 = vperm.xlu0 %6096, %v5899
    %v6098 = vpop.permute.xlu0 %6097
    %6101 = vset.pattern.permute.xlu0 2
    %6102 = vperm.xlu0 %6101, %v5900
    %v6103 = vpop.permute.xlu0 %6102
    %6106 = vset.pattern.permute.xlu0 2
    %6107 = vperm.xlu0 %6106, %v5901
    %v6108 = vpop.permute.xlu0 %6107
    %6111 = vset.pattern.permute.xlu0 2
    %6112 = vperm.xlu0 %6111, %v5902
    %v6113 = vpop.permute.xlu0 %6112
    %6116 = vset.pattern.permute.xlu0 2
    %6117 = vperm.xlu0 %6116, %v5903
    %v6118 = vpop.permute.xlu0 %6117
    %6121 = vset.pattern.permute.xlu0 2
    %6122 = vperm.xlu0 %6121, %v5904
    %v6123 = vpop.permute.xlu0 %6122
    %6126 = vset.pattern.permute.xlu0 2
    %6127 = vperm.xlu0 %6126, %v5905
    %v6128 = vpop.permute.xlu0 %6127
    %6131 = vset.pattern.permute.xlu0 2
    %6132 = vperm.xlu0 %6131, %v5906
    %v6133 = vpop.permute.xlu0 %6132
    %6136 = vset.pattern.permute.xlu0 2
    %6137 = vperm.xlu0 %6136, %v5907
    %v6138 = vpop.permute.xlu0 %6137
    %6141 = vset.pattern.permute.xlu0 2
    %6142 = vperm.xlu0 %6141, %v5908
    %v6143 = vpop.permute.xlu0 %6142
    %6146 = vset.pattern.permute.xlu0 2
    %6147 = vperm.xlu0 %6146, %v5909
    %v6148 = vpop.permute.xlu0 %6147
    %6151 = vset.pattern.permute.xlu0 2
    %6152 = vperm.xlu0 %6151, %v5910
    %v6153 = vpop.permute.xlu0 %6152
    %6156 = vset.pattern.permute.xlu0 2
    %6157 = vperm.xlu0 %6156, %v5911
    %v6158 = vpop.permute.xlu0 %6157
    %6161 = vset.pattern.permute.xlu0 2
    %6162 = vperm.xlu0 %6161, %v5912
    %v6163 = vpop.permute.xlu0 %6162
    %6166 = vset.pattern.permute.xlu0 2
    %6167 = vperm.xlu0 %6166, %v5913
    %v6168 = vpop.permute.xlu0 %6167
    %6171 = vset.pattern.permute.xlu0 2
    %6172 = vperm.xlu0 %6171, %v5914
    %v6173 = vpop.permute.xlu0 %6172
    %6176 = vset.pattern.permute.xlu0 2
    %6177 = vperm.xlu0 %6176, %v5915
    %v6178 = vpop.permute.xlu0 %6177
    %6181 = vset.pattern.permute.xlu0 2
    %6182 = vperm.xlu0 %6181, %v5916
    %v6183 = vpop.permute.xlu0 %6182
    %6186 = vset.pattern.permute.xlu0 2
    %6187 = vperm.xlu0 %6186, %v5917
    %v6188 = vpop.permute.xlu0 %6187
    %6191 = vset.pattern.permute.xlu0 2
    %6192 = vperm.xlu0 %6191, %v5918
    %v6193 = vpop.permute.xlu0 %6192
    %6196 = vset.pattern.permute.xlu0 2
    %6197 = vperm.xlu0 %6196, %v5919
    %v6198 = vpop.permute.xlu0 %6197
    %6201 = vset.pattern.permute.xlu0 2
    %6202 = vperm.xlu0 %6201, %v5920
    %v6203 = vpop.permute.xlu0 %6202
    %6206 = vset.pattern.permute.xlu0 2
    %6207 = vperm.xlu0 %6206, %v5921
    %v6208 = vpop.permute.xlu0 %6207
    %6211 = vset.pattern.permute.xlu0 2
    %6212 = vperm.xlu0 %6211, %v5922
    %v6213 = vpop.permute.xlu0 %6212
    %6216 = vset.pattern.permute.xlu0 2
    %6217 = vperm.xlu0 %6216, %v5923
    %v6218 = vpop.permute.xlu0 %6217
    %6221 = vset.pattern.permute.xlu0 3
    %6222 = vperm.xlu0 %6221, %v6024
    %v6223 = vpop.permute.xlu0 %6222
    %6226 = vset.pattern.permute.xlu0 3
    %6227 = vperm.xlu0 %6226, %v6025
    %v6228 = vpop.permute.xlu0 %6227
    %6231 = vset.pattern.permute.xlu0 3
    %6232 = vperm.xlu0 %6231, %v6026
    %v6233 = vpop.permute.xlu0 %6232
    %6236 = vset.pattern.permute.xlu0 3
    %6237 = vperm.xlu0 %6236, %v6027
    %v6238 = vpop.permute.xlu0 %6237
    %6241 = vset.pattern.permute.xlu0 3
    %6242 = vperm.xlu0 %6241, %v6028
    %v6243 = vpop.permute.xlu0 %6242
    %6246 = vset.pattern.permute.xlu0 3
    %6247 = vperm.xlu0 %6246, %v6029
    %v6248 = vpop.permute.xlu0 %6247
    %6251 = vset.pattern.permute.xlu0 3
    %6252 = vperm.xlu0 %6251, %v6030
    %v6253 = vpop.permute.xlu0 %6252
    %6256 = vset.pattern.permute.xlu0 3
    %6257 = vperm.xlu0 %6256, %v6031
    %v6258 = vpop.permute.xlu0 %6257
    %6261 = vset.pattern.permute.xlu0 3
    %6262 = vperm.xlu0 %6261, %v6032
    %v6263 = vpop.permute.xlu0 %6262
    %6266 = vset.pattern.permute.xlu0 3
    %6267 = vperm.xlu0 %6266, %v6033
    %v6268 = vpop.permute.xlu0 %6267
    %6271 = vset.pattern.permute.xlu0 3
    %6272 = vperm.xlu0 %6271, %v6034
    %v6273 = vpop.permute.xlu0 %6272
    %6276 = vset.pattern.permute.xlu0 3
    %6277 = vperm.xlu0 %6276, %v6035
    %v6278 = vpop.permute.xlu0 %6277
    %6281 = vset.pattern.permute.xlu0 3
    %6282 = vperm.xlu0 %6281, %v6036
    %v6283 = vpop.permute.xlu0 %6282
    %6286 = vset.pattern.permute.xlu0 3
    %6287 = vperm.xlu0 %6286, %v6037
    %v6288 = vpop.permute.xlu0 %6287
    %6291 = vset.pattern.permute.xlu0 3
    %6292 = vperm.xlu0 %6291, %v6038
    %v6293 = vpop.permute.xlu0 %6292
    %6296 = vset.pattern.permute.xlu0 3
    %6297 = vperm.xlu0 %6296, %v6039
    %v6298 = vpop.permute.xlu0 %6297
    %6301 = vset.pattern.permute.xlu0 3
    %6302 = vperm.xlu0 %6301, %v6040
    %v6303 = vpop.permute.xlu0 %6302
    %6306 = vset.pattern.permute.xlu0 3
    %6307 = vperm.xlu0 %6306, %v6041
    %v6308 = vpop.permute.xlu0 %6307
    %6311 = vset.pattern.permute.xlu0 3
    %6312 = vperm.xlu0 %6311, %v6042
    %v6313 = vpop.permute.xlu0 %6312
    %6316 = vset.pattern.permute.xlu0 3
    %6317 = vperm.xlu0 %6316, %v6043
    %v6318 = vpop.permute.xlu0 %6317
    %6321 = vset.pattern.permute.xlu0 3
    %6322 = vperm.xlu0 %6321, %v6044
    %v6323 = vpop.permute.xlu0 %6322
    %6326 = vset.pattern.permute.xlu0 3
    %6327 = vperm.xlu0 %6326, %v6045
    %v6328 = vpop.permute.xlu0 %6327
    %6331 = vset.pattern.permute.xlu0 3
    %6332 = vperm.xlu0 %6331, %v6046
    %v6333 = vpop.permute.xlu0 %6332
    %6336 = vset.pattern.permute.xlu0 3
    %6337 = vperm.xlu0 %6336, %v6047
    %v6338 = vpop.permute.xlu0 %6337
    %6341 = vset.pattern.permute.xlu0 3
    %6342 = vperm.xlu0 %6341, %v6048
    %v6343 = vpop.permute.xlu0 %6342
    %6346 = vset.pattern.permute.xlu0 3
    %6347 = vperm.xlu0 %6346, %v6049
    %v6348 = vpop.permute.xlu0 %6347
    %6351 = vset.pattern.permute.xlu0 3
    %6352 = vperm.xlu0 %6351, %v6050
    %v6353 = vpop.permute.xlu0 %6352
    %6356 = vset.pattern.permute.xlu0 3
    %6357 = vperm.xlu0 %6356, %v6051
    %v6358 = vpop.permute.xlu0 %6357
    %6361 = vset.pattern.permute.xlu0 3
    %6362 = vperm.xlu0 %6361, %v6052
    %v6363 = vpop.permute.xlu0 %6362
    %6366 = vset.pattern.permute.xlu0 3
    %6367 = vperm.xlu0 %6366, %v6053
    %v6368 = vpop.permute.xlu0 %6367
    %6371 = vset.pattern.permute.xlu0 3
    %6372 = vperm.xlu0 %6371, %v6054
    %v6373 = vpop.permute.xlu0 %6372
    %6376 = vset.pattern.permute.xlu0 3
    %6377 = vperm.xlu0 %6376, %v6055
    %v6378 = vpop.permute.xlu0 %6377
    %v6380 = vsel %vm6059, %v6063, %v6223
    %v6381 = vsel %vm6059, %v6068, %v6228
    %v6382 = vsel %vm6059, %v6073, %v6233
    %v6383 = vsel %vm6059, %v6078, %v6238
    %v6384 = vsel %vm6059, %v6083, %v6243
    %v6385 = vsel %vm6059, %v6088, %v6248
    %v6386 = vsel %vm6059, %v6093, %v6253
    %v6387 = vsel %vm6059, %v6098, %v6258
    %v6388 = vsel %vm6059, %v6103, %v6263
    %v6389 = vsel %vm6059, %v6108, %v6268
    %v6390 = vsel %vm6059, %v6113, %v6273
    %v6391 = vsel %vm6059, %v6118, %v6278
    %v6392 = vsel %vm6059, %v6123, %v6283
    %v6393 = vsel %vm6059, %v6128, %v6288
    %v6394 = vsel %vm6059, %v6133, %v6293
    %v6395 = vsel %vm6059, %v6138, %v6298
    %v6396 = vsel %vm6059, %v6143, %v6303
    %v6397 = vsel %vm6059, %v6148, %v6308
    %v6398 = vsel %vm6059, %v6153, %v6313
    %v6399 = vsel %vm6059, %v6158, %v6318
    %v6400 = vsel %vm6059, %v6163, %v6323
    %v6401 = vsel %vm6059, %v6168, %v6328
    %v6402 = vsel %vm6059, %v6173, %v6333
    %v6403 = vsel %vm6059, %v6178, %v6338
    %v6404 = vsel %vm6059, %v6183, %v6343
    %v6405 = vsel %vm6059, %v6188, %v6348
    %v6406 = vsel %vm6059, %v6193, %v6353
    %v6407 = vsel %vm6059, %v6198, %v6358
    %v6408 = vsel %vm6059, %v6203, %v6363
    %v6409 = vsel %vm6059, %v6208, %v6368
    %v6410 = vsel %vm6059, %v6213, %v6373
    %v6411 = vsel %vm6059, %v6218, %v6378
    %6413 = vset.pattern.permute.xlu0 1
    %6414 = vperm.xlu0 %6413, %v5760
    %v6415 = vpop.permute.xlu0 %6414
    %6418 = vset.pattern.permute.xlu0 1
    %6419 = vperm.xlu0 %6418, %v5761
    %v6420 = vpop.permute.xlu0 %6419
    %6423 = vset.pattern.permute.xlu0 1
    %6424 = vperm.xlu0 %6423, %v5762
    %v6425 = vpop.permute.xlu0 %6424
    %6428 = vset.pattern.permute.xlu0 1
    %6429 = vperm.xlu0 %6428, %v5763
    %v6430 = vpop.permute.xlu0 %6429
    %6433 = vset.pattern.permute.xlu0 1
    %6434 = vperm.xlu0 %6433, %v5764
    %v6435 = vpop.permute.xlu0 %6434
    %6438 = vset.pattern.permute.xlu0 1
    %6439 = vperm.xlu0 %6438, %v5765
    %v6440 = vpop.permute.xlu0 %6439
    %6443 = vset.pattern.permute.xlu0 1
    %6444 = vperm.xlu0 %6443, %v5766
    %v6445 = vpop.permute.xlu0 %6444
    %6448 = vset.pattern.permute.xlu0 1
    %6449 = vperm.xlu0 %6448, %v5767
    %v6450 = vpop.permute.xlu0 %6449
    %6453 = vset.pattern.permute.xlu0 1
    %6454 = vperm.xlu0 %6453, %v5768
    %v6455 = vpop.permute.xlu0 %6454
    %6458 = vset.pattern.permute.xlu0 1
    %6459 = vperm.xlu0 %6458, %v5769
    %v6460 = vpop.permute.xlu0 %6459
    %6463 = vset.pattern.permute.xlu0 1
    %6464 = vperm.xlu0 %6463, %v5770
    %v6465 = vpop.permute.xlu0 %6464
    %6468 = vset.pattern.permute.xlu0 1
    %6469 = vperm.xlu0 %6468, %v5771
    %v6470 = vpop.permute.xlu0 %6469
    %6473 = vset.pattern.permute.xlu0 1
    %6474 = vperm.xlu0 %6473, %v5772
    %v6475 = vpop.permute.xlu0 %6474
    %6478 = vset.pattern.permute.xlu0 1
    %6479 = vperm.xlu0 %6478, %v5773
    %v6480 = vpop.permute.xlu0 %6479
    %6483 = vset.pattern.permute.xlu0 1
    %6484 = vperm.xlu0 %6483, %v5774
    %v6485 = vpop.permute.xlu0 %6484
    %6488 = vset.pattern.permute.xlu0 1
    %6489 = vperm.xlu0 %6488, %v5775
    %v6490 = vpop.permute.xlu0 %6489
    %6493 = vset.pattern.permute.xlu0 1
    %6494 = vperm.xlu0 %6493, %v5776
    %v6495 = vpop.permute.xlu0 %6494
    %6498 = vset.pattern.permute.xlu0 1
    %6499 = vperm.xlu0 %6498, %v5777
    %v6500 = vpop.permute.xlu0 %6499
    %6503 = vset.pattern.permute.xlu0 1
    %6504 = vperm.xlu0 %6503, %v5778
    %v6505 = vpop.permute.xlu0 %6504
    %6508 = vset.pattern.permute.xlu0 1
    %6509 = vperm.xlu0 %6508, %v5779
    %v6510 = vpop.permute.xlu0 %6509
    %6513 = vset.pattern.permute.xlu0 1
    %6514 = vperm.xlu0 %6513, %v5780
    %v6515 = vpop.permute.xlu0 %6514
    %6518 = vset.pattern.permute.xlu0 1
    %6519 = vperm.xlu0 %6518, %v5781
    %v6520 = vpop.permute.xlu0 %6519
    %6523 = vset.pattern.permute.xlu0 1
    %6524 = vperm.xlu0 %6523, %v5782
    %v6525 = vpop.permute.xlu0 %6524
    %6528 = vset.pattern.permute.xlu0 1
    %6529 = vperm.xlu0 %6528, %v5783
    %v6530 = vpop.permute.xlu0 %6529
    %6533 = vset.pattern.permute.xlu0 1
    %6534 = vperm.xlu0 %6533, %v5784
    %v6535 = vpop.permute.xlu0 %6534
    %6538 = vset.pattern.permute.xlu0 1
    %6539 = vperm.xlu0 %6538, %v5785
    %v6540 = vpop.permute.xlu0 %6539
    %6543 = vset.pattern.permute.xlu0 1
    %6544 = vperm.xlu0 %6543, %v5786
    %v6545 = vpop.permute.xlu0 %6544
    %6548 = vset.pattern.permute.xlu0 1
    %6549 = vperm.xlu0 %6548, %v5787
    %v6550 = vpop.permute.xlu0 %6549
    %6553 = vset.pattern.permute.xlu0 1
    %6554 = vperm.xlu0 %6553, %v5788
    %v6555 = vpop.permute.xlu0 %6554
    %6558 = vset.pattern.permute.xlu0 1
    %6559 = vperm.xlu0 %6558, %v5789
    %v6560 = vpop.permute.xlu0 %6559
    %6563 = vset.pattern.permute.xlu0 1
    %6564 = vperm.xlu0 %6563, %v5790
    %v6565 = vpop.permute.xlu0 %6564
    %6568 = vset.pattern.permute.xlu0 1
    %6569 = vperm.xlu0 %6568, %v5791
    %v6570 = vpop.permute.xlu0 %6569
    %v6572 = vsel %vm6058, %v6415, %v6380
    %v6573 = vsel %vm6058, %v6420, %v6381
    %v6574 = vsel %vm6058, %v6425, %v6382
    %v6575 = vsel %vm6058, %v6430, %v6383
    %v6576 = vsel %vm6058, %v6435, %v6384
    %v6577 = vsel %vm6058, %v6440, %v6385
    %v6578 = vsel %vm6058, %v6445, %v6386
    %v6579 = vsel %vm6058, %v6450, %v6387
    %v6580 = vsel %vm6058, %v6455, %v6388
    %v6581 = vsel %vm6058, %v6460, %v6389
    %v6582 = vsel %vm6058, %v6465, %v6390
    %v6583 = vsel %vm6058, %v6470, %v6391
    %v6584 = vsel %vm6058, %v6475, %v6392
    %v6585 = vsel %vm6058, %v6480, %v6393
    %v6586 = vsel %vm6058, %v6485, %v6394
    %v6587 = vsel %vm6058, %v6490, %v6395
    %v6588 = vsel %vm6058, %v6495, %v6396
    %v6589 = vsel %vm6058, %v6500, %v6397
    %v6590 = vsel %vm6058, %v6505, %v6398
    %v6591 = vsel %vm6058, %v6510, %v6399
    %v6592 = vsel %vm6058, %v6515, %v6400
    %v6593 = vsel %vm6058, %v6520, %v6401
    %v6594 = vsel %vm6058, %v6525, %v6402
    %v6595 = vsel %vm6058, %v6530, %v6403
    %v6596 = vsel %vm6058, %v6535, %v6404
    %v6597 = vsel %vm6058, %v6540, %v6405
    %v6598 = vsel %vm6058, %v6545, %v6406
    %v6599 = vsel %vm6058, %v6550, %v6407
    %v6600 = vsel %vm6058, %v6555, %v6408
    %v6601 = vsel %vm6058, %v6560, %v6409
    %v6602 = vsel %vm6058, %v6565, %v6410
    %v6603 = vsel %vm6058, %v6570, %v6411
    %v6604 = vxor.u32 %v6572, 2147483648
    %v6605 = vxor.u32 %v6573, 2147483648
    %v6606 = vxor.u32 %v6574, 2147483648
    %v6607 = vxor.u32 %v6575, 2147483648
    %v6608 = vxor.u32 %v6576, 2147483648
    %v6609 = vxor.u32 %v6577, 2147483648
    %v6610 = vxor.u32 %v6578, 2147483648
    %v6611 = vxor.u32 %v6579, 2147483648
    %v6612 = vxor.u32 %v6580, 2147483648
    %v6613 = vxor.u32 %v6581, 2147483648
    %v6614 = vxor.u32 %v6582, 2147483648
    %v6615 = vxor.u32 %v6583, 2147483648
    %v6616 = vxor.u32 %v6584, 2147483648
    %v6617 = vxor.u32 %v6585, 2147483648
    %v6618 = vxor.u32 %v6586, 2147483648
    %v6619 = vxor.u32 %v6587, 2147483648
    %v6620 = vxor.u32 %v6588, 2147483648
    %v6621 = vxor.u32 %v6589, 2147483648
    %v6622 = vxor.u32 %v6590, 2147483648
    %v6623 = vxor.u32 %v6591, 2147483648
    %v6624 = vxor.u32 %v6592, 2147483648
    %v6625 = vxor.u32 %v6593, 2147483648
    %v6626 = vxor.u32 %v6594, 2147483648
    %v6627 = vxor.u32 %v6595, 2147483648
    %v6628 = vxor.u32 %v6596, 2147483648
    %v6629 = vxor.u32 %v6597, 2147483648
    %v6630 = vxor.u32 %v6598, 2147483648
    %v6631 = vxor.u32 %v6599, 2147483648
    %v6632 = vxor.u32 %v6600, 2147483648
    %v6633 = vxor.u32 %v6601, 2147483648
    %v6634 = vxor.u32 %v6602, 2147483648
    %v6635 = vxor.u32 %v6603, 2147483648
    %v6636 = vmul.f32 %v6604, 1.442695
    %v6637 = vpow.pop %v6636
    %v6638 = vmul.f32 %v6605, 1.442695
    %v6639 = vpow.pop %v6638
    %v6640 = vmul.f32 %v6606, 1.442695
    %v6641 = vpow.pop %v6640
    %v6642 = vmul.f32 %v6607, 1.442695
    %v6643 = vpow.pop %v6642
    %v6644 = vmul.f32 %v6608, 1.442695
    %v6645 = vpow.pop %v6644
    %v6646 = vmul.f32 %v6609, 1.442695
    %v6647 = vpow.pop %v6646
    %v6648 = vmul.f32 %v6610, 1.442695
    %v6649 = vpow.pop %v6648
    %v6650 = vmul.f32 %v6611, 1.442695
    %v6651 = vpow.pop %v6650
    %v6652 = vmul.f32 %v6612, 1.442695
    %v6653 = vpow.pop %v6652
    %v6654 = vmul.f32 %v6613, 1.442695
    %v6655 = vpow.pop %v6654
    %v6656 = vmul.f32 %v6614, 1.442695
    %v6657 = vpow.pop %v6656
    %v6658 = vmul.f32 %v6615, 1.442695
    %v6659 = vpow.pop %v6658
    %v6660 = vmul.f32 %v6616, 1.442695
    %v6661 = vpow.pop %v6660
    %v6662 = vmul.f32 %v6617, 1.442695
    %v6663 = vpow.pop %v6662
    %v6664 = vmul.f32 %v6618, 1.442695
    %v6665 = vpow.pop %v6664
    %v6666 = vmul.f32 %v6619, 1.442695
    %v6667 = vpow.pop %v6666
    %v6668 = vmul.f32 %v6620, 1.442695
    %v6669 = vpow.pop %v6668
    %v6670 = vmul.f32 %v6621, 1.442695
    %v6671 = vpow.pop %v6670
    %v6672 = vmul.f32 %v6622, 1.442695
    %v6673 = vpow.pop %v6672
    %v6674 = vmul.f32 %v6623, 1.442695
    %v6675 = vpow.pop %v6674
    %v6676 = vmul.f32 %v6624, 1.442695
    %v6677 = vpow.pop %v6676
    %v6678 = vmul.f32 %v6625, 1.442695
    %v6679 = vpow.pop %v6678
    %v6680 = vmul.f32 %v6626, 1.442695
    %v6681 = vpow.pop %v6680
    %v6682 = vmul.f32 %v6627, 1.442695
    %v6683 = vpow.pop %v6682
    %v6684 = vmul.f32 %v6628, 1.442695
    %v6685 = vpow.pop %v6684
    %v6686 = vmul.f32 %v6629, 1.442695
    %v6687 = vpow.pop %v6686
    %v6688 = vmul.f32 %v6630, 1.442695
    %v6689 = vpow.pop %v6688
    %v6690 = vmul.f32 %v6631, 1.442695
    %v6691 = vpow.pop %v6690
    %v6692 = vmul.f32 %v6632, 1.442695
    %v6693 = vpow.pop %v6692
    %v6694 = vmul.f32 %v6633, 1.442695
    %v6695 = vpow.pop %v6694
    %v6696 = vmul.f32 %v6634, 1.442695
    %v6697 = vpow.pop %v6696
    %v6698 = vmul.f32 %v6635, 1.442695
    %v6699 = vpow.pop %v6698
    %v6700 = vadd.f32 %v6637, 1.0
    %v6701 = vadd.f32 %v6639, 1.0
    %v6702 = vadd.f32 %v6641, 1.0
    %v6703 = vadd.f32 %v6643, 1.0
    %v6704 = vadd.f32 %v6645, 1.0
    %v6705 = vadd.f32 %v6647, 1.0
    %v6706 = vadd.f32 %v6649, 1.0
    %v6707 = vadd.f32 %v6651, 1.0
    %v6708 = vadd.f32 %v6653, 1.0
    %v6709 = vadd.f32 %v6655, 1.0
    %v6710 = vadd.f32 %v6657, 1.0
    %v6711 = vadd.f32 %v6659, 1.0
    %v6712 = vadd.f32 %v6661, 1.0
    %v6713 = vadd.f32 %v6663, 1.0
    %v6714 = vadd.f32 %v6665, 1.0
    %v6715 = vadd.f32 %v6667, 1.0
    %v6716 = vadd.f32 %v6669, 1.0
    %v6717 = vadd.f32 %v6671, 1.0
    %v6718 = vadd.f32 %v6673, 1.0
    %v6719 = vadd.f32 %v6675, 1.0
    %v6720 = vadd.f32 %v6677, 1.0
    %v6721 = vadd.f32 %v6679, 1.0
    %v6722 = vadd.f32 %v6681, 1.0
    %v6723 = vadd.f32 %v6683, 1.0
    %v6724 = vadd.f32 %v6685, 1.0
    %v6725 = vadd.f32 %v6687, 1.0
    %v6726 = vadd.f32 %v6689, 1.0
    %v6727 = vadd.f32 %v6691, 1.0
    %v6728 = vadd.f32 %v6693, 1.0
    %v6729 = vadd.f32 %v6695, 1.0
    %v6730 = vadd.f32 %v6697, 1.0
    %v6731 = vadd.f32 %v6699, 1.0
    %v6732 = vrcp.pop %v6700
    %v6733 = vmul.f32 1.0, %v6732
    %v6734 = vrcp.pop %v6701
    %v6735 = vmul.f32 1.0, %v6734
    %v6736 = vrcp.pop %v6702
    %v6737 = vmul.f32 1.0, %v6736
    %v6738 = vrcp.pop %v6703
    %v6739 = vmul.f32 1.0, %v6738
    %v6740 = vrcp.pop %v6704
    %v6741 = vmul.f32 1.0, %v6740
    %v6742 = vrcp.pop %v6705
    %v6743 = vmul.f32 1.0, %v6742
    %v6744 = vrcp.pop %v6706
    %v6745 = vmul.f32 1.0, %v6744
    %v6746 = vrcp.pop %v6707
    %v6747 = vmul.f32 1.0, %v6746
    %v6748 = vrcp.pop %v6708
    %v6749 = vmul.f32 1.0, %v6748
    %v6750 = vrcp.pop %v6709
    %v6751 = vmul.f32 1.0, %v6750
    %v6752 = vrcp.pop %v6710
    %v6753 = vmul.f32 1.0, %v6752
    %v6754 = vrcp.pop %v6711
    %v6755 = vmul.f32 1.0, %v6754
    %v6756 = vrcp.pop %v6712
    %v6757 = vmul.f32 1.0, %v6756
    %v6758 = vrcp.pop %v6713
    %v6759 = vmul.f32 1.0, %v6758
    %v6760 = vrcp.pop %v6714
    %v6761 = vmul.f32 1.0, %v6760
    %v6762 = vrcp.pop %v6715
    %v6763 = vmul.f32 1.0, %v6762
    %v6764 = vrcp.pop %v6716
    %v6765 = vmul.f32 1.0, %v6764
    %v6766 = vrcp.pop %v6717
    %v6767 = vmul.f32 1.0, %v6766
    %v6768 = vrcp.pop %v6718
    %v6769 = vmul.f32 1.0, %v6768
    %v6770 = vrcp.pop %v6719
    %v6771 = vmul.f32 1.0, %v6770
    %v6772 = vrcp.pop %v6720
    %v6773 = vmul.f32 1.0, %v6772
    %v6774 = vrcp.pop %v6721
    %v6775 = vmul.f32 1.0, %v6774
    %v6776 = vrcp.pop %v6722
    %v6777 = vmul.f32 1.0, %v6776
    %v6778 = vrcp.pop %v6723
    %v6779 = vmul.f32 1.0, %v6778
    %v6780 = vrcp.pop %v6724
    %v6781 = vmul.f32 1.0, %v6780
    %v6782 = vrcp.pop %v6725
    %v6783 = vmul.f32 1.0, %v6782
    %v6784 = vrcp.pop %v6726
    %v6785 = vmul.f32 1.0, %v6784
    %v6786 = vrcp.pop %v6727
    %v6787 = vmul.f32 1.0, %v6786
    %v6788 = vrcp.pop %v6728
    %v6789 = vmul.f32 1.0, %v6788
    %v6790 = vrcp.pop %v6729
    %v6791 = vmul.f32 1.0, %v6790
    %v6792 = vrcp.pop %v6730
    %v6793 = vmul.f32 1.0, %v6792
    %v6794 = vrcp.pop %v6731
    %v6795 = vmul.f32 1.0, %v6794
    %vm6796 = vcmp.eq.s32.totalorder %v6057, 0
    %6798 = vset.pattern.permute.xlu0 0
    %6799 = vperm.xlu0 %6798, %v4537
    %v6800 = vpop.permute.xlu0 %6799
    %6803 = vset.pattern.permute.xlu0 0
    %6804 = vperm.xlu0 %6803, %v4538
    %v6805 = vpop.permute.xlu0 %6804
    %6808 = vset.pattern.permute.xlu0 0
    %6809 = vperm.xlu0 %6808, %v4539
    %v6810 = vpop.permute.xlu0 %6809
    %6813 = vset.pattern.permute.xlu0 0
    %6814 = vperm.xlu0 %6813, %v4540
    %v6815 = vpop.permute.xlu0 %6814
    %6818 = vset.pattern.permute.xlu0 0
    %6819 = vperm.xlu0 %6818, %v4541
    %v6820 = vpop.permute.xlu0 %6819
    %6823 = vset.pattern.permute.xlu0 0
    %6824 = vperm.xlu0 %6823, %v4542
    %v6825 = vpop.permute.xlu0 %6824
    %6828 = vset.pattern.permute.xlu0 0
    %6829 = vperm.xlu0 %6828, %v4543
    %v6830 = vpop.permute.xlu0 %6829
    %6833 = vset.pattern.permute.xlu0 0
    %6834 = vperm.xlu0 %6833, %v4544
    %v6835 = vpop.permute.xlu0 %6834
    %6838 = vset.pattern.permute.xlu0 0
    %6839 = vperm.xlu0 %6838, %v4545
    %v6840 = vpop.permute.xlu0 %6839
    %6843 = vset.pattern.permute.xlu0 0
    %6844 = vperm.xlu0 %6843, %v4546
    %v6845 = vpop.permute.xlu0 %6844
    %6848 = vset.pattern.permute.xlu0 0
    %6849 = vperm.xlu0 %6848, %v4547
    %v6850 = vpop.permute.xlu0 %6849
    %6853 = vset.pattern.permute.xlu0 0
    %6854 = vperm.xlu0 %6853, %v4548
    %v6855 = vpop.permute.xlu0 %6854
    %6858 = vset.pattern.permute.xlu0 0
    %6859 = vperm.xlu0 %6858, %v4549
    %v6860 = vpop.permute.xlu0 %6859
    %6863 = vset.pattern.permute.xlu0 0
    %6864 = vperm.xlu0 %6863, %v4550
    %v6865 = vpop.permute.xlu0 %6864
    %6868 = vset.pattern.permute.xlu0 0
    %6869 = vperm.xlu0 %6868, %v4551
    %v6870 = vpop.permute.xlu0 %6869
    %6873 = vset.pattern.permute.xlu0 0
    %6874 = vperm.xlu0 %6873, %v4552
    %v6875 = vpop.permute.xlu0 %6874
    %6878 = vset.pattern.permute.xlu0 0
    %6879 = vperm.xlu0 %6878, %v4553
    %v6880 = vpop.permute.xlu0 %6879
    %6883 = vset.pattern.permute.xlu0 0
    %6884 = vperm.xlu0 %6883, %v4554
    %v6885 = vpop.permute.xlu0 %6884
    %6888 = vset.pattern.permute.xlu0 0
    %6889 = vperm.xlu0 %6888, %v4555
    %v6890 = vpop.permute.xlu0 %6889
    %6893 = vset.pattern.permute.xlu0 0
    %6894 = vperm.xlu0 %6893, %v4556
    %v6895 = vpop.permute.xlu0 %6894
    %6898 = vset.pattern.permute.xlu0 0
    %6899 = vperm.xlu0 %6898, %v4557
    %v6900 = vpop.permute.xlu0 %6899
    %6903 = vset.pattern.permute.xlu0 0
    %6904 = vperm.xlu0 %6903, %v4558
    %v6905 = vpop.permute.xlu0 %6904
    %6908 = vset.pattern.permute.xlu0 0
    %6909 = vperm.xlu0 %6908, %v4559
    %v6910 = vpop.permute.xlu0 %6909
    %6913 = vset.pattern.permute.xlu0 0
    %6914 = vperm.xlu0 %6913, %v4560
    %v6915 = vpop.permute.xlu0 %6914
    %6918 = vset.pattern.permute.xlu0 0
    %6919 = vperm.xlu0 %6918, %v4561
    %v6920 = vpop.permute.xlu0 %6919
    %6923 = vset.pattern.permute.xlu0 0
    %6924 = vperm.xlu0 %6923, %v4562
    %v6925 = vpop.permute.xlu0 %6924
    %6928 = vset.pattern.permute.xlu0 0
    %6929 = vperm.xlu0 %6928, %v4563
    %v6930 = vpop.permute.xlu0 %6929
    %6933 = vset.pattern.permute.xlu0 0
    %6934 = vperm.xlu0 %6933, %v4564
    %v6935 = vpop.permute.xlu0 %6934
    %6938 = vset.pattern.permute.xlu0 0
    %6939 = vperm.xlu0 %6938, %v4565
    %v6940 = vpop.permute.xlu0 %6939
    %6943 = vset.pattern.permute.xlu0 0
    %6944 = vperm.xlu0 %6943, %v4566
    %v6945 = vpop.permute.xlu0 %6944
    %6948 = vset.pattern.permute.xlu0 0
    %6949 = vperm.xlu0 %6948, %v4567
    %v6950 = vpop.permute.xlu0 %6949
    %6953 = vset.pattern.permute.xlu0 0
    %6954 = vperm.xlu0 %6953, %v4568
    %v6955 = vpop.permute.xlu0 %6954
    %v6957 = vsel %vm6796, %v6800, %v6733
    %v6958 = vsel %vm6796, %v6805, %v6735
    %v6959 = vsel %vm6796, %v6810, %v6737
    %v6960 = vsel %vm6796, %v6815, %v6739
    %v6961 = vsel %vm6796, %v6820, %v6741
    %v6962 = vsel %vm6796, %v6825, %v6743
    %v6963 = vsel %vm6796, %v6830, %v6745
    %v6964 = vsel %vm6796, %v6835, %v6747
    %v6965 = vsel %vm6796, %v6840, %v6749
    %v6966 = vsel %vm6796, %v6845, %v6751
    %v6967 = vsel %vm6796, %v6850, %v6753
    %v6968 = vsel %vm6796, %v6855, %v6755
    %v6969 = vsel %vm6796, %v6860, %v6757
    %v6970 = vsel %vm6796, %v6865, %v6759
    %v6971 = vsel %vm6796, %v6870, %v6761
    %v6972 = vsel %vm6796, %v6875, %v6763
    %v6973 = vsel %vm6796, %v6880, %v6765
    %v6974 = vsel %vm6796, %v6885, %v6767
    %v6975 = vsel %vm6796, %v6890, %v6769
    %v6976 = vsel %vm6796, %v6895, %v6771
    %v6977 = vsel %vm6796, %v6900, %v6773
    %v6978 = vsel %vm6796, %v6905, %v6775
    %v6979 = vsel %vm6796, %v6910, %v6777
    %v6980 = vsel %vm6796, %v6915, %v6779
    %v6981 = vsel %vm6796, %v6920, %v6781
    %v6982 = vsel %vm6796, %v6925, %v6783
    %v6983 = vsel %vm6796, %v6930, %v6785
    %v6984 = vsel %vm6796, %v6935, %v6787
    %v6985 = vsel %vm6796, %v6940, %v6789
    %v6986 = vsel %vm6796, %v6945, %v6791
    %v6987 = vsel %vm6796, %v6950, %v6793
    %v6988 = vsel %vm6796, %v6955, %v6795
    %vm6989 = vcmask 31744
    %6990 = vst.msk [vmem:[%s14] sm:$0xff] %vm6989, %v6957
    %6991 = vst.msk [vmem:[%s14 + $0x8] sm:$0xff] %vm6989, %v6958
    %6992 = vst.msk [vmem:[%s14 + $0x10] sm:$0xff] %vm6989, %v6959
    %6993 = vst.msk [vmem:[%s14 + $0x18] sm:$0xff] %vm6989, %v6960
    %6994 = vst.msk [vmem:[%s14 + $0x20] sm:$0xff] %vm6989, %v6961
    %6995 = vst.msk [vmem:[%s14 + $0x28] sm:$0xff] %vm6989, %v6962
    %6996 = vst.msk [vmem:[%s14 + $0x30] sm:$0xff] %vm6989, %v6963
    %6997 = vst.msk [vmem:[%s14 + $0x38] sm:$0xff] %vm6989, %v6964
    %6998 = vst.msk [vmem:[%s14 + $0x40] sm:$0xff] %vm6989, %v6965
    %6999 = vst.msk [vmem:[%s14 + $0x48] sm:$0xff] %vm6989, %v6966
    %7000 = vst.msk [vmem:[%s14 + $0x50] sm:$0xff] %vm6989, %v6967
    %7001 = vst.msk [vmem:[%s14 + $0x58] sm:$0xff] %vm6989, %v6968
    %7002 = vst.msk [vmem:[%s14 + $0x60] sm:$0xff] %vm6989, %v6969
    %7003 = vst.msk [vmem:[%s14 + $0x68] sm:$0xff] %vm6989, %v6970
    %7004 = vst.msk [vmem:[%s14 + $0x70] sm:$0xff] %vm6989, %v6971
    %7005 = vst.msk [vmem:[%s14 + $0x78] sm:$0xff] %vm6989, %v6972
    %7006 = vst.msk [vmem:[%s14 + $0x80] sm:$0xff] %vm6989, %v6973
    %7007 = vst.msk [vmem:[%s14 + $0x88] sm:$0xff] %vm6989, %v6974
    %7008 = vst.msk [vmem:[%s14 + $0x90] sm:$0xff] %vm6989, %v6975
    %7009 = vst.msk [vmem:[%s14 + $0x98] sm:$0xff] %vm6989, %v6976
    %7010 = vst.msk [vmem:[%s14 + $0xa0] sm:$0xff] %vm6989, %v6977
    %7011 = vst.msk [vmem:[%s14 + $0xa8] sm:$0xff] %vm6989, %v6978
    %7012 = vst.msk [vmem:[%s14 + $0xb0] sm:$0xff] %vm6989, %v6979
    %7013 = vst.msk [vmem:[%s14 + $0xb8] sm:$0xff] %vm6989, %v6980
    %7014 = vst.msk [vmem:[%s14 + $0xc0] sm:$0xff] %vm6989, %v6981
    %7015 = vst.msk [vmem:[%s14 + $0xc8] sm:$0xff] %vm6989, %v6982
    %7016 = vst.msk [vmem:[%s14 + $0xd0] sm:$0xff] %vm6989, %v6983
    %7017 = vst.msk [vmem:[%s14 + $0xd8] sm:$0xff] %vm6989, %v6984
    %7018 = vst.msk [vmem:[%s14 + $0xe0] sm:$0xff] %vm6989, %v6985
    %7019 = vst.msk [vmem:[%s14 + $0xe8] sm:$0xff] %vm6989, %v6986
    %7020 = vst.msk [vmem:[%s14 + $0xf0] sm:$0xff] %vm6989, %v6987
    %7021 = vst.msk [vmem:[%s14 + $0xf8] sm:$0xff] %vm6989, %v6988
    // Predicated region
    $region62: #{nerf_forward.1} parent=1 // pred_check
      _
    $region63: #{nerf_forward.1} parent=1 // pred_check_branch
      %7023 = sbr.rel (0) target = $region65
    $region64: #{nerf_forward.1} parent=1 // pred_region
      _
    $region65: #{nerf_forward.1} parent=1 // pred_fallthru
      _
    // Predicated region
    $region66: #{nerf_forward.1} parent=1 // pred_check
      _
    $region67: #{nerf_forward.1} parent=1 // pred_check_branch
      %7025 = sbr.rel (0) target = $region69
    $region68: #{nerf_forward.1} parent=1 // pred_region
      _
    $region69: #{nerf_forward.1} parent=1 // pred_fallthru
      _
    %7026 = vsyncpa [#allocation3], 1

</llo_original>
